<compile_context>
chip_gen: v7x
topology: tpu7x:2x2x1
jax: 0.10.0
libtpu: 0.0.40
codegen_flags: <defaults>
</compile_context>

<pallas_src>
import math
from functools import partial

import numpy as np
import jax
import jax.numpy as jnp
from jax import lax
from jax.experimental import pallas as pl
from jax.experimental.pallas import tpu as pltpu


_NEG_INF = -1e30   # off-head fill for the folded block-diagonal attention (exp -> 0)


# ----------------------------- Pallas kernel ------------------------------ #

def _wattn_kernel(x_ref, qkvw_ref, projw_ref, projb_ref, scale_ref, bias_ref,
                  o_ref, *scratch, num_heads, fold):
    """Processes Bt windows per grid step.

    x_ref    : (Bt, N, C)       input tokens, original dtype (cast in-kernel)
    qkvw_ref : (C, 3C)          qkv weight (in, out), resident, single-buffered
    projw_ref: (C, C)           proj weight (in, out), resident, single-buffered
    projb_ref: (1, C)           proj bias, f32
    scale_ref: (H,)             exp(clamp(logit_scale)), f32, SMEM (scalar reads)
    bias_ref : fold  -> (H*N, H*N) block-diag 16*sigmoid(bias) with -1e30 off-head
               !fold -> (H, N, N)  16*sigmoid(bias); read one head at a time
    o_ref    : (Bt, N, C)       output
    scratch  : fold  -> qf, kf, vf (Bt, H*N, hd) + acc (Bt*N, C), compute dtype
               !fold -> acc (Bt*N, C), compute dtype
    """
    Bt, N, C = x_ref.shape
    H = num_heads
    hd = C // H
    if fold:
        qf_ref, kf_ref, vf_ref, acc_ref = scratch
    else:
        (acc_ref,) = scratch
    cdt = acc_ref.dtype                          # MXU compute dtype (bf16)

    # ---- qkv projection: one big MXU call with M = Bt*N rows (no bias). Inputs and
    # weights are cast on the VPU right before the dot (no wrapper-side HBM pass).
    # NOTE: the (Bt,N,C)->(Bt*N,C) reshape is free when N is a sublane multiple
    # (guaranteed on the folded path; for windows like (2,7,7)/N=98 it may copy).
    xf = x_ref[...].reshape(Bt * N, C).astype(cdt)
    qkv = jnp.dot(xf, qkvw_ref[...].astype(cdt),
                  preferred_element_type=jnp.float32)              # (Bt*N, 3C) f32

    def _norm(u):  # F.normalize(..., dim=-1) == u * rsqrt(max(||u||^2, 1e-24))
        return u * lax.rsqrt(jnp.maximum(jnp.sum(u * u, axis=-1, keepdims=True), 1e-24))

    if fold:
        # ---- fold heads into a single (H*N)-token block-diagonal attention ----
        for h in range(H):
            q = qkv[:, 0 * C + h * hd: 0 * C + (h + 1) * hd].reshape(Bt, N, hd)
            k = qkv[:, 1 * C + h * hd: 1 * C + (h + 1) * hd].reshape(Bt, N, hd)
            v = qkv[:, 2 * C + h * hd: 2 * C + (h + 1) * hd].reshape(Bt, N, hd)
            # normalize + fold per-head logit scale (scalar from SMEM) in f32,
            # store bf16 into the folded scratch (ends live ranges per head).
            qf_ref[:, h * N:(h + 1) * N, :] = (_norm(q) * scale_ref[h]).astype(cdt)
            kf_ref[:, h * N:(h + 1) * N, :] = _norm(k).astype(cdt)
            vf_ref[:, h * N:(h + 1) * N, :] = v.astype(cdt)

        # one full-width QK^T, softmax and PV (lane occupancy 100% instead of N/128)
        attn = jnp.einsum('bnd,bmd->bnm', qf_ref[...], kf_ref[...],
                          preferred_element_type=jnp.float32)      # (Bt, H*N, H*N) f32
        attn = attn + bias_ref[...]                                # bias + off-head mask
        attn = attn - jnp.max(attn, axis=-1, keepdims=True)
        p = jnp.exp(attn)
        # approx EUP reciprocal (free slot); not bit-exact vs an exact divide.
        p = p * pl.reciprocal(jnp.sum(p, axis=-1, keepdims=True), approx=True)
        out_f = jnp.einsum('bnm,bmd->bnd', p.astype(cdt), vf_ref[...],
                           preferred_element_type=jnp.float32)     # (Bt, H*N, hd) f32

        # un-fold head outputs into the merged (Bt*N, C) bf16 scratch accumulator
        for h in range(H):
            acc_ref[:, h * hd:(h + 1) * hd] = (
                out_f[:, h * N:(h + 1) * N, :].reshape(Bt * N, hd).astype(cdt))
    else:
        # ---- per-head path (large N): scratch accumulator instead of concat ----
        # TODO(synk): for num_heads >= 8 convert this static unroll to lax.fori_loop
        # over a qkv scratch ref to keep vreg live ranges flat per head.
        for h in range(H):
            q = qkv[:, 0 * C + h * hd: 0 * C + (h + 1) * hd].reshape(Bt, N, hd)
            k = qkv[:, 1 * C + h * hd: 1 * C + (h + 1) * hd].reshape(Bt, N, hd)
            v = qkv[:, 2 * C + h * hd: 2 * C + (h + 1) * hd].reshape(Bt, N, hd)
            qn = (_norm(q) * scale_ref[h]).astype(cdt)
            kn = _norm(k).astype(cdt)
            attn = jnp.einsum('bnd,bmd->bnm', qn, kn,
                              preferred_element_type=jnp.float32)  # (Bt, N, N) f32
            attn = attn + bias_ref[h]                              # per-head bias load
            attn = attn - jnp.max(attn, axis=-1, keepdims=True)
            p = jnp.exp(attn)
            p = p * pl.reciprocal(jnp.sum(p, axis=-1, keepdims=True), approx=True)
            ho = jnp.einsum('bnm,bmd->bnd', p.astype(cdt), v.astype(cdt),
                            preferred_element_type=jnp.float32)    # (Bt, N, hd) f32
            acc_ref[:, h * hd:(h + 1) * hd] = ho.reshape(Bt * N, hd).astype(cdt)

    # ---- output projection: one big MXU call reading bf16 straight from scratch ----
    out = jnp.dot(acc_ref[...], projw_ref[...].astype(cdt),
                  preferred_element_type=jnp.float32)              # (Bt*N, C) f32
    out = out + projb_ref[...]                                     # (1, C) broadcast
    o_ref[...] = out.reshape(Bt, N, C).astype(o_ref.dtype)


# ------------------------------- wrapper ----------------------------------- #

def _pick_windows_per_step(B_, N, C, itemsize=4):
    # Target ~512 KiB x/out blocks (HBM-roofline-efficient DMA tiles) and >= 256 rows
    # for the MXU M dimension; keep >= 2 grid steps and prefer an even step count so
    # both v7x TensorCores get work ("parallel" grid axis).
    rows_target = max(256, (512 * 1024) // max(1, C * itemsize))
    wps = max(1, min(B_, -(-rows_target // N)))
    while B_ % wps:
        wps -= 1
    if B_ // wps < 2 and B_ >= 2:
        wps = max(1, B_ // 2)
        while B_ % wps:
            wps -= 1
    steps = B_ // wps
    if steps >= 2 and steps % 2:
        for cand in range(wps, 0, -1):
            if B_ % cand == 0 and (B_ // cand) % 2 == 0:
                wps = cand
                break
    return wps


def window_attention_3d(x, qkv_w, proj_w, proj_b, logit_scale, rel_bias_raw, num_heads,
                        *, windows_per_step=None, compute_dtype=jnp.bfloat16,
                        out_dtype=None, vmem_limit_bytes=None):
    B_, N, C = x.shape
    H = num_heads
    hd = C // H
    # On v5e (lowest HBM BW) pass out_dtype=jnp.bfloat16 if the consumer allows it.
    out_dtype = x.dtype if out_dtype is None else out_dtype

    # ---- hoisted parameter-only work (identical for every window) ----
    scale = jnp.exp(jnp.minimum(logit_scale.astype(jnp.float32),
                                jnp.float32(math.log(1.0 / 0.01)))).reshape(H)  # (H,)
    bias16 = 16.0 * jax.nn.sigmoid(rel_bias_raw.astype(jnp.float32))            # (H, N, N)

    # Head folding: merge H heads into one block-diagonal attention with a 128..256-wide
    # token axis (full MXU/lane occupancy for the attention section at sub-128 N).
    fold = (N < 128) and (H * N <= 256) and (N % 8 == 0)
    if fold:
        eye = jnp.eye(H, dtype=jnp.float32)
        bias_arg = (eye[:, None, :, None] * bias16[:, :, None, :]
                    + (1.0 - eye)[:, None, :, None] * jnp.float32(_NEG_INF)
                    ).reshape(H * N, H * N)                                     # (HN, HN)
    else:
        bias_arg = bias16

    if windows_per_step is None:
        windows_per_step = _pick_windows_per_step(B_, N, C, jnp.dtype(x.dtype).itemsize)
    Bt = windows_per_step
    assert B_ % Bt == 0, "windows_per_step must divide num_windows*batch"

    if fold:
        scratch_shapes = [pltpu.VMEM((Bt, H * N, hd), compute_dtype),   # folded q
                          pltpu.VMEM((Bt, H * N, hd), compute_dtype),   # folded k
                          pltpu.VMEM((Bt, H * N, hd), compute_dtype),   # folded v
                          pltpu.VMEM((Bt * N, C), compute_dtype)]       # merged head outs
    else:
        scratch_shapes = [pltpu.VMEM((Bt * N, C), compute_dtype)]

    # ---- VMEM budget derived from the actual footprint.
    # v7x has 64 MiB total -> keep headroom; v5e/v6e (128 MiB) can go up to ~96 MiB
    # with a larger Bt. Computed need already covers double-buffered x/out blocks,
    # single-buffered resident weights/bias and scratch; margin covers f32 temporaries.
    if vmem_limit_bytes is None:
        def _nb(shape, dt):
            return int(np.prod(shape)) * jnp.dtype(dt).itemsize
        blk = _nb((Bt, N, C), x.dtype) + _nb((Bt, N, C), out_dtype)
        wts = (_nb((C, 3 * C), qkv_w.dtype) + _nb((C, C), proj_w.dtype)
               + _nb((1, C), jnp.float32) + _nb(bias_arg.shape, jnp.float32))
        if fold:
            scr = 3 * _nb((Bt, H * N, hd), compute_dtype) + _nb((Bt * N, C), compute_dtype)
        else:
            scr = _nb((Bt * N, C), compute_dtype)
        need = 2 * blk + wts + scr + (16 << 20)
        vmem_limit_bytes = int(min(max(2 * need, 32 << 20), 96 << 20))

    # Resident blocks never change index -> single buffer (saves VMEM for bigger Bt).
    resident = dict(pipeline_mode=pl.Buffered(1))
    if fold:
        bias_spec = pl.BlockSpec((H * N, H * N), lambda b: (0, 0), **resident)
    else:
        bias_spec = pl.BlockSpec((H, N, N), lambda b: (0, 0, 0), **resident)

    grid_spec = pltpu.PrefetchScalarGridSpec(
        num_scalar_prefetch=0,
        grid=(B_ // Bt,),
        in_specs=[
            pl.BlockSpec((Bt, N, C), lambda b: (b, 0, 0)),                 # x (Bt windows)
            pl.BlockSpec((C, 3 * C), lambda b: (0, 0), **resident),        # qkv weight
            pl.BlockSpec((C, C), lambda b: (0, 0), **resident),            # proj weight
            pl.BlockSpec((1, C), lambda b: (0, 0), **resident),            # proj bias
            pl.BlockSpec(memory_space=pltpu.MemorySpace.SMEM),             # logit scales
            bias_spec,                                                     # rel-pos bias
        ],
        out_specs=pl.BlockSpec((Bt, N, C), lambda b: (b, 0, 0)),
        scratch_shapes=scratch_shapes,
    )

    return pl.pallas_call(
        partial(_wattn_kernel, num_heads=num_heads, fold=fold),
        out_shape=jax.ShapeDtypeStruct((B_, N, C), out_dtype),
        grid_spec=grid_spec,
        compiler_params=pltpu.CompilerParams(
            dimension_semantics=("parallel",),
            vmem_limit_bytes=vmem_limit_bytes,
        ),
    )(x, qkv_w, proj_w, proj_b.reshape(1, C).astype(jnp.float32), scale, bias_arg)


# --------------------------- parameter / buffer setup ---------------------- #

def make_relative_position_index(window_size):
    Wd, Wh, Ww = window_size
    coords = np.stack(np.meshgrid(np.arange(Wd), np.arange(Wh), np.arange(Ww),
                                  indexing="ij"))                          # (3, Wd, Wh, Ww)
    coords_flat = coords.reshape(3, -1)                                    # (3, N)
    rel = coords_flat[:, :, None] - coords_flat[:, None, :]                # (3, N, N)
    rel = rel.transpose(1, 2, 0).astype(np.int64)                          # (N, N, 3)
    rel[..., 0] += Wd - 1
    rel[..., 1] += Wh - 1
    rel[..., 2] += Ww - 1
    rel[..., 0] *= (2 * Wh - 1) * (2 * Ww - 1)
    rel[..., 1] *= 2 * Ww - 1
    return rel.sum(-1)                                                     # (N, N)


def make_relative_coords_table(window_size, pretrained_window_size=(0, 0, 0)):
    Wd, Wh, Ww = window_size
    rd = np.arange(-(Wd - 1), Wd, dtype=np.float32)
    rh = np.arange(-(Wh - 1), Wh, dtype=np.float32)
    rw = np.arange(-(Ww - 1), Ww, dtype=np.float32)
    table = np.stack(np.meshgrid(rd, rh, rw, indexing="ij"), axis=-1)      # (2Wd-1,2Wh-1,2Ww-1,3)
    if pretrained_window_size[0] > 0:
        divs = [pretrained_window_size[i] - 1 for i in range(3)]
    else:
        divs = [window_size[i] - 1 for i in range(3)]
    for i in range(3):
        table[..., i] /= float(divs[i])
    table *= 8.0
    table = np.sign(table) * np.log2(np.abs(table) + 1.0) / np.log2(8.0)
    return table.astype(np.float32)


def init_params(key, dim, window_size, num_heads):
    ks = jax.random.split(key, 4)
    return {
        # linear weights stored as (in_features, out_features)
        "qkv_w": jax.random.normal(ks[0], (dim, 3 * dim), jnp.float32) * 0.02,
        "proj_w": jax.random.normal(ks[1], (dim, dim), jnp.float32) * 0.02,
        "proj_b": jnp.zeros((1, dim), jnp.float32),
        # maps to the module's (num_heads, 1, 1) logit_scale parameter
        "logit_scale": jnp.log(10.0 * jnp.ones((1, num_heads), jnp.float32)),
        "cpb_w1": jax.random.normal(ks[2], (3, 512), jnp.float32) * 0.02,
        "cpb_b1": jnp.zeros((512,), jnp.float32),
        "cpb_w2": jax.random.normal(ks[3], (512, num_heads), jnp.float32) * 0.02,
    }


def compute_raw_rel_bias(params, window_size, num_heads):
    """cpb_mlp(relative_coords_table) gathered by relative_position_index.

    Returns the RAW bias (num_heads, N, N); 16*sigmoid is applied (hoisted) in the
    wrapper. Parameter-only work -> plain JAX glue.
    """
    table = jnp.asarray(make_relative_coords_table(window_size)).reshape(-1, 3)
    h1 = jax.nn.relu(table @ params["cpb_w1"] + params["cpb_b1"])          # (T, 512)
    bias_table = h1 @ params["cpb_w2"]                                     # (T, num_heads)
    rel_index = jnp.asarray(make_relative_position_index(window_size))     # (N, N)
    N = rel_index.shape[0]
    bias = bias_table[rel_index.reshape(-1)].reshape(N, N, num_heads)
    return jnp.transpose(bias, (2, 0, 1)).astype(jnp.float32)              # (num_heads, N, N)


# ----------------------------- pure-JAX reference -------------------------- #

def reference_forward(x, params, scale, bias16, num_heads, compute_dtype):
    """Mirrors the module forward (mask=None) with the same MXU compute dtype so the
    comparison against the kernel stays tight."""
    B_, N, C = x.shape
    hd = C // num_heads
    xc = x.astype(compute_dtype)
    qkv = jnp.dot(xc, params["qkv_w"].astype(compute_dtype),
                  preferred_element_type=jnp.float32)                      # (B_, N, 3C) f32
    qkv = qkv.reshape(B_, N, 3, num_heads, hd).transpose(2, 0, 3, 1, 4)
    q, k, v = qkv[0], qkv[1], qkv[2]                                       # (B_, H, N, hd) f32
    qn = q * lax.rsqrt(jnp.maximum(jnp.sum(q * q, axis=-1, keepdims=True), 1e-24))
    kn = k * lax.rsqrt(jnp.maximum(jnp.sum(k * k, axis=-1, keepdims=True), 1e-24))
    qn = qn * scale.reshape(1, num_heads, 1, 1)                            # fold scale, as in kernel
    attn = jnp.einsum('bhnd,bhmd->bhnm', qn.astype(compute_dtype), kn.astype(compute_dtype),
                      preferred_element_type=jnp.float32)
    attn = attn + bias16[None]
    attn = jax.nn.softmax(attn, axis=-1)
    out = jnp.einsum('bhnm,bhmd->bhnd', attn.astype(compute_dtype), v.astype(compute_dtype),
                     preferred_element_type=jnp.float32)
    out = out.transpose(0, 2, 1, 3).reshape(B_, N, C)
    out = jnp.dot(out.astype(compute_dtype), params["proj_w"].astype(compute_dtype),
                  preferred_element_type=jnp.float32) + params["proj_b"]
    return out.astype(x.dtype)


# ---------------------------------- main ----------------------------------- #

if __name__ == "__main__":
    dim = 128                                # lane-dense minor dim (multiple of 128)
    num_heads = 4                            # head_dim = 32
    window_size = (2, 4, 4)                  # N = 2*4*4 = 32  -> folded path (H*N = 128)
    N = window_size[0] * window_size[1] * window_size[2]
    B_ = 16                                  # num_windows * batch -> 2 grid steps of 8 windows

    key = jax.random.PRNGKey(0)
    kx, kp = jax.random.split(key)
    x = jax.random.normal(kx, (B_, N, dim), jnp.float32)

    params = init_params(kp, dim, window_size, num_heads)
    rel_bias_raw = compute_raw_rel_bias(params, window_size, num_heads)

    out = window_attention_3d(x, params["qkv_w"], params["proj_w"], params["proj_b"],
                              params["logit_scale"], rel_bias_raw, num_heads,
                              compute_dtype=jnp.bfloat16)
    out = jax.block_until_ready(out)

    scale = jnp.exp(jnp.minimum(params["logit_scale"], jnp.float32(math.log(1.0 / 0.01))))
    bias16 = 16.0 * jax.nn.sigmoid(rel_bias_raw)
    ref = jax.block_until_ready(
        reference_forward(x, params, scale, bias16, num_heads, jnp.bfloat16))

    np.testing.assert_allclose(np.asarray(out), np.asarray(ref), rtol=1e-2, atol=1e-3)
    print("KERNEL_OK")
</pallas_src>

<mosaic_0001>
module attributes {stable_mosaic.version = 11 : i64} {
  func.func @_wattn_kernel(%arg0: i32, %arg1: memref<8x32x128xf32, #tpu.memory_space<vmem>>, %arg2: memref<128x384xf32, #tpu.memory_space<vmem>>, %arg3: memref<128x128xf32, #tpu.memory_space<vmem>>, %arg4: memref<1x128xf32, #tpu.memory_space<vmem>>, %arg5: memref<4xf32, #tpu.memory_space<smem>>, %arg6: memref<128x128xf32, #tpu.memory_space<vmem>>, %arg7: memref<8x32x128xf32, #tpu.memory_space<vmem>>, %arg8: memref<8x128x32xbf16, #tpu.memory_space<vmem>>, %arg9: memref<8x128x32xbf16, #tpu.memory_space<vmem>>, %arg10: memref<8x128x32xbf16, #tpu.memory_space<vmem>>, %arg11: memref<256x128xbf16, #tpu.memory_space<vmem>>) attributes {dimension_semantics = [#tpu.dimension_semantics<parallel>], iteration_bounds = array<i64: 2>, scalar_prefetch = 0 : i64, scratch_operands = 4 : i64, tpu.core_type = #tpu.core_type<tc>, window_params = [{transform_indices = @transform_0, window_bounds = array<i64: 8, 32, 128>}, {pipeline_mode = #tpu.pipeline_mode<synchronous>, transform_indices = @transform_1, window_bounds = array<i64: 128, 384>}, {pipeline_mode = #tpu.pipeline_mode<synchronous>, transform_indices = @transform_2, window_bounds = array<i64: 128, 128>}, {pipeline_mode = #tpu.pipeline_mode<synchronous>, transform_indices = @transform_3, window_bounds = array<i64: 1, 128>}, {transform_indices = @transform_4, window_bounds = array<i64: 4>}, {pipeline_mode = #tpu.pipeline_mode<synchronous>, transform_indices = @transform_5, window_bounds = array<i64: 128, 128>}, {transform_indices = @transform_6, window_bounds = array<i64: 8, 32, 128>}]} {
    %c0 = arith.constant 0 : index
    %c0_0 = arith.constant 0 : index
    %c0_1 = arith.constant 0 : index
    %0 = vector.load %arg1[%c0, %c0_0, %c0_1] : memref<8x32x128xf32, #tpu.memory_space<vmem>>, vector<8x32x128xf32>
    %1 = vector.shape_cast %0 : vector<8x32x128xf32> to vector<256x128xf32>
    %2 = arith.truncf %1 : vector<256x128xf32> to vector<256x128xbf16>
    %c0_2 = arith.constant 0 : index
    %c0_3 = arith.constant 0 : index
    %3 = vector.load %arg2[%c0_2, %c0_3] : memref<128x384xf32, #tpu.memory_space<vmem>>, vector<128x384xf32>
    %4 = arith.truncf %3 : vector<128x384xf32> to vector<128x384xbf16>
    %cst = arith.constant dense<0.000000e+00> : vector<256x384xf32>
    %5 = tpu.matmul %2, %4, %cst {dimension_numbers = #tpu.dot_dimension_numbers<[1], [0], [0], [1], [0, 0, 1, 1], [], []>} : vector<256x128xbf16>, vector<128x384xbf16>, vector<256x384xf32> -> vector<256x384xf32>
    %6 = vector.extract_strided_slice %5 {offsets = [0, 0], sizes = [256, 32], strides = [1, 1]} : vector<256x384xf32> to vector<256x32xf32>
    %7 = vector.shape_cast %6 : vector<256x32xf32> to vector<8x32x32xf32>
    %8 = vector.extract_strided_slice %5 {offsets = [0, 128], sizes = [256, 32], strides = [1, 1]} : vector<256x384xf32> to vector<256x32xf32>
    %9 = vector.shape_cast %8 : vector<256x32xf32> to vector<8x32x32xf32>
    %10 = vector.extract_strided_slice %5 {offsets = [0, 256], sizes = [256, 32], strides = [1, 1]} : vector<256x384xf32> to vector<256x32xf32>
    %11 = vector.shape_cast %10 : vector<256x32xf32> to vector<8x32x32xf32>
    %12 = arith.mulf %7, %7 : vector<8x32x32xf32>
    %cst_4 = arith.constant dense<0.000000e+00> : vector<8x32xf32>
    %13 = vector.multi_reduction <add>, %12, %cst_4 [2] : vector<8x32x32xf32> to vector<8x32xf32>
    %14 = vector.shape_cast %13 : vector<8x32xf32> to vector<8x32x1xf32>
    %cst_5 = arith.constant 1.000000e-24 : f32
    %15 = vector.broadcast %cst_5 : f32 to vector<8x32x1xf32>
    %16 = arith.maximumf %14, %15 : vector<8x32x1xf32>
    %17 = math.rsqrt %16 : vector<8x32x1xf32>
    %18 = vector.broadcast %17 : vector<8x32x1xf32> to vector<8x32x32xf32>
    %19 = arith.mulf %7, %18 : vector<8x32x32xf32>
    %c0_6 = arith.constant 0 : index
    %20 = memref.load %arg5[%c0_6] : memref<4xf32, #tpu.memory_space<smem>>
    %21 = vector.broadcast %20 : f32 to vector<8x32x32xf32>
    %22 = arith.mulf %19, %21 : vector<8x32x32xf32>
    %23 = arith.truncf %22 : vector<8x32x32xf32> to vector<8x32x32xbf16>
    %c0_7 = arith.constant 0 : index
    %c0_8 = arith.constant 0 : index
    %c0_9 = arith.constant 0 : index
    %24 = vector.load %arg8[%c0_7, %c0_8, %c0_9] : memref<8x128x32xbf16, #tpu.memory_space<vmem>>, vector<8x32x32xbf16>
    tpu.vector_store %arg8[%c0_7, %c0_8, %c0_9], %23 {strides = array<i32>} : memref<8x128x32xbf16, #tpu.memory_space<vmem>>, vector<8x32x32xbf16>,
    %25 = arith.mulf %9, %9 : vector<8x32x32xf32>
    %cst_10 = arith.constant dense<0.000000e+00> : vector<8x32xf32>
    %26 = vector.multi_reduction <add>, %25, %cst_10 [2] : vector<8x32x32xf32> to vector<8x32xf32>
    %27 = vector.shape_cast %26 : vector<8x32xf32> to vector<8x32x1xf32>
    %cst_11 = arith.constant 1.000000e-24 : f32
    %28 = vector.broadcast %cst_11 : f32 to vector<8x32x1xf32>
    %29 = arith.maximumf %27, %28 : vector<8x32x1xf32>
    %30 = math.rsqrt %29 : vector<8x32x1xf32>
    %31 = vector.broadcast %30 : vector<8x32x1xf32> to vector<8x32x32xf32>
    %32 = arith.mulf %9, %31 : vector<8x32x32xf32>
    %33 = arith.truncf %32 : vector<8x32x32xf32> to vector<8x32x32xbf16>
    %c0_12 = arith.constant 0 : index
    %c0_13 = arith.constant 0 : index
    %c0_14 = arith.constant 0 : index
    %34 = vector.load %arg9[%c0_12, %c0_13, %c0_14] : memref<8x128x32xbf16, #tpu.memory_space<vmem>>, vector<8x32x32xbf16>
    tpu.vector_store %arg9[%c0_12, %c0_13, %c0_14], %33 {strides = array<i32>} : memref<8x128x32xbf16, #tpu.memory_space<vmem>>, vector<8x32x32xbf16>,
    %35 = arith.truncf %11 : vector<8x32x32xf32> to vector<8x32x32xbf16>
    %c0_15 = arith.constant 0 : index
    %c0_16 = arith.constant 0 : index
    %c0_17 = arith.constant 0 : index
    %36 = vector.load %arg10[%c0_15, %c0_16, %c0_17] : memref<8x128x32xbf16, #tpu.memory_space<vmem>>, vector<8x32x32xbf16>
    tpu.vector_store %arg10[%c0_15, %c0_16, %c0_17], %35 {strides = array<i32>} : memref<8x128x32xbf16, #tpu.memory_space<vmem>>, vector<8x32x32xbf16>,
    %37 = vector.extract_strided_slice %5 {offsets = [0, 32], sizes = [256, 32], strides = [1, 1]} : vector<256x384xf32> to vector<256x32xf32>
    %38 = vector.shape_cast %37 : vector<256x32xf32> to vector<8x32x32xf32>
    %39 = vector.extract_strided_slice %5 {offsets = [0, 160], sizes = [256, 32], strides = [1, 1]} : vector<256x384xf32> to vector<256x32xf32>
    %40 = vector.shape_cast %39 : vector<256x32xf32> to vector<8x32x32xf32>
    %41 = vector.extract_strided_slice %5 {offsets = [0, 288], sizes = [256, 32], strides = [1, 1]} : vector<256x384xf32> to vector<256x32xf32>
    %42 = vector.shape_cast %41 : vector<256x32xf32> to vector<8x32x32xf32>
    %43 = arith.mulf %38, %38 : vector<8x32x32xf32>
    %cst_18 = arith.constant dense<0.000000e+00> : vector<8x32xf32>
    %44 = vector.multi_reduction <add>, %43, %cst_18 [2] : vector<8x32x32xf32> to vector<8x32xf32>
    %45 = vector.shape_cast %44 : vector<8x32xf32> to vector<8x32x1xf32>
    %cst_19 = arith.constant 1.000000e-24 : f32
    %46 = vector.broadcast %cst_19 : f32 to vector<8x32x1xf32>
    %47 = arith.maximumf %45, %46 : vector<8x32x1xf32>
    %48 = math.rsqrt %47 : vector<8x32x1xf32>
    %49 = vector.broadcast %48 : vector<8x32x1xf32> to vector<8x32x32xf32>
    %50 = arith.mulf %38, %49 : vector<8x32x32xf32>
    %c1 = arith.constant 1 : index
    %51 = memref.load %arg5[%c1] : memref<4xf32, #tpu.memory_space<smem>>
    %52 = vector.broadcast %51 : f32 to vector<8x32x32xf32>
    %53 = arith.mulf %50, %52 : vector<8x32x32xf32>
    %54 = arith.truncf %53 : vector<8x32x32xf32> to vector<8x32x32xbf16>
    %c0_20 = arith.constant 0 : index
    %c32 = arith.constant 32 : index
    %c0_21 = arith.constant 0 : index
    %55 = vector.load %arg8[%c0_20, %c32, %c0_21] : memref<8x128x32xbf16, #tpu.memory_space<vmem>>, vector<8x32x32xbf16>
    tpu.vector_store %arg8[%c0_20, %c32, %c0_21], %54 {strides = array<i32>} : memref<8x128x32xbf16, #tpu.memory_space<vmem>>, vector<8x32x32xbf16>,
    %56 = arith.mulf %40, %40 : vector<8x32x32xf32>
    %cst_22 = arith.constant dense<0.000000e+00> : vector<8x32xf32>
    %57 = vector.multi_reduction <add>, %56, %cst_22 [2] : vector<8x32x32xf32> to vector<8x32xf32>
    %58 = vector.shape_cast %57 : vector<8x32xf32> to vector<8x32x1xf32>
    %cst_23 = arith.constant 1.000000e-24 : f32
    %59 = vector.broadcast %cst_23 : f32 to vector<8x32x1xf32>
    %60 = arith.maximumf %58, %59 : vector<8x32x1xf32>
    %61 = math.rsqrt %60 : vector<8x32x1xf32>
    %62 = vector.broadcast %61 : vector<8x32x1xf32> to vector<8x32x32xf32>
    %63 = arith.mulf %40, %62 : vector<8x32x32xf32>
    %64 = arith.truncf %63 : vector<8x32x32xf32> to vector<8x32x32xbf16>
    %c0_24 = arith.constant 0 : index
    %c32_25 = arith.constant 32 : index
    %c0_26 = arith.constant 0 : index
    %65 = vector.load %arg9[%c0_24, %c32_25, %c0_26] : memref<8x128x32xbf16, #tpu.memory_space<vmem>>, vector<8x32x32xbf16>
    tpu.vector_store %arg9[%c0_24, %c32_25, %c0_26], %64 {strides = array<i32>} : memref<8x128x32xbf16, #tpu.memory_space<vmem>>, vector<8x32x32xbf16>,
    %66 = arith.truncf %42 : vector<8x32x32xf32> to vector<8x32x32xbf16>
    %c0_27 = arith.constant 0 : index
    %c32_28 = arith.constant 32 : index
    %c0_29 = arith.constant 0 : index
    %67 = vector.load %arg10[%c0_27, %c32_28, %c0_29] : memref<8x128x32xbf16, #tpu.memory_space<vmem>>, vector<8x32x32xbf16>
    tpu.vector_store %arg10[%c0_27, %c32_28, %c0_29], %66 {strides = array<i32>} : memref<8x128x32xbf16, #tpu.memory_space<vmem>>, vector<8x32x32xbf16>,
    %68 = vector.extract_strided_slice %5 {offsets = [0, 64], sizes = [256, 32], strides = [1, 1]} : vector<256x384xf32> to vector<256x32xf32>
    %69 = vector.shape_cast %68 : vector<256x32xf32> to vector<8x32x32xf32>
    %70 = vector.extract_strided_slice %5 {offsets = [0, 192], sizes = [256, 32], strides = [1, 1]} : vector<256x384xf32> to vector<256x32xf32>
    %71 = vector.shape_cast %70 : vector<256x32xf32> to vector<8x32x32xf32>
    %72 = vector.extract_strided_slice %5 {offsets = [0, 320], sizes = [256, 32], strides = [1, 1]} : vector<256x384xf32> to vector<256x32xf32>
    %73 = vector.shape_cast %72 : vector<256x32xf32> to vector<8x32x32xf32>
    %74 = arith.mulf %69, %69 : vector<8x32x32xf32>
    %cst_30 = arith.constant dense<0.000000e+00> : vector<8x32xf32>
    %75 = vector.multi_reduction <add>, %74, %cst_30 [2] : vector<8x32x32xf32> to vector<8x32xf32>
    %76 = vector.shape_cast %75 : vector<8x32xf32> to vector<8x32x1xf32>
    %cst_31 = arith.constant 1.000000e-24 : f32
    %77 = vector.broadcast %cst_31 : f32 to vector<8x32x1xf32>
    %78 = arith.maximumf %76, %77 : vector<8x32x1xf32>
    %79 = math.rsqrt %78 : vector<8x32x1xf32>
    %80 = vector.broadcast %79 : vector<8x32x1xf32> to vector<8x32x32xf32>
    %81 = arith.mulf %69, %80 : vector<8x32x32xf32>
    %c2 = arith.constant 2 : index
    %82 = memref.load %arg5[%c2] : memref<4xf32, #tpu.memory_space<smem>>
    %83 = vector.broadcast %82 : f32 to vector<8x32x32xf32>
    %84 = arith.mulf %81, %83 : vector<8x32x32xf32>
    %85 = arith.truncf %84 : vector<8x32x32xf32> to vector<8x32x32xbf16>
    %c0_32 = arith.constant 0 : index
    %c64 = arith.constant 64 : index
    %c0_33 = arith.constant 0 : index
    %86 = vector.load %arg8[%c0_32, %c64, %c0_33] : memref<8x128x32xbf16, #tpu.memory_space<vmem>>, vector<8x32x32xbf16>
    tpu.vector_store %arg8[%c0_32, %c64, %c0_33], %85 {strides = array<i32>} : memref<8x128x32xbf16, #tpu.memory_space<vmem>>, vector<8x32x32xbf16>,
    %87 = arith.mulf %71, %71 : vector<8x32x32xf32>
    %cst_34 = arith.constant dense<0.000000e+00> : vector<8x32xf32>
    %88 = vector.multi_reduction <add>, %87, %cst_34 [2] : vector<8x32x32xf32> to vector<8x32xf32>
    %89 = vector.shape_cast %88 : vector<8x32xf32> to vector<8x32x1xf32>
    %cst_35 = arith.constant 1.000000e-24 : f32
    %90 = vector.broadcast %cst_35 : f32 to vector<8x32x1xf32>
    %91 = arith.maximumf %89, %90 : vector<8x32x1xf32>
    %92 = math.rsqrt %91 : vector<8x32x1xf32>
    %93 = vector.broadcast %92 : vector<8x32x1xf32> to vector<8x32x32xf32>
    %94 = arith.mulf %71, %93 : vector<8x32x32xf32>
    %95 = arith.truncf %94 : vector<8x32x32xf32> to vector<8x32x32xbf16>
    %c0_36 = arith.constant 0 : index
    %c64_37 = arith.constant 64 : index
    %c0_38 = arith.constant 0 : index
    %96 = vector.load %arg9[%c0_36, %c64_37, %c0_38] : memref<8x128x32xbf16, #tpu.memory_space<vmem>>, vector<8x32x32xbf16>
    tpu.vector_store %arg9[%c0_36, %c64_37, %c0_38], %95 {strides = array<i32>} : memref<8x128x32xbf16, #tpu.memory_space<vmem>>, vector<8x32x32xbf16>,
    %97 = arith.truncf %73 : vector<8x32x32xf32> to vector<8x32x32xbf16>
    %c0_39 = arith.constant 0 : index
    %c64_40 = arith.constant 64 : index
    %c0_41 = arith.constant 0 : index
    %98 = vector.load %arg10[%c0_39, %c64_40, %c0_41] : memref<8x128x32xbf16, #tpu.memory_space<vmem>>, vector<8x32x32xbf16>
    tpu.vector_store %arg10[%c0_39, %c64_40, %c0_41], %97 {strides = array<i32>} : memref<8x128x32xbf16, #tpu.memory_space<vmem>>, vector<8x32x32xbf16>,
    %99 = vector.extract_strided_slice %5 {offsets = [0, 96], sizes = [256, 32], strides = [1, 1]} : vector<256x384xf32> to vector<256x32xf32>
    %100 = vector.shape_cast %99 : vector<256x32xf32> to vector<8x32x32xf32>
    %101 = vector.extract_strided_slice %5 {offsets = [0, 224], sizes = [256, 32], strides = [1, 1]} : vector<256x384xf32> to vector<256x32xf32>
    %102 = vector.shape_cast %101 : vector<256x32xf32> to vector<8x32x32xf32>
    %103 = vector.extract_strided_slice %5 {offsets = [0, 352], sizes = [256, 32], strides = [1, 1]} : vector<256x384xf32> to vector<256x32xf32>
    %104 = vector.shape_cast %103 : vector<256x32xf32> to vector<8x32x32xf32>
    %105 = arith.mulf %100, %100 : vector<8x32x32xf32>
    %cst_42 = arith.constant dense<0.000000e+00> : vector<8x32xf32>
    %106 = vector.multi_reduction <add>, %105, %cst_42 [2] : vector<8x32x32xf32> to vector<8x32xf32>
    %107 = vector.shape_cast %106 : vector<8x32xf32> to vector<8x32x1xf32>
    %cst_43 = arith.constant 1.000000e-24 : f32
    %108 = vector.broadcast %cst_43 : f32 to vector<8x32x1xf32>
    %109 = arith.maximumf %107, %108 : vector<8x32x1xf32>
    %110 = math.rsqrt %109 : vector<8x32x1xf32>
    %111 = vector.broadcast %110 : vector<8x32x1xf32> to vector<8x32x32xf32>
    %112 = arith.mulf %100, %111 : vector<8x32x32xf32>
    %c3 = arith.constant 3 : index
    %113 = memref.load %arg5[%c3] : memref<4xf32, #tpu.memory_space<smem>>
    %114 = vector.broadcast %113 : f32 to vector<8x32x32xf32>
    %115 = arith.mulf %112, %114 : vector<8x32x32xf32>
    %116 = arith.truncf %115 : vector<8x32x32xf32> to vector<8x32x32xbf16>
    %c0_44 = arith.constant 0 : index
    %c96 = arith.constant 96 : index
    %c0_45 = arith.constant 0 : index
    %117 = vector.load %arg8[%c0_44, %c96, %c0_45] : memref<8x128x32xbf16, #tpu.memory_space<vmem>>, vector<8x32x32xbf16>
    tpu.vector_store %arg8[%c0_44, %c96, %c0_45], %116 {strides = array<i32>} : memref<8x128x32xbf16, #tpu.memory_space<vmem>>, vector<8x32x32xbf16>,
    %118 = arith.mulf %102, %102 : vector<8x32x32xf32>
    %cst_46 = arith.constant dense<0.000000e+00> : vector<8x32xf32>
    %119 = vector.multi_reduction <add>, %118, %cst_46 [2] : vector<8x32x32xf32> to vector<8x32xf32>
    %120 = vector.shape_cast %119 : vector<8x32xf32> to vector<8x32x1xf32>
    %cst_47 = arith.constant 1.000000e-24 : f32
    %121 = vector.broadcast %cst_47 : f32 to vector<8x32x1xf32>
    %122 = arith.maximumf %120, %121 : vector<8x32x1xf32>
    %123 = math.rsqrt %122 : vector<8x32x1xf32>
    %124 = vector.broadcast %123 : vector<8x32x1xf32> to vector<8x32x32xf32>
    %125 = arith.mulf %102, %124 : vector<8x32x32xf32>
    %126 = arith.truncf %125 : vector<8x32x32xf32> to vector<8x32x32xbf16>
    %c0_48 = arith.constant 0 : index
    %c96_49 = arith.constant 96 : index
    %c0_50 = arith.constant 0 : index
    %127 = vector.load %arg9[%c0_48, %c96_49, %c0_50] : memref<8x128x32xbf16, #tpu.memory_space<vmem>>, vector<8x32x32xbf16>
    tpu.vector_store %arg9[%c0_48, %c96_49, %c0_50], %126 {strides = array<i32>} : memref<8x128x32xbf16, #tpu.memory_space<vmem>>, vector<8x32x32xbf16>,
    %128 = arith.truncf %104 : vector<8x32x32xf32> to vector<8x32x32xbf16>
    %c0_51 = arith.constant 0 : index
    %c96_52 = arith.constant 96 : index
    %c0_53 = arith.constant 0 : index
    %129 = vector.load %arg10[%c0_51, %c96_52, %c0_53] : memref<8x128x32xbf16, #tpu.memory_space<vmem>>, vector<8x32x32xbf16>
    tpu.vector_store %arg10[%c0_51, %c96_52, %c0_53], %128 {strides = array<i32>} : memref<8x128x32xbf16, #tpu.memory_space<vmem>>, vector<8x32x32xbf16>,
    %c0_54 = arith.constant 0 : index
    %c0_55 = arith.constant 0 : index
    %c0_56 = arith.constant 0 : index
    %130 = vector.load %arg8[%c0_54, %c0_55, %c0_56] : memref<8x128x32xbf16, #tpu.memory_space<vmem>>, vector<8x128x32xbf16>
    %c0_57 = arith.constant 0 : index
    %c0_58 = arith.constant 0 : index
    %c0_59 = arith.constant 0 : index
    %131 = vector.load %arg9[%c0_57, %c0_58, %c0_59] : memref<8x128x32xbf16, #tpu.memory_space<vmem>>, vector<8x128x32xbf16>
    "tpu.trace_start"() <{level = 10 : i32, message = "bnd,bmd->bnm"}> : () -> ()
    %cst_60 = arith.constant dense<0.000000e+00> : vector<8x128x128xf32>
    %132 = tpu.matmul %130, %131, %cst_60 {dimension_numbers = #tpu.dot_dimension_numbers<[2], [2], [1], [1], [0, 0, 0, 1, 1, 1], [0], [0]>} : vector<8x128x32xbf16>, vector<8x128x32xbf16>, vector<8x128x128xf32> -> vector<8x128x128xf32>
    "tpu.trace_stop"() : () -> ()
    %c0_61 = arith.constant 0 : index
    %c0_62 = arith.constant 0 : index
    %133 = vector.load %arg6[%c0_61, %c0_62] : memref<128x128xf32, #tpu.memory_space<vmem>>, vector<128x128xf32>
    %134 = vector.shape_cast %133 : vector<128x128xf32> to vector<1x128x128xf32>
    %135 = vector.broadcast %134 : vector<1x128x128xf32> to vector<8x128x128xf32>
    %136 = arith.addf %132, %135 : vector<8x128x128xf32>
    %cst_63 = arith.constant dense<0xFF800000> : vector<8x128xf32>
    %137 = vector.multi_reduction <maximumf>, %136, %cst_63 [2] : vector<8x128x128xf32> to vector<8x128xf32>
    %138 = vector.shape_cast %137 : vector<8x128xf32> to vector<8x128x1xf32>
    %139 = vector.broadcast %138 : vector<8x128x1xf32> to vector<8x128x128xf32>
    %140 = arith.subf %136, %139 : vector<8x128x128xf32>
    %141 = math.exp %140 : vector<8x128x128xf32>
    %cst_64 = arith.constant dense<0.000000e+00> : vector<8x128xf32>
    %142 = vector.multi_reduction <add>, %141, %cst_64 [2] : vector<8x128x128xf32> to vector<8x128xf32>
    %143 = vector.shape_cast %142 : vector<8x128xf32> to vector<8x128x1xf32>
    %144 = tpu.reciprocal %143 {approx = true} : vector<8x128x1xf32> -> vector<8x128x1xf32>
    %145 = vector.broadcast %144 : vector<8x128x1xf32> to vector<8x128x128xf32>
    %146 = arith.mulf %141, %145 : vector<8x128x128xf32>
    %147 = arith.truncf %146 : vector<8x128x128xf32> to vector<8x128x128xbf16>
    %c0_65 = arith.constant 0 : index
    %c0_66 = arith.constant 0 : index
    %c0_67 = arith.constant 0 : index
    %148 = vector.load %arg10[%c0_65, %c0_66, %c0_67] : memref<8x128x32xbf16, #tpu.memory_space<vmem>>, vector<8x128x32xbf16>
    "tpu.trace_start"() <{level = 10 : i32, message = "bnm,bmd->bnd"}> : () -> ()
    %cst_68 = arith.constant dense<0.000000e+00> : vector<8x128x32xf32>
    %149 = tpu.matmul %147, %148, %cst_68 {dimension_numbers = #tpu.dot_dimension_numbers<[2], [1], [1], [2], [0, 0, 0, 1, 1, 2], [0], [0]>} : vector<8x128x128xbf16>, vector<8x128x32xbf16>, vector<8x128x32xf32> -> vector<8x128x32xf32>
    "tpu.trace_stop"() : () -> ()
    %150 = vector.extract_strided_slice %149 {offsets = [0, 0, 0], sizes = [8, 32, 32], strides = [1, 1, 1]} : vector<8x128x32xf32> to vector<8x32x32xf32>
    %151 = vector.shape_cast %150 : vector<8x32x32xf32> to vector<256x32xf32>
    %152 = arith.truncf %151 : vector<256x32xf32> to vector<256x32xbf16>
    %c0_69 = arith.constant 0 : index
    %c0_70 = arith.constant 0 : index
    %153 = vector.load %arg11[%c0_69, %c0_70] : memref<256x128xbf16, #tpu.memory_space<vmem>>, vector<256x32xbf16>
    tpu.vector_store %arg11[%c0_69, %c0_70], %152 {strides = array<i32>} : memref<256x128xbf16, #tpu.memory_space<vmem>>, vector<256x32xbf16>,
    %154 = vector.extract_strided_slice %149 {offsets = [0, 32, 0], sizes = [8, 32, 32], strides = [1, 1, 1]} : vector<8x128x32xf32> to vector<8x32x32xf32>
    %155 = vector.shape_cast %154 : vector<8x32x32xf32> to vector<256x32xf32>
    %156 = arith.truncf %155 : vector<256x32xf32> to vector<256x32xbf16>
    %c0_71 = arith.constant 0 : index
    %c32_72 = arith.constant 32 : index
    %157 = vector.load %arg11[%c0_71, %c32_72] : memref<256x128xbf16, #tpu.memory_space<vmem>>, vector<256x32xbf16>
    tpu.vector_store %arg11[%c0_71, %c32_72], %156 {strides = array<i32>} : memref<256x128xbf16, #tpu.memory_space<vmem>>, vector<256x32xbf16>,
    %158 = vector.extract_strided_slice %149 {offsets = [0, 64, 0], sizes = [8, 32, 32], strides = [1, 1, 1]} : vector<8x128x32xf32> to vector<8x32x32xf32>
    %159 = vector.shape_cast %158 : vector<8x32x32xf32> to vector<256x32xf32>
    %160 = arith.truncf %159 : vector<256x32xf32> to vector<256x32xbf16>
    %c0_73 = arith.constant 0 : index
    %c64_74 = arith.constant 64 : index
    %161 = vector.load %arg11[%c0_73, %c64_74] : memref<256x128xbf16, #tpu.memory_space<vmem>>, vector<256x32xbf16>
    tpu.vector_store %arg11[%c0_73, %c64_74], %160 {strides = array<i32>} : memref<256x128xbf16, #tpu.memory_space<vmem>>, vector<256x32xbf16>,
    %162 = vector.extract_strided_slice %149 {offsets = [0, 96, 0], sizes = [8, 32, 32], strides = [1, 1, 1]} : vector<8x128x32xf32> to vector<8x32x32xf32>
    %163 = vector.shape_cast %162 : vector<8x32x32xf32> to vector<256x32xf32>
    %164 = arith.truncf %163 : vector<256x32xf32> to vector<256x32xbf16>
    %c0_75 = arith.constant 0 : index
    %c96_76 = arith.constant 96 : index
    %165 = vector.load %arg11[%c0_75, %c96_76] : memref<256x128xbf16, #tpu.memory_space<vmem>>, vector<256x32xbf16>
    tpu.vector_store %arg11[%c0_75, %c96_76], %164 {strides = array<i32>} : memref<256x128xbf16, #tpu.memory_space<vmem>>, vector<256x32xbf16>,
    %c0_77 = arith.constant 0 : index
    %c0_78 = arith.constant 0 : index
    %166 = vector.load %arg11[%c0_77, %c0_78] : memref<256x128xbf16, #tpu.memory_space<vmem>>, vector<256x128xbf16>
    %c0_79 = arith.constant 0 : index
    %c0_80 = arith.constant 0 : index
    %167 = vector.load %arg3[%c0_79, %c0_80] : memref<128x128xf32, #tpu.memory_space<vmem>>, vector<128x128xf32>
    %168 = arith.truncf %167 : vector<128x128xf32> to vector<128x128xbf16>
    %cst_81 = arith.constant dense<0.000000e+00> : vector<256x128xf32>
    %169 = tpu.matmul %166, %168, %cst_81 {dimension_numbers = #tpu.dot_dimension_numbers<[1], [0], [0], [1], [0, 0, 1, 1], [], []>} : vector<256x128xbf16>, vector<128x128xbf16>, vector<256x128xf32> -> vector<256x128xf32>
    %c0_82 = arith.constant 0 : index
    %c0_83 = arith.constant 0 : index
    %170 = vector.load %arg4[%c0_82, %c0_83] : memref<1x128xf32, #tpu.memory_space<vmem>>, vector<1x128xf32>
    %171 = vector.broadcast %170 : vector<1x128xf32> to vector<256x128xf32>
    %172 = arith.addf %169, %171 : vector<256x128xf32>
    %173 = vector.shape_cast %172 : vector<256x128xf32> to vector<8x32x128xf32>
    %c0_84 = arith.constant 0 : index
    %c0_85 = arith.constant 0 : index
    %c0_86 = arith.constant 0 : index
    %174 = vector.load %arg7[%c0_84, %c0_85, %c0_86] : memref<8x32x128xf32, #tpu.memory_space<vmem>>, vector<8x32x128xf32>
    tpu.vector_store %arg7[%c0_84, %c0_85, %c0_86], %173 {strides = array<i32>} : memref<8x32x128xf32, #tpu.memory_space<vmem>>, vector<8x32x128xf32>,
    return
  }
  func.func @transform_0(%arg0: i32) -> (i32, i32, i32) {
    %c0_i32 = arith.constant 0 : i32
    %c0_i32_0 = arith.constant 0 : i32
    %c0_i32_1 = arith.constant 0 : i32
    return %arg0, %c0_i32, %c0_i32_0 : i32, i32, i32
  }
  func.func @transform_1(%arg0: i32) -> (i32, i32) {
    %c0_i32 = arith.constant 0 : i32
    %c0_i32_0 = arith.constant 0 : i32
    %c0_i32_1 = arith.constant 0 : i32
    return %c0_i32, %c0_i32_0 : i32, i32
  }
  func.func @transform_2(%arg0: i32) -> (i32, i32) {
    %c0_i32 = arith.constant 0 : i32
    %c0_i32_0 = arith.constant 0 : i32
    %c0_i32_1 = arith.constant 0 : i32
    return %c0_i32, %c0_i32_0 : i32, i32
  }
  func.func @transform_3(%arg0: i32) -> (i32, i32) {
    %c0_i32 = arith.constant 0 : i32
    %c0_i32_0 = arith.constant 0 : i32
    %c0_i32_1 = arith.constant 0 : i32
    return %c0_i32, %c0_i32_0 : i32, i32
  }
  func.func @transform_4(%arg0: i32) -> i32 {
    %c0_i32 = arith.constant 0 : i32
    %c0_i32_0 = arith.constant 0 : i32
    return %c0_i32 : i32
  }
  func.func @transform_5(%arg0: i32) -> (i32, i32) {
    %c0_i32 = arith.constant 0 : i32
    %c0_i32_0 = arith.constant 0 : i32
    %c0_i32_1 = arith.constant 0 : i32
    return %c0_i32, %c0_i32_0 : i32, i32
  }
  func.func @transform_6(%arg0: i32) -> (i32, i32, i32) {
    %c0_i32 = arith.constant 0 : i32
    %c0_i32_0 = arith.constant 0 : i32
    %c0_i32_1 = arith.constant 0 : i32
    return %arg0, %c0_i32, %c0_i32_0 : i32, i32, i32
  }
}

</mosaic_0001>

<llo_original>
// kernel: tpu_custom_call.1
$region0: #{tpu_custom_call.1}
  #allocation0 [shape = 'u32[]', space=smem, size = 0x4, offset = 0x4, fixed_abs, tag = 'smem constant byte address 0x4 - core index']
  #allocation1 [shape = 'u32[144,128]{1,0:T(1,128)}', space=vmem, size = 0x12000, scoped, tag = 'internal scratch']
  #allocation2 [shape = 'bf16[8,128,32]{2,1,0:T(16,128)(2,1)}', space=vmem, size = 0x40000, scoped, tag = 'scratch operand']
  #allocation3 [shape = 'bf16[8,128,32]{2,1,0:T(16,128)(2,1)}', space=vmem, size = 0x40000, scoped, tag = 'scratch operand']
  #allocation4 [shape = 'bf16[8,128,32]{2,1,0:T(16,128)(2,1)}', space=vmem, size = 0x40000, scoped, tag = 'scratch operand']
  #allocation5 [shape = 'bf16[256,128]{1,0:T(16,128)(2,1)}', space=vmem, size = 0x10000, scoped, tag = 'scratch operand']
  %s0 = inlined_call_operand.hbm [shape: f32[16,32,128], index: 0, kind: input, shape index: {}]
  %s1 = inlined_call_operand.hbm [shape: f32[128,384], index: 1, kind: input, shape index: {}]
  %s2 = inlined_call_operand.hbm [shape: f32[128,128], index: 2, kind: input, shape index: {}]
  %s3 = inlined_call_operand.vmem [shape: f32[1,128], index: 3, kind: input, shape index: {}]
  %s4 = inlined_call_operand.vmem [shape: f32[4], index: 4, kind: input, shape index: {}]
  %s5 = inlined_call_operand.hbm [shape: f32[128,128], index: 5, kind: input, shape index: {}]
  %s6 = inlined_call_operand.hbm [shape: f32[16,32,128], index: 6, kind: output, shape index: {}]
  %s7 = sld [smem:[#allocation0]]
  $region77: #{tpu_custom_call.1} parent=0
    _
  %s9 = ssub.s32 1, %s7
  %s10 = scalar_select 0, %s9, %s7
  $region1: #{tpu_custom_call.1} parent=0
    #allocation6 [shape = 'u8[262144]{0}', space=vmem, size = 0x40000, scoped, tag = 'input window, operand 0']
    #allocation7 [shape = 's32[2]{0}', space=sflag, size = 0x8, scoped, tag = 'scoped memory for tpu_custom_call.1']
    #allocation8 [shape = 's32[2]{0}', space=sflag, size = 0x8, scoped, tag = 'scoped memory for tpu_custom_call.1']
    #allocation9 [shape = 's32[2]{0}', space=sflag, size = 0x8, scoped, tag = 'scoped memory for tpu_custom_call.1']
    #allocation10 [shape = 'u8[196608]{0}', space=vmem, size = 0x30000, scoped, tag = 'input window, operand 1, single buffered']
    #allocation11 [shape = 's32[1]{0}', space=sflag, size = 0x4, scoped, tag = 'scoped memory for tpu_custom_call.1']
    #allocation12 [shape = 'u8[65536]{0}', space=vmem, size = 0x10000, scoped, tag = 'input window, operand 2, single buffered']
    #allocation13 [shape = 'u8[512]{0}', space=smem, size = 0x200, scoped, tag = 'input window, operand 4, single buffered']
    #allocation14 [shape = 'u8[65536]{0}', space=vmem, size = 0x10000, scoped, tag = 'input window, operand 5, single buffered']
    #allocation15 [shape = 's32[1]{0}', space=sflag, size = 0x4, scoped, tag = 'scoped memory for tpu_custom_call.1']
    #allocation16 [shape = 'u8[262144]{0}', space=vmem, size = 0x40000, scoped, tag = 'output window, operand 0']
    %11 = vsyncpa [#allocation7], 0
    %s12 = scalar_lea.sflag [#allocation7], 1
    %13 = vsyncpa %s12, 0
    %14 = vsyncpa [#allocation11], 0
    %15 = vsyncpa [#allocation9], 0
    %16 = vsyncpa [#allocation15], 0
    %17 = vsyncpa [#allocation8], 0
    %s18 = scalar_lea.sflag [#allocation8], 1
    %19 = vsyncpa %s18, 0
    loop: start=0, step=1, limit=4
    $region2: #{tpu_custom_call.1} parent=1 // loop_pre_header
      _
    $region3: #{tpu_custom_call.1} parent=1 // loop_header
      %s21 = sphi 0, %s25
      %p22 = scmp.ge.s32.totalorder %s21, 4
      %s31 = sphi 0, %s33
      %s34 = sphi 0, %s31
      %s35 = sphi 0, %s34
      %s51 = sphi 0, %s35
      %s55 = sphi 0, %s55
      %s57 = sphi 0, %s55
      %s58 = sphi 0, %s57
      %s72 = sphi 0, %s58
      %s76 = sphi 0, %s76
      %s78 = sphi 0, %s76
      %s79 = sphi 0, %s78
      %s93 = sphi 0, %s79
      %s97 = sphi 0, %s97
      %s99 = sphi 0, %s97
      %s100 = sphi 0, %s99
      %s114 = sphi 0, %s100
      %s118 = sphi 0, %s118
      %s120 = sphi 0, %s118
      %s121 = sphi 0, %s120
      %s135 = sphi 0, %s121
      %s139 = sphi 0, %s139
      %s141 = sphi 0, %s139
      %s142 = sphi 0, %s141
      %s156 = sphi 0, %s142
      %s162 = sphi 0, %s164
      %s165 = sphi 0, %s162
      %s166 = sphi 0, %s165
      %s182 = sphi 0, %s166
    $region4: #{tpu_custom_call.1} parent=1 // loop_header_branch
      %24 = sbr.rel (%p22) target = $region8
    $region5: #{tpu_custom_call.1} parent=1 // loop_body
      %s26 = ssub.s32 %s21, 1
      %s27 = ssub.s32 %s21, 2
      %s28 = sadd.s32 %s21, 1
      %s29 = ssub.s32 %s21, %s28
      %p30 = scmp.eq.s32.totalorder %s29, 0
      %s32 = sadd.s32 %s31, 1
      %s33 = scalar_select %p30, %s31, %s32
      %p36 = pneg %p30
      %p37 = scmp.eq.s32.totalorder %s21, 1
      %p38 = por %p36, %p37
      %p39 = scmp.ne.s32.totalorder %s31, %s34
      %p40 = scmp.eq.s32.totalorder %s21, 0
      %p41 = por %p39, %p40
      %p42 = scmp.ne.s32.totalorder %s31, %s34
      %p43 = scmp.eq.s32.totalorder %s26, 1
      %p44 = por %p42, %p43
      %p45 = scmp.ne.s32.totalorder %s34, %s35
      %p46 = scmp.eq.s32.totalorder %s26, 0
      %p47 = por %p45, %p46
      %p48 = scmp.ne.s32.totalorder %s34, %s35
      %p49 = scmp.eq.s32.totalorder %s27, 1
      %p50 = por %p48, %p49
      %p52 = scmp.ne.s32.totalorder %s35, %s51
      %p53 = scmp.eq.s32.totalorder %s27, 0
      %p54 = por %p52, %p53
      %s56 = sadd.s32 %s55, 1
      %p59 = scmp.eq.s32.totalorder %s21, 1
      %p60 = scmp.ne.s32.totalorder %s55, %s57
      %p61 = scmp.eq.s32.totalorder %s21, 0
      %p62 = por %p60, %p61
      %p63 = scmp.ne.s32.totalorder %s55, %s57
      %p64 = scmp.eq.s32.totalorder %s26, 1
      %p65 = por %p63, %p64
      %p66 = scmp.ne.s32.totalorder %s57, %s58
      %p67 = scmp.eq.s32.totalorder %s26, 0
      %p68 = por %p66, %p67
      %p69 = scmp.ne.s32.totalorder %s57, %s58
      %p70 = scmp.eq.s32.totalorder %s27, 1
      %p71 = por %p69, %p70
      %p73 = scmp.ne.s32.totalorder %s58, %s72
      %p74 = scmp.eq.s32.totalorder %s27, 0
      %p75 = por %p73, %p74
      %s77 = sadd.s32 %s76, 1
      %p80 = scmp.eq.s32.totalorder %s21, 1
      %p81 = scmp.ne.s32.totalorder %s76, %s78
      %p82 = scmp.eq.s32.totalorder %s21, 0
      %p83 = por %p81, %p82
      %p84 = scmp.ne.s32.totalorder %s76, %s78
      %p85 = scmp.eq.s32.totalorder %s26, 1
      %p86 = por %p84, %p85
      %p87 = scmp.ne.s32.totalorder %s78, %s79
      %p88 = scmp.eq.s32.totalorder %s26, 0
      %p89 = por %p87, %p88
      %p90 = scmp.ne.s32.totalorder %s78, %s79
      %p91 = scmp.eq.s32.totalorder %s27, 1
      %p92 = por %p90, %p91
      %p94 = scmp.ne.s32.totalorder %s79, %s93
      %p95 = scmp.eq.s32.totalorder %s27, 0
      %p96 = por %p94, %p95
      %s98 = sadd.s32 %s97, 1
      %p101 = scmp.eq.s32.totalorder %s21, 1
      %p102 = scmp.ne.s32.totalorder %s97, %s99
      %p103 = scmp.eq.s32.totalorder %s21, 0
      %p104 = por %p102, %p103
      %p105 = scmp.ne.s32.totalorder %s97, %s99
      %p106 = scmp.eq.s32.totalorder %s26, 1
      %p107 = por %p105, %p106
      %p108 = scmp.ne.s32.totalorder %s99, %s100
      %p109 = scmp.eq.s32.totalorder %s26, 0
      %p110 = por %p108, %p109
      %p111 = scmp.ne.s32.totalorder %s99, %s100
      %p112 = scmp.eq.s32.totalorder %s27, 1
      %p113 = por %p111, %p112
      %p115 = scmp.ne.s32.totalorder %s100, %s114
      %p116 = scmp.eq.s32.totalorder %s27, 0
      %p117 = por %p115, %p116
      %s119 = sadd.s32 %s118, 1
      %p122 = scmp.eq.s32.totalorder %s21, 1
      %p123 = scmp.ne.s32.totalorder %s118, %s120
      %p124 = scmp.eq.s32.totalorder %s21, 0
      %p125 = por %p123, %p124
      %p126 = scmp.ne.s32.totalorder %s118, %s120
      %p127 = scmp.eq.s32.totalorder %s26, 1
      %p128 = por %p126, %p127
      %p129 = scmp.ne.s32.totalorder %s120, %s121
      %p130 = scmp.eq.s32.totalorder %s26, 0
      %p131 = por %p129, %p130
      %p132 = scmp.ne.s32.totalorder %s120, %s121
      %p133 = scmp.eq.s32.totalorder %s27, 1
      %p134 = por %p132, %p133
      %p136 = scmp.ne.s32.totalorder %s121, %s135
      %p137 = scmp.eq.s32.totalorder %s27, 0
      %p138 = por %p136, %p137
      %s140 = sadd.s32 %s139, 1
      %p143 = scmp.eq.s32.totalorder %s21, 1
      %p144 = scmp.ne.s32.totalorder %s139, %s141
      %p145 = scmp.eq.s32.totalorder %s21, 0
      %p146 = por %p144, %p145
      %p147 = scmp.ne.s32.totalorder %s139, %s141
      %p148 = scmp.eq.s32.totalorder %s26, 1
      %p149 = por %p147, %p148
      %p150 = scmp.ne.s32.totalorder %s141, %s142
      %p151 = scmp.eq.s32.totalorder %s26, 0
      %p152 = por %p150, %p151
      %p153 = scmp.ne.s32.totalorder %s141, %s142
      %p154 = scmp.eq.s32.totalorder %s27, 1
      %p155 = por %p153, %p154
      %p157 = scmp.ne.s32.totalorder %s142, %s156
      %p158 = scmp.eq.s32.totalorder %s27, 0
      %p159 = por %p157, %p158
      %s160 = ssub.s32 %s21, %s28
      %p161 = scmp.eq.s32.totalorder %s160, 0
      %s163 = sadd.s32 %s162, 1
      %s164 = scalar_select %p161, %s162, %s163
      %p167 = pneg %p161
      %p168 = scmp.eq.s32.totalorder %s21, 1
      %p169 = por %p167, %p168
      %p170 = scmp.ne.s32.totalorder %s162, %s165
      %p171 = scmp.eq.s32.totalorder %s21, 0
      %p172 = por %p170, %p171
      %p173 = scmp.ne.s32.totalorder %s162, %s165
      %p174 = scmp.eq.s32.totalorder %s26, 1
      %p175 = por %p173, %p174
      %p176 = scmp.ne.s32.totalorder %s165, %s166
      %p177 = scmp.eq.s32.totalorder %s26, 0
      %p178 = por %p176, %p177
      %p179 = scmp.ne.s32.totalorder %s165, %s166
      %p180 = scmp.eq.s32.totalorder %s27, 1
      %p181 = por %p179, %p180
      %p183 = scmp.ne.s32.totalorder %s166, %s182
      %p184 = scmp.eq.s32.totalorder %s27, 0
      %p185 = por %p183, %p184
      %p186 = scmp.le.s32.totalorder 1, %s21
      %p187 = scmp.lt.s32.totalorder %s21, 3
      %p188 = pnand %p186, %p187
      %p189 = pneg %p188
      // Predicated region
      $region9: #{tpu_custom_call.1} parent=5 // pred_check
        _
      $region10: #{tpu_custom_call.1} parent=5 // pred_check_branch
        %191 = sbr.rel (%p188) target = $region12
      $region11: #{tpu_custom_call.1} parent=5 // pred_region
        %s192 = ssub.s32 %s21, 1
        // Predicated region
        $region13: #{tpu_custom_call.1} parent=11 // pred_check
          %p193 = pneg %p68
        $region14: #{tpu_custom_call.1} parent=11 // pred_check_branch
          %195 = sbr.rel (%p193) target = $region16
        $region15: #{tpu_custom_call.1} parent=11 // pred_region
          %s197 = ssub.s32 6144, 6144
          %198 = vsyncadd [#allocation11], %s197
          %s199 = sshll.u32 [#allocation10], 4
          %s200 = int_to_ptr.vmem [resolvable:$true] %s199
          %205 = dma.hbm_to_vmem [thread:$0]  %s1, 6144, %s200, [#allocation11], 384, 384, 24
        $region16: #{tpu_custom_call.1} parent=11 // pred_fallthru
          _
        // Predicated region
        $region17: #{tpu_custom_call.1} parent=11 // pred_check
          %p206 = pneg %p89
        $region18: #{tpu_custom_call.1} parent=11 // pred_check_branch
          %208 = sbr.rel (%p206) target = $region20
        $region19: #{tpu_custom_call.1} parent=11 // pred_region
          %s210 = ssub.s32 2048, 2048
          %211 = vsyncadd [#allocation11], %s210
          %s212 = sshll.u32 [#allocation12], 4
          %s213 = int_to_ptr.vmem [resolvable:$true] %s212
          %218 = dma.hbm_to_vmem [thread:$0]  %s2, 2048, %s213, [#allocation11], 128, 128, 8
        $region20: #{tpu_custom_call.1} parent=11 // pred_fallthru
          _
        // Predicated region
        $region21: #{tpu_custom_call.1} parent=11 // pred_check
          %p219 = pneg %p110
        $region22: #{tpu_custom_call.1} parent=11 // pred_check_branch
          %221 = sbr.rel (%p219) target = $region24
        $region23: #{tpu_custom_call.1} parent=11 // pred_region
          _
        $region24: #{tpu_custom_call.1} parent=11 // pred_fallthru
          _
        // Predicated region
        $region25: #{tpu_custom_call.1} parent=11 // pred_check
          %p222 = pneg %p131
        $region26: #{tpu_custom_call.1} parent=11 // pred_check_branch
          %224 = sbr.rel (%p222) target = $region28
        $region27: #{tpu_custom_call.1} parent=11 // pred_region
          %s226 = ssub.s32 16, 16
          %227 = vsyncadd [#allocation9], %s226
          %s229 = sshll.u32 %s4, 4
          %s230 = int_to_ptr.vmem [resolvable:$true] %s229
          %232 = dma.vmem_to_smem %s230, 16, [#allocation13], [#allocation9]
        $region28: #{tpu_custom_call.1} parent=11 // pred_fallthru
          _
        // Predicated region
        $region29: #{tpu_custom_call.1} parent=11 // pred_check
          %p233 = pneg %p152
        $region30: #{tpu_custom_call.1} parent=11 // pred_check_branch
          %235 = sbr.rel (%p233) target = $region32
        $region31: #{tpu_custom_call.1} parent=11 // pred_region
          %s237 = ssub.s32 2048, 2048
          %238 = vsyncadd [#allocation15], %s237
          %s239 = sshll.u32 [#allocation14], 4
          %s240 = int_to_ptr.vmem [resolvable:$true] %s239
          %245 = dma.hbm_to_vmem [thread:$0]  %s5, 2048, %s240, [#allocation15], 128, 128, 8
        $region32: #{tpu_custom_call.1} parent=11 // pred_fallthru
          _
      $region12: #{tpu_custom_call.1} parent=5 // pred_fallthru
        _
      %p246 = scmp.lt.s32.totalorder %s21, 2
      // Predicated region
      $region33: #{tpu_custom_call.1} parent=5 // pred_check
        %p247 = pneg %p246
      $region34: #{tpu_custom_call.1} parent=5 // pred_check_branch
        %249 = sbr.rel (%p247) target = $region36
      $region35: #{tpu_custom_call.1} parent=5 // pred_region
        // Predicated region
        $region37: #{tpu_custom_call.1} parent=35 // pred_check
          %p250 = pneg %p41
        $region38: #{tpu_custom_call.1} parent=35 // pred_check_branch
          %252 = sbr.rel (%p250) target = $region40
        $region39: #{tpu_custom_call.1} parent=35 // pred_region
          %s253 = sand.u32 %s31, 1
          %s254 = scalar_lea.sflag [#allocation7], %s253
          %s255 = sand.u32 %s31, 1
          %s256 = smul.addr %s255, 256
          %s257 = scalar_lea.vmem [#allocation6], %s256
          %s258 = smul.u32 8, %s21
          %s260 = ssub.s32 4096, 4096
          %261 = vsyncadd %s254, %s260
          %s262 = smul.addr %s258, 4
          %s263 = smul.addr %s262, 128
          %s264 = scalar_lea.hbm %s0, %s263
          %s265 = sshll.u32 %s257, 4
          %s266 = int_to_ptr.vmem [resolvable:$true] %s265
          %271 = dma.hbm_to_vmem [thread:$0]  %s264, 4096, %s266, %s254, 128, 128, 8
        $region40: #{tpu_custom_call.1} parent=35 // pred_fallthru
          _
      $region36: #{tpu_custom_call.1} parent=5 // pred_fallthru
        _
      %p272 = scmp.le.s32.totalorder 1, %s21
      %p273 = scmp.lt.s32.totalorder %s21, 3
      %p274 = pnand %p272, %p273
      %p275 = pneg %p274
      // Predicated region
      $region41: #{tpu_custom_call.1} parent=5 // pred_check
        _
      $region42: #{tpu_custom_call.1} parent=5 // pred_check_branch
        %277 = sbr.rel (%p274) target = $region44
      $region43: #{tpu_custom_call.1} parent=5 // pred_region
        %s278 = ssub.s32 %s21, 1
        %s279 = sand.u32 %s34, 1
        %s280 = scalar_lea.sflag [#allocation7], %s279
        %s281 = sand.u32 %s34, 1
        %s282 = smul.addr %s281, 256
        %s283 = scalar_lea.vmem [#allocation6], %s282
        // Predicated region
        $region45: #{tpu_custom_call.1} parent=43 // pred_check
          %p284 = pneg %p47
        $region46: #{tpu_custom_call.1} parent=43 // pred_check_branch
          %286 = sbr.rel (%p284) target = $region48
        $region47: #{tpu_custom_call.1} parent=43 // pred_region
          %287 = dma.done %s280, 4096
        $region48: #{tpu_custom_call.1} parent=43 // pred_fallthru
          _
        // Predicated region
        $region49: #{tpu_custom_call.1} parent=43 // pred_check
          %p288 = pneg %p68
        $region50: #{tpu_custom_call.1} parent=43 // pred_check_branch
          %290 = sbr.rel (%p288) target = $region52
        $region51: #{tpu_custom_call.1} parent=43 // pred_region
          %291 = dma.done [#allocation11], 6144
        $region52: #{tpu_custom_call.1} parent=43 // pred_fallthru
          _
        // Predicated region
        $region53: #{tpu_custom_call.1} parent=43 // pred_check
          %p292 = pneg %p89
        $region54: #{tpu_custom_call.1} parent=43 // pred_check_branch
          %294 = sbr.rel (%p292) target = $region56
        $region55: #{tpu_custom_call.1} parent=43 // pred_region
          %295 = dma.done [#allocation11], 2048
        $region56: #{tpu_custom_call.1} parent=43 // pred_fallthru
          _
        // Predicated region
        $region57: #{tpu_custom_call.1} parent=43 // pred_check
          %p296 = pneg %p131
        $region58: #{tpu_custom_call.1} parent=43 // pred_check_branch
          %298 = sbr.rel (%p296) target = $region60
        $region59: #{tpu_custom_call.1} parent=43 // pred_region
          %299 = dma.done [#allocation9], 16
        $region60: #{tpu_custom_call.1} parent=43 // pred_fallthru
          _
        // Predicated region
        $region61: #{tpu_custom_call.1} parent=43 // pred_check
          %p300 = pneg %p152
        $region62: #{tpu_custom_call.1} parent=43 // pred_check_branch
          %302 = sbr.rel (%p300) target = $region64
        $region63: #{tpu_custom_call.1} parent=43 // pred_region
          %303 = dma.done [#allocation15], 2048
        $region64: #{tpu_custom_call.1} parent=43 // pred_fallthru
          _
        %304 = sfence
        %s305 = sand.u32 %s34, 1
        %s306 = scalar_lea.sflag [#allocation7], %s305
        %s307 = sand.u32 %s34, 1
        %s308 = smul.addr %s307, 256
        %s309 = scalar_lea.vmem [#allocation6], %s308
        %p310 = pneg %p47
        %p311 = pneg %p44
        %p312 = pneg %p68
        %p313 = pneg %p65
        %p314 = pneg %p89
        %p315 = pneg %p86
        %p316 = pneg %p110
        %p317 = pneg %p107
        %p318 = pneg %p131
        %p319 = pneg %p128
        %p320 = pneg %p152
        %p321 = pneg %p149
        %p322 = pneg %p178
        %p323 = pneg %p175
        %s324 = sand.u32 %s165, 1
        %s325 = scalar_lea.sflag [#allocation8], %s324
        %s326 = sand.u32 %s165, 1
        %s327 = smul.addr %s326, 256
        %s328 = scalar_lea.vmem [#allocation16], %s327
        %s329 = smul.u32 8, %s26
        %s330 = smul.u32 8, %s26
        %v332 = vld [vmem:[%s283] sm:$0xff]
        %v333 = vld [vmem:[%s283 + $0x8] sm:$0xff]
        %v334 = vld [vmem:[%s283 + $0x10] sm:$0xff]
        %v335 = vld [vmem:[%s283 + $0x18] sm:$0xff]
        %v336 = vld [vmem:[%s283 + $0x20] sm:$0xff]
        %v337 = vld [vmem:[%s283 + $0x28] sm:$0xff]
        %v338 = vld [vmem:[%s283 + $0x30] sm:$0xff]
        %v339 = vld [vmem:[%s283 + $0x38] sm:$0xff]
        %v340 = vld [vmem:[%s283 + $0x40] sm:$0xff]
        %v341 = vld [vmem:[%s283 + $0x48] sm:$0xff]
        %v342 = vld [vmem:[%s283 + $0x50] sm:$0xff]
        %v343 = vld [vmem:[%s283 + $0x58] sm:$0xff]
        %v344 = vld [vmem:[%s283 + $0x60] sm:$0xff]
        %v345 = vld [vmem:[%s283 + $0x68] sm:$0xff]
        %v346 = vld [vmem:[%s283 + $0x70] sm:$0xff]
        %v347 = vld [vmem:[%s283 + $0x78] sm:$0xff]
        %v348 = vld [vmem:[%s283 + $0x80] sm:$0xff]
        %v349 = vld [vmem:[%s283 + $0x88] sm:$0xff]
        %v350 = vld [vmem:[%s283 + $0x90] sm:$0xff]
        %v351 = vld [vmem:[%s283 + $0x98] sm:$0xff]
        %v352 = vld [vmem:[%s283 + $0xa0] sm:$0xff]
        %v353 = vld [vmem:[%s283 + $0xa8] sm:$0xff]
        %v354 = vld [vmem:[%s283 + $0xb0] sm:$0xff]
        %v355 = vld [vmem:[%s283 + $0xb8] sm:$0xff]
        %v356 = vld [vmem:[%s283 + $0xc0] sm:$0xff]
        %v357 = vld [vmem:[%s283 + $0xc8] sm:$0xff]
        %v358 = vld [vmem:[%s283 + $0xd0] sm:$0xff]
        %v359 = vld [vmem:[%s283 + $0xd8] sm:$0xff]
        %v360 = vld [vmem:[%s283 + $0xe0] sm:$0xff]
        %v361 = vld [vmem:[%s283 + $0xe8] sm:$0xff]
        %v362 = vld [vmem:[%s283 + $0xf0] sm:$0xff]
        %v363 = vld [vmem:[%s283 + $0xf8] sm:$0xff]
        %v364 = vpack.c.bf16 %v333, %v332
        %v365 = vpack.c.bf16 %v335, %v334
        %v366 = vpack.c.bf16 %v337, %v336
        %v367 = vpack.c.bf16 %v339, %v338
        %v368 = vpack.c.bf16 %v341, %v340
        %v369 = vpack.c.bf16 %v343, %v342
        %v370 = vpack.c.bf16 %v345, %v344
        %v371 = vpack.c.bf16 %v347, %v346
        %v372 = vpack.c.bf16 %v349, %v348
        %v373 = vpack.c.bf16 %v351, %v350
        %v374 = vpack.c.bf16 %v353, %v352
        %v375 = vpack.c.bf16 %v355, %v354
        %v376 = vpack.c.bf16 %v357, %v356
        %v377 = vpack.c.bf16 %v359, %v358
        %v378 = vpack.c.bf16 %v361, %v360
        %v379 = vpack.c.bf16 %v363, %v362
        %v380 = vld [vmem:[#allocation10] sm:$0xff]
        %v381 = vld [vmem:[#allocation10 + $0x8] sm:$0xff]
        %v382 = vld [vmem:[#allocation10 + $0x10] sm:$0xff]
        %v383 = vld [vmem:[#allocation10 + $0x18] sm:$0xff]
        %v384 = vld [vmem:[#allocation10 + $0x20] sm:$0xff]
        %v385 = vld [vmem:[#allocation10 + $0x28] sm:$0xff]
        %v386 = vld [vmem:[#allocation10 + $0x30] sm:$0xff]
        %v387 = vld [vmem:[#allocation10 + $0x38] sm:$0xff]
        %v388 = vld [vmem:[#allocation10 + $0x40] sm:$0xff]
        %v389 = vld [vmem:[#allocation10 + $0x48] sm:$0xff]
        %v390 = vld [vmem:[#allocation10 + $0x50] sm:$0xff]
        %v391 = vld [vmem:[#allocation10 + $0x58] sm:$0xff]
        %v392 = vld [vmem:[#allocation10 + $0x60] sm:$0xff]
        %v393 = vld [vmem:[#allocation10 + $0x68] sm:$0xff]
        %v394 = vld [vmem:[#allocation10 + $0x70] sm:$0xff]
        %v395 = vld [vmem:[#allocation10 + $0x78] sm:$0xff]
        %v396 = vld [vmem:[#allocation10 + $0x80] sm:$0xff]
        %v397 = vld [vmem:[#allocation10 + $0x88] sm:$0xff]
        %v398 = vld [vmem:[#allocation10 + $0x90] sm:$0xff]
        %v399 = vld [vmem:[#allocation10 + $0x98] sm:$0xff]
        %v400 = vld [vmem:[#allocation10 + $0xa0] sm:$0xff]
        %v401 = vld [vmem:[#allocation10 + $0xa8] sm:$0xff]
        %v402 = vld [vmem:[#allocation10 + $0xb0] sm:$0xff]
        %v403 = vld [vmem:[#allocation10 + $0xb8] sm:$0xff]
        %v404 = vld [vmem:[#allocation10 + $0xc0] sm:$0xff]
        %v405 = vld [vmem:[#allocation10 + $0xc8] sm:$0xff]
        %v406 = vld [vmem:[#allocation10 + $0xd0] sm:$0xff]
        %v407 = vld [vmem:[#allocation10 + $0xd8] sm:$0xff]
        %v408 = vld [vmem:[#allocation10 + $0xe0] sm:$0xff]
        %v409 = vld [vmem:[#allocation10 + $0xe8] sm:$0xff]
        %v410 = vld [vmem:[#allocation10 + $0xf0] sm:$0xff]
        %v411 = vld [vmem:[#allocation10 + $0xf8] sm:$0xff]
        %v412 = vld [vmem:[#allocation10 + $0x100] sm:$0xff]
        %v413 = vld [vmem:[#allocation10 + $0x108] sm:$0xff]
        %v414 = vld [vmem:[#allocation10 + $0x110] sm:$0xff]
        %v415 = vld [vmem:[#allocation10 + $0x118] sm:$0xff]
        %v416 = vld [vmem:[#allocation10 + $0x120] sm:$0xff]
        %v417 = vld [vmem:[#allocation10 + $0x128] sm:$0xff]
        %v418 = vld [vmem:[#allocation10 + $0x130] sm:$0xff]
        %v419 = vld [vmem:[#allocation10 + $0x138] sm:$0xff]
        %v420 = vld [vmem:[#allocation10 + $0x140] sm:$0xff]
        %v421 = vld [vmem:[#allocation10 + $0x148] sm:$0xff]
        %v422 = vld [vmem:[#allocation10 + $0x150] sm:$0xff]
        %v423 = vld [vmem:[#allocation10 + $0x158] sm:$0xff]
        %v424 = vld [vmem:[#allocation10 + $0x160] sm:$0xff]
        %v425 = vld [vmem:[#allocation10 + $0x168] sm:$0xff]
        %v426 = vld [vmem:[#allocation10 + $0x170] sm:$0xff]
        %v427 = vld [vmem:[#allocation10 + $0x178] sm:$0xff]
        %v428 = vpack.c.bf16 %v383, %v380
        %v429 = vpack.c.bf16 %v384, %v381
        %v430 = vpack.c.bf16 %v385, %v382
        %v431 = vpack.c.bf16 %v389, %v386
        %v432 = vpack.c.bf16 %v390, %v387
        %v433 = vpack.c.bf16 %v391, %v388
        %v434 = vpack.c.bf16 %v395, %v392
        %v435 = vpack.c.bf16 %v396, %v393
        %v436 = vpack.c.bf16 %v397, %v394
        %v437 = vpack.c.bf16 %v401, %v398
        %v438 = vpack.c.bf16 %v402, %v399
        %v439 = vpack.c.bf16 %v403, %v400
        %v440 = vpack.c.bf16 %v407, %v404
        %v441 = vpack.c.bf16 %v408, %v405
        %v442 = vpack.c.bf16 %v409, %v406
        %v443 = vpack.c.bf16 %v413, %v410
        %v444 = vpack.c.bf16 %v414, %v411
        %v445 = vpack.c.bf16 %v415, %v412
        %v446 = vpack.c.bf16 %v419, %v416
        %v447 = vpack.c.bf16 %v420, %v417
        %v448 = vpack.c.bf16 %v421, %v418
        %v449 = vpack.c.bf16 %v425, %v422
        %v450 = vpack.c.bf16 %v426, %v423
        %v451 = vpack.c.bf16 %v427, %v424
        %452 = vmatprep.subr.bf16.mxu0 %v429
        %453 = vmatpush1.bf16.msra.mxu0 %v428
        %454 = vmatprep.subr.bf16.mxu0 %v432
        %455 = vmatpush1.bf16.msra.mxu0 %v431
        %456 = vmatprep.subr.bf16.mxu0 %v435
        %457 = vmatpush1.bf16.msra.mxu0 %v434
        %458 = vmatprep.subr.bf16.mxu0 %v438
        %459 = vmatpush1.bf16.msra.mxu0 %v437
        %460 = vmatprep.subr.bf16.mxu0 %v441
        %461 = vmatpush1.bf16.msra.mxu0 %v440
        %462 = vmatprep.subr.bf16.mxu0 %v444
        %463 = vmatpush1.bf16.msra.mxu0 %v443
        %464 = vmatprep.subr.bf16.mxu0 %v447
        %465 = vmatpush1.bf16.msra.mxu0 %v446
        %466 = vmatprep.subr.bf16.mxu0 %v450
        %467 = vmatpush1.bf16.msra.mxu0 %v449
        %468 = vmatprep.subr.bf16.mxu0 0
        %469 = vmatpush1.bf16.msra.mxu0 0
        %470 = vmatprep.subr.bf16.mxu0 0
        %471 = vmatpush1.bf16.msra.mxu0 0
        %472 = vmatprep.subr.bf16.mxu0 0
        %473 = vmatpush1.bf16.msra.mxu0 0
        %474 = vmatprep.subr.bf16.mxu0 0
        %475 = vmatpush1.bf16.msra.mxu0 0
        %476 = vmatprep.subr.bf16.mxu0 0
        %477 = vmatpush1.bf16.msra.mxu0 0
        %478 = vmatprep.subr.bf16.mxu0 0
        %479 = vmatpush1.bf16.msra.mxu0 0
        %480 = vmatprep.subr.bf16.mxu0 0
        %481 = vmatpush1.bf16.msra.mxu0 0
        %482 = vmatprep.subr.bf16.mxu0 0
        %483 = vmatpush1.bf16.msra.mxu0 0
        %484 = vmatprep.mubr.bf16.mxu0 0
        %485 = vmatmul.mubr.bf16.gmra.mrb[0].mxu0 %v364
        %v486 = vpop.f32.mrb[0].mxu0
        %v487 = vadd.f32 0.0, %v486
        %v488 = vpop.f32.mrb[0].mxu0
        %v489 = vadd.f32 0.0, %v488
        %v490 = vpop.f32.mrb[0].mxu0
        %v491 = vadd.f32 0.0, %v490
        %v492 = vpop.f32.mrb[0].mxu0
        %v493 = vadd.f32 0.0, %v492
        %494 = vmatprep.mubr.bf16.mxu0 0
        %495 = vmatmul.mubr.bf16.gmra.mrb[0].mxu0 %v365
        %v496 = vpop.f32.mrb[0].mxu0
        %v497 = vadd.f32 0.0, %v496
        %v498 = vpop.f32.mrb[0].mxu0
        %v499 = vadd.f32 0.0, %v498
        %v500 = vpop.f32.mrb[0].mxu0
        %v501 = vadd.f32 0.0, %v500
        %v502 = vpop.f32.mrb[0].mxu0
        %v503 = vadd.f32 0.0, %v502
        %504 = vmatprep.mubr.bf16.mxu0 0
        %505 = vmatmul.mubr.bf16.gmra.mrb[0].mxu0 %v366
        %v506 = vpop.f32.mrb[0].mxu0
        %v507 = vadd.f32 0.0, %v506
        %v508 = vpop.f32.mrb[0].mxu0
        %v509 = vadd.f32 0.0, %v508
        %v510 = vpop.f32.mrb[0].mxu0
        %v511 = vadd.f32 0.0, %v510
        %v512 = vpop.f32.mrb[0].mxu0
        %v513 = vadd.f32 0.0, %v512
        %514 = vmatprep.mubr.bf16.mxu0 0
        %515 = vmatmul.mubr.bf16.gmra.mrb[0].mxu0 %v367
        %v516 = vpop.f32.mrb[0].mxu0
        %v517 = vadd.f32 0.0, %v516
        %v518 = vpop.f32.mrb[0].mxu0
        %v519 = vadd.f32 0.0, %v518
        %v520 = vpop.f32.mrb[0].mxu0
        %v521 = vadd.f32 0.0, %v520
        %v522 = vpop.f32.mrb[0].mxu0
        %v523 = vadd.f32 0.0, %v522
        %524 = vmatprep.mubr.bf16.mxu0 0
        %525 = vmatmul.mubr.bf16.gmra.mrb[0].mxu0 %v368
        %v526 = vpop.f32.mrb[0].mxu0
        %v527 = vadd.f32 0.0, %v526
        %v528 = vpop.f32.mrb[0].mxu0
        %v529 = vadd.f32 0.0, %v528
        %v530 = vpop.f32.mrb[0].mxu0
        %v531 = vadd.f32 0.0, %v530
        %v532 = vpop.f32.mrb[0].mxu0
        %v533 = vadd.f32 0.0, %v532
        %534 = vmatprep.mubr.bf16.mxu0 0
        %535 = vmatmul.mubr.bf16.gmra.mrb[0].mxu0 %v369
        %v536 = vpop.f32.mrb[0].mxu0
        %v537 = vadd.f32 0.0, %v536
        %v538 = vpop.f32.mrb[0].mxu0
        %v539 = vadd.f32 0.0, %v538
        %v540 = vpop.f32.mrb[0].mxu0
        %v541 = vadd.f32 0.0, %v540
        %v542 = vpop.f32.mrb[0].mxu0
        %v543 = vadd.f32 0.0, %v542
        %544 = vmatprep.mubr.bf16.mxu0 0
        %545 = vmatmul.mubr.bf16.gmra.mrb[0].mxu0 %v370
        %v546 = vpop.f32.mrb[0].mxu0
        %v547 = vadd.f32 0.0, %v546
        %v548 = vpop.f32.mrb[0].mxu0
        %v549 = vadd.f32 0.0, %v548
        %v550 = vpop.f32.mrb[0].mxu0
        %v551 = vadd.f32 0.0, %v550
        %v552 = vpop.f32.mrb[0].mxu0
        %v553 = vadd.f32 0.0, %v552
        %554 = vmatprep.mubr.bf16.mxu0 0
        %555 = vmatmul.mubr.bf16.gmra.mrb[0].mxu0 %v371
        %v556 = vpop.f32.mrb[0].mxu0
        %v557 = vadd.f32 0.0, %v556
        %v558 = vpop.f32.mrb[0].mxu0
        %v559 = vadd.f32 0.0, %v558
        %v560 = vpop.f32.mrb[0].mxu0
        %v561 = vadd.f32 0.0, %v560
        %v562 = vpop.f32.mrb[0].mxu0
        %v563 = vadd.f32 0.0, %v562
        %564 = vmatprep.mubr.bf16.mxu0 0
        %565 = vmatmul.mubr.bf16.gmra.mrb[0].mxu0 %v372
        %v566 = vpop.f32.mrb[0].mxu0
        %v567 = vadd.f32 0.0, %v566
        %v568 = vpop.f32.mrb[0].mxu0
        %v569 = vadd.f32 0.0, %v568
        %v570 = vpop.f32.mrb[0].mxu0
        %v571 = vadd.f32 0.0, %v570
        %v572 = vpop.f32.mrb[0].mxu0
        %v573 = vadd.f32 0.0, %v572
        %574 = vmatprep.mubr.bf16.mxu0 0
        %575 = vmatmul.mubr.bf16.gmra.mrb[0].mxu0 %v373
        %v576 = vpop.f32.mrb[0].mxu0
        %v577 = vadd.f32 0.0, %v576
        %v578 = vpop.f32.mrb[0].mxu0
        %v579 = vadd.f32 0.0, %v578
        %v580 = vpop.f32.mrb[0].mxu0
        %v581 = vadd.f32 0.0, %v580
        %v582 = vpop.f32.mrb[0].mxu0
        %v583 = vadd.f32 0.0, %v582
        %584 = vmatprep.mubr.bf16.mxu0 0
        %585 = vmatmul.mubr.bf16.gmra.mrb[0].mxu0 %v374
        %v586 = vpop.f32.mrb[0].mxu0
        %v587 = vadd.f32 0.0, %v586
        %v588 = vpop.f32.mrb[0].mxu0
        %v589 = vadd.f32 0.0, %v588
        %v590 = vpop.f32.mrb[0].mxu0
        %v591 = vadd.f32 0.0, %v590
        %v592 = vpop.f32.mrb[0].mxu0
        %v593 = vadd.f32 0.0, %v592
        %594 = vmatprep.mubr.bf16.mxu0 0
        %595 = vmatmul.mubr.bf16.gmra.mrb[0].mxu0 %v375
        %v596 = vpop.f32.mrb[0].mxu0
        %v597 = vadd.f32 0.0, %v596
        %v598 = vpop.f32.mrb[0].mxu0
        %v599 = vadd.f32 0.0, %v598
        %v600 = vpop.f32.mrb[0].mxu0
        %v601 = vadd.f32 0.0, %v600
        %v602 = vpop.f32.mrb[0].mxu0
        %v603 = vadd.f32 0.0, %v602
        %604 = vmatprep.mubr.bf16.mxu0 0
        %605 = vmatmul.mubr.bf16.gmra.mrb[0].mxu0 %v376
        %v606 = vpop.f32.mrb[0].mxu0
        %v607 = vadd.f32 0.0, %v606
        %v608 = vpop.f32.mrb[0].mxu0
        %v609 = vadd.f32 0.0, %v608
        %v610 = vpop.f32.mrb[0].mxu0
        %v611 = vadd.f32 0.0, %v610
        %v612 = vpop.f32.mrb[0].mxu0
        %v613 = vadd.f32 0.0, %v612
        %614 = vmatprep.mubr.bf16.mxu0 0
        %615 = vmatmul.mubr.bf16.gmra.mrb[0].mxu0 %v377
        %v616 = vpop.f32.mrb[0].mxu0
        %v617 = vadd.f32 0.0, %v616
        %v618 = vpop.f32.mrb[0].mxu0
        %v619 = vadd.f32 0.0, %v618
        %v620 = vpop.f32.mrb[0].mxu0
        %v621 = vadd.f32 0.0, %v620
        %v622 = vpop.f32.mrb[0].mxu0
        %v623 = vadd.f32 0.0, %v622
        %624 = vmatprep.mubr.bf16.mxu0 0
        %625 = vmatmul.mubr.bf16.gmra.mrb[0].mxu0 %v378
        %v626 = vpop.f32.mrb[0].mxu0
        %v627 = vadd.f32 0.0, %v626
        %v628 = vpop.f32.mrb[0].mxu0
        %v629 = vadd.f32 0.0, %v628
        %v630 = vpop.f32.mrb[0].mxu0
        %v631 = vadd.f32 0.0, %v630
        %v632 = vpop.f32.mrb[0].mxu0
        %v633 = vadd.f32 0.0, %v632
        %634 = vmatprep.mubr.bf16.mxu0 0
        %635 = vmatmul.mubr.bf16.gmra.mrb[0].mxu0 %v379
        %v636 = vpop.f32.mrb[0].mxu0
        %v637 = vadd.f32 0.0, %v636
        %v638 = vpop.f32.mrb[0].mxu0
        %v639 = vadd.f32 0.0, %v638
        %v640 = vpop.f32.mrb[0].mxu0
        %v641 = vadd.f32 0.0, %v640
        %v642 = vpop.f32.mrb[0].mxu0
        %v643 = vadd.f32 0.0, %v642
        %644 = vdwg.mxu0
        %645 = vmatprep.subr.bf16.mxu0 0
        %646 = vmatpush1.bf16.msra.mxu0 %v430
        %647 = vmatprep.subr.bf16.mxu0 0
        %648 = vmatpush1.bf16.msra.mxu0 %v433
        %649 = vmatprep.subr.bf16.mxu0 0
        %650 = vmatpush1.bf16.msra.mxu0 %v436
        %651 = vmatprep.subr.bf16.mxu0 0
        %652 = vmatpush1.bf16.msra.mxu0 %v439
        %653 = vmatprep.subr.bf16.mxu0 0
        %654 = vmatpush1.bf16.msra.mxu0 %v442
        %655 = vmatprep.subr.bf16.mxu0 0
        %656 = vmatpush1.bf16.msra.mxu0 %v445
        %657 = vmatprep.subr.bf16.mxu0 0
        %658 = vmatpush1.bf16.msra.mxu0 %v448
        %659 = vmatprep.subr.bf16.mxu0 0
        %660 = vmatpush1.bf16.msra.mxu0 %v451
        %661 = vmatprep.subr.bf16.mxu0 0
        %662 = vmatpush1.bf16.msra.mxu0 0
        %663 = vmatprep.subr.bf16.mxu0 0
        %664 = vmatpush1.bf16.msra.mxu0 0
        %665 = vmatprep.subr.bf16.mxu0 0
        %666 = vmatpush1.bf16.msra.mxu0 0
        %667 = vmatprep.subr.bf16.mxu0 0
        %668 = vmatpush1.bf16.msra.mxu0 0
        %669 = vmatprep.subr.bf16.mxu0 0
        %670 = vmatpush1.bf16.msra.mxu0 0
        %671 = vmatprep.subr.bf16.mxu0 0
        %672 = vmatpush1.bf16.msra.mxu0 0
        %673 = vmatprep.subr.bf16.mxu0 0
        %674 = vmatpush1.bf16.msra.mxu0 0
        %675 = vmatprep.subr.bf16.mxu0 0
        %676 = vmatpush1.bf16.msra.mxu0 0
        %677 = vmatprep.mubr.bf16.mxu0 0
        %678 = vmatmul.mubr.bf16.gmra.mrb[0].mxu0 %v364
        %v679 = vpop.f32.mrb[0].mxu0
        %v680 = vadd.f32 0.0, %v679
        %v681 = vpop.f32.mrb[0].mxu0
        %v682 = vpop.f32.mrb[0].mxu0
        %v683 = vadd.f32 0.0, %v682
        %v684 = vpop.f32.mrb[0].mxu0
        %685 = vmatprep.mubr.bf16.mxu0 0
        %686 = vmatmul.mubr.bf16.gmra.mrb[0].mxu0 %v365
        %v687 = vpop.f32.mrb[0].mxu0
        %v688 = vadd.f32 0.0, %v687
        %v689 = vpop.f32.mrb[0].mxu0
        %v690 = vpop.f32.mrb[0].mxu0
        %v691 = vadd.f32 0.0, %v690
        %v692 = vpop.f32.mrb[0].mxu0
        %693 = vmatprep.mubr.bf16.mxu0 0
        %694 = vmatmul.mubr.bf16.gmra.mrb[0].mxu0 %v366
        %v695 = vpop.f32.mrb[0].mxu0
        %v696 = vadd.f32 0.0, %v695
        %v697 = vpop.f32.mrb[0].mxu0
        %v698 = vpop.f32.mrb[0].mxu0
        %v699 = vadd.f32 0.0, %v698
        %v700 = vpop.f32.mrb[0].mxu0
        %701 = vmatprep.mubr.bf16.mxu0 0
        %702 = vmatmul.mubr.bf16.gmra.mrb[0].mxu0 %v367
        %v703 = vpop.f32.mrb[0].mxu0
        %v704 = vadd.f32 0.0, %v703
        %v705 = vpop.f32.mrb[0].mxu0
        %v706 = vpop.f32.mrb[0].mxu0
        %v707 = vadd.f32 0.0, %v706
        %v708 = vpop.f32.mrb[0].mxu0
        %709 = vmatprep.mubr.bf16.mxu0 0
        %710 = vmatmul.mubr.bf16.gmra.mrb[0].mxu0 %v368
        %v711 = vpop.f32.mrb[0].mxu0
        %v712 = vadd.f32 0.0, %v711
        %v713 = vpop.f32.mrb[0].mxu0
        %v714 = vpop.f32.mrb[0].mxu0
        %v715 = vadd.f32 0.0, %v714
        %v716 = vpop.f32.mrb[0].mxu0
        %717 = vmatprep.mubr.bf16.mxu0 0
        %718 = vmatmul.mubr.bf16.gmra.mrb[0].mxu0 %v369
        %v719 = vpop.f32.mrb[0].mxu0
        %v720 = vadd.f32 0.0, %v719
        %v721 = vpop.f32.mrb[0].mxu0
        %v722 = vpop.f32.mrb[0].mxu0
        %v723 = vadd.f32 0.0, %v722
        %v724 = vpop.f32.mrb[0].mxu0
        %725 = vmatprep.mubr.bf16.mxu0 0
        %726 = vmatmul.mubr.bf16.gmra.mrb[0].mxu0 %v370
        %v727 = vpop.f32.mrb[0].mxu0
        %v728 = vadd.f32 0.0, %v727
        %v729 = vpop.f32.mrb[0].mxu0
        %v730 = vpop.f32.mrb[0].mxu0
        %v731 = vadd.f32 0.0, %v730
        %v732 = vpop.f32.mrb[0].mxu0
        %733 = vmatprep.mubr.bf16.mxu0 0
        %734 = vmatmul.mubr.bf16.gmra.mrb[0].mxu0 %v371
        %v735 = vpop.f32.mrb[0].mxu0
        %v736 = vadd.f32 0.0, %v735
        %v737 = vpop.f32.mrb[0].mxu0
        %v738 = vpop.f32.mrb[0].mxu0
        %v739 = vadd.f32 0.0, %v738
        %v740 = vpop.f32.mrb[0].mxu0
        %741 = vmatprep.mubr.bf16.mxu0 0
        %742 = vmatmul.mubr.bf16.gmra.mrb[0].mxu0 %v372
        %v743 = vpop.f32.mrb[0].mxu0
        %v744 = vadd.f32 0.0, %v743
        %v745 = vpop.f32.mrb[0].mxu0
        %v746 = vpop.f32.mrb[0].mxu0
        %v747 = vadd.f32 0.0, %v746
        %v748 = vpop.f32.mrb[0].mxu0
        %749 = vmatprep.mubr.bf16.mxu0 0
        %750 = vmatmul.mubr.bf16.gmra.mrb[0].mxu0 %v373
        %v751 = vpop.f32.mrb[0].mxu0
        %v752 = vadd.f32 0.0, %v751
        %v753 = vpop.f32.mrb[0].mxu0
        %v754 = vpop.f32.mrb[0].mxu0
        %v755 = vadd.f32 0.0, %v754
        %v756 = vpop.f32.mrb[0].mxu0
        %757 = vmatprep.mubr.bf16.mxu0 0
        %758 = vmatmul.mubr.bf16.gmra.mrb[0].mxu0 %v374
        %v759 = vpop.f32.mrb[0].mxu0
        %v760 = vadd.f32 0.0, %v759
        %v761 = vpop.f32.mrb[0].mxu0
        %v762 = vpop.f32.mrb[0].mxu0
        %v763 = vadd.f32 0.0, %v762
        %v764 = vpop.f32.mrb[0].mxu0
        %765 = vmatprep.mubr.bf16.mxu0 0
        %766 = vmatmul.mubr.bf16.gmra.mrb[0].mxu0 %v375
        %v767 = vpop.f32.mrb[0].mxu0
        %v768 = vadd.f32 0.0, %v767
        %v769 = vpop.f32.mrb[0].mxu0
        %v770 = vpop.f32.mrb[0].mxu0
        %v771 = vadd.f32 0.0, %v770
        %v772 = vpop.f32.mrb[0].mxu0
        %773 = vmatprep.mubr.bf16.mxu0 0
        %774 = vmatmul.mubr.bf16.gmra.mrb[0].mxu0 %v376
        %v775 = vpop.f32.mrb[0].mxu0
        %v776 = vadd.f32 0.0, %v775
        %v777 = vpop.f32.mrb[0].mxu0
        %v778 = vpop.f32.mrb[0].mxu0
        %v779 = vadd.f32 0.0, %v778
        %v780 = vpop.f32.mrb[0].mxu0
        %781 = vmatprep.mubr.bf16.mxu0 0
        %782 = vmatmul.mubr.bf16.gmra.mrb[0].mxu0 %v377
        %v783 = vpop.f32.mrb[0].mxu0
        %v784 = vadd.f32 0.0, %v783
        %v785 = vpop.f32.mrb[0].mxu0
        %v786 = vpop.f32.mrb[0].mxu0
        %v787 = vadd.f32 0.0, %v786
        %v788 = vpop.f32.mrb[0].mxu0
        %789 = vmatprep.mubr.bf16.mxu0 0
        %790 = vmatmul.mubr.bf16.gmra.mrb[0].mxu0 %v378
        %v791 = vpop.f32.mrb[0].mxu0
        %v792 = vadd.f32 0.0, %v791
        %v793 = vpop.f32.mrb[0].mxu0
        %v794 = vpop.f32.mrb[0].mxu0
        %v795 = vadd.f32 0.0, %v794
        %v796 = vpop.f32.mrb[0].mxu0
        %797 = vmatprep.mubr.bf16.mxu0 0
        %798 = vmatmul.mubr.bf16.gmra.mrb[0].mxu0 %v379
        %v799 = vpop.f32.mrb[0].mxu0
        %v800 = vadd.f32 0.0, %v799
        %v801 = vpop.f32.mrb[0].mxu0
        %v802 = vpop.f32.mrb[0].mxu0
        %v803 = vadd.f32 0.0, %v802
        %v804 = vpop.f32.mrb[0].mxu0
        %805 = vdwg.mxu0
        %v806 = vmul.f32 %v487, %v487
        %v807 = vmul.f32 %v491, %v491
        %v808 = vmul.f32 %v497, %v497
        %v809 = vmul.f32 %v501, %v501
        %v810 = vmul.f32 %v507, %v507
        %v811 = vmul.f32 %v511, %v511
        %v812 = vmul.f32 %v517, %v517
        %v813 = vmul.f32 %v521, %v521
        %v814 = vmul.f32 %v527, %v527
        %v815 = vmul.f32 %v531, %v531
        %v816 = vmul.f32 %v537, %v537
        %v817 = vmul.f32 %v541, %v541
        %v818 = vmul.f32 %v547, %v547
        %v819 = vmul.f32 %v551, %v551
        %v820 = vmul.f32 %v557, %v557
        %v821 = vmul.f32 %v561, %v561
        %v822 = vmul.f32 %v567, %v567
        %v823 = vmul.f32 %v571, %v571
        %v824 = vmul.f32 %v577, %v577
        %v825 = vmul.f32 %v581, %v581
        %v826 = vmul.f32 %v587, %v587
        %v827 = vmul.f32 %v591, %v591
        %v828 = vmul.f32 %v597, %v597
        %v829 = vmul.f32 %v601, %v601
        %v830 = vmul.f32 %v607, %v607
        %v831 = vmul.f32 %v611, %v611
        %v832 = vmul.f32 %v617, %v617
        %v833 = vmul.f32 %v621, %v621
        %v834 = vmul.f32 %v627, %v627
        %v835 = vmul.f32 %v631, %v631
        %v836 = vmul.f32 %v637, %v637
        %v837 = vmul.f32 %v641, %v641
        %vm838 = vcmask 261120
        %v839 = vsel %vm838, %v806, 0.0
        %840 = vadd.xlane.f32.xlu0 %v839
        %v841 = vpop.xlane.xlu0 %840
        %v842 = vsel %vm838, %v807, 0.0
        %843 = vadd.xlane.f32.xlu0 %v842
        %v844 = vpop.xlane.xlu0 %843
        %v845 = vsel %vm838, %v808, 0.0
        %846 = vadd.xlane.f32.xlu0 %v845
        %v847 = vpop.xlane.xlu0 %846
        %v848 = vsel %vm838, %v809, 0.0
        %849 = vadd.xlane.f32.xlu0 %v848
        %v850 = vpop.xlane.xlu0 %849
        %v851 = vsel %vm838, %v810, 0.0
        %852 = vadd.xlane.f32.xlu0 %v851
        %v853 = vpop.xlane.xlu0 %852
        %v854 = vsel %vm838, %v811, 0.0
        %855 = vadd.xlane.f32.xlu0 %v854
        %v856 = vpop.xlane.xlu0 %855
        %v857 = vsel %vm838, %v812, 0.0
        %858 = vadd.xlane.f32.xlu0 %v857
        %v859 = vpop.xlane.xlu0 %858
        %v860 = vsel %vm838, %v813, 0.0
        %861 = vadd.xlane.f32.xlu0 %v860
        %v862 = vpop.xlane.xlu0 %861
        %v863 = vsel %vm838, %v814, 0.0
        %864 = vadd.xlane.f32.xlu0 %v863
        %v865 = vpop.xlane.xlu0 %864
        %v866 = vsel %vm838, %v815, 0.0
        %867 = vadd.xlane.f32.xlu0 %v866
        %v868 = vpop.xlane.xlu0 %867
        %v869 = vsel %vm838, %v816, 0.0
        %870 = vadd.xlane.f32.xlu0 %v869
        %v871 = vpop.xlane.xlu0 %870
        %v872 = vsel %vm838, %v817, 0.0
        %873 = vadd.xlane.f32.xlu0 %v872
        %v874 = vpop.xlane.xlu0 %873
        %v875 = vsel %vm838, %v818, 0.0
        %876 = vadd.xlane.f32.xlu0 %v875
        %v877 = vpop.xlane.xlu0 %876
        %v878 = vsel %vm838, %v819, 0.0
        %879 = vadd.xlane.f32.xlu0 %v878
        %v880 = vpop.xlane.xlu0 %879
        %v881 = vsel %vm838, %v820, 0.0
        %882 = vadd.xlane.f32.xlu0 %v881
        %v883 = vpop.xlane.xlu0 %882
        %v884 = vsel %vm838, %v821, 0.0
        %885 = vadd.xlane.f32.xlu0 %v884
        %v886 = vpop.xlane.xlu0 %885
        %v887 = vsel %vm838, %v822, 0.0
        %888 = vadd.xlane.f32.xlu0 %v887
        %v889 = vpop.xlane.xlu0 %888
        %v890 = vsel %vm838, %v823, 0.0
        %891 = vadd.xlane.f32.xlu0 %v890
        %v892 = vpop.xlane.xlu0 %891
        %v893 = vsel %vm838, %v824, 0.0
        %894 = vadd.xlane.f32.xlu0 %v893
        %v895 = vpop.xlane.xlu0 %894
        %v896 = vsel %vm838, %v825, 0.0
        %897 = vadd.xlane.f32.xlu0 %v896
        %v898 = vpop.xlane.xlu0 %897
        %v899 = vsel %vm838, %v826, 0.0
        %900 = vadd.xlane.f32.xlu0 %v899
        %v901 = vpop.xlane.xlu0 %900
        %v902 = vsel %vm838, %v827, 0.0
        %903 = vadd.xlane.f32.xlu0 %v902
        %v904 = vpop.xlane.xlu0 %903
        %v905 = vsel %vm838, %v828, 0.0
        %906 = vadd.xlane.f32.xlu0 %v905
        %v907 = vpop.xlane.xlu0 %906
        %v908 = vsel %vm838, %v829, 0.0
        %909 = vadd.xlane.f32.xlu0 %v908
        %v910 = vpop.xlane.xlu0 %909
        %v911 = vsel %vm838, %v830, 0.0
        %912 = vadd.xlane.f32.xlu0 %v911
        %v913 = vpop.xlane.xlu0 %912
        %v914 = vsel %vm838, %v831, 0.0
        %915 = vadd.xlane.f32.xlu0 %v914
        %v916 = vpop.xlane.xlu0 %915
        %v917 = vsel %vm838, %v832, 0.0
        %918 = vadd.xlane.f32.xlu0 %v917
        %v919 = vpop.xlane.xlu0 %918
        %v920 = vsel %vm838, %v833, 0.0
        %921 = vadd.xlane.f32.xlu0 %v920
        %v922 = vpop.xlane.xlu0 %921
        %v923 = vsel %vm838, %v834, 0.0
        %924 = vadd.xlane.f32.xlu0 %v923
        %v925 = vpop.xlane.xlu0 %924
        %v926 = vsel %vm838, %v835, 0.0
        %927 = vadd.xlane.f32.xlu0 %v926
        %v928 = vpop.xlane.xlu0 %927
        %v929 = vsel %vm838, %v836, 0.0
        %930 = vadd.xlane.f32.xlu0 %v929
        %v931 = vpop.xlane.xlu0 %930
        %v932 = vsel %vm838, %v837, 0.0
        %933 = vadd.xlane.f32.xlu0 %v932
        %v934 = vpop.xlane.xlu0 %933
        %v935 = vmax.f32 %v841, 1e-24
        %v936 = vmax.f32 %v844, 1e-24
        %v937 = vmax.f32 %v847, 1e-24
        %v938 = vmax.f32 %v850, 1e-24
        %v939 = vmax.f32 %v853, 1e-24
        %v940 = vmax.f32 %v856, 1e-24
        %v941 = vmax.f32 %v859, 1e-24
        %v942 = vmax.f32 %v862, 1e-24
        %v943 = vmax.f32 %v865, 1e-24
        %v944 = vmax.f32 %v868, 1e-24
        %v945 = vmax.f32 %v871, 1e-24
        %v946 = vmax.f32 %v874, 1e-24
        %v947 = vmax.f32 %v877, 1e-24
        %v948 = vmax.f32 %v880, 1e-24
        %v949 = vmax.f32 %v883, 1e-24
        %v950 = vmax.f32 %v886, 1e-24
        %v951 = vmax.f32 %v889, 1e-24
        %v952 = vmax.f32 %v892, 1e-24
        %v953 = vmax.f32 %v895, 1e-24
        %v954 = vmax.f32 %v898, 1e-24
        %v955 = vmax.f32 %v901, 1e-24
        %v956 = vmax.f32 %v904, 1e-24
        %v957 = vmax.f32 %v907, 1e-24
        %v958 = vmax.f32 %v910, 1e-24
        %v959 = vmax.f32 %v913, 1e-24
        %v960 = vmax.f32 %v916, 1e-24
        %v961 = vmax.f32 %v919, 1e-24
        %v962 = vmax.f32 %v922, 1e-24
        %v963 = vmax.f32 %v925, 1e-24
        %v964 = vmax.f32 %v928, 1e-24
        %v965 = vmax.f32 %v931, 1e-24
        %v966 = vmax.f32 %v934, 1e-24
        %v967 = vrsqrt.pop %v935
        %v968 = vrsqrt.pop %v936
        %v969 = vrsqrt.pop %v937
        %v970 = vrsqrt.pop %v938
        %v971 = vrsqrt.pop %v939
        %v972 = vrsqrt.pop %v940
        %v973 = vrsqrt.pop %v941
        %v974 = vrsqrt.pop %v942
        %v975 = vrsqrt.pop %v943
        %v976 = vrsqrt.pop %v944
        %v977 = vrsqrt.pop %v945
        %v978 = vrsqrt.pop %v946
        %v979 = vrsqrt.pop %v947
        %v980 = vrsqrt.pop %v948
        %v981 = vrsqrt.pop %v949
        %v982 = vrsqrt.pop %v950
        %v983 = vrsqrt.pop %v951
        %v984 = vrsqrt.pop %v952
        %v985 = vrsqrt.pop %v953
        %v986 = vrsqrt.pop %v954
        %v987 = vrsqrt.pop %v955
        %v988 = vrsqrt.pop %v956
        %v989 = vrsqrt.pop %v957
        %v990 = vrsqrt.pop %v958
        %v991 = vrsqrt.pop %v959
        %v992 = vrsqrt.pop %v960
        %v993 = vrsqrt.pop %v961
        %v994 = vrsqrt.pop %v962
        %v995 = vrsqrt.pop %v963
        %v996 = vrsqrt.pop %v964
        %v997 = vrsqrt.pop %v965
        %v998 = vrsqrt.pop %v966
        %v999 = vmul.f32 %v487, %v967
        %v1000 = vmul.f32 %v491, %v968
        %v1001 = vmul.f32 %v497, %v969
        %v1002 = vmul.f32 %v501, %v970
        %v1003 = vmul.f32 %v507, %v971
        %v1004 = vmul.f32 %v511, %v972
        %v1005 = vmul.f32 %v517, %v973
        %v1006 = vmul.f32 %v521, %v974
        %v1007 = vmul.f32 %v527, %v975
        %v1008 = vmul.f32 %v531, %v976
        %v1009 = vmul.f32 %v537, %v977
        %v1010 = vmul.f32 %v541, %v978
        %v1011 = vmul.f32 %v547, %v979
        %v1012 = vmul.f32 %v551, %v980
        %v1013 = vmul.f32 %v557, %v981
        %v1014 = vmul.f32 %v561, %v982
        %v1015 = vmul.f32 %v567, %v983
        %v1016 = vmul.f32 %v571, %v984
        %v1017 = vmul.f32 %v577, %v985
        %v1018 = vmul.f32 %v581, %v986
        %v1019 = vmul.f32 %v587, %v987
        %v1020 = vmul.f32 %v591, %v988
        %v1021 = vmul.f32 %v597, %v989
        %v1022 = vmul.f32 %v601, %v990
        %v1023 = vmul.f32 %v607, %v991
        %v1024 = vmul.f32 %v611, %v992
        %v1025 = vmul.f32 %v617, %v993
        %v1026 = vmul.f32 %v621, %v994
        %v1027 = vmul.f32 %v627, %v995
        %v1028 = vmul.f32 %v631, %v996
        %v1029 = vmul.f32 %v637, %v997
        %v1030 = vmul.f32 %v641, %v998
        %s1031 = sld [smem:[#allocation13]]
        %v1032 = vstv %s1031
        %v1033 = vmul.f32 %v999, %v1032
        %v1034 = vmul.f32 %v1000, %v1032
        %v1035 = vmul.f32 %v1001, %v1032
        %v1036 = vmul.f32 %v1002, %v1032
        %v1037 = vmul.f32 %v1003, %v1032
        %v1038 = vmul.f32 %v1004, %v1032
        %v1039 = vmul.f32 %v1005, %v1032
        %v1040 = vmul.f32 %v1006, %v1032
        %v1041 = vmul.f32 %v1007, %v1032
        %v1042 = vmul.f32 %v1008, %v1032
        %v1043 = vmul.f32 %v1009, %v1032
        %v1044 = vmul.f32 %v1010, %v1032
        %v1045 = vmul.f32 %v1011, %v1032
        %v1046 = vmul.f32 %v1012, %v1032
        %v1047 = vmul.f32 %v1013, %v1032
        %v1048 = vmul.f32 %v1014, %v1032
        %v1049 = vmul.f32 %v1015, %v1032
        %v1050 = vmul.f32 %v1016, %v1032
        %v1051 = vmul.f32 %v1017, %v1032
        %v1052 = vmul.f32 %v1018, %v1032
        %v1053 = vmul.f32 %v1019, %v1032
        %v1054 = vmul.f32 %v1020, %v1032
        %v1055 = vmul.f32 %v1021, %v1032
        %v1056 = vmul.f32 %v1022, %v1032
        %v1057 = vmul.f32 %v1023, %v1032
        %v1058 = vmul.f32 %v1024, %v1032
        %v1059 = vmul.f32 %v1025, %v1032
        %v1060 = vmul.f32 %v1026, %v1032
        %v1061 = vmul.f32 %v1027, %v1032
        %v1062 = vmul.f32 %v1028, %v1032
        %v1063 = vmul.f32 %v1029, %v1032
        %v1064 = vmul.f32 %v1030, %v1032
        %v1065 = vpack.c.bf16 %v1034, %v1033
        %v1066 = vpack.c.bf16 %v1036, %v1035
        %v1067 = vpack.c.bf16 %v1038, %v1037
        %v1068 = vpack.c.bf16 %v1040, %v1039
        %v1069 = vpack.c.bf16 %v1042, %v1041
        %v1070 = vpack.c.bf16 %v1044, %v1043
        %v1071 = vpack.c.bf16 %v1046, %v1045
        %v1072 = vpack.c.bf16 %v1048, %v1047
        %v1073 = vpack.c.bf16 %v1050, %v1049
        %v1074 = vpack.c.bf16 %v1052, %v1051
        %v1075 = vpack.c.bf16 %v1054, %v1053
        %v1076 = vpack.c.bf16 %v1056, %v1055
        %v1077 = vpack.c.bf16 %v1058, %v1057
        %v1078 = vpack.c.bf16 %v1060, %v1059
        %v1079 = vpack.c.bf16 %v1062, %v1061
        %v1080 = vpack.c.bf16 %v1064, %v1063
        %1081 = vst.msk [vmem:[#allocation2] sm:$0xff] %vm838, %v1065
        %1082 = vst.msk [vmem:[#allocation2 + $0x8] sm:$0xff] %vm838, %v1066
        %1083 = vst.msk [vmem:[#allocation2 + $0x40] sm:$0xff] %vm838, %v1067
        %1084 = vst.msk [vmem:[#allocation2 + $0x48] sm:$0xff] %vm838, %v1068
        %1085 = vst.msk [vmem:[#allocation2 + $0x80] sm:$0xff] %vm838, %v1069
        %1086 = vst.msk [vmem:[#allocation2 + $0x88] sm:$0xff] %vm838, %v1070
        %1087 = vst.msk [vmem:[#allocation2 + $0xc0] sm:$0xff] %vm838, %v1071
        %1088 = vst.msk [vmem:[#allocation2 + $0xc8] sm:$0xff] %vm838, %v1072
        %1089 = vst.msk [vmem:[#allocation2 + $0x100] sm:$0xff] %vm838, %v1073
        %1090 = vst.msk [vmem:[#allocation2 + $0x108] sm:$0xff] %vm838, %v1074
        %1091 = vst.msk [vmem:[#allocation2 + $0x140] sm:$0xff] %vm838, %v1075
        %1092 = vst.msk [vmem:[#allocation2 + $0x148] sm:$0xff] %vm838, %v1076
        %1093 = vst.msk [vmem:[#allocation2 + $0x180] sm:$0xff] %vm838, %v1077
        %1094 = vst.msk [vmem:[#allocation2 + $0x188] sm:$0xff] %vm838, %v1078
        %1095 = vst.msk [vmem:[#allocation2 + $0x1c0] sm:$0xff] %vm838, %v1079
        %1096 = vst.msk [vmem:[#allocation2 + $0x1c8] sm:$0xff] %vm838, %v1080
        %v1097 = vmul.f32 %v489, %v489
        %v1098 = vmul.f32 %v493, %v493
        %v1099 = vmul.f32 %v499, %v499
        %v1100 = vmul.f32 %v503, %v503
        %v1101 = vmul.f32 %v509, %v509
        %v1102 = vmul.f32 %v513, %v513
        %v1103 = vmul.f32 %v519, %v519
        %v1104 = vmul.f32 %v523, %v523
        %v1105 = vmul.f32 %v529, %v529
        %v1106 = vmul.f32 %v533, %v533
        %v1107 = vmul.f32 %v539, %v539
        %v1108 = vmul.f32 %v543, %v543
        %v1109 = vmul.f32 %v549, %v549
        %v1110 = vmul.f32 %v553, %v553
        %v1111 = vmul.f32 %v559, %v559
        %v1112 = vmul.f32 %v563, %v563
        %v1113 = vmul.f32 %v569, %v569
        %v1114 = vmul.f32 %v573, %v573
        %v1115 = vmul.f32 %v579, %v579
        %v1116 = vmul.f32 %v583, %v583
        %v1117 = vmul.f32 %v589, %v589
        %v1118 = vmul.f32 %v593, %v593
        %v1119 = vmul.f32 %v599, %v599
        %v1120 = vmul.f32 %v603, %v603
        %v1121 = vmul.f32 %v609, %v609
        %v1122 = vmul.f32 %v613, %v613
        %v1123 = vmul.f32 %v619, %v619
        %v1124 = vmul.f32 %v623, %v623
        %v1125 = vmul.f32 %v629, %v629
        %v1126 = vmul.f32 %v633, %v633
        %v1127 = vmul.f32 %v639, %v639
        %v1128 = vmul.f32 %v643, %v643
        %v1129 = vsel %vm838, %v1097, 0.0
        %1130 = vadd.xlane.f32.xlu0 %v1129
        %v1131 = vpop.xlane.xlu0 %1130
        %v1132 = vsel %vm838, %v1098, 0.0
        %1133 = vadd.xlane.f32.xlu0 %v1132
        %v1134 = vpop.xlane.xlu0 %1133
        %v1135 = vsel %vm838, %v1099, 0.0
        %1136 = vadd.xlane.f32.xlu0 %v1135
        %v1137 = vpop.xlane.xlu0 %1136
        %v1138 = vsel %vm838, %v1100, 0.0
        %1139 = vadd.xlane.f32.xlu0 %v1138
        %v1140 = vpop.xlane.xlu0 %1139
        %v1141 = vsel %vm838, %v1101, 0.0
        %1142 = vadd.xlane.f32.xlu0 %v1141
        %v1143 = vpop.xlane.xlu0 %1142
        %v1144 = vsel %vm838, %v1102, 0.0
        %1145 = vadd.xlane.f32.xlu0 %v1144
        %v1146 = vpop.xlane.xlu0 %1145
        %v1147 = vsel %vm838, %v1103, 0.0
        %1148 = vadd.xlane.f32.xlu0 %v1147
        %v1149 = vpop.xlane.xlu0 %1148
        %v1150 = vsel %vm838, %v1104, 0.0
        %1151 = vadd.xlane.f32.xlu0 %v1150
        %v1152 = vpop.xlane.xlu0 %1151
        %v1153 = vsel %vm838, %v1105, 0.0
        %1154 = vadd.xlane.f32.xlu0 %v1153
        %v1155 = vpop.xlane.xlu0 %1154
        %v1156 = vsel %vm838, %v1106, 0.0
        %1157 = vadd.xlane.f32.xlu0 %v1156
        %v1158 = vpop.xlane.xlu0 %1157
        %v1159 = vsel %vm838, %v1107, 0.0
        %1160 = vadd.xlane.f32.xlu0 %v1159
        %v1161 = vpop.xlane.xlu0 %1160
        %v1162 = vsel %vm838, %v1108, 0.0
        %1163 = vadd.xlane.f32.xlu0 %v1162
        %v1164 = vpop.xlane.xlu0 %1163
        %v1165 = vsel %vm838, %v1109, 0.0
        %1166 = vadd.xlane.f32.xlu0 %v1165
        %v1167 = vpop.xlane.xlu0 %1166
        %v1168 = vsel %vm838, %v1110, 0.0
        %1169 = vadd.xlane.f32.xlu0 %v1168
        %v1170 = vpop.xlane.xlu0 %1169
        %v1171 = vsel %vm838, %v1111, 0.0
        %1172 = vadd.xlane.f32.xlu0 %v1171
        %v1173 = vpop.xlane.xlu0 %1172
        %v1174 = vsel %vm838, %v1112, 0.0
        %1175 = vadd.xlane.f32.xlu0 %v1174
        %v1176 = vpop.xlane.xlu0 %1175
        %v1177 = vsel %vm838, %v1113, 0.0
        %1178 = vadd.xlane.f32.xlu0 %v1177
        %v1179 = vpop.xlane.xlu0 %1178
        %v1180 = vsel %vm838, %v1114, 0.0
        %1181 = vadd.xlane.f32.xlu0 %v1180
        %v1182 = vpop.xlane.xlu0 %1181
        %v1183 = vsel %vm838, %v1115, 0.0
        %1184 = vadd.xlane.f32.xlu0 %v1183
        %v1185 = vpop.xlane.xlu0 %1184
        %v1186 = vsel %vm838, %v1116, 0.0
        %1187 = vadd.xlane.f32.xlu0 %v1186
        %v1188 = vpop.xlane.xlu0 %1187
        %v1189 = vsel %vm838, %v1117, 0.0
        %1190 = vadd.xlane.f32.xlu0 %v1189
        %v1191 = vpop.xlane.xlu0 %1190
        %v1192 = vsel %vm838, %v1118, 0.0
        %1193 = vadd.xlane.f32.xlu0 %v1192
        %v1194 = vpop.xlane.xlu0 %1193
        %v1195 = vsel %vm838, %v1119, 0.0
        %1196 = vadd.xlane.f32.xlu0 %v1195
        %v1197 = vpop.xlane.xlu0 %1196
        %v1198 = vsel %vm838, %v1120, 0.0
        %1199 = vadd.xlane.f32.xlu0 %v1198
        %v1200 = vpop.xlane.xlu0 %1199
        %v1201 = vsel %vm838, %v1121, 0.0
        %1202 = vadd.xlane.f32.xlu0 %v1201
        %v1203 = vpop.xlane.xlu0 %1202
        %v1204 = vsel %vm838, %v1122, 0.0
        %1205 = vadd.xlane.f32.xlu0 %v1204
        %v1206 = vpop.xlane.xlu0 %1205
        %v1207 = vsel %vm838, %v1123, 0.0
        %1208 = vadd.xlane.f32.xlu0 %v1207
        %v1209 = vpop.xlane.xlu0 %1208
        %v1210 = vsel %vm838, %v1124, 0.0
        %1211 = vadd.xlane.f32.xlu0 %v1210
        %v1212 = vpop.xlane.xlu0 %1211
        %v1213 = vsel %vm838, %v1125, 0.0
        %1214 = vadd.xlane.f32.xlu0 %v1213
        %v1215 = vpop.xlane.xlu0 %1214
        %v1216 = vsel %vm838, %v1126, 0.0
        %1217 = vadd.xlane.f32.xlu0 %v1216
        %v1218 = vpop.xlane.xlu0 %1217
        %v1219 = vsel %vm838, %v1127, 0.0
        %1220 = vadd.xlane.f32.xlu0 %v1219
        %v1221 = vpop.xlane.xlu0 %1220
        %v1222 = vsel %vm838, %v1128, 0.0
        %1223 = vadd.xlane.f32.xlu0 %v1222
        %v1224 = vpop.xlane.xlu0 %1223
        %v1225 = vmax.f32 %v1131, 1e-24
        %v1226 = vmax.f32 %v1134, 1e-24
        %v1227 = vmax.f32 %v1137, 1e-24
        %v1228 = vmax.f32 %v1140, 1e-24
        %v1229 = vmax.f32 %v1143, 1e-24
        %v1230 = vmax.f32 %v1146, 1e-24
        %v1231 = vmax.f32 %v1149, 1e-24
        %v1232 = vmax.f32 %v1152, 1e-24
        %v1233 = vmax.f32 %v1155, 1e-24
        %v1234 = vmax.f32 %v1158, 1e-24
        %v1235 = vmax.f32 %v1161, 1e-24
        %v1236 = vmax.f32 %v1164, 1e-24
        %v1237 = vmax.f32 %v1167, 1e-24
        %v1238 = vmax.f32 %v1170, 1e-24
        %v1239 = vmax.f32 %v1173, 1e-24
        %v1240 = vmax.f32 %v1176, 1e-24
        %v1241 = vmax.f32 %v1179, 1e-24
        %v1242 = vmax.f32 %v1182, 1e-24
        %v1243 = vmax.f32 %v1185, 1e-24
        %v1244 = vmax.f32 %v1188, 1e-24
        %v1245 = vmax.f32 %v1191, 1e-24
        %v1246 = vmax.f32 %v1194, 1e-24
        %v1247 = vmax.f32 %v1197, 1e-24
        %v1248 = vmax.f32 %v1200, 1e-24
        %v1249 = vmax.f32 %v1203, 1e-24
        %v1250 = vmax.f32 %v1206, 1e-24
        %v1251 = vmax.f32 %v1209, 1e-24
        %v1252 = vmax.f32 %v1212, 1e-24
        %v1253 = vmax.f32 %v1215, 1e-24
        %v1254 = vmax.f32 %v1218, 1e-24
        %v1255 = vmax.f32 %v1221, 1e-24
        %v1256 = vmax.f32 %v1224, 1e-24
        %v1257 = vrsqrt.pop %v1225
        %v1258 = vrsqrt.pop %v1226
        %v1259 = vrsqrt.pop %v1227
        %v1260 = vrsqrt.pop %v1228
        %v1261 = vrsqrt.pop %v1229
        %v1262 = vrsqrt.pop %v1230
        %v1263 = vrsqrt.pop %v1231
        %v1264 = vrsqrt.pop %v1232
        %v1265 = vrsqrt.pop %v1233
        %v1266 = vrsqrt.pop %v1234
        %v1267 = vrsqrt.pop %v1235
        %v1268 = vrsqrt.pop %v1236
        %v1269 = vrsqrt.pop %v1237
        %v1270 = vrsqrt.pop %v1238
        %v1271 = vrsqrt.pop %v1239
        %v1272 = vrsqrt.pop %v1240
        %v1273 = vrsqrt.pop %v1241
        %v1274 = vrsqrt.pop %v1242
        %v1275 = vrsqrt.pop %v1243
        %v1276 = vrsqrt.pop %v1244
        %v1277 = vrsqrt.pop %v1245
        %v1278 = vrsqrt.pop %v1246
        %v1279 = vrsqrt.pop %v1247
        %v1280 = vrsqrt.pop %v1248
        %v1281 = vrsqrt.pop %v1249
        %v1282 = vrsqrt.pop %v1250
        %v1283 = vrsqrt.pop %v1251
        %v1284 = vrsqrt.pop %v1252
        %v1285 = vrsqrt.pop %v1253
        %v1286 = vrsqrt.pop %v1254
        %v1287 = vrsqrt.pop %v1255
        %v1288 = vrsqrt.pop %v1256
        %v1289 = vmul.f32 %v489, %v1257
        %v1290 = vmul.f32 %v493, %v1258
        %v1291 = vmul.f32 %v499, %v1259
        %v1292 = vmul.f32 %v503, %v1260
        %v1293 = vmul.f32 %v509, %v1261
        %v1294 = vmul.f32 %v513, %v1262
        %v1295 = vmul.f32 %v519, %v1263
        %v1296 = vmul.f32 %v523, %v1264
        %v1297 = vmul.f32 %v529, %v1265
        %v1298 = vmul.f32 %v533, %v1266
        %v1299 = vmul.f32 %v539, %v1267
        %v1300 = vmul.f32 %v543, %v1268
        %v1301 = vmul.f32 %v549, %v1269
        %v1302 = vmul.f32 %v553, %v1270
        %v1303 = vmul.f32 %v559, %v1271
        %v1304 = vmul.f32 %v563, %v1272
        %v1305 = vmul.f32 %v569, %v1273
        %v1306 = vmul.f32 %v573, %v1274
        %v1307 = vmul.f32 %v579, %v1275
        %v1308 = vmul.f32 %v583, %v1276
        %v1309 = vmul.f32 %v589, %v1277
        %v1310 = vmul.f32 %v593, %v1278
        %v1311 = vmul.f32 %v599, %v1279
        %v1312 = vmul.f32 %v603, %v1280
        %v1313 = vmul.f32 %v609, %v1281
        %v1314 = vmul.f32 %v613, %v1282
        %v1315 = vmul.f32 %v619, %v1283
        %v1316 = vmul.f32 %v623, %v1284
        %v1317 = vmul.f32 %v629, %v1285
        %v1318 = vmul.f32 %v633, %v1286
        %v1319 = vmul.f32 %v639, %v1287
        %v1320 = vmul.f32 %v643, %v1288
        %v1321 = vpack.c.bf16 %v1290, %v1289
        %v1322 = vpack.c.bf16 %v1292, %v1291
        %v1323 = vpack.c.bf16 %v1294, %v1293
        %v1324 = vpack.c.bf16 %v1296, %v1295
        %v1325 = vpack.c.bf16 %v1298, %v1297
        %v1326 = vpack.c.bf16 %v1300, %v1299
        %v1327 = vpack.c.bf16 %v1302, %v1301
        %v1328 = vpack.c.bf16 %v1304, %v1303
        %v1329 = vpack.c.bf16 %v1306, %v1305
        %v1330 = vpack.c.bf16 %v1308, %v1307
        %v1331 = vpack.c.bf16 %v1310, %v1309
        %v1332 = vpack.c.bf16 %v1312, %v1311
        %v1333 = vpack.c.bf16 %v1314, %v1313
        %v1334 = vpack.c.bf16 %v1316, %v1315
        %v1335 = vpack.c.bf16 %v1318, %v1317
        %v1336 = vpack.c.bf16 %v1320, %v1319
        %1337 = vst.msk [vmem:[#allocation3] sm:$0xff] %vm838, %v1321
        %1338 = vst.msk [vmem:[#allocation3 + $0x8] sm:$0xff] %vm838, %v1322
        %1339 = vst.msk [vmem:[#allocation3 + $0x40] sm:$0xff] %vm838, %v1323
        %1340 = vst.msk [vmem:[#allocation3 + $0x48] sm:$0xff] %vm838, %v1324
        %1341 = vst.msk [vmem:[#allocation3 + $0x80] sm:$0xff] %vm838, %v1325
        %1342 = vst.msk [vmem:[#allocation3 + $0x88] sm:$0xff] %vm838, %v1326
        %1343 = vst.msk [vmem:[#allocation3 + $0xc0] sm:$0xff] %vm838, %v1327
        %1344 = vst.msk [vmem:[#allocation3 + $0xc8] sm:$0xff] %vm838, %v1328
        %1345 = vst.msk [vmem:[#allocation3 + $0x100] sm:$0xff] %vm838, %v1329
        %1346 = vst.msk [vmem:[#allocation3 + $0x108] sm:$0xff] %vm838, %v1330
        %1347 = vst.msk [vmem:[#allocation3 + $0x140] sm:$0xff] %vm838, %v1331
        %1348 = vst.msk [vmem:[#allocation3 + $0x148] sm:$0xff] %vm838, %v1332
        %1349 = vst.msk [vmem:[#allocation3 + $0x180] sm:$0xff] %vm838, %v1333
        %1350 = vst.msk [vmem:[#allocation3 + $0x188] sm:$0xff] %vm838, %v1334
        %1351 = vst.msk [vmem:[#allocation3 + $0x1c0] sm:$0xff] %vm838, %v1335
        %1352 = vst.msk [vmem:[#allocation3 + $0x1c8] sm:$0xff] %vm838, %v1336
        %v1353 = vpack.c.bf16 %v683, %v680
        %v1354 = vpack.c.bf16 %v691, %v688
        %v1355 = vpack.c.bf16 %v699, %v696
        %v1356 = vpack.c.bf16 %v707, %v704
        %v1357 = vpack.c.bf16 %v715, %v712
        %v1358 = vpack.c.bf16 %v723, %v720
        %v1359 = vpack.c.bf16 %v731, %v728
        %v1360 = vpack.c.bf16 %v739, %v736
        %v1361 = vpack.c.bf16 %v747, %v744
        %v1362 = vpack.c.bf16 %v755, %v752
        %v1363 = vpack.c.bf16 %v763, %v760
        %v1364 = vpack.c.bf16 %v771, %v768
        %v1365 = vpack.c.bf16 %v779, %v776
        %v1366 = vpack.c.bf16 %v787, %v784
        %v1367 = vpack.c.bf16 %v795, %v792
        %v1368 = vpack.c.bf16 %v803, %v800
        %1369 = vst.msk [vmem:[#allocation4] sm:$0xff] %vm838, %v1353
        %1370 = vst.msk [vmem:[#allocation4 + $0x8] sm:$0xff] %vm838, %v1354
        %1371 = vst.msk [vmem:[#allocation4 + $0x40] sm:$0xff] %vm838, %v1355
        %1372 = vst.msk [vmem:[#allocation4 + $0x48] sm:$0xff] %vm838, %v1356
        %1373 = vst.msk [vmem:[#allocation4 + $0x80] sm:$0xff] %vm838, %v1357
        %1374 = vst.msk [vmem:[#allocation4 + $0x88] sm:$0xff] %vm838, %v1358
        %1375 = vst.msk [vmem:[#allocation4 + $0xc0] sm:$0xff] %vm838, %v1359
        %1376 = vst.msk [vmem:[#allocation4 + $0xc8] sm:$0xff] %vm838, %v1360
        %1377 = vst.msk [vmem:[#allocation4 + $0x100] sm:$0xff] %vm838, %v1361
        %1378 = vst.msk [vmem:[#allocation4 + $0x108] sm:$0xff] %vm838, %v1362
        %1379 = vst.msk [vmem:[#allocation4 + $0x140] sm:$0xff] %vm838, %v1363
        %1380 = vst.msk [vmem:[#allocation4 + $0x148] sm:$0xff] %vm838, %v1364
        %1381 = vst.msk [vmem:[#allocation4 + $0x180] sm:$0xff] %vm838, %v1365
        %1382 = vst.msk [vmem:[#allocation4 + $0x188] sm:$0xff] %vm838, %v1366
        %1383 = vst.msk [vmem:[#allocation4 + $0x1c0] sm:$0xff] %vm838, %v1367
        %1384 = vst.msk [vmem:[#allocation4 + $0x1c8] sm:$0xff] %vm838, %v1368
        %1417 = vrot.lane.b32.xlu0 %v806, 96
        %v1418 = vpop.permute.xlu0 %1417
        %1419 = vrot.lane.b32.xlu0 %v807, 96
        %v1420 = vpop.permute.xlu0 %1419
        %1421 = vrot.lane.b32.xlu0 %v808, 96
        %v1422 = vpop.permute.xlu0 %1421
        %1423 = vrot.lane.b32.xlu0 %v809, 96
        %v1424 = vpop.permute.xlu0 %1423
        %1425 = vrot.lane.b32.xlu0 %v810, 96
        %v1426 = vpop.permute.xlu0 %1425
        %1427 = vrot.lane.b32.xlu0 %v811, 96
        %v1428 = vpop.permute.xlu0 %1427
        %1429 = vrot.lane.b32.xlu0 %v812, 96
        %v1430 = vpop.permute.xlu0 %1429
        %1431 = vrot.lane.b32.xlu0 %v813, 96
        %v1432 = vpop.permute.xlu0 %1431
        %1433 = vrot.lane.b32.xlu0 %v814, 96
        %v1434 = vpop.permute.xlu0 %1433
        %1435 = vrot.lane.b32.xlu0 %v815, 96
        %v1436 = vpop.permute.xlu0 %1435
        %1437 = vrot.lane.b32.xlu0 %v816, 96
        %v1438 = vpop.permute.xlu0 %1437
        %1439 = vrot.lane.b32.xlu0 %v817, 96
        %v1440 = vpop.permute.xlu0 %1439
        %1441 = vrot.lane.b32.xlu0 %v818, 96
        %v1442 = vpop.permute.xlu0 %1441
        %1443 = vrot.lane.b32.xlu0 %v819, 96
        %v1444 = vpop.permute.xlu0 %1443
        %1445 = vrot.lane.b32.xlu0 %v820, 96
        %v1446 = vpop.permute.xlu0 %1445
        %1447 = vrot.lane.b32.xlu0 %v821, 96
        %v1448 = vpop.permute.xlu0 %1447
        %1449 = vrot.lane.b32.xlu0 %v822, 96
        %v1450 = vpop.permute.xlu0 %1449
        %1451 = vrot.lane.b32.xlu0 %v823, 96
        %v1452 = vpop.permute.xlu0 %1451
        %1453 = vrot.lane.b32.xlu0 %v824, 96
        %v1454 = vpop.permute.xlu0 %1453
        %1455 = vrot.lane.b32.xlu0 %v825, 96
        %v1456 = vpop.permute.xlu0 %1455
        %1457 = vrot.lane.b32.xlu0 %v826, 96
        %v1458 = vpop.permute.xlu0 %1457
        %1459 = vrot.lane.b32.xlu0 %v827, 96
        %v1460 = vpop.permute.xlu0 %1459
        %1461 = vrot.lane.b32.xlu0 %v828, 96
        %v1462 = vpop.permute.xlu0 %1461
        %1463 = vrot.lane.b32.xlu0 %v829, 96
        %v1464 = vpop.permute.xlu0 %1463
        %1465 = vrot.lane.b32.xlu0 %v830, 96
        %v1466 = vpop.permute.xlu0 %1465
        %1467 = vrot.lane.b32.xlu0 %v831, 96
        %v1468 = vpop.permute.xlu0 %1467
        %1469 = vrot.lane.b32.xlu0 %v832, 96
        %v1470 = vpop.permute.xlu0 %1469
        %1471 = vrot.lane.b32.xlu0 %v833, 96
        %v1472 = vpop.permute.xlu0 %1471
        %1473 = vrot.lane.b32.xlu0 %v834, 96
        %v1474 = vpop.permute.xlu0 %1473
        %1475 = vrot.lane.b32.xlu0 %v835, 96
        %v1476 = vpop.permute.xlu0 %1475
        %1477 = vrot.lane.b32.xlu0 %v836, 96
        %v1478 = vpop.permute.xlu0 %1477
        %1479 = vrot.lane.b32.xlu0 %v837, 96
        %v1480 = vpop.permute.xlu0 %1479
        %v1513 = vsel %vm838, %v1418, 0.0
        %1514 = vadd.xlane.f32.xlu0 %v1513
        %v1515 = vpop.xlane.xlu0 %1514
        %v1516 = vsel %vm838, %v1420, 0.0
        %1517 = vadd.xlane.f32.xlu0 %v1516
        %v1518 = vpop.xlane.xlu0 %1517
        %v1519 = vsel %vm838, %v1422, 0.0
        %1520 = vadd.xlane.f32.xlu0 %v1519
        %v1521 = vpop.xlane.xlu0 %1520
        %v1522 = vsel %vm838, %v1424, 0.0
        %1523 = vadd.xlane.f32.xlu0 %v1522
        %v1524 = vpop.xlane.xlu0 %1523
        %v1525 = vsel %vm838, %v1426, 0.0
        %1526 = vadd.xlane.f32.xlu0 %v1525
        %v1527 = vpop.xlane.xlu0 %1526
        %v1528 = vsel %vm838, %v1428, 0.0
        %1529 = vadd.xlane.f32.xlu0 %v1528
        %v1530 = vpop.xlane.xlu0 %1529
        %v1531 = vsel %vm838, %v1430, 0.0
        %1532 = vadd.xlane.f32.xlu0 %v1531
        %v1533 = vpop.xlane.xlu0 %1532
        %v1534 = vsel %vm838, %v1432, 0.0
        %1535 = vadd.xlane.f32.xlu0 %v1534
        %v1536 = vpop.xlane.xlu0 %1535
        %v1537 = vsel %vm838, %v1434, 0.0
        %1538 = vadd.xlane.f32.xlu0 %v1537
        %v1539 = vpop.xlane.xlu0 %1538
        %v1540 = vsel %vm838, %v1436, 0.0
        %1541 = vadd.xlane.f32.xlu0 %v1540
        %v1542 = vpop.xlane.xlu0 %1541
        %v1543 = vsel %vm838, %v1438, 0.0
        %1544 = vadd.xlane.f32.xlu0 %v1543
        %v1545 = vpop.xlane.xlu0 %1544
        %v1546 = vsel %vm838, %v1440, 0.0
        %1547 = vadd.xlane.f32.xlu0 %v1546
        %v1548 = vpop.xlane.xlu0 %1547
        %v1549 = vsel %vm838, %v1442, 0.0
        %1550 = vadd.xlane.f32.xlu0 %v1549
        %v1551 = vpop.xlane.xlu0 %1550
        %v1552 = vsel %vm838, %v1444, 0.0
        %1553 = vadd.xlane.f32.xlu0 %v1552
        %v1554 = vpop.xlane.xlu0 %1553
        %v1555 = vsel %vm838, %v1446, 0.0
        %1556 = vadd.xlane.f32.xlu0 %v1555
        %v1557 = vpop.xlane.xlu0 %1556
        %v1558 = vsel %vm838, %v1448, 0.0
        %1559 = vadd.xlane.f32.xlu0 %v1558
        %v1560 = vpop.xlane.xlu0 %1559
        %v1561 = vsel %vm838, %v1450, 0.0
        %1562 = vadd.xlane.f32.xlu0 %v1561
        %v1563 = vpop.xlane.xlu0 %1562
        %v1564 = vsel %vm838, %v1452, 0.0
        %1565 = vadd.xlane.f32.xlu0 %v1564
        %v1566 = vpop.xlane.xlu0 %1565
        %v1567 = vsel %vm838, %v1454, 0.0
        %1568 = vadd.xlane.f32.xlu0 %v1567
        %v1569 = vpop.xlane.xlu0 %1568
        %v1570 = vsel %vm838, %v1456, 0.0
        %1571 = vadd.xlane.f32.xlu0 %v1570
        %v1572 = vpop.xlane.xlu0 %1571
        %v1573 = vsel %vm838, %v1458, 0.0
        %1574 = vadd.xlane.f32.xlu0 %v1573
        %v1575 = vpop.xlane.xlu0 %1574
        %v1576 = vsel %vm838, %v1460, 0.0
        %1577 = vadd.xlane.f32.xlu0 %v1576
        %v1578 = vpop.xlane.xlu0 %1577
        %v1579 = vsel %vm838, %v1462, 0.0
        %1580 = vadd.xlane.f32.xlu0 %v1579
        %v1581 = vpop.xlane.xlu0 %1580
        %v1582 = vsel %vm838, %v1464, 0.0
        %1583 = vadd.xlane.f32.xlu0 %v1582
        %v1584 = vpop.xlane.xlu0 %1583
        %v1585 = vsel %vm838, %v1466, 0.0
        %1586 = vadd.xlane.f32.xlu0 %v1585
        %v1587 = vpop.xlane.xlu0 %1586
        %v1588 = vsel %vm838, %v1468, 0.0
        %1589 = vadd.xlane.f32.xlu0 %v1588
        %v1590 = vpop.xlane.xlu0 %1589
        %v1591 = vsel %vm838, %v1470, 0.0
        %1592 = vadd.xlane.f32.xlu0 %v1591
        %v1593 = vpop.xlane.xlu0 %1592
        %v1594 = vsel %vm838, %v1472, 0.0
        %1595 = vadd.xlane.f32.xlu0 %v1594
        %v1596 = vpop.xlane.xlu0 %1595
        %v1597 = vsel %vm838, %v1474, 0.0
        %1598 = vadd.xlane.f32.xlu0 %v1597
        %v1599 = vpop.xlane.xlu0 %1598
        %v1600 = vsel %vm838, %v1476, 0.0
        %1601 = vadd.xlane.f32.xlu0 %v1600
        %v1602 = vpop.xlane.xlu0 %1601
        %v1603 = vsel %vm838, %v1478, 0.0
        %1604 = vadd.xlane.f32.xlu0 %v1603
        %v1605 = vpop.xlane.xlu0 %1604
        %v1606 = vsel %vm838, %v1480, 0.0
        %1607 = vadd.xlane.f32.xlu0 %v1606
        %v1608 = vpop.xlane.xlu0 %1607
        %v1609 = vmax.f32 %v1515, 1e-24
        %v1610 = vmax.f32 %v1518, 1e-24
        %v1611 = vmax.f32 %v1521, 1e-24
        %v1612 = vmax.f32 %v1524, 1e-24
        %v1613 = vmax.f32 %v1527, 1e-24
        %v1614 = vmax.f32 %v1530, 1e-24
        %v1615 = vmax.f32 %v1533, 1e-24
        %v1616 = vmax.f32 %v1536, 1e-24
        %v1617 = vmax.f32 %v1539, 1e-24
        %v1618 = vmax.f32 %v1542, 1e-24
        %v1619 = vmax.f32 %v1545, 1e-24
        %v1620 = vmax.f32 %v1548, 1e-24
        %v1621 = vmax.f32 %v1551, 1e-24
        %v1622 = vmax.f32 %v1554, 1e-24
        %v1623 = vmax.f32 %v1557, 1e-24
        %v1624 = vmax.f32 %v1560, 1e-24
        %v1625 = vmax.f32 %v1563, 1e-24
        %v1626 = vmax.f32 %v1566, 1e-24
        %v1627 = vmax.f32 %v1569, 1e-24
        %v1628 = vmax.f32 %v1572, 1e-24
        %v1629 = vmax.f32 %v1575, 1e-24
        %v1630 = vmax.f32 %v1578, 1e-24
        %v1631 = vmax.f32 %v1581, 1e-24
        %v1632 = vmax.f32 %v1584, 1e-24
        %v1633 = vmax.f32 %v1587, 1e-24
        %v1634 = vmax.f32 %v1590, 1e-24
        %v1635 = vmax.f32 %v1593, 1e-24
        %v1636 = vmax.f32 %v1596, 1e-24
        %v1637 = vmax.f32 %v1599, 1e-24
        %v1638 = vmax.f32 %v1602, 1e-24
        %v1639 = vmax.f32 %v1605, 1e-24
        %v1640 = vmax.f32 %v1608, 1e-24
        %v1641 = vrsqrt.pop %v1609
        %v1642 = vrsqrt.pop %v1610
        %v1643 = vrsqrt.pop %v1611
        %v1644 = vrsqrt.pop %v1612
        %v1645 = vrsqrt.pop %v1613
        %v1646 = vrsqrt.pop %v1614
        %v1647 = vrsqrt.pop %v1615
        %v1648 = vrsqrt.pop %v1616
        %v1649 = vrsqrt.pop %v1617
        %v1650 = vrsqrt.pop %v1618
        %v1651 = vrsqrt.pop %v1619
        %v1652 = vrsqrt.pop %v1620
        %v1653 = vrsqrt.pop %v1621
        %v1654 = vrsqrt.pop %v1622
        %v1655 = vrsqrt.pop %v1623
        %v1656 = vrsqrt.pop %v1624
        %v1657 = vrsqrt.pop %v1625
        %v1658 = vrsqrt.pop %v1626
        %v1659 = vrsqrt.pop %v1627
        %v1660 = vrsqrt.pop %v1628
        %v1661 = vrsqrt.pop %v1629
        %v1662 = vrsqrt.pop %v1630
        %v1663 = vrsqrt.pop %v1631
        %v1664 = vrsqrt.pop %v1632
        %v1665 = vrsqrt.pop %v1633
        %v1666 = vrsqrt.pop %v1634
        %v1667 = vrsqrt.pop %v1635
        %v1668 = vrsqrt.pop %v1636
        %v1669 = vrsqrt.pop %v1637
        %v1670 = vrsqrt.pop %v1638
        %v1671 = vrsqrt.pop %v1639
        %v1672 = vrsqrt.pop %v1640
        %v1673 = vmul.f32 %v487, %v1641
        %v1674 = vmul.f32 %v491, %v1642
        %v1675 = vmul.f32 %v497, %v1643
        %v1676 = vmul.f32 %v501, %v1644
        %v1677 = vmul.f32 %v507, %v1645
        %v1678 = vmul.f32 %v511, %v1646
        %v1679 = vmul.f32 %v517, %v1647
        %v1680 = vmul.f32 %v521, %v1648
        %v1681 = vmul.f32 %v527, %v1649
        %v1682 = vmul.f32 %v531, %v1650
        %v1683 = vmul.f32 %v537, %v1651
        %v1684 = vmul.f32 %v541, %v1652
        %v1685 = vmul.f32 %v547, %v1653
        %v1686 = vmul.f32 %v551, %v1654
        %v1687 = vmul.f32 %v557, %v1655
        %v1688 = vmul.f32 %v561, %v1656
        %v1689 = vmul.f32 %v567, %v1657
        %v1690 = vmul.f32 %v571, %v1658
        %v1691 = vmul.f32 %v577, %v1659
        %v1692 = vmul.f32 %v581, %v1660
        %v1693 = vmul.f32 %v587, %v1661
        %v1694 = vmul.f32 %v591, %v1662
        %v1695 = vmul.f32 %v597, %v1663
        %v1696 = vmul.f32 %v601, %v1664
        %v1697 = vmul.f32 %v607, %v1665
        %v1698 = vmul.f32 %v611, %v1666
        %v1699 = vmul.f32 %v617, %v1667
        %v1700 = vmul.f32 %v621, %v1668
        %v1701 = vmul.f32 %v627, %v1669
        %v1702 = vmul.f32 %v631, %v1670
        %v1703 = vmul.f32 %v637, %v1671
        %v1704 = vmul.f32 %v641, %v1672
        %s1705 = sld [smem:[#allocation13 + $0x1]]
        %v1706 = vstv %s1705
        %v1707 = vmul.f32 %v1673, %v1706
        %v1708 = vmul.f32 %v1674, %v1706
        %v1709 = vmul.f32 %v1675, %v1706
        %v1710 = vmul.f32 %v1676, %v1706
        %v1711 = vmul.f32 %v1677, %v1706
        %v1712 = vmul.f32 %v1678, %v1706
        %v1713 = vmul.f32 %v1679, %v1706
        %v1714 = vmul.f32 %v1680, %v1706
        %v1715 = vmul.f32 %v1681, %v1706
        %v1716 = vmul.f32 %v1682, %v1706
        %v1717 = vmul.f32 %v1683, %v1706
        %v1718 = vmul.f32 %v1684, %v1706
        %v1719 = vmul.f32 %v1685, %v1706
        %v1720 = vmul.f32 %v1686, %v1706
        %v1721 = vmul.f32 %v1687, %v1706
        %v1722 = vmul.f32 %v1688, %v1706
        %v1723 = vmul.f32 %v1689, %v1706
        %v1724 = vmul.f32 %v1690, %v1706
        %v1725 = vmul.f32 %v1691, %v1706
        %v1726 = vmul.f32 %v1692, %v1706
        %v1727 = vmul.f32 %v1693, %v1706
        %v1728 = vmul.f32 %v1694, %v1706
        %v1729 = vmul.f32 %v1695, %v1706
        %v1730 = vmul.f32 %v1696, %v1706
        %v1731 = vmul.f32 %v1697, %v1706
        %v1732 = vmul.f32 %v1698, %v1706
        %v1733 = vmul.f32 %v1699, %v1706
        %v1734 = vmul.f32 %v1700, %v1706
        %v1735 = vmul.f32 %v1701, %v1706
        %v1736 = vmul.f32 %v1702, %v1706
        %v1737 = vmul.f32 %v1703, %v1706
        %v1738 = vmul.f32 %v1704, %v1706
        %v1739 = vpack.c.bf16 %v1708, %v1707
        %v1740 = vpack.c.bf16 %v1710, %v1709
        %v1741 = vpack.c.bf16 %v1712, %v1711
        %v1742 = vpack.c.bf16 %v1714, %v1713
        %v1743 = vpack.c.bf16 %v1716, %v1715
        %v1744 = vpack.c.bf16 %v1718, %v1717
        %v1745 = vpack.c.bf16 %v1720, %v1719
        %v1746 = vpack.c.bf16 %v1722, %v1721
        %v1747 = vpack.c.bf16 %v1724, %v1723
        %v1748 = vpack.c.bf16 %v1726, %v1725
        %v1749 = vpack.c.bf16 %v1728, %v1727
        %v1750 = vpack.c.bf16 %v1730, %v1729
        %v1751 = vpack.c.bf16 %v1732, %v1731
        %v1752 = vpack.c.bf16 %v1734, %v1733
        %v1753 = vpack.c.bf16 %v1736, %v1735
        %v1754 = vpack.c.bf16 %v1738, %v1737
        %1771 = vrot.lane.b32.xlu0 %v1739, 96
        %v1772 = vpop.permute.xlu0 %1771
        %1773 = vrot.lane.b32.xlu0 %v1740, 96
        %v1774 = vpop.permute.xlu0 %1773
        %1775 = vrot.lane.b32.xlu0 %v1741, 96
        %v1776 = vpop.permute.xlu0 %1775
        %1777 = vrot.lane.b32.xlu0 %v1742, 96
        %v1778 = vpop.permute.xlu0 %1777
        %1779 = vrot.lane.b32.xlu0 %v1743, 96
        %v1780 = vpop.permute.xlu0 %1779
        %1781 = vrot.lane.b32.xlu0 %v1744, 96
        %v1782 = vpop.permute.xlu0 %1781
        %1783 = vrot.lane.b32.xlu0 %v1745, 96
        %v1784 = vpop.permute.xlu0 %1783
        %1785 = vrot.lane.b32.xlu0 %v1746, 96
        %v1786 = vpop.permute.xlu0 %1785
        %1787 = vrot.lane.b32.xlu0 %v1747, 96
        %v1788 = vpop.permute.xlu0 %1787
        %1789 = vrot.lane.b32.xlu0 %v1748, 96
        %v1790 = vpop.permute.xlu0 %1789
        %1791 = vrot.lane.b32.xlu0 %v1749, 96
        %v1792 = vpop.permute.xlu0 %1791
        %1793 = vrot.lane.b32.xlu0 %v1750, 96
        %v1794 = vpop.permute.xlu0 %1793
        %1795 = vrot.lane.b32.xlu0 %v1751, 96
        %v1796 = vpop.permute.xlu0 %1795
        %1797 = vrot.lane.b32.xlu0 %v1752, 96
        %v1798 = vpop.permute.xlu0 %1797
        %1799 = vrot.lane.b32.xlu0 %v1753, 96
        %v1800 = vpop.permute.xlu0 %1799
        %1801 = vrot.lane.b32.xlu0 %v1754, 96
        %v1802 = vpop.permute.xlu0 %1801
        %1819 = vst.msk [vmem:[#allocation2 + $0x10] sm:$0xff] %vm838, %v1772
        %1820 = vst.msk [vmem:[#allocation2 + $0x18] sm:$0xff] %vm838, %v1774
        %1821 = vst.msk [vmem:[#allocation2 + $0x50] sm:$0xff] %vm838, %v1776
        %1822 = vst.msk [vmem:[#allocation2 + $0x58] sm:$0xff] %vm838, %v1778
        %1823 = vst.msk [vmem:[#allocation2 + $0x90] sm:$0xff] %vm838, %v1780
        %1824 = vst.msk [vmem:[#allocation2 + $0x98] sm:$0xff] %vm838, %v1782
        %1825 = vst.msk [vmem:[#allocation2 + $0xd0] sm:$0xff] %vm838, %v1784
        %1826 = vst.msk [vmem:[#allocation2 + $0xd8] sm:$0xff] %vm838, %v1786
        %1827 = vst.msk [vmem:[#allocation2 + $0x110] sm:$0xff] %vm838, %v1788
        %1828 = vst.msk [vmem:[#allocation2 + $0x118] sm:$0xff] %vm838, %v1790
        %1829 = vst.msk [vmem:[#allocation2 + $0x150] sm:$0xff] %vm838, %v1792
        %1830 = vst.msk [vmem:[#allocation2 + $0x158] sm:$0xff] %vm838, %v1794
        %1831 = vst.msk [vmem:[#allocation2 + $0x190] sm:$0xff] %vm838, %v1796
        %1832 = vst.msk [vmem:[#allocation2 + $0x198] sm:$0xff] %vm838, %v1798
        %1833 = vst.msk [vmem:[#allocation2 + $0x1d0] sm:$0xff] %vm838, %v1800
        %1834 = vst.msk [vmem:[#allocation2 + $0x1d8] sm:$0xff] %vm838, %v1802
        %1867 = vrot.lane.b32.xlu0 %v1097, 96
        %v1868 = vpop.permute.xlu0 %1867
        %1869 = vrot.lane.b32.xlu0 %v1098, 96
        %v1870 = vpop.permute.xlu0 %1869
        %1871 = vrot.lane.b32.xlu0 %v1099, 96
        %v1872 = vpop.permute.xlu0 %1871
        %1873 = vrot.lane.b32.xlu0 %v1100, 96
        %v1874 = vpop.permute.xlu0 %1873
        %1875 = vrot.lane.b32.xlu0 %v1101, 96
        %v1876 = vpop.permute.xlu0 %1875
        %1877 = vrot.lane.b32.xlu0 %v1102, 96
        %v1878 = vpop.permute.xlu0 %1877
        %1879 = vrot.lane.b32.xlu0 %v1103, 96
        %v1880 = vpop.permute.xlu0 %1879
        %1881 = vrot.lane.b32.xlu0 %v1104, 96
        %v1882 = vpop.permute.xlu0 %1881
        %1883 = vrot.lane.b32.xlu0 %v1105, 96
        %v1884 = vpop.permute.xlu0 %1883
        %1885 = vrot.lane.b32.xlu0 %v1106, 96
        %v1886 = vpop.permute.xlu0 %1885
        %1887 = vrot.lane.b32.xlu0 %v1107, 96
        %v1888 = vpop.permute.xlu0 %1887
        %1889 = vrot.lane.b32.xlu0 %v1108, 96
        %v1890 = vpop.permute.xlu0 %1889
        %1891 = vrot.lane.b32.xlu0 %v1109, 96
        %v1892 = vpop.permute.xlu0 %1891
        %1893 = vrot.lane.b32.xlu0 %v1110, 96
        %v1894 = vpop.permute.xlu0 %1893
        %1895 = vrot.lane.b32.xlu0 %v1111, 96
        %v1896 = vpop.permute.xlu0 %1895
        %1897 = vrot.lane.b32.xlu0 %v1112, 96
        %v1898 = vpop.permute.xlu0 %1897
        %1899 = vrot.lane.b32.xlu0 %v1113, 96
        %v1900 = vpop.permute.xlu0 %1899
        %1901 = vrot.lane.b32.xlu0 %v1114, 96
        %v1902 = vpop.permute.xlu0 %1901
        %1903 = vrot.lane.b32.xlu0 %v1115, 96
        %v1904 = vpop.permute.xlu0 %1903
        %1905 = vrot.lane.b32.xlu0 %v1116, 96
        %v1906 = vpop.permute.xlu0 %1905
        %1907 = vrot.lane.b32.xlu0 %v1117, 96
        %v1908 = vpop.permute.xlu0 %1907
        %1909 = vrot.lane.b32.xlu0 %v1118, 96
        %v1910 = vpop.permute.xlu0 %1909
        %1911 = vrot.lane.b32.xlu0 %v1119, 96
        %v1912 = vpop.permute.xlu0 %1911
        %1913 = vrot.lane.b32.xlu0 %v1120, 96
        %v1914 = vpop.permute.xlu0 %1913
        %1915 = vrot.lane.b32.xlu0 %v1121, 96
        %v1916 = vpop.permute.xlu0 %1915
        %1917 = vrot.lane.b32.xlu0 %v1122, 96
        %v1918 = vpop.permute.xlu0 %1917
        %1919 = vrot.lane.b32.xlu0 %v1123, 96
        %v1920 = vpop.permute.xlu0 %1919
        %1921 = vrot.lane.b32.xlu0 %v1124, 96
        %v1922 = vpop.permute.xlu0 %1921
        %1923 = vrot.lane.b32.xlu0 %v1125, 96
        %v1924 = vpop.permute.xlu0 %1923
        %1925 = vrot.lane.b32.xlu0 %v1126, 96
        %v1926 = vpop.permute.xlu0 %1925
        %1927 = vrot.lane.b32.xlu0 %v1127, 96
        %v1928 = vpop.permute.xlu0 %1927
        %1929 = vrot.lane.b32.xlu0 %v1128, 96
        %v1930 = vpop.permute.xlu0 %1929
        %v1963 = vsel %vm838, %v1868, 0.0
        %1964 = vadd.xlane.f32.xlu0 %v1963
        %v1965 = vpop.xlane.xlu0 %1964
        %v1966 = vsel %vm838, %v1870, 0.0
        %1967 = vadd.xlane.f32.xlu0 %v1966
        %v1968 = vpop.xlane.xlu0 %1967
        %v1969 = vsel %vm838, %v1872, 0.0
        %1970 = vadd.xlane.f32.xlu0 %v1969
        %v1971 = vpop.xlane.xlu0 %1970
        %v1972 = vsel %vm838, %v1874, 0.0
        %1973 = vadd.xlane.f32.xlu0 %v1972
        %v1974 = vpop.xlane.xlu0 %1973
        %v1975 = vsel %vm838, %v1876, 0.0
        %1976 = vadd.xlane.f32.xlu0 %v1975
        %v1977 = vpop.xlane.xlu0 %1976
        %v1978 = vsel %vm838, %v1878, 0.0
        %1979 = vadd.xlane.f32.xlu0 %v1978
        %v1980 = vpop.xlane.xlu0 %1979
        %v1981 = vsel %vm838, %v1880, 0.0
        %1982 = vadd.xlane.f32.xlu0 %v1981
        %v1983 = vpop.xlane.xlu0 %1982
        %v1984 = vsel %vm838, %v1882, 0.0
        %1985 = vadd.xlane.f32.xlu0 %v1984
        %v1986 = vpop.xlane.xlu0 %1985
        %v1987 = vsel %vm838, %v1884, 0.0
        %1988 = vadd.xlane.f32.xlu0 %v1987
        %v1989 = vpop.xlane.xlu0 %1988
        %v1990 = vsel %vm838, %v1886, 0.0
        %1991 = vadd.xlane.f32.xlu0 %v1990
        %v1992 = vpop.xlane.xlu0 %1991
        %v1993 = vsel %vm838, %v1888, 0.0
        %1994 = vadd.xlane.f32.xlu0 %v1993
        %v1995 = vpop.xlane.xlu0 %1994
        %v1996 = vsel %vm838, %v1890, 0.0
        %1997 = vadd.xlane.f32.xlu0 %v1996
        %v1998 = vpop.xlane.xlu0 %1997
        %v1999 = vsel %vm838, %v1892, 0.0
        %2000 = vadd.xlane.f32.xlu0 %v1999
        %v2001 = vpop.xlane.xlu0 %2000
        %v2002 = vsel %vm838, %v1894, 0.0
        %2003 = vadd.xlane.f32.xlu0 %v2002
        %v2004 = vpop.xlane.xlu0 %2003
        %v2005 = vsel %vm838, %v1896, 0.0
        %2006 = vadd.xlane.f32.xlu0 %v2005
        %v2007 = vpop.xlane.xlu0 %2006
        %v2008 = vsel %vm838, %v1898, 0.0
        %2009 = vadd.xlane.f32.xlu0 %v2008
        %v2010 = vpop.xlane.xlu0 %2009
        %v2011 = vsel %vm838, %v1900, 0.0
        %2012 = vadd.xlane.f32.xlu0 %v2011
        %v2013 = vpop.xlane.xlu0 %2012
        %v2014 = vsel %vm838, %v1902, 0.0
        %2015 = vadd.xlane.f32.xlu0 %v2014
        %v2016 = vpop.xlane.xlu0 %2015
        %v2017 = vsel %vm838, %v1904, 0.0
        %2018 = vadd.xlane.f32.xlu0 %v2017
        %v2019 = vpop.xlane.xlu0 %2018
        %v2020 = vsel %vm838, %v1906, 0.0
        %2021 = vadd.xlane.f32.xlu0 %v2020
        %v2022 = vpop.xlane.xlu0 %2021
        %v2023 = vsel %vm838, %v1908, 0.0
        %2024 = vadd.xlane.f32.xlu0 %v2023
        %v2025 = vpop.xlane.xlu0 %2024
        %v2026 = vsel %vm838, %v1910, 0.0
        %2027 = vadd.xlane.f32.xlu0 %v2026
        %v2028 = vpop.xlane.xlu0 %2027
        %v2029 = vsel %vm838, %v1912, 0.0
        %2030 = vadd.xlane.f32.xlu0 %v2029
        %v2031 = vpop.xlane.xlu0 %2030
        %v2032 = vsel %vm838, %v1914, 0.0
        %2033 = vadd.xlane.f32.xlu0 %v2032
        %v2034 = vpop.xlane.xlu0 %2033
        %v2035 = vsel %vm838, %v1916, 0.0
        %2036 = vadd.xlane.f32.xlu0 %v2035
        %v2037 = vpop.xlane.xlu0 %2036
        %v2038 = vsel %vm838, %v1918, 0.0
        %2039 = vadd.xlane.f32.xlu0 %v2038
        %v2040 = vpop.xlane.xlu0 %2039
        %v2041 = vsel %vm838, %v1920, 0.0
        %2042 = vadd.xlane.f32.xlu0 %v2041
        %v2043 = vpop.xlane.xlu0 %2042
        %v2044 = vsel %vm838, %v1922, 0.0
        %2045 = vadd.xlane.f32.xlu0 %v2044
        %v2046 = vpop.xlane.xlu0 %2045
        %v2047 = vsel %vm838, %v1924, 0.0
        %2048 = vadd.xlane.f32.xlu0 %v2047
        %v2049 = vpop.xlane.xlu0 %2048
        %v2050 = vsel %vm838, %v1926, 0.0
        %2051 = vadd.xlane.f32.xlu0 %v2050
        %v2052 = vpop.xlane.xlu0 %2051
        %v2053 = vsel %vm838, %v1928, 0.0
        %2054 = vadd.xlane.f32.xlu0 %v2053
        %v2055 = vpop.xlane.xlu0 %2054
        %v2056 = vsel %vm838, %v1930, 0.0
        %2057 = vadd.xlane.f32.xlu0 %v2056
        %v2058 = vpop.xlane.xlu0 %2057
        %v2059 = vmax.f32 %v1965, 1e-24
        %v2060 = vmax.f32 %v1968, 1e-24
        %v2061 = vmax.f32 %v1971, 1e-24
        %v2062 = vmax.f32 %v1974, 1e-24
        %v2063 = vmax.f32 %v1977, 1e-24
        %v2064 = vmax.f32 %v1980, 1e-24
        %v2065 = vmax.f32 %v1983, 1e-24
        %v2066 = vmax.f32 %v1986, 1e-24
        %v2067 = vmax.f32 %v1989, 1e-24
        %v2068 = vmax.f32 %v1992, 1e-24
        %v2069 = vmax.f32 %v1995, 1e-24
        %v2070 = vmax.f32 %v1998, 1e-24
        %v2071 = vmax.f32 %v2001, 1e-24
        %v2072 = vmax.f32 %v2004, 1e-24
        %v2073 = vmax.f32 %v2007, 1e-24
        %v2074 = vmax.f32 %v2010, 1e-24
        %v2075 = vmax.f32 %v2013, 1e-24
        %v2076 = vmax.f32 %v2016, 1e-24
        %v2077 = vmax.f32 %v2019, 1e-24
        %v2078 = vmax.f32 %v2022, 1e-24
        %v2079 = vmax.f32 %v2025, 1e-24
        %v2080 = vmax.f32 %v2028, 1e-24
        %v2081 = vmax.f32 %v2031, 1e-24
        %v2082 = vmax.f32 %v2034, 1e-24
        %v2083 = vmax.f32 %v2037, 1e-24
        %v2084 = vmax.f32 %v2040, 1e-24
        %v2085 = vmax.f32 %v2043, 1e-24
        %v2086 = vmax.f32 %v2046, 1e-24
        %v2087 = vmax.f32 %v2049, 1e-24
        %v2088 = vmax.f32 %v2052, 1e-24
        %v2089 = vmax.f32 %v2055, 1e-24
        %v2090 = vmax.f32 %v2058, 1e-24
        %v2091 = vrsqrt.pop %v2059
        %v2092 = vrsqrt.pop %v2060
        %v2093 = vrsqrt.pop %v2061
        %v2094 = vrsqrt.pop %v2062
        %v2095 = vrsqrt.pop %v2063
        %v2096 = vrsqrt.pop %v2064
        %v2097 = vrsqrt.pop %v2065
        %v2098 = vrsqrt.pop %v2066
        %v2099 = vrsqrt.pop %v2067
        %v2100 = vrsqrt.pop %v2068
        %v2101 = vrsqrt.pop %v2069
        %v2102 = vrsqrt.pop %v2070
        %v2103 = vrsqrt.pop %v2071
        %v2104 = vrsqrt.pop %v2072
        %v2105 = vrsqrt.pop %v2073
        %v2106 = vrsqrt.pop %v2074
        %v2107 = vrsqrt.pop %v2075
        %v2108 = vrsqrt.pop %v2076
        %v2109 = vrsqrt.pop %v2077
        %v2110 = vrsqrt.pop %v2078
        %v2111 = vrsqrt.pop %v2079
        %v2112 = vrsqrt.pop %v2080
        %v2113 = vrsqrt.pop %v2081
        %v2114 = vrsqrt.pop %v2082
        %v2115 = vrsqrt.pop %v2083
        %v2116 = vrsqrt.pop %v2084
        %v2117 = vrsqrt.pop %v2085
        %v2118 = vrsqrt.pop %v2086
        %v2119 = vrsqrt.pop %v2087
        %v2120 = vrsqrt.pop %v2088
        %v2121 = vrsqrt.pop %v2089
        %v2122 = vrsqrt.pop %v2090
        %v2123 = vmul.f32 %v489, %v2091
        %v2124 = vmul.f32 %v493, %v2092
        %v2125 = vmul.f32 %v499, %v2093
        %v2126 = vmul.f32 %v503, %v2094
        %v2127 = vmul.f32 %v509, %v2095
        %v2128 = vmul.f32 %v513, %v2096
        %v2129 = vmul.f32 %v519, %v2097
        %v2130 = vmul.f32 %v523, %v2098
        %v2131 = vmul.f32 %v529, %v2099
        %v2132 = vmul.f32 %v533, %v2100
        %v2133 = vmul.f32 %v539, %v2101
        %v2134 = vmul.f32 %v543, %v2102
        %v2135 = vmul.f32 %v549, %v2103
        %v2136 = vmul.f32 %v553, %v2104
        %v2137 = vmul.f32 %v559, %v2105
        %v2138 = vmul.f32 %v563, %v2106
        %v2139 = vmul.f32 %v569, %v2107
        %v2140 = vmul.f32 %v573, %v2108
        %v2141 = vmul.f32 %v579, %v2109
        %v2142 = vmul.f32 %v583, %v2110
        %v2143 = vmul.f32 %v589, %v2111
        %v2144 = vmul.f32 %v593, %v2112
        %v2145 = vmul.f32 %v599, %v2113
        %v2146 = vmul.f32 %v603, %v2114
        %v2147 = vmul.f32 %v609, %v2115
        %v2148 = vmul.f32 %v613, %v2116
        %v2149 = vmul.f32 %v619, %v2117
        %v2150 = vmul.f32 %v623, %v2118
        %v2151 = vmul.f32 %v629, %v2119
        %v2152 = vmul.f32 %v633, %v2120
        %v2153 = vmul.f32 %v639, %v2121
        %v2154 = vmul.f32 %v643, %v2122
        %v2155 = vpack.c.bf16 %v2124, %v2123
        %v2156 = vpack.c.bf16 %v2126, %v2125
        %v2157 = vpack.c.bf16 %v2128, %v2127
        %v2158 = vpack.c.bf16 %v2130, %v2129
        %v2159 = vpack.c.bf16 %v2132, %v2131
        %v2160 = vpack.c.bf16 %v2134, %v2133
        %v2161 = vpack.c.bf16 %v2136, %v2135
        %v2162 = vpack.c.bf16 %v2138, %v2137
        %v2163 = vpack.c.bf16 %v2140, %v2139
        %v2164 = vpack.c.bf16 %v2142, %v2141
        %v2165 = vpack.c.bf16 %v2144, %v2143
        %v2166 = vpack.c.bf16 %v2146, %v2145
        %v2167 = vpack.c.bf16 %v2148, %v2147
        %v2168 = vpack.c.bf16 %v2150, %v2149
        %v2169 = vpack.c.bf16 %v2152, %v2151
        %v2170 = vpack.c.bf16 %v2154, %v2153
        %2187 = vrot.lane.b32.xlu0 %v2155, 96
        %v2188 = vpop.permute.xlu0 %2187
        %2189 = vrot.lane.b32.xlu0 %v2156, 96
        %v2190 = vpop.permute.xlu0 %2189
        %2191 = vrot.lane.b32.xlu0 %v2157, 96
        %v2192 = vpop.permute.xlu0 %2191
        %2193 = vrot.lane.b32.xlu0 %v2158, 96
        %v2194 = vpop.permute.xlu0 %2193
        %2195 = vrot.lane.b32.xlu0 %v2159, 96
        %v2196 = vpop.permute.xlu0 %2195
        %2197 = vrot.lane.b32.xlu0 %v2160, 96
        %v2198 = vpop.permute.xlu0 %2197
        %2199 = vrot.lane.b32.xlu0 %v2161, 96
        %v2200 = vpop.permute.xlu0 %2199
        %2201 = vrot.lane.b32.xlu0 %v2162, 96
        %v2202 = vpop.permute.xlu0 %2201
        %2203 = vrot.lane.b32.xlu0 %v2163, 96
        %v2204 = vpop.permute.xlu0 %2203
        %2205 = vrot.lane.b32.xlu0 %v2164, 96
        %v2206 = vpop.permute.xlu0 %2205
        %2207 = vrot.lane.b32.xlu0 %v2165, 96
        %v2208 = vpop.permute.xlu0 %2207
        %2209 = vrot.lane.b32.xlu0 %v2166, 96
        %v2210 = vpop.permute.xlu0 %2209
        %2211 = vrot.lane.b32.xlu0 %v2167, 96
        %v2212 = vpop.permute.xlu0 %2211
        %2213 = vrot.lane.b32.xlu0 %v2168, 96
        %v2214 = vpop.permute.xlu0 %2213
        %2215 = vrot.lane.b32.xlu0 %v2169, 96
        %v2216 = vpop.permute.xlu0 %2215
        %2217 = vrot.lane.b32.xlu0 %v2170, 96
        %v2218 = vpop.permute.xlu0 %2217
        %2235 = vst.msk [vmem:[#allocation3 + $0x10] sm:$0xff] %vm838, %v2188
        %2236 = vst.msk [vmem:[#allocation3 + $0x18] sm:$0xff] %vm838, %v2190
        %2237 = vst.msk [vmem:[#allocation3 + $0x50] sm:$0xff] %vm838, %v2192
        %2238 = vst.msk [vmem:[#allocation3 + $0x58] sm:$0xff] %vm838, %v2194
        %2239 = vst.msk [vmem:[#allocation3 + $0x90] sm:$0xff] %vm838, %v2196
        %2240 = vst.msk [vmem:[#allocation3 + $0x98] sm:$0xff] %vm838, %v2198
        %2241 = vst.msk [vmem:[#allocation3 + $0xd0] sm:$0xff] %vm838, %v2200
        %2242 = vst.msk [vmem:[#allocation3 + $0xd8] sm:$0xff] %vm838, %v2202
        %2243 = vst.msk [vmem:[#allocation3 + $0x110] sm:$0xff] %vm838, %v2204
        %2244 = vst.msk [vmem:[#allocation3 + $0x118] sm:$0xff] %vm838, %v2206
        %2245 = vst.msk [vmem:[#allocation3 + $0x150] sm:$0xff] %vm838, %v2208
        %2246 = vst.msk [vmem:[#allocation3 + $0x158] sm:$0xff] %vm838, %v2210
        %2247 = vst.msk [vmem:[#allocation3 + $0x190] sm:$0xff] %vm838, %v2212
        %2248 = vst.msk [vmem:[#allocation3 + $0x198] sm:$0xff] %vm838, %v2214
        %2249 = vst.msk [vmem:[#allocation3 + $0x1d0] sm:$0xff] %vm838, %v2216
        %2250 = vst.msk [vmem:[#allocation3 + $0x1d8] sm:$0xff] %vm838, %v2218
        %2267 = vrot.lane.b32.xlu0 %v1353, 96
        %v2268 = vpop.permute.xlu0 %2267
        %2269 = vrot.lane.b32.xlu0 %v1354, 96
        %v2270 = vpop.permute.xlu0 %2269
        %2271 = vrot.lane.b32.xlu0 %v1355, 96
        %v2272 = vpop.permute.xlu0 %2271
        %2273 = vrot.lane.b32.xlu0 %v1356, 96
        %v2274 = vpop.permute.xlu0 %2273
        %2275 = vrot.lane.b32.xlu0 %v1357, 96
        %v2276 = vpop.permute.xlu0 %2275
        %2277 = vrot.lane.b32.xlu0 %v1358, 96
        %v2278 = vpop.permute.xlu0 %2277
        %2279 = vrot.lane.b32.xlu0 %v1359, 96
        %v2280 = vpop.permute.xlu0 %2279
        %2281 = vrot.lane.b32.xlu0 %v1360, 96
        %v2282 = vpop.permute.xlu0 %2281
        %2283 = vrot.lane.b32.xlu0 %v1361, 96
        %v2284 = vpop.permute.xlu0 %2283
        %2285 = vrot.lane.b32.xlu0 %v1362, 96
        %v2286 = vpop.permute.xlu0 %2285
        %2287 = vrot.lane.b32.xlu0 %v1363, 96
        %v2288 = vpop.permute.xlu0 %2287
        %2289 = vrot.lane.b32.xlu0 %v1364, 96
        %v2290 = vpop.permute.xlu0 %2289
        %2291 = vrot.lane.b32.xlu0 %v1365, 96
        %v2292 = vpop.permute.xlu0 %2291
        %2293 = vrot.lane.b32.xlu0 %v1366, 96
        %v2294 = vpop.permute.xlu0 %2293
        %2295 = vrot.lane.b32.xlu0 %v1367, 96
        %v2296 = vpop.permute.xlu0 %2295
        %2297 = vrot.lane.b32.xlu0 %v1368, 96
        %v2298 = vpop.permute.xlu0 %2297
        %2315 = vst.msk [vmem:[#allocation4 + $0x10] sm:$0xff] %vm838, %v2268
        %2316 = vst.msk [vmem:[#allocation4 + $0x18] sm:$0xff] %vm838, %v2270
        %2317 = vst.msk [vmem:[#allocation4 + $0x50] sm:$0xff] %vm838, %v2272
        %2318 = vst.msk [vmem:[#allocation4 + $0x58] sm:$0xff] %vm838, %v2274
        %2319 = vst.msk [vmem:[#allocation4 + $0x90] sm:$0xff] %vm838, %v2276
        %2320 = vst.msk [vmem:[#allocation4 + $0x98] sm:$0xff] %vm838, %v2278
        %2321 = vst.msk [vmem:[#allocation4 + $0xd0] sm:$0xff] %vm838, %v2280
        %2322 = vst.msk [vmem:[#allocation4 + $0xd8] sm:$0xff] %vm838, %v2282
        %2323 = vst.msk [vmem:[#allocation4 + $0x110] sm:$0xff] %vm838, %v2284
        %2324 = vst.msk [vmem:[#allocation4 + $0x118] sm:$0xff] %vm838, %v2286
        %2325 = vst.msk [vmem:[#allocation4 + $0x150] sm:$0xff] %vm838, %v2288
        %2326 = vst.msk [vmem:[#allocation4 + $0x158] sm:$0xff] %vm838, %v2290
        %2327 = vst.msk [vmem:[#allocation4 + $0x190] sm:$0xff] %vm838, %v2292
        %2328 = vst.msk [vmem:[#allocation4 + $0x198] sm:$0xff] %vm838, %v2294
        %2329 = vst.msk [vmem:[#allocation4 + $0x1d0] sm:$0xff] %vm838, %v2296
        %2330 = vst.msk [vmem:[#allocation4 + $0x1d8] sm:$0xff] %vm838, %v2298
        %2331 = vrot.lane.b32.xlu0 %v806, 64
        %v2332 = vpop.permute.xlu0 %2331
        %2333 = vrot.lane.b32.xlu0 %v807, 64
        %v2334 = vpop.permute.xlu0 %2333
        %2335 = vrot.lane.b32.xlu0 %v808, 64
        %v2336 = vpop.permute.xlu0 %2335
        %2337 = vrot.lane.b32.xlu0 %v809, 64
        %v2338 = vpop.permute.xlu0 %2337
        %2339 = vrot.lane.b32.xlu0 %v810, 64
        %v2340 = vpop.permute.xlu0 %2339
        %2341 = vrot.lane.b32.xlu0 %v811, 64
        %v2342 = vpop.permute.xlu0 %2341
        %2343 = vrot.lane.b32.xlu0 %v812, 64
        %v2344 = vpop.permute.xlu0 %2343
        %2345 = vrot.lane.b32.xlu0 %v813, 64
        %v2346 = vpop.permute.xlu0 %2345
        %2347 = vrot.lane.b32.xlu0 %v814, 64
        %v2348 = vpop.permute.xlu0 %2347
        %2349 = vrot.lane.b32.xlu0 %v815, 64
        %v2350 = vpop.permute.xlu0 %2349
        %2351 = vrot.lane.b32.xlu0 %v816, 64
        %v2352 = vpop.permute.xlu0 %2351
        %2353 = vrot.lane.b32.xlu0 %v817, 64
        %v2354 = vpop.permute.xlu0 %2353
        %2355 = vrot.lane.b32.xlu0 %v818, 64
        %v2356 = vpop.permute.xlu0 %2355
        %2357 = vrot.lane.b32.xlu0 %v819, 64
        %v2358 = vpop.permute.xlu0 %2357
        %2359 = vrot.lane.b32.xlu0 %v820, 64
        %v2360 = vpop.permute.xlu0 %2359
        %2361 = vrot.lane.b32.xlu0 %v821, 64
        %v2362 = vpop.permute.xlu0 %2361
        %2363 = vrot.lane.b32.xlu0 %v822, 64
        %v2364 = vpop.permute.xlu0 %2363
        %2365 = vrot.lane.b32.xlu0 %v823, 64
        %v2366 = vpop.permute.xlu0 %2365
        %2367 = vrot.lane.b32.xlu0 %v824, 64
        %v2368 = vpop.permute.xlu0 %2367
        %2369 = vrot.lane.b32.xlu0 %v825, 64
        %v2370 = vpop.permute.xlu0 %2369
        %2371 = vrot.lane.b32.xlu0 %v826, 64
        %v2372 = vpop.permute.xlu0 %2371
        %2373 = vrot.lane.b32.xlu0 %v827, 64
        %v2374 = vpop.permute.xlu0 %2373
        %2375 = vrot.lane.b32.xlu0 %v828, 64
        %v2376 = vpop.permute.xlu0 %2375
        %2377 = vrot.lane.b32.xlu0 %v829, 64
        %v2378 = vpop.permute.xlu0 %2377
        %2379 = vrot.lane.b32.xlu0 %v830, 64
        %v2380 = vpop.permute.xlu0 %2379
        %2381 = vrot.lane.b32.xlu0 %v831, 64
        %v2382 = vpop.permute.xlu0 %2381
        %2383 = vrot.lane.b32.xlu0 %v832, 64
        %v2384 = vpop.permute.xlu0 %2383
        %2385 = vrot.lane.b32.xlu0 %v833, 64
        %v2386 = vpop.permute.xlu0 %2385
        %2387 = vrot.lane.b32.xlu0 %v834, 64
        %v2388 = vpop.permute.xlu0 %2387
        %2389 = vrot.lane.b32.xlu0 %v835, 64
        %v2390 = vpop.permute.xlu0 %2389
        %2391 = vrot.lane.b32.xlu0 %v836, 64
        %v2392 = vpop.permute.xlu0 %2391
        %2393 = vrot.lane.b32.xlu0 %v837, 64
        %v2394 = vpop.permute.xlu0 %2393
        %v2427 = vsel %vm838, %v2332, 0.0
        %2428 = vadd.xlane.f32.xlu0 %v2427
        %v2429 = vpop.xlane.xlu0 %2428
        %v2430 = vsel %vm838, %v2334, 0.0
        %2431 = vadd.xlane.f32.xlu0 %v2430
        %v2432 = vpop.xlane.xlu0 %2431
        %v2433 = vsel %vm838, %v2336, 0.0
        %2434 = vadd.xlane.f32.xlu0 %v2433
        %v2435 = vpop.xlane.xlu0 %2434
        %v2436 = vsel %vm838, %v2338, 0.0
        %2437 = vadd.xlane.f32.xlu0 %v2436
        %v2438 = vpop.xlane.xlu0 %2437
        %v2439 = vsel %vm838, %v2340, 0.0
        %2440 = vadd.xlane.f32.xlu0 %v2439
        %v2441 = vpop.xlane.xlu0 %2440
        %v2442 = vsel %vm838, %v2342, 0.0
        %2443 = vadd.xlane.f32.xlu0 %v2442
        %v2444 = vpop.xlane.xlu0 %2443
        %v2445 = vsel %vm838, %v2344, 0.0
        %2446 = vadd.xlane.f32.xlu0 %v2445
        %v2447 = vpop.xlane.xlu0 %2446
        %v2448 = vsel %vm838, %v2346, 0.0
        %2449 = vadd.xlane.f32.xlu0 %v2448
        %v2450 = vpop.xlane.xlu0 %2449
        %v2451 = vsel %vm838, %v2348, 0.0
        %2452 = vadd.xlane.f32.xlu0 %v2451
        %v2453 = vpop.xlane.xlu0 %2452
        %v2454 = vsel %vm838, %v2350, 0.0
        %2455 = vadd.xlane.f32.xlu0 %v2454
        %v2456 = vpop.xlane.xlu0 %2455
        %v2457 = vsel %vm838, %v2352, 0.0
        %2458 = vadd.xlane.f32.xlu0 %v2457
        %v2459 = vpop.xlane.xlu0 %2458
        %v2460 = vsel %vm838, %v2354, 0.0
        %2461 = vadd.xlane.f32.xlu0 %v2460
        %v2462 = vpop.xlane.xlu0 %2461
        %v2463 = vsel %vm838, %v2356, 0.0
        %2464 = vadd.xlane.f32.xlu0 %v2463
        %v2465 = vpop.xlane.xlu0 %2464
        %v2466 = vsel %vm838, %v2358, 0.0
        %2467 = vadd.xlane.f32.xlu0 %v2466
        %v2468 = vpop.xlane.xlu0 %2467
        %v2469 = vsel %vm838, %v2360, 0.0
        %2470 = vadd.xlane.f32.xlu0 %v2469
        %v2471 = vpop.xlane.xlu0 %2470
        %v2472 = vsel %vm838, %v2362, 0.0
        %2473 = vadd.xlane.f32.xlu0 %v2472
        %v2474 = vpop.xlane.xlu0 %2473
        %v2475 = vsel %vm838, %v2364, 0.0
        %2476 = vadd.xlane.f32.xlu0 %v2475
        %v2477 = vpop.xlane.xlu0 %2476
        %v2478 = vsel %vm838, %v2366, 0.0
        %2479 = vadd.xlane.f32.xlu0 %v2478
        %v2480 = vpop.xlane.xlu0 %2479
        %v2481 = vsel %vm838, %v2368, 0.0
        %2482 = vadd.xlane.f32.xlu0 %v2481
        %v2483 = vpop.xlane.xlu0 %2482
        %v2484 = vsel %vm838, %v2370, 0.0
        %2485 = vadd.xlane.f32.xlu0 %v2484
        %v2486 = vpop.xlane.xlu0 %2485
        %v2487 = vsel %vm838, %v2372, 0.0
        %2488 = vadd.xlane.f32.xlu0 %v2487
        %v2489 = vpop.xlane.xlu0 %2488
        %v2490 = vsel %vm838, %v2374, 0.0
        %2491 = vadd.xlane.f32.xlu0 %v2490
        %v2492 = vpop.xlane.xlu0 %2491
        %v2493 = vsel %vm838, %v2376, 0.0
        %2494 = vadd.xlane.f32.xlu0 %v2493
        %v2495 = vpop.xlane.xlu0 %2494
        %v2496 = vsel %vm838, %v2378, 0.0
        %2497 = vadd.xlane.f32.xlu0 %v2496
        %v2498 = vpop.xlane.xlu0 %2497
        %v2499 = vsel %vm838, %v2380, 0.0
        %2500 = vadd.xlane.f32.xlu0 %v2499
        %v2501 = vpop.xlane.xlu0 %2500
        %v2502 = vsel %vm838, %v2382, 0.0
        %2503 = vadd.xlane.f32.xlu0 %v2502
        %v2504 = vpop.xlane.xlu0 %2503
        %v2505 = vsel %vm838, %v2384, 0.0
        %2506 = vadd.xlane.f32.xlu0 %v2505
        %v2507 = vpop.xlane.xlu0 %2506
        %v2508 = vsel %vm838, %v2386, 0.0
        %2509 = vadd.xlane.f32.xlu0 %v2508
        %v2510 = vpop.xlane.xlu0 %2509
        %v2511 = vsel %vm838, %v2388, 0.0
        %2512 = vadd.xlane.f32.xlu0 %v2511
        %v2513 = vpop.xlane.xlu0 %2512
        %v2514 = vsel %vm838, %v2390, 0.0
        %2515 = vadd.xlane.f32.xlu0 %v2514
        %v2516 = vpop.xlane.xlu0 %2515
        %v2517 = vsel %vm838, %v2392, 0.0
        %2518 = vadd.xlane.f32.xlu0 %v2517
        %v2519 = vpop.xlane.xlu0 %2518
        %v2520 = vsel %vm838, %v2394, 0.0
        %2521 = vadd.xlane.f32.xlu0 %v2520
        %v2522 = vpop.xlane.xlu0 %2521
        %v2523 = vmax.f32 %v2429, 1e-24
        %v2524 = vmax.f32 %v2432, 1e-24
        %v2525 = vmax.f32 %v2435, 1e-24
        %v2526 = vmax.f32 %v2438, 1e-24
        %v2527 = vmax.f32 %v2441, 1e-24
        %v2528 = vmax.f32 %v2444, 1e-24
        %v2529 = vmax.f32 %v2447, 1e-24
        %v2530 = vmax.f32 %v2450, 1e-24
        %v2531 = vmax.f32 %v2453, 1e-24
        %v2532 = vmax.f32 %v2456, 1e-24
        %v2533 = vmax.f32 %v2459, 1e-24
        %v2534 = vmax.f32 %v2462, 1e-24
        %v2535 = vmax.f32 %v2465, 1e-24
        %v2536 = vmax.f32 %v2468, 1e-24
        %v2537 = vmax.f32 %v2471, 1e-24
        %v2538 = vmax.f32 %v2474, 1e-24
        %v2539 = vmax.f32 %v2477, 1e-24
        %v2540 = vmax.f32 %v2480, 1e-24
        %v2541 = vmax.f32 %v2483, 1e-24
        %v2542 = vmax.f32 %v2486, 1e-24
        %v2543 = vmax.f32 %v2489, 1e-24
        %v2544 = vmax.f32 %v2492, 1e-24
        %v2545 = vmax.f32 %v2495, 1e-24
        %v2546 = vmax.f32 %v2498, 1e-24
        %v2547 = vmax.f32 %v2501, 1e-24
        %v2548 = vmax.f32 %v2504, 1e-24
        %v2549 = vmax.f32 %v2507, 1e-24
        %v2550 = vmax.f32 %v2510, 1e-24
        %v2551 = vmax.f32 %v2513, 1e-24
        %v2552 = vmax.f32 %v2516, 1e-24
        %v2553 = vmax.f32 %v2519, 1e-24
        %v2554 = vmax.f32 %v2522, 1e-24
        %v2555 = vrsqrt.pop %v2523
        %v2556 = vrsqrt.pop %v2524
        %v2557 = vrsqrt.pop %v2525
        %v2558 = vrsqrt.pop %v2526
        %v2559 = vrsqrt.pop %v2527
        %v2560 = vrsqrt.pop %v2528
        %v2561 = vrsqrt.pop %v2529
        %v2562 = vrsqrt.pop %v2530
        %v2563 = vrsqrt.pop %v2531
        %v2564 = vrsqrt.pop %v2532
        %v2565 = vrsqrt.pop %v2533
        %v2566 = vrsqrt.pop %v2534
        %v2567 = vrsqrt.pop %v2535
        %v2568 = vrsqrt.pop %v2536
        %v2569 = vrsqrt.pop %v2537
        %v2570 = vrsqrt.pop %v2538
        %v2571 = vrsqrt.pop %v2539
        %v2572 = vrsqrt.pop %v2540
        %v2573 = vrsqrt.pop %v2541
        %v2574 = vrsqrt.pop %v2542
        %v2575 = vrsqrt.pop %v2543
        %v2576 = vrsqrt.pop %v2544
        %v2577 = vrsqrt.pop %v2545
        %v2578 = vrsqrt.pop %v2546
        %v2579 = vrsqrt.pop %v2547
        %v2580 = vrsqrt.pop %v2548
        %v2581 = vrsqrt.pop %v2549
        %v2582 = vrsqrt.pop %v2550
        %v2583 = vrsqrt.pop %v2551
        %v2584 = vrsqrt.pop %v2552
        %v2585 = vrsqrt.pop %v2553
        %v2586 = vrsqrt.pop %v2554
        %v2587 = vmul.f32 %v487, %v2555
        %v2588 = vmul.f32 %v491, %v2556
        %v2589 = vmul.f32 %v497, %v2557
        %v2590 = vmul.f32 %v501, %v2558
        %v2591 = vmul.f32 %v507, %v2559
        %v2592 = vmul.f32 %v511, %v2560
        %v2593 = vmul.f32 %v517, %v2561
        %v2594 = vmul.f32 %v521, %v2562
        %v2595 = vmul.f32 %v527, %v2563
        %v2596 = vmul.f32 %v531, %v2564
        %v2597 = vmul.f32 %v537, %v2565
        %v2598 = vmul.f32 %v541, %v2566
        %v2599 = vmul.f32 %v547, %v2567
        %v2600 = vmul.f32 %v551, %v2568
        %v2601 = vmul.f32 %v557, %v2569
        %v2602 = vmul.f32 %v561, %v2570
        %v2603 = vmul.f32 %v567, %v2571
        %v2604 = vmul.f32 %v571, %v2572
        %v2605 = vmul.f32 %v577, %v2573
        %v2606 = vmul.f32 %v581, %v2574
        %v2607 = vmul.f32 %v587, %v2575
        %v2608 = vmul.f32 %v591, %v2576
        %v2609 = vmul.f32 %v597, %v2577
        %v2610 = vmul.f32 %v601, %v2578
        %v2611 = vmul.f32 %v607, %v2579
        %v2612 = vmul.f32 %v611, %v2580
        %v2613 = vmul.f32 %v617, %v2581
        %v2614 = vmul.f32 %v621, %v2582
        %v2615 = vmul.f32 %v627, %v2583
        %v2616 = vmul.f32 %v631, %v2584
        %v2617 = vmul.f32 %v637, %v2585
        %v2618 = vmul.f32 %v641, %v2586
        %s2619 = sld [smem:[#allocation13 + $0x2]]
        %v2620 = vstv %s2619
        %v2621 = vmul.f32 %v2587, %v2620
        %v2622 = vmul.f32 %v2588, %v2620
        %v2623 = vmul.f32 %v2589, %v2620
        %v2624 = vmul.f32 %v2590, %v2620
        %v2625 = vmul.f32 %v2591, %v2620
        %v2626 = vmul.f32 %v2592, %v2620
        %v2627 = vmul.f32 %v2593, %v2620
        %v2628 = vmul.f32 %v2594, %v2620
        %v2629 = vmul.f32 %v2595, %v2620
        %v2630 = vmul.f32 %v2596, %v2620
        %v2631 = vmul.f32 %v2597, %v2620
        %v2632 = vmul.f32 %v2598, %v2620
        %v2633 = vmul.f32 %v2599, %v2620
        %v2634 = vmul.f32 %v2600, %v2620
        %v2635 = vmul.f32 %v2601, %v2620
        %v2636 = vmul.f32 %v2602, %v2620
        %v2637 = vmul.f32 %v2603, %v2620
        %v2638 = vmul.f32 %v2604, %v2620
        %v2639 = vmul.f32 %v2605, %v2620
        %v2640 = vmul.f32 %v2606, %v2620
        %v2641 = vmul.f32 %v2607, %v2620
        %v2642 = vmul.f32 %v2608, %v2620
        %v2643 = vmul.f32 %v2609, %v2620
        %v2644 = vmul.f32 %v2610, %v2620
        %v2645 = vmul.f32 %v2611, %v2620
        %v2646 = vmul.f32 %v2612, %v2620
        %v2647 = vmul.f32 %v2613, %v2620
        %v2648 = vmul.f32 %v2614, %v2620
        %v2649 = vmul.f32 %v2615, %v2620
        %v2650 = vmul.f32 %v2616, %v2620
        %v2651 = vmul.f32 %v2617, %v2620
        %v2652 = vmul.f32 %v2618, %v2620
        %v2653 = vpack.c.bf16 %v2622, %v2621
        %v2654 = vpack.c.bf16 %v2624, %v2623
        %v2655 = vpack.c.bf16 %v2626, %v2625
        %v2656 = vpack.c.bf16 %v2628, %v2627
        %v2657 = vpack.c.bf16 %v2630, %v2629
        %v2658 = vpack.c.bf16 %v2632, %v2631
        %v2659 = vpack.c.bf16 %v2634, %v2633
        %v2660 = vpack.c.bf16 %v2636, %v2635
        %v2661 = vpack.c.bf16 %v2638, %v2637
        %v2662 = vpack.c.bf16 %v2640, %v2639
        %v2663 = vpack.c.bf16 %v2642, %v2641
        %v2664 = vpack.c.bf16 %v2644, %v2643
        %v2665 = vpack.c.bf16 %v2646, %v2645
        %v2666 = vpack.c.bf16 %v2648, %v2647
        %v2667 = vpack.c.bf16 %v2650, %v2649
        %v2668 = vpack.c.bf16 %v2652, %v2651
        %2685 = vrot.lane.b32.xlu0 %v2653, 64
        %v2686 = vpop.permute.xlu0 %2685
        %2687 = vrot.lane.b32.xlu0 %v2654, 64
        %v2688 = vpop.permute.xlu0 %2687
        %2689 = vrot.lane.b32.xlu0 %v2655, 64
        %v2690 = vpop.permute.xlu0 %2689
        %2691 = vrot.lane.b32.xlu0 %v2656, 64
        %v2692 = vpop.permute.xlu0 %2691
        %2693 = vrot.lane.b32.xlu0 %v2657, 64
        %v2694 = vpop.permute.xlu0 %2693
        %2695 = vrot.lane.b32.xlu0 %v2658, 64
        %v2696 = vpop.permute.xlu0 %2695
        %2697 = vrot.lane.b32.xlu0 %v2659, 64
        %v2698 = vpop.permute.xlu0 %2697
        %2699 = vrot.lane.b32.xlu0 %v2660, 64
        %v2700 = vpop.permute.xlu0 %2699
        %2701 = vrot.lane.b32.xlu0 %v2661, 64
        %v2702 = vpop.permute.xlu0 %2701
        %2703 = vrot.lane.b32.xlu0 %v2662, 64
        %v2704 = vpop.permute.xlu0 %2703
        %2705 = vrot.lane.b32.xlu0 %v2663, 64
        %v2706 = vpop.permute.xlu0 %2705
        %2707 = vrot.lane.b32.xlu0 %v2664, 64
        %v2708 = vpop.permute.xlu0 %2707
        %2709 = vrot.lane.b32.xlu0 %v2665, 64
        %v2710 = vpop.permute.xlu0 %2709
        %2711 = vrot.lane.b32.xlu0 %v2666, 64
        %v2712 = vpop.permute.xlu0 %2711
        %2713 = vrot.lane.b32.xlu0 %v2667, 64
        %v2714 = vpop.permute.xlu0 %2713
        %2715 = vrot.lane.b32.xlu0 %v2668, 64
        %v2716 = vpop.permute.xlu0 %2715
        %2733 = vst.msk [vmem:[#allocation2 + $0x20] sm:$0xff] %vm838, %v2686
        %2734 = vst.msk [vmem:[#allocation2 + $0x28] sm:$0xff] %vm838, %v2688
        %2735 = vst.msk [vmem:[#allocation2 + $0x60] sm:$0xff] %vm838, %v2690
        %2736 = vst.msk [vmem:[#allocation2 + $0x68] sm:$0xff] %vm838, %v2692
        %2737 = vst.msk [vmem:[#allocation2 + $0xa0] sm:$0xff] %vm838, %v2694
        %2738 = vst.msk [vmem:[#allocation2 + $0xa8] sm:$0xff] %vm838, %v2696
        %2739 = vst.msk [vmem:[#allocation2 + $0xe0] sm:$0xff] %vm838, %v2698
        %2740 = vst.msk [vmem:[#allocation2 + $0xe8] sm:$0xff] %vm838, %v2700
        %2741 = vst.msk [vmem:[#allocation2 + $0x120] sm:$0xff] %vm838, %v2702
        %2742 = vst.msk [vmem:[#allocation2 + $0x128] sm:$0xff] %vm838, %v2704
        %2743 = vst.msk [vmem:[#allocation2 + $0x160] sm:$0xff] %vm838, %v2706
        %2744 = vst.msk [vmem:[#allocation2 + $0x168] sm:$0xff] %vm838, %v2708
        %2745 = vst.msk [vmem:[#allocation2 + $0x1a0] sm:$0xff] %vm838, %v2710
        %2746 = vst.msk [vmem:[#allocation2 + $0x1a8] sm:$0xff] %vm838, %v2712
        %2747 = vst.msk [vmem:[#allocation2 + $0x1e0] sm:$0xff] %vm838, %v2714
        %2748 = vst.msk [vmem:[#allocation2 + $0x1e8] sm:$0xff] %vm838, %v2716
        %2749 = vrot.lane.b32.xlu0 %v1097, 64
        %v2750 = vpop.permute.xlu0 %2749
        %2751 = vrot.lane.b32.xlu0 %v1098, 64
        %v2752 = vpop.permute.xlu0 %2751
        %2753 = vrot.lane.b32.xlu0 %v1099, 64
        %v2754 = vpop.permute.xlu0 %2753
        %2755 = vrot.lane.b32.xlu0 %v1100, 64
        %v2756 = vpop.permute.xlu0 %2755
        %2757 = vrot.lane.b32.xlu0 %v1101, 64
        %v2758 = vpop.permute.xlu0 %2757
        %2759 = vrot.lane.b32.xlu0 %v1102, 64
        %v2760 = vpop.permute.xlu0 %2759
        %2761 = vrot.lane.b32.xlu0 %v1103, 64
        %v2762 = vpop.permute.xlu0 %2761
        %2763 = vrot.lane.b32.xlu0 %v1104, 64
        %v2764 = vpop.permute.xlu0 %2763
        %2765 = vrot.lane.b32.xlu0 %v1105, 64
        %v2766 = vpop.permute.xlu0 %2765
        %2767 = vrot.lane.b32.xlu0 %v1106, 64
        %v2768 = vpop.permute.xlu0 %2767
        %2769 = vrot.lane.b32.xlu0 %v1107, 64
        %v2770 = vpop.permute.xlu0 %2769
        %2771 = vrot.lane.b32.xlu0 %v1108, 64
        %v2772 = vpop.permute.xlu0 %2771
        %2773 = vrot.lane.b32.xlu0 %v1109, 64
        %v2774 = vpop.permute.xlu0 %2773
        %2775 = vrot.lane.b32.xlu0 %v1110, 64
        %v2776 = vpop.permute.xlu0 %2775
        %2777 = vrot.lane.b32.xlu0 %v1111, 64
        %v2778 = vpop.permute.xlu0 %2777
        %2779 = vrot.lane.b32.xlu0 %v1112, 64
        %v2780 = vpop.permute.xlu0 %2779
        %2781 = vrot.lane.b32.xlu0 %v1113, 64
        %v2782 = vpop.permute.xlu0 %2781
        %2783 = vrot.lane.b32.xlu0 %v1114, 64
        %v2784 = vpop.permute.xlu0 %2783
        %2785 = vrot.lane.b32.xlu0 %v1115, 64
        %v2786 = vpop.permute.xlu0 %2785
        %2787 = vrot.lane.b32.xlu0 %v1116, 64
        %v2788 = vpop.permute.xlu0 %2787
        %2789 = vrot.lane.b32.xlu0 %v1117, 64
        %v2790 = vpop.permute.xlu0 %2789
        %2791 = vrot.lane.b32.xlu0 %v1118, 64
        %v2792 = vpop.permute.xlu0 %2791
        %2793 = vrot.lane.b32.xlu0 %v1119, 64
        %v2794 = vpop.permute.xlu0 %2793
        %2795 = vrot.lane.b32.xlu0 %v1120, 64
        %v2796 = vpop.permute.xlu0 %2795
        %2797 = vrot.lane.b32.xlu0 %v1121, 64
        %v2798 = vpop.permute.xlu0 %2797
        %2799 = vrot.lane.b32.xlu0 %v1122, 64
        %v2800 = vpop.permute.xlu0 %2799
        %2801 = vrot.lane.b32.xlu0 %v1123, 64
        %v2802 = vpop.permute.xlu0 %2801
        %2803 = vrot.lane.b32.xlu0 %v1124, 64
        %v2804 = vpop.permute.xlu0 %2803
        %2805 = vrot.lane.b32.xlu0 %v1125, 64
        %v2806 = vpop.permute.xlu0 %2805
        %2807 = vrot.lane.b32.xlu0 %v1126, 64
        %v2808 = vpop.permute.xlu0 %2807
        %2809 = vrot.lane.b32.xlu0 %v1127, 64
        %v2810 = vpop.permute.xlu0 %2809
        %2811 = vrot.lane.b32.xlu0 %v1128, 64
        %v2812 = vpop.permute.xlu0 %2811
        %v2845 = vsel %vm838, %v2750, 0.0
        %2846 = vadd.xlane.f32.xlu0 %v2845
        %v2847 = vpop.xlane.xlu0 %2846
        %v2848 = vsel %vm838, %v2752, 0.0
        %2849 = vadd.xlane.f32.xlu0 %v2848
        %v2850 = vpop.xlane.xlu0 %2849
        %v2851 = vsel %vm838, %v2754, 0.0
        %2852 = vadd.xlane.f32.xlu0 %v2851
        %v2853 = vpop.xlane.xlu0 %2852
        %v2854 = vsel %vm838, %v2756, 0.0
        %2855 = vadd.xlane.f32.xlu0 %v2854
        %v2856 = vpop.xlane.xlu0 %2855
        %v2857 = vsel %vm838, %v2758, 0.0
        %2858 = vadd.xlane.f32.xlu0 %v2857
        %v2859 = vpop.xlane.xlu0 %2858
        %v2860 = vsel %vm838, %v2760, 0.0
        %2861 = vadd.xlane.f32.xlu0 %v2860
        %v2862 = vpop.xlane.xlu0 %2861
        %v2863 = vsel %vm838, %v2762, 0.0
        %2864 = vadd.xlane.f32.xlu0 %v2863
        %v2865 = vpop.xlane.xlu0 %2864
        %v2866 = vsel %vm838, %v2764, 0.0
        %2867 = vadd.xlane.f32.xlu0 %v2866
        %v2868 = vpop.xlane.xlu0 %2867
        %v2869 = vsel %vm838, %v2766, 0.0
        %2870 = vadd.xlane.f32.xlu0 %v2869
        %v2871 = vpop.xlane.xlu0 %2870
        %v2872 = vsel %vm838, %v2768, 0.0
        %2873 = vadd.xlane.f32.xlu0 %v2872
        %v2874 = vpop.xlane.xlu0 %2873
        %v2875 = vsel %vm838, %v2770, 0.0
        %2876 = vadd.xlane.f32.xlu0 %v2875
        %v2877 = vpop.xlane.xlu0 %2876
        %v2878 = vsel %vm838, %v2772, 0.0
        %2879 = vadd.xlane.f32.xlu0 %v2878
        %v2880 = vpop.xlane.xlu0 %2879
        %v2881 = vsel %vm838, %v2774, 0.0
        %2882 = vadd.xlane.f32.xlu0 %v2881
        %v2883 = vpop.xlane.xlu0 %2882
        %v2884 = vsel %vm838, %v2776, 0.0
        %2885 = vadd.xlane.f32.xlu0 %v2884
        %v2886 = vpop.xlane.xlu0 %2885
        %v2887 = vsel %vm838, %v2778, 0.0
        %2888 = vadd.xlane.f32.xlu0 %v2887
        %v2889 = vpop.xlane.xlu0 %2888
        %v2890 = vsel %vm838, %v2780, 0.0
        %2891 = vadd.xlane.f32.xlu0 %v2890
        %v2892 = vpop.xlane.xlu0 %2891
        %v2893 = vsel %vm838, %v2782, 0.0
        %2894 = vadd.xlane.f32.xlu0 %v2893
        %v2895 = vpop.xlane.xlu0 %2894
        %v2896 = vsel %vm838, %v2784, 0.0
        %2897 = vadd.xlane.f32.xlu0 %v2896
        %v2898 = vpop.xlane.xlu0 %2897
        %v2899 = vsel %vm838, %v2786, 0.0
        %2900 = vadd.xlane.f32.xlu0 %v2899
        %v2901 = vpop.xlane.xlu0 %2900
        %v2902 = vsel %vm838, %v2788, 0.0
        %2903 = vadd.xlane.f32.xlu0 %v2902
        %v2904 = vpop.xlane.xlu0 %2903
        %v2905 = vsel %vm838, %v2790, 0.0
        %2906 = vadd.xlane.f32.xlu0 %v2905
        %v2907 = vpop.xlane.xlu0 %2906
        %v2908 = vsel %vm838, %v2792, 0.0
        %2909 = vadd.xlane.f32.xlu0 %v2908
        %v2910 = vpop.xlane.xlu0 %2909
        %v2911 = vsel %vm838, %v2794, 0.0
        %2912 = vadd.xlane.f32.xlu0 %v2911
        %v2913 = vpop.xlane.xlu0 %2912
        %v2914 = vsel %vm838, %v2796, 0.0
        %2915 = vadd.xlane.f32.xlu0 %v2914
        %v2916 = vpop.xlane.xlu0 %2915
        %v2917 = vsel %vm838, %v2798, 0.0
        %2918 = vadd.xlane.f32.xlu0 %v2917
        %v2919 = vpop.xlane.xlu0 %2918
        %v2920 = vsel %vm838, %v2800, 0.0
        %2921 = vadd.xlane.f32.xlu0 %v2920
        %v2922 = vpop.xlane.xlu0 %2921
        %v2923 = vsel %vm838, %v2802, 0.0
        %2924 = vadd.xlane.f32.xlu0 %v2923
        %v2925 = vpop.xlane.xlu0 %2924
        %v2926 = vsel %vm838, %v2804, 0.0
        %2927 = vadd.xlane.f32.xlu0 %v2926
        %v2928 = vpop.xlane.xlu0 %2927
        %v2929 = vsel %vm838, %v2806, 0.0
        %2930 = vadd.xlane.f32.xlu0 %v2929
        %v2931 = vpop.xlane.xlu0 %2930
        %v2932 = vsel %vm838, %v2808, 0.0
        %2933 = vadd.xlane.f32.xlu0 %v2932
        %v2934 = vpop.xlane.xlu0 %2933
        %v2935 = vsel %vm838, %v2810, 0.0
        %2936 = vadd.xlane.f32.xlu0 %v2935
        %v2937 = vpop.xlane.xlu0 %2936
        %v2938 = vsel %vm838, %v2812, 0.0
        %2939 = vadd.xlane.f32.xlu0 %v2938
        %v2940 = vpop.xlane.xlu0 %2939
        %v2941 = vmax.f32 %v2847, 1e-24
        %v2942 = vmax.f32 %v2850, 1e-24
        %v2943 = vmax.f32 %v2853, 1e-24
        %v2944 = vmax.f32 %v2856, 1e-24
        %v2945 = vmax.f32 %v2859, 1e-24
        %v2946 = vmax.f32 %v2862, 1e-24
        %v2947 = vmax.f32 %v2865, 1e-24
        %v2948 = vmax.f32 %v2868, 1e-24
        %v2949 = vmax.f32 %v2871, 1e-24
        %v2950 = vmax.f32 %v2874, 1e-24
        %v2951 = vmax.f32 %v2877, 1e-24
        %v2952 = vmax.f32 %v2880, 1e-24
        %v2953 = vmax.f32 %v2883, 1e-24
        %v2954 = vmax.f32 %v2886, 1e-24
        %v2955 = vmax.f32 %v2889, 1e-24
        %v2956 = vmax.f32 %v2892, 1e-24
        %v2957 = vmax.f32 %v2895, 1e-24
        %v2958 = vmax.f32 %v2898, 1e-24
        %v2959 = vmax.f32 %v2901, 1e-24
        %v2960 = vmax.f32 %v2904, 1e-24
        %v2961 = vmax.f32 %v2907, 1e-24
        %v2962 = vmax.f32 %v2910, 1e-24
        %v2963 = vmax.f32 %v2913, 1e-24
        %v2964 = vmax.f32 %v2916, 1e-24
        %v2965 = vmax.f32 %v2919, 1e-24
        %v2966 = vmax.f32 %v2922, 1e-24
        %v2967 = vmax.f32 %v2925, 1e-24
        %v2968 = vmax.f32 %v2928, 1e-24
        %v2969 = vmax.f32 %v2931, 1e-24
        %v2970 = vmax.f32 %v2934, 1e-24
        %v2971 = vmax.f32 %v2937, 1e-24
        %v2972 = vmax.f32 %v2940, 1e-24
        %v2973 = vrsqrt.pop %v2941
        %v2974 = vrsqrt.pop %v2942
        %v2975 = vrsqrt.pop %v2943
        %v2976 = vrsqrt.pop %v2944
        %v2977 = vrsqrt.pop %v2945
        %v2978 = vrsqrt.pop %v2946
        %v2979 = vrsqrt.pop %v2947
        %v2980 = vrsqrt.pop %v2948
        %v2981 = vrsqrt.pop %v2949
        %v2982 = vrsqrt.pop %v2950
        %v2983 = vrsqrt.pop %v2951
        %v2984 = vrsqrt.pop %v2952
        %v2985 = vrsqrt.pop %v2953
        %v2986 = vrsqrt.pop %v2954
        %v2987 = vrsqrt.pop %v2955
        %v2988 = vrsqrt.pop %v2956
        %v2989 = vrsqrt.pop %v2957
        %v2990 = vrsqrt.pop %v2958
        %v2991 = vrsqrt.pop %v2959
        %v2992 = vrsqrt.pop %v2960
        %v2993 = vrsqrt.pop %v2961
        %v2994 = vrsqrt.pop %v2962
        %v2995 = vrsqrt.pop %v2963
        %v2996 = vrsqrt.pop %v2964
        %v2997 = vrsqrt.pop %v2965
        %v2998 = vrsqrt.pop %v2966
        %v2999 = vrsqrt.pop %v2967
        %v3000 = vrsqrt.pop %v2968
        %v3001 = vrsqrt.pop %v2969
        %v3002 = vrsqrt.pop %v2970
        %v3003 = vrsqrt.pop %v2971
        %v3004 = vrsqrt.pop %v2972
        %v3005 = vmul.f32 %v489, %v2973
        %v3006 = vmul.f32 %v493, %v2974
        %v3007 = vmul.f32 %v499, %v2975
        %v3008 = vmul.f32 %v503, %v2976
        %v3009 = vmul.f32 %v509, %v2977
        %v3010 = vmul.f32 %v513, %v2978
        %v3011 = vmul.f32 %v519, %v2979
        %v3012 = vmul.f32 %v523, %v2980
        %v3013 = vmul.f32 %v529, %v2981
        %v3014 = vmul.f32 %v533, %v2982
        %v3015 = vmul.f32 %v539, %v2983
        %v3016 = vmul.f32 %v543, %v2984
        %v3017 = vmul.f32 %v549, %v2985
        %v3018 = vmul.f32 %v553, %v2986
        %v3019 = vmul.f32 %v559, %v2987
        %v3020 = vmul.f32 %v563, %v2988
        %v3021 = vmul.f32 %v569, %v2989
        %v3022 = vmul.f32 %v573, %v2990
        %v3023 = vmul.f32 %v579, %v2991
        %v3024 = vmul.f32 %v583, %v2992
        %v3025 = vmul.f32 %v589, %v2993
        %v3026 = vmul.f32 %v593, %v2994
        %v3027 = vmul.f32 %v599, %v2995
        %v3028 = vmul.f32 %v603, %v2996
        %v3029 = vmul.f32 %v609, %v2997
        %v3030 = vmul.f32 %v613, %v2998
        %v3031 = vmul.f32 %v619, %v2999
        %v3032 = vmul.f32 %v623, %v3000
        %v3033 = vmul.f32 %v629, %v3001
        %v3034 = vmul.f32 %v633, %v3002
        %v3035 = vmul.f32 %v639, %v3003
        %v3036 = vmul.f32 %v643, %v3004
        %v3037 = vpack.c.bf16 %v3006, %v3005
        %v3038 = vpack.c.bf16 %v3008, %v3007
        %v3039 = vpack.c.bf16 %v3010, %v3009
        %v3040 = vpack.c.bf16 %v3012, %v3011
        %v3041 = vpack.c.bf16 %v3014, %v3013
        %v3042 = vpack.c.bf16 %v3016, %v3015
        %v3043 = vpack.c.bf16 %v3018, %v3017
        %v3044 = vpack.c.bf16 %v3020, %v3019
        %v3045 = vpack.c.bf16 %v3022, %v3021
        %v3046 = vpack.c.bf16 %v3024, %v3023
        %v3047 = vpack.c.bf16 %v3026, %v3025
        %v3048 = vpack.c.bf16 %v3028, %v3027
        %v3049 = vpack.c.bf16 %v3030, %v3029
        %v3050 = vpack.c.bf16 %v3032, %v3031
        %v3051 = vpack.c.bf16 %v3034, %v3033
        %v3052 = vpack.c.bf16 %v3036, %v3035
        %3069 = vrot.lane.b32.xlu0 %v3037, 64
        %v3070 = vpop.permute.xlu0 %3069
        %3071 = vrot.lane.b32.xlu0 %v3038, 64
        %v3072 = vpop.permute.xlu0 %3071
        %3073 = vrot.lane.b32.xlu0 %v3039, 64
        %v3074 = vpop.permute.xlu0 %3073
        %3075 = vrot.lane.b32.xlu0 %v3040, 64
        %v3076 = vpop.permute.xlu0 %3075
        %3077 = vrot.lane.b32.xlu0 %v3041, 64
        %v3078 = vpop.permute.xlu0 %3077
        %3079 = vrot.lane.b32.xlu0 %v3042, 64
        %v3080 = vpop.permute.xlu0 %3079
        %3081 = vrot.lane.b32.xlu0 %v3043, 64
        %v3082 = vpop.permute.xlu0 %3081
        %3083 = vrot.lane.b32.xlu0 %v3044, 64
        %v3084 = vpop.permute.xlu0 %3083
        %3085 = vrot.lane.b32.xlu0 %v3045, 64
        %v3086 = vpop.permute.xlu0 %3085
        %3087 = vrot.lane.b32.xlu0 %v3046, 64
        %v3088 = vpop.permute.xlu0 %3087
        %3089 = vrot.lane.b32.xlu0 %v3047, 64
        %v3090 = vpop.permute.xlu0 %3089
        %3091 = vrot.lane.b32.xlu0 %v3048, 64
        %v3092 = vpop.permute.xlu0 %3091
        %3093 = vrot.lane.b32.xlu0 %v3049, 64
        %v3094 = vpop.permute.xlu0 %3093
        %3095 = vrot.lane.b32.xlu0 %v3050, 64
        %v3096 = vpop.permute.xlu0 %3095
        %3097 = vrot.lane.b32.xlu0 %v3051, 64
        %v3098 = vpop.permute.xlu0 %3097
        %3099 = vrot.lane.b32.xlu0 %v3052, 64
        %v3100 = vpop.permute.xlu0 %3099
        %3117 = vst.msk [vmem:[#allocation3 + $0x20] sm:$0xff] %vm838, %v3070
        %3118 = vst.msk [vmem:[#allocation3 + $0x28] sm:$0xff] %vm838, %v3072
        %3119 = vst.msk [vmem:[#allocation3 + $0x60] sm:$0xff] %vm838, %v3074
        %3120 = vst.msk [vmem:[#allocation3 + $0x68] sm:$0xff] %vm838, %v3076
        %3121 = vst.msk [vmem:[#allocation3 + $0xa0] sm:$0xff] %vm838, %v3078
        %3122 = vst.msk [vmem:[#allocation3 + $0xa8] sm:$0xff] %vm838, %v3080
        %3123 = vst.msk [vmem:[#allocation3 + $0xe0] sm:$0xff] %vm838, %v3082
        %3124 = vst.msk [vmem:[#allocation3 + $0xe8] sm:$0xff] %vm838, %v3084
        %3125 = vst.msk [vmem:[#allocation3 + $0x120] sm:$0xff] %vm838, %v3086
        %3126 = vst.msk [vmem:[#allocation3 + $0x128] sm:$0xff] %vm838, %v3088
        %3127 = vst.msk [vmem:[#allocation3 + $0x160] sm:$0xff] %vm838, %v3090
        %3128 = vst.msk [vmem:[#allocation3 + $0x168] sm:$0xff] %vm838, %v3092
        %3129 = vst.msk [vmem:[#allocation3 + $0x1a0] sm:$0xff] %vm838, %v3094
        %3130 = vst.msk [vmem:[#allocation3 + $0x1a8] sm:$0xff] %vm838, %v3096
        %3131 = vst.msk [vmem:[#allocation3 + $0x1e0] sm:$0xff] %vm838, %v3098
        %3132 = vst.msk [vmem:[#allocation3 + $0x1e8] sm:$0xff] %vm838, %v3100
        %3133 = vrot.lane.b32.xlu0 %v1353, 64
        %v3134 = vpop.permute.xlu0 %3133
        %3135 = vrot.lane.b32.xlu0 %v1354, 64
        %v3136 = vpop.permute.xlu0 %3135
        %3137 = vrot.lane.b32.xlu0 %v1355, 64
        %v3138 = vpop.permute.xlu0 %3137
        %3139 = vrot.lane.b32.xlu0 %v1356, 64
        %v3140 = vpop.permute.xlu0 %3139
        %3141 = vrot.lane.b32.xlu0 %v1357, 64
        %v3142 = vpop.permute.xlu0 %3141
        %3143 = vrot.lane.b32.xlu0 %v1358, 64
        %v3144 = vpop.permute.xlu0 %3143
        %3145 = vrot.lane.b32.xlu0 %v1359, 64
        %v3146 = vpop.permute.xlu0 %3145
        %3147 = vrot.lane.b32.xlu0 %v1360, 64
        %v3148 = vpop.permute.xlu0 %3147
        %3149 = vrot.lane.b32.xlu0 %v1361, 64
        %v3150 = vpop.permute.xlu0 %3149
        %3151 = vrot.lane.b32.xlu0 %v1362, 64
        %v3152 = vpop.permute.xlu0 %3151
        %3153 = vrot.lane.b32.xlu0 %v1363, 64
        %v3154 = vpop.permute.xlu0 %3153
        %3155 = vrot.lane.b32.xlu0 %v1364, 64
        %v3156 = vpop.permute.xlu0 %3155
        %3157 = vrot.lane.b32.xlu0 %v1365, 64
        %v3158 = vpop.permute.xlu0 %3157
        %3159 = vrot.lane.b32.xlu0 %v1366, 64
        %v3160 = vpop.permute.xlu0 %3159
        %3161 = vrot.lane.b32.xlu0 %v1367, 64
        %v3162 = vpop.permute.xlu0 %3161
        %3163 = vrot.lane.b32.xlu0 %v1368, 64
        %v3164 = vpop.permute.xlu0 %3163
        %3181 = vst.msk [vmem:[#allocation4 + $0x20] sm:$0xff] %vm838, %v3134
        %3182 = vst.msk [vmem:[#allocation4 + $0x28] sm:$0xff] %vm838, %v3136
        %3183 = vst.msk [vmem:[#allocation4 + $0x60] sm:$0xff] %vm838, %v3138
        %3184 = vst.msk [vmem:[#allocation4 + $0x68] sm:$0xff] %vm838, %v3140
        %3185 = vst.msk [vmem:[#allocation4 + $0xa0] sm:$0xff] %vm838, %v3142
        %3186 = vst.msk [vmem:[#allocation4 + $0xa8] sm:$0xff] %vm838, %v3144
        %3187 = vst.msk [vmem:[#allocation4 + $0xe0] sm:$0xff] %vm838, %v3146
        %3188 = vst.msk [vmem:[#allocation4 + $0xe8] sm:$0xff] %vm838, %v3148
        %3189 = vst.msk [vmem:[#allocation4 + $0x120] sm:$0xff] %vm838, %v3150
        %3190 = vst.msk [vmem:[#allocation4 + $0x128] sm:$0xff] %vm838, %v3152
        %3191 = vst.msk [vmem:[#allocation4 + $0x160] sm:$0xff] %vm838, %v3154
        %3192 = vst.msk [vmem:[#allocation4 + $0x168] sm:$0xff] %vm838, %v3156
        %3193 = vst.msk [vmem:[#allocation4 + $0x1a0] sm:$0xff] %vm838, %v3158
        %3194 = vst.msk [vmem:[#allocation4 + $0x1a8] sm:$0xff] %vm838, %v3160
        %3195 = vst.msk [vmem:[#allocation4 + $0x1e0] sm:$0xff] %vm838, %v3162
        %3196 = vst.msk [vmem:[#allocation4 + $0x1e8] sm:$0xff] %vm838, %v3164
        %3197 = vrot.lane.b32.xlu0 %v806, 32
        %v3198 = vpop.permute.xlu0 %3197
        %3199 = vrot.lane.b32.xlu0 %v807, 32
        %v3200 = vpop.permute.xlu0 %3199
        %3201 = vrot.lane.b32.xlu0 %v808, 32
        %v3202 = vpop.permute.xlu0 %3201
        %3203 = vrot.lane.b32.xlu0 %v809, 32
        %v3204 = vpop.permute.xlu0 %3203
        %3205 = vrot.lane.b32.xlu0 %v810, 32
        %v3206 = vpop.permute.xlu0 %3205
        %3207 = vrot.lane.b32.xlu0 %v811, 32
        %v3208 = vpop.permute.xlu0 %3207
        %3209 = vrot.lane.b32.xlu0 %v812, 32
        %v3210 = vpop.permute.xlu0 %3209
        %3211 = vrot.lane.b32.xlu0 %v813, 32
        %v3212 = vpop.permute.xlu0 %3211
        %3213 = vrot.lane.b32.xlu0 %v814, 32
        %v3214 = vpop.permute.xlu0 %3213
        %3215 = vrot.lane.b32.xlu0 %v815, 32
        %v3216 = vpop.permute.xlu0 %3215
        %3217 = vrot.lane.b32.xlu0 %v816, 32
        %v3218 = vpop.permute.xlu0 %3217
        %3219 = vrot.lane.b32.xlu0 %v817, 32
        %v3220 = vpop.permute.xlu0 %3219
        %3221 = vrot.lane.b32.xlu0 %v818, 32
        %v3222 = vpop.permute.xlu0 %3221
        %3223 = vrot.lane.b32.xlu0 %v819, 32
        %v3224 = vpop.permute.xlu0 %3223
        %3225 = vrot.lane.b32.xlu0 %v820, 32
        %v3226 = vpop.permute.xlu0 %3225
        %3227 = vrot.lane.b32.xlu0 %v821, 32
        %v3228 = vpop.permute.xlu0 %3227
        %3229 = vrot.lane.b32.xlu0 %v822, 32
        %v3230 = vpop.permute.xlu0 %3229
        %3231 = vrot.lane.b32.xlu0 %v823, 32
        %v3232 = vpop.permute.xlu0 %3231
        %3233 = vrot.lane.b32.xlu0 %v824, 32
        %v3234 = vpop.permute.xlu0 %3233
        %3235 = vrot.lane.b32.xlu0 %v825, 32
        %v3236 = vpop.permute.xlu0 %3235
        %3237 = vrot.lane.b32.xlu0 %v826, 32
        %v3238 = vpop.permute.xlu0 %3237
        %3239 = vrot.lane.b32.xlu0 %v827, 32
        %v3240 = vpop.permute.xlu0 %3239
        %3241 = vrot.lane.b32.xlu0 %v828, 32
        %v3242 = vpop.permute.xlu0 %3241
        %3243 = vrot.lane.b32.xlu0 %v829, 32
        %v3244 = vpop.permute.xlu0 %3243
        %3245 = vrot.lane.b32.xlu0 %v830, 32
        %v3246 = vpop.permute.xlu0 %3245
        %3247 = vrot.lane.b32.xlu0 %v831, 32
        %v3248 = vpop.permute.xlu0 %3247
        %3249 = vrot.lane.b32.xlu0 %v832, 32
        %v3250 = vpop.permute.xlu0 %3249
        %3251 = vrot.lane.b32.xlu0 %v833, 32
        %v3252 = vpop.permute.xlu0 %3251
        %3253 = vrot.lane.b32.xlu0 %v834, 32
        %v3254 = vpop.permute.xlu0 %3253
        %3255 = vrot.lane.b32.xlu0 %v835, 32
        %v3256 = vpop.permute.xlu0 %3255
        %3257 = vrot.lane.b32.xlu0 %v836, 32
        %v3258 = vpop.permute.xlu0 %3257
        %3259 = vrot.lane.b32.xlu0 %v837, 32
        %v3260 = vpop.permute.xlu0 %3259
        %v3293 = vsel %vm838, %v3198, 0.0
        %3294 = vadd.xlane.f32.xlu0 %v3293
        %v3295 = vpop.xlane.xlu0 %3294
        %v3296 = vsel %vm838, %v3200, 0.0
        %3297 = vadd.xlane.f32.xlu0 %v3296
        %v3298 = vpop.xlane.xlu0 %3297
        %v3299 = vsel %vm838, %v3202, 0.0
        %3300 = vadd.xlane.f32.xlu0 %v3299
        %v3301 = vpop.xlane.xlu0 %3300
        %v3302 = vsel %vm838, %v3204, 0.0
        %3303 = vadd.xlane.f32.xlu0 %v3302
        %v3304 = vpop.xlane.xlu0 %3303
        %v3305 = vsel %vm838, %v3206, 0.0
        %3306 = vadd.xlane.f32.xlu0 %v3305
        %v3307 = vpop.xlane.xlu0 %3306
        %v3308 = vsel %vm838, %v3208, 0.0
        %3309 = vadd.xlane.f32.xlu0 %v3308
        %v3310 = vpop.xlane.xlu0 %3309
        %v3311 = vsel %vm838, %v3210, 0.0
        %3312 = vadd.xlane.f32.xlu0 %v3311
        %v3313 = vpop.xlane.xlu0 %3312
        %v3314 = vsel %vm838, %v3212, 0.0
        %3315 = vadd.xlane.f32.xlu0 %v3314
        %v3316 = vpop.xlane.xlu0 %3315
        %v3317 = vsel %vm838, %v3214, 0.0
        %3318 = vadd.xlane.f32.xlu0 %v3317
        %v3319 = vpop.xlane.xlu0 %3318
        %v3320 = vsel %vm838, %v3216, 0.0
        %3321 = vadd.xlane.f32.xlu0 %v3320
        %v3322 = vpop.xlane.xlu0 %3321
        %v3323 = vsel %vm838, %v3218, 0.0
        %3324 = vadd.xlane.f32.xlu0 %v3323
        %v3325 = vpop.xlane.xlu0 %3324
        %v3326 = vsel %vm838, %v3220, 0.0
        %3327 = vadd.xlane.f32.xlu0 %v3326
        %v3328 = vpop.xlane.xlu0 %3327
        %v3329 = vsel %vm838, %v3222, 0.0
        %3330 = vadd.xlane.f32.xlu0 %v3329
        %v3331 = vpop.xlane.xlu0 %3330
        %v3332 = vsel %vm838, %v3224, 0.0
        %3333 = vadd.xlane.f32.xlu0 %v3332
        %v3334 = vpop.xlane.xlu0 %3333
        %v3335 = vsel %vm838, %v3226, 0.0
        %3336 = vadd.xlane.f32.xlu0 %v3335
        %v3337 = vpop.xlane.xlu0 %3336
        %v3338 = vsel %vm838, %v3228, 0.0
        %3339 = vadd.xlane.f32.xlu0 %v3338
        %v3340 = vpop.xlane.xlu0 %3339
        %v3341 = vsel %vm838, %v3230, 0.0
        %3342 = vadd.xlane.f32.xlu0 %v3341
        %v3343 = vpop.xlane.xlu0 %3342
        %v3344 = vsel %vm838, %v3232, 0.0
        %3345 = vadd.xlane.f32.xlu0 %v3344
        %v3346 = vpop.xlane.xlu0 %3345
        %v3347 = vsel %vm838, %v3234, 0.0
        %3348 = vadd.xlane.f32.xlu0 %v3347
        %v3349 = vpop.xlane.xlu0 %3348
        %v3350 = vsel %vm838, %v3236, 0.0
        %3351 = vadd.xlane.f32.xlu0 %v3350
        %v3352 = vpop.xlane.xlu0 %3351
        %v3353 = vsel %vm838, %v3238, 0.0
        %3354 = vadd.xlane.f32.xlu0 %v3353
        %v3355 = vpop.xlane.xlu0 %3354
        %v3356 = vsel %vm838, %v3240, 0.0
        %3357 = vadd.xlane.f32.xlu0 %v3356
        %v3358 = vpop.xlane.xlu0 %3357
        %v3359 = vsel %vm838, %v3242, 0.0
        %3360 = vadd.xlane.f32.xlu0 %v3359
        %v3361 = vpop.xlane.xlu0 %3360
        %v3362 = vsel %vm838, %v3244, 0.0
        %3363 = vadd.xlane.f32.xlu0 %v3362
        %v3364 = vpop.xlane.xlu0 %3363
        %v3365 = vsel %vm838, %v3246, 0.0
        %3366 = vadd.xlane.f32.xlu0 %v3365
        %v3367 = vpop.xlane.xlu0 %3366
        %v3368 = vsel %vm838, %v3248, 0.0
        %3369 = vadd.xlane.f32.xlu0 %v3368
        %v3370 = vpop.xlane.xlu0 %3369
        %v3371 = vsel %vm838, %v3250, 0.0
        %3372 = vadd.xlane.f32.xlu0 %v3371
        %v3373 = vpop.xlane.xlu0 %3372
        %v3374 = vsel %vm838, %v3252, 0.0
        %3375 = vadd.xlane.f32.xlu0 %v3374
        %v3376 = vpop.xlane.xlu0 %3375
        %v3377 = vsel %vm838, %v3254, 0.0
        %3378 = vadd.xlane.f32.xlu0 %v3377
        %v3379 = vpop.xlane.xlu0 %3378
        %v3380 = vsel %vm838, %v3256, 0.0
        %3381 = vadd.xlane.f32.xlu0 %v3380
        %v3382 = vpop.xlane.xlu0 %3381
        %v3383 = vsel %vm838, %v3258, 0.0
        %3384 = vadd.xlane.f32.xlu0 %v3383
        %v3385 = vpop.xlane.xlu0 %3384
        %v3386 = vsel %vm838, %v3260, 0.0
        %3387 = vadd.xlane.f32.xlu0 %v3386
        %v3388 = vpop.xlane.xlu0 %3387
        %v3389 = vmax.f32 %v3295, 1e-24
        %v3390 = vmax.f32 %v3298, 1e-24
        %v3391 = vmax.f32 %v3301, 1e-24
        %v3392 = vmax.f32 %v3304, 1e-24
        %v3393 = vmax.f32 %v3307, 1e-24
        %v3394 = vmax.f32 %v3310, 1e-24
        %v3395 = vmax.f32 %v3313, 1e-24
        %v3396 = vmax.f32 %v3316, 1e-24
        %v3397 = vmax.f32 %v3319, 1e-24
        %v3398 = vmax.f32 %v3322, 1e-24
        %v3399 = vmax.f32 %v3325, 1e-24
        %v3400 = vmax.f32 %v3328, 1e-24
        %v3401 = vmax.f32 %v3331, 1e-24
        %v3402 = vmax.f32 %v3334, 1e-24
        %v3403 = vmax.f32 %v3337, 1e-24
        %v3404 = vmax.f32 %v3340, 1e-24
        %v3405 = vmax.f32 %v3343, 1e-24
        %v3406 = vmax.f32 %v3346, 1e-24
        %v3407 = vmax.f32 %v3349, 1e-24
        %v3408 = vmax.f32 %v3352, 1e-24
        %v3409 = vmax.f32 %v3355, 1e-24
        %v3410 = vmax.f32 %v3358, 1e-24
        %v3411 = vmax.f32 %v3361, 1e-24
        %v3412 = vmax.f32 %v3364, 1e-24
        %v3413 = vmax.f32 %v3367, 1e-24
        %v3414 = vmax.f32 %v3370, 1e-24
        %v3415 = vmax.f32 %v3373, 1e-24
        %v3416 = vmax.f32 %v3376, 1e-24
        %v3417 = vmax.f32 %v3379, 1e-24
        %v3418 = vmax.f32 %v3382, 1e-24
        %v3419 = vmax.f32 %v3385, 1e-24
        %v3420 = vmax.f32 %v3388, 1e-24
        %v3421 = vrsqrt.pop %v3389
        %v3422 = vrsqrt.pop %v3390
        %v3423 = vrsqrt.pop %v3391
        %v3424 = vrsqrt.pop %v3392
        %v3425 = vrsqrt.pop %v3393
        %v3426 = vrsqrt.pop %v3394
        %v3427 = vrsqrt.pop %v3395
        %v3428 = vrsqrt.pop %v3396
        %v3429 = vrsqrt.pop %v3397
        %v3430 = vrsqrt.pop %v3398
        %v3431 = vrsqrt.pop %v3399
        %v3432 = vrsqrt.pop %v3400
        %v3433 = vrsqrt.pop %v3401
        %v3434 = vrsqrt.pop %v3402
        %v3435 = vrsqrt.pop %v3403
        %v3436 = vrsqrt.pop %v3404
        %v3437 = vrsqrt.pop %v3405
        %v3438 = vrsqrt.pop %v3406
        %v3439 = vrsqrt.pop %v3407
        %v3440 = vrsqrt.pop %v3408
        %v3441 = vrsqrt.pop %v3409
        %v3442 = vrsqrt.pop %v3410
        %v3443 = vrsqrt.pop %v3411
        %v3444 = vrsqrt.pop %v3412
        %v3445 = vrsqrt.pop %v3413
        %v3446 = vrsqrt.pop %v3414
        %v3447 = vrsqrt.pop %v3415
        %v3448 = vrsqrt.pop %v3416
        %v3449 = vrsqrt.pop %v3417
        %v3450 = vrsqrt.pop %v3418
        %v3451 = vrsqrt.pop %v3419
        %v3452 = vrsqrt.pop %v3420
        %v3453 = vmul.f32 %v487, %v3421
        %v3454 = vmul.f32 %v491, %v3422
        %v3455 = vmul.f32 %v497, %v3423
        %v3456 = vmul.f32 %v501, %v3424
        %v3457 = vmul.f32 %v507, %v3425
        %v3458 = vmul.f32 %v511, %v3426
        %v3459 = vmul.f32 %v517, %v3427
        %v3460 = vmul.f32 %v521, %v3428
        %v3461 = vmul.f32 %v527, %v3429
        %v3462 = vmul.f32 %v531, %v3430
        %v3463 = vmul.f32 %v537, %v3431
        %v3464 = vmul.f32 %v541, %v3432
        %v3465 = vmul.f32 %v547, %v3433
        %v3466 = vmul.f32 %v551, %v3434
        %v3467 = vmul.f32 %v557, %v3435
        %v3468 = vmul.f32 %v561, %v3436
        %v3469 = vmul.f32 %v567, %v3437
        %v3470 = vmul.f32 %v571, %v3438
        %v3471 = vmul.f32 %v577, %v3439
        %v3472 = vmul.f32 %v581, %v3440
        %v3473 = vmul.f32 %v587, %v3441
        %v3474 = vmul.f32 %v591, %v3442
        %v3475 = vmul.f32 %v597, %v3443
        %v3476 = vmul.f32 %v601, %v3444
        %v3477 = vmul.f32 %v607, %v3445
        %v3478 = vmul.f32 %v611, %v3446
        %v3479 = vmul.f32 %v617, %v3447
        %v3480 = vmul.f32 %v621, %v3448
        %v3481 = vmul.f32 %v627, %v3449
        %v3482 = vmul.f32 %v631, %v3450
        %v3483 = vmul.f32 %v637, %v3451
        %v3484 = vmul.f32 %v641, %v3452
        %s3485 = sld [smem:[#allocation13 + $0x3]]
        %v3486 = vstv %s3485
        %v3487 = vmul.f32 %v3453, %v3486
        %v3488 = vmul.f32 %v3454, %v3486
        %v3489 = vmul.f32 %v3455, %v3486
        %v3490 = vmul.f32 %v3456, %v3486
        %v3491 = vmul.f32 %v3457, %v3486
        %v3492 = vmul.f32 %v3458, %v3486
        %v3493 = vmul.f32 %v3459, %v3486
        %v3494 = vmul.f32 %v3460, %v3486
        %v3495 = vmul.f32 %v3461, %v3486
        %v3496 = vmul.f32 %v3462, %v3486
        %v3497 = vmul.f32 %v3463, %v3486
        %v3498 = vmul.f32 %v3464, %v3486
        %v3499 = vmul.f32 %v3465, %v3486
        %v3500 = vmul.f32 %v3466, %v3486
        %v3501 = vmul.f32 %v3467, %v3486
        %v3502 = vmul.f32 %v3468, %v3486
        %v3503 = vmul.f32 %v3469, %v3486
        %v3504 = vmul.f32 %v3470, %v3486
        %v3505 = vmul.f32 %v3471, %v3486
        %v3506 = vmul.f32 %v3472, %v3486
        %v3507 = vmul.f32 %v3473, %v3486
        %v3508 = vmul.f32 %v3474, %v3486
        %v3509 = vmul.f32 %v3475, %v3486
        %v3510 = vmul.f32 %v3476, %v3486
        %v3511 = vmul.f32 %v3477, %v3486
        %v3512 = vmul.f32 %v3478, %v3486
        %v3513 = vmul.f32 %v3479, %v3486
        %v3514 = vmul.f32 %v3480, %v3486
        %v3515 = vmul.f32 %v3481, %v3486
        %v3516 = vmul.f32 %v3482, %v3486
        %v3517 = vmul.f32 %v3483, %v3486
        %v3518 = vmul.f32 %v3484, %v3486
        %v3519 = vpack.c.bf16 %v3488, %v3487
        %v3520 = vpack.c.bf16 %v3490, %v3489
        %v3521 = vpack.c.bf16 %v3492, %v3491
        %v3522 = vpack.c.bf16 %v3494, %v3493
        %v3523 = vpack.c.bf16 %v3496, %v3495
        %v3524 = vpack.c.bf16 %v3498, %v3497
        %v3525 = vpack.c.bf16 %v3500, %v3499
        %v3526 = vpack.c.bf16 %v3502, %v3501
        %v3527 = vpack.c.bf16 %v3504, %v3503
        %v3528 = vpack.c.bf16 %v3506, %v3505
        %v3529 = vpack.c.bf16 %v3508, %v3507
        %v3530 = vpack.c.bf16 %v3510, %v3509
        %v3531 = vpack.c.bf16 %v3512, %v3511
        %v3532 = vpack.c.bf16 %v3514, %v3513
        %v3533 = vpack.c.bf16 %v3516, %v3515
        %v3534 = vpack.c.bf16 %v3518, %v3517
        %3551 = vrot.lane.b32.xlu0 %v3519, 32
        %v3552 = vpop.permute.xlu0 %3551
        %3553 = vrot.lane.b32.xlu0 %v3520, 32
        %v3554 = vpop.permute.xlu0 %3553
        %3555 = vrot.lane.b32.xlu0 %v3521, 32
        %v3556 = vpop.permute.xlu0 %3555
        %3557 = vrot.lane.b32.xlu0 %v3522, 32
        %v3558 = vpop.permute.xlu0 %3557
        %3559 = vrot.lane.b32.xlu0 %v3523, 32
        %v3560 = vpop.permute.xlu0 %3559
        %3561 = vrot.lane.b32.xlu0 %v3524, 32
        %v3562 = vpop.permute.xlu0 %3561
        %3563 = vrot.lane.b32.xlu0 %v3525, 32
        %v3564 = vpop.permute.xlu0 %3563
        %3565 = vrot.lane.b32.xlu0 %v3526, 32
        %v3566 = vpop.permute.xlu0 %3565
        %3567 = vrot.lane.b32.xlu0 %v3527, 32
        %v3568 = vpop.permute.xlu0 %3567
        %3569 = vrot.lane.b32.xlu0 %v3528, 32
        %v3570 = vpop.permute.xlu0 %3569
        %3571 = vrot.lane.b32.xlu0 %v3529, 32
        %v3572 = vpop.permute.xlu0 %3571
        %3573 = vrot.lane.b32.xlu0 %v3530, 32
        %v3574 = vpop.permute.xlu0 %3573
        %3575 = vrot.lane.b32.xlu0 %v3531, 32
        %v3576 = vpop.permute.xlu0 %3575
        %3577 = vrot.lane.b32.xlu0 %v3532, 32
        %v3578 = vpop.permute.xlu0 %3577
        %3579 = vrot.lane.b32.xlu0 %v3533, 32
        %v3580 = vpop.permute.xlu0 %3579
        %3581 = vrot.lane.b32.xlu0 %v3534, 32
        %v3582 = vpop.permute.xlu0 %3581
        %3599 = vst.msk [vmem:[#allocation2 + $0x30] sm:$0xff] %vm838, %v3552
        %3600 = vst.msk [vmem:[#allocation2 + $0x38] sm:$0xff] %vm838, %v3554
        %3601 = vst.msk [vmem:[#allocation2 + $0x70] sm:$0xff] %vm838, %v3556
        %3602 = vst.msk [vmem:[#allocation2 + $0x78] sm:$0xff] %vm838, %v3558
        %3603 = vst.msk [vmem:[#allocation2 + $0xb0] sm:$0xff] %vm838, %v3560
        %3604 = vst.msk [vmem:[#allocation2 + $0xb8] sm:$0xff] %vm838, %v3562
        %3605 = vst.msk [vmem:[#allocation2 + $0xf0] sm:$0xff] %vm838, %v3564
        %3606 = vst.msk [vmem:[#allocation2 + $0xf8] sm:$0xff] %vm838, %v3566
        %3607 = vst.msk [vmem:[#allocation2 + $0x130] sm:$0xff] %vm838, %v3568
        %3608 = vst.msk [vmem:[#allocation2 + $0x138] sm:$0xff] %vm838, %v3570
        %3609 = vst.msk [vmem:[#allocation2 + $0x170] sm:$0xff] %vm838, %v3572
        %3610 = vst.msk [vmem:[#allocation2 + $0x178] sm:$0xff] %vm838, %v3574
        %3611 = vst.msk [vmem:[#allocation2 + $0x1b0] sm:$0xff] %vm838, %v3576
        %3612 = vst.msk [vmem:[#allocation2 + $0x1b8] sm:$0xff] %vm838, %v3578
        %3613 = vst.msk [vmem:[#allocation2 + $0x1f0] sm:$0xff] %vm838, %v3580
        %3614 = vst.msk [vmem:[#allocation2 + $0x1f8] sm:$0xff] %vm838, %v3582
        %3615 = vrot.lane.b32.xlu0 %v1097, 32
        %v3616 = vpop.permute.xlu0 %3615
        %3617 = vrot.lane.b32.xlu0 %v1098, 32
        %v3618 = vpop.permute.xlu0 %3617
        %3619 = vrot.lane.b32.xlu0 %v1099, 32
        %v3620 = vpop.permute.xlu0 %3619
        %3621 = vrot.lane.b32.xlu0 %v1100, 32
        %v3622 = vpop.permute.xlu0 %3621
        %3623 = vrot.lane.b32.xlu0 %v1101, 32
        %v3624 = vpop.permute.xlu0 %3623
        %3625 = vrot.lane.b32.xlu0 %v1102, 32
        %v3626 = vpop.permute.xlu0 %3625
        %3627 = vrot.lane.b32.xlu0 %v1103, 32
        %v3628 = vpop.permute.xlu0 %3627
        %3629 = vrot.lane.b32.xlu0 %v1104, 32
        %v3630 = vpop.permute.xlu0 %3629
        %3631 = vrot.lane.b32.xlu0 %v1105, 32
        %v3632 = vpop.permute.xlu0 %3631
        %3633 = vrot.lane.b32.xlu0 %v1106, 32
        %v3634 = vpop.permute.xlu0 %3633
        %3635 = vrot.lane.b32.xlu0 %v1107, 32
        %v3636 = vpop.permute.xlu0 %3635
        %3637 = vrot.lane.b32.xlu0 %v1108, 32
        %v3638 = vpop.permute.xlu0 %3637
        %3639 = vrot.lane.b32.xlu0 %v1109, 32
        %v3640 = vpop.permute.xlu0 %3639
        %3641 = vrot.lane.b32.xlu0 %v1110, 32
        %v3642 = vpop.permute.xlu0 %3641
        %3643 = vrot.lane.b32.xlu0 %v1111, 32
        %v3644 = vpop.permute.xlu0 %3643
        %3645 = vrot.lane.b32.xlu0 %v1112, 32
        %v3646 = vpop.permute.xlu0 %3645
        %3647 = vrot.lane.b32.xlu0 %v1113, 32
        %v3648 = vpop.permute.xlu0 %3647
        %3649 = vrot.lane.b32.xlu0 %v1114, 32
        %v3650 = vpop.permute.xlu0 %3649
        %3651 = vrot.lane.b32.xlu0 %v1115, 32
        %v3652 = vpop.permute.xlu0 %3651
        %3653 = vrot.lane.b32.xlu0 %v1116, 32
        %v3654 = vpop.permute.xlu0 %3653
        %3655 = vrot.lane.b32.xlu0 %v1117, 32
        %v3656 = vpop.permute.xlu0 %3655
        %3657 = vrot.lane.b32.xlu0 %v1118, 32
        %v3658 = vpop.permute.xlu0 %3657
        %3659 = vrot.lane.b32.xlu0 %v1119, 32
        %v3660 = vpop.permute.xlu0 %3659
        %3661 = vrot.lane.b32.xlu0 %v1120, 32
        %v3662 = vpop.permute.xlu0 %3661
        %3663 = vrot.lane.b32.xlu0 %v1121, 32
        %v3664 = vpop.permute.xlu0 %3663
        %3665 = vrot.lane.b32.xlu0 %v1122, 32
        %v3666 = vpop.permute.xlu0 %3665
        %3667 = vrot.lane.b32.xlu0 %v1123, 32
        %v3668 = vpop.permute.xlu0 %3667
        %3669 = vrot.lane.b32.xlu0 %v1124, 32
        %v3670 = vpop.permute.xlu0 %3669
        %3671 = vrot.lane.b32.xlu0 %v1125, 32
        %v3672 = vpop.permute.xlu0 %3671
        %3673 = vrot.lane.b32.xlu0 %v1126, 32
        %v3674 = vpop.permute.xlu0 %3673
        %3675 = vrot.lane.b32.xlu0 %v1127, 32
        %v3676 = vpop.permute.xlu0 %3675
        %3677 = vrot.lane.b32.xlu0 %v1128, 32
        %v3678 = vpop.permute.xlu0 %3677
        %v3711 = vsel %vm838, %v3616, 0.0
        %3712 = vadd.xlane.f32.xlu0 %v3711
        %v3713 = vpop.xlane.xlu0 %3712
        %v3714 = vsel %vm838, %v3618, 0.0
        %3715 = vadd.xlane.f32.xlu0 %v3714
        %v3716 = vpop.xlane.xlu0 %3715
        %v3717 = vsel %vm838, %v3620, 0.0
        %3718 = vadd.xlane.f32.xlu0 %v3717
        %v3719 = vpop.xlane.xlu0 %3718
        %v3720 = vsel %vm838, %v3622, 0.0
        %3721 = vadd.xlane.f32.xlu0 %v3720
        %v3722 = vpop.xlane.xlu0 %3721
        %v3723 = vsel %vm838, %v3624, 0.0
        %3724 = vadd.xlane.f32.xlu0 %v3723
        %v3725 = vpop.xlane.xlu0 %3724
        %v3726 = vsel %vm838, %v3626, 0.0
        %3727 = vadd.xlane.f32.xlu0 %v3726
        %v3728 = vpop.xlane.xlu0 %3727
        %v3729 = vsel %vm838, %v3628, 0.0
        %3730 = vadd.xlane.f32.xlu0 %v3729
        %v3731 = vpop.xlane.xlu0 %3730
        %v3732 = vsel %vm838, %v3630, 0.0
        %3733 = vadd.xlane.f32.xlu0 %v3732
        %v3734 = vpop.xlane.xlu0 %3733
        %v3735 = vsel %vm838, %v3632, 0.0
        %3736 = vadd.xlane.f32.xlu0 %v3735
        %v3737 = vpop.xlane.xlu0 %3736
        %v3738 = vsel %vm838, %v3634, 0.0
        %3739 = vadd.xlane.f32.xlu0 %v3738
        %v3740 = vpop.xlane.xlu0 %3739
        %v3741 = vsel %vm838, %v3636, 0.0
        %3742 = vadd.xlane.f32.xlu0 %v3741
        %v3743 = vpop.xlane.xlu0 %3742
        %v3744 = vsel %vm838, %v3638, 0.0
        %3745 = vadd.xlane.f32.xlu0 %v3744
        %v3746 = vpop.xlane.xlu0 %3745
        %v3747 = vsel %vm838, %v3640, 0.0
        %3748 = vadd.xlane.f32.xlu0 %v3747
        %v3749 = vpop.xlane.xlu0 %3748
        %v3750 = vsel %vm838, %v3642, 0.0
        %3751 = vadd.xlane.f32.xlu0 %v3750
        %v3752 = vpop.xlane.xlu0 %3751
        %v3753 = vsel %vm838, %v3644, 0.0
        %3754 = vadd.xlane.f32.xlu0 %v3753
        %v3755 = vpop.xlane.xlu0 %3754
        %v3756 = vsel %vm838, %v3646, 0.0
        %3757 = vadd.xlane.f32.xlu0 %v3756
        %v3758 = vpop.xlane.xlu0 %3757
        %v3759 = vsel %vm838, %v3648, 0.0
        %3760 = vadd.xlane.f32.xlu0 %v3759
        %v3761 = vpop.xlane.xlu0 %3760
        %v3762 = vsel %vm838, %v3650, 0.0
        %3763 = vadd.xlane.f32.xlu0 %v3762
        %v3764 = vpop.xlane.xlu0 %3763
        %v3765 = vsel %vm838, %v3652, 0.0
        %3766 = vadd.xlane.f32.xlu0 %v3765
        %v3767 = vpop.xlane.xlu0 %3766
        %v3768 = vsel %vm838, %v3654, 0.0
        %3769 = vadd.xlane.f32.xlu0 %v3768
        %v3770 = vpop.xlane.xlu0 %3769
        %v3771 = vsel %vm838, %v3656, 0.0
        %3772 = vadd.xlane.f32.xlu0 %v3771
        %v3773 = vpop.xlane.xlu0 %3772
        %v3774 = vsel %vm838, %v3658, 0.0
        %3775 = vadd.xlane.f32.xlu0 %v3774
        %v3776 = vpop.xlane.xlu0 %3775
        %v3777 = vsel %vm838, %v3660, 0.0
        %3778 = vadd.xlane.f32.xlu0 %v3777
        %v3779 = vpop.xlane.xlu0 %3778
        %v3780 = vsel %vm838, %v3662, 0.0
        %3781 = vadd.xlane.f32.xlu0 %v3780
        %v3782 = vpop.xlane.xlu0 %3781
        %v3783 = vsel %vm838, %v3664, 0.0
        %3784 = vadd.xlane.f32.xlu0 %v3783
        %v3785 = vpop.xlane.xlu0 %3784
        %v3786 = vsel %vm838, %v3666, 0.0
        %3787 = vadd.xlane.f32.xlu0 %v3786
        %v3788 = vpop.xlane.xlu0 %3787
        %v3789 = vsel %vm838, %v3668, 0.0
        %3790 = vadd.xlane.f32.xlu0 %v3789
        %v3791 = vpop.xlane.xlu0 %3790
        %v3792 = vsel %vm838, %v3670, 0.0
        %3793 = vadd.xlane.f32.xlu0 %v3792
        %v3794 = vpop.xlane.xlu0 %3793
        %v3795 = vsel %vm838, %v3672, 0.0
        %3796 = vadd.xlane.f32.xlu0 %v3795
        %v3797 = vpop.xlane.xlu0 %3796
        %v3798 = vsel %vm838, %v3674, 0.0
        %3799 = vadd.xlane.f32.xlu0 %v3798
        %v3800 = vpop.xlane.xlu0 %3799
        %v3801 = vsel %vm838, %v3676, 0.0
        %3802 = vadd.xlane.f32.xlu0 %v3801
        %v3803 = vpop.xlane.xlu0 %3802
        %v3804 = vsel %vm838, %v3678, 0.0
        %3805 = vadd.xlane.f32.xlu0 %v3804
        %v3806 = vpop.xlane.xlu0 %3805
        %v3807 = vmax.f32 %v3713, 1e-24
        %v3808 = vmax.f32 %v3716, 1e-24
        %v3809 = vmax.f32 %v3719, 1e-24
        %v3810 = vmax.f32 %v3722, 1e-24
        %v3811 = vmax.f32 %v3725, 1e-24
        %v3812 = vmax.f32 %v3728, 1e-24
        %v3813 = vmax.f32 %v3731, 1e-24
        %v3814 = vmax.f32 %v3734, 1e-24
        %v3815 = vmax.f32 %v3737, 1e-24
        %v3816 = vmax.f32 %v3740, 1e-24
        %v3817 = vmax.f32 %v3743, 1e-24
        %v3818 = vmax.f32 %v3746, 1e-24
        %v3819 = vmax.f32 %v3749, 1e-24
        %v3820 = vmax.f32 %v3752, 1e-24
        %v3821 = vmax.f32 %v3755, 1e-24
        %v3822 = vmax.f32 %v3758, 1e-24
        %v3823 = vmax.f32 %v3761, 1e-24
        %v3824 = vmax.f32 %v3764, 1e-24
        %v3825 = vmax.f32 %v3767, 1e-24
        %v3826 = vmax.f32 %v3770, 1e-24
        %v3827 = vmax.f32 %v3773, 1e-24
        %v3828 = vmax.f32 %v3776, 1e-24
        %v3829 = vmax.f32 %v3779, 1e-24
        %v3830 = vmax.f32 %v3782, 1e-24
        %v3831 = vmax.f32 %v3785, 1e-24
        %v3832 = vmax.f32 %v3788, 1e-24
        %v3833 = vmax.f32 %v3791, 1e-24
        %v3834 = vmax.f32 %v3794, 1e-24
        %v3835 = vmax.f32 %v3797, 1e-24
        %v3836 = vmax.f32 %v3800, 1e-24
        %v3837 = vmax.f32 %v3803, 1e-24
        %v3838 = vmax.f32 %v3806, 1e-24
        %v3839 = vrsqrt.pop %v3807
        %v3840 = vrsqrt.pop %v3808
        %v3841 = vrsqrt.pop %v3809
        %v3842 = vrsqrt.pop %v3810
        %v3843 = vrsqrt.pop %v3811
        %v3844 = vrsqrt.pop %v3812
        %v3845 = vrsqrt.pop %v3813
        %v3846 = vrsqrt.pop %v3814
        %v3847 = vrsqrt.pop %v3815
        %v3848 = vrsqrt.pop %v3816
        %v3849 = vrsqrt.pop %v3817
        %v3850 = vrsqrt.pop %v3818
        %v3851 = vrsqrt.pop %v3819
        %v3852 = vrsqrt.pop %v3820
        %v3853 = vrsqrt.pop %v3821
        %v3854 = vrsqrt.pop %v3822
        %v3855 = vrsqrt.pop %v3823
        %v3856 = vrsqrt.pop %v3824
        %v3857 = vrsqrt.pop %v3825
        %v3858 = vrsqrt.pop %v3826
        %v3859 = vrsqrt.pop %v3827
        %v3860 = vrsqrt.pop %v3828
        %v3861 = vrsqrt.pop %v3829
        %v3862 = vrsqrt.pop %v3830
        %v3863 = vrsqrt.pop %v3831
        %v3864 = vrsqrt.pop %v3832
        %v3865 = vrsqrt.pop %v3833
        %v3866 = vrsqrt.pop %v3834
        %v3867 = vrsqrt.pop %v3835
        %v3868 = vrsqrt.pop %v3836
        %v3869 = vrsqrt.pop %v3837
        %v3870 = vrsqrt.pop %v3838
        %v3871 = vmul.f32 %v489, %v3839
        %v3872 = vmul.f32 %v493, %v3840
        %v3873 = vmul.f32 %v499, %v3841
        %v3874 = vmul.f32 %v503, %v3842
        %v3875 = vmul.f32 %v509, %v3843
        %v3876 = vmul.f32 %v513, %v3844
        %v3877 = vmul.f32 %v519, %v3845
        %v3878 = vmul.f32 %v523, %v3846
        %v3879 = vmul.f32 %v529, %v3847
        %v3880 = vmul.f32 %v533, %v3848
        %v3881 = vmul.f32 %v539, %v3849
        %v3882 = vmul.f32 %v543, %v3850
        %v3883 = vmul.f32 %v549, %v3851
        %v3884 = vmul.f32 %v553, %v3852
        %v3885 = vmul.f32 %v559, %v3853
        %v3886 = vmul.f32 %v563, %v3854
        %v3887 = vmul.f32 %v569, %v3855
        %v3888 = vmul.f32 %v573, %v3856
        %v3889 = vmul.f32 %v579, %v3857
        %v3890 = vmul.f32 %v583, %v3858
        %v3891 = vmul.f32 %v589, %v3859
        %v3892 = vmul.f32 %v593, %v3860
        %v3893 = vmul.f32 %v599, %v3861
        %v3894 = vmul.f32 %v603, %v3862
        %v3895 = vmul.f32 %v609, %v3863
        %v3896 = vmul.f32 %v613, %v3864
        %v3897 = vmul.f32 %v619, %v3865
        %v3898 = vmul.f32 %v623, %v3866
        %v3899 = vmul.f32 %v629, %v3867
        %v3900 = vmul.f32 %v633, %v3868
        %v3901 = vmul.f32 %v639, %v3869
        %v3902 = vmul.f32 %v643, %v3870
        %v3903 = vpack.c.bf16 %v3872, %v3871
        %v3904 = vpack.c.bf16 %v3874, %v3873
        %v3905 = vpack.c.bf16 %v3876, %v3875
        %v3906 = vpack.c.bf16 %v3878, %v3877
        %v3907 = vpack.c.bf16 %v3880, %v3879
        %v3908 = vpack.c.bf16 %v3882, %v3881
        %v3909 = vpack.c.bf16 %v3884, %v3883
        %v3910 = vpack.c.bf16 %v3886, %v3885
        %v3911 = vpack.c.bf16 %v3888, %v3887
        %v3912 = vpack.c.bf16 %v3890, %v3889
        %v3913 = vpack.c.bf16 %v3892, %v3891
        %v3914 = vpack.c.bf16 %v3894, %v3893
        %v3915 = vpack.c.bf16 %v3896, %v3895
        %v3916 = vpack.c.bf16 %v3898, %v3897
        %v3917 = vpack.c.bf16 %v3900, %v3899
        %v3918 = vpack.c.bf16 %v3902, %v3901
        %3935 = vrot.lane.b32.xlu0 %v3903, 32
        %v3936 = vpop.permute.xlu0 %3935
        %3937 = vrot.lane.b32.xlu0 %v3904, 32
        %v3938 = vpop.permute.xlu0 %3937
        %3939 = vrot.lane.b32.xlu0 %v3905, 32
        %v3940 = vpop.permute.xlu0 %3939
        %3941 = vrot.lane.b32.xlu0 %v3906, 32
        %v3942 = vpop.permute.xlu0 %3941
        %3943 = vrot.lane.b32.xlu0 %v3907, 32
        %v3944 = vpop.permute.xlu0 %3943
        %3945 = vrot.lane.b32.xlu0 %v3908, 32
        %v3946 = vpop.permute.xlu0 %3945
        %3947 = vrot.lane.b32.xlu0 %v3909, 32
        %v3948 = vpop.permute.xlu0 %3947
        %3949 = vrot.lane.b32.xlu0 %v3910, 32
        %v3950 = vpop.permute.xlu0 %3949
        %3951 = vrot.lane.b32.xlu0 %v3911, 32
        %v3952 = vpop.permute.xlu0 %3951
        %3953 = vrot.lane.b32.xlu0 %v3912, 32
        %v3954 = vpop.permute.xlu0 %3953
        %3955 = vrot.lane.b32.xlu0 %v3913, 32
        %v3956 = vpop.permute.xlu0 %3955
        %3957 = vrot.lane.b32.xlu0 %v3914, 32
        %v3958 = vpop.permute.xlu0 %3957
        %3959 = vrot.lane.b32.xlu0 %v3915, 32
        %v3960 = vpop.permute.xlu0 %3959
        %3961 = vrot.lane.b32.xlu0 %v3916, 32
        %v3962 = vpop.permute.xlu0 %3961
        %3963 = vrot.lane.b32.xlu0 %v3917, 32
        %v3964 = vpop.permute.xlu0 %3963
        %3965 = vrot.lane.b32.xlu0 %v3918, 32
        %v3966 = vpop.permute.xlu0 %3965
        %3983 = vst.msk [vmem:[#allocation3 + $0x30] sm:$0xff] %vm838, %v3936
        %3984 = vst.msk [vmem:[#allocation3 + $0x38] sm:$0xff] %vm838, %v3938
        %3985 = vst.msk [vmem:[#allocation3 + $0x70] sm:$0xff] %vm838, %v3940
        %3986 = vst.msk [vmem:[#allocation3 + $0x78] sm:$0xff] %vm838, %v3942
        %3987 = vst.msk [vmem:[#allocation3 + $0xb0] sm:$0xff] %vm838, %v3944
        %3988 = vst.msk [vmem:[#allocation3 + $0xb8] sm:$0xff] %vm838, %v3946
        %3989 = vst.msk [vmem:[#allocation3 + $0xf0] sm:$0xff] %vm838, %v3948
        %3990 = vst.msk [vmem:[#allocation3 + $0xf8] sm:$0xff] %vm838, %v3950
        %3991 = vst.msk [vmem:[#allocation3 + $0x130] sm:$0xff] %vm838, %v3952
        %3992 = vst.msk [vmem:[#allocation3 + $0x138] sm:$0xff] %vm838, %v3954
        %3993 = vst.msk [vmem:[#allocation3 + $0x170] sm:$0xff] %vm838, %v3956
        %3994 = vst.msk [vmem:[#allocation3 + $0x178] sm:$0xff] %vm838, %v3958
        %3995 = vst.msk [vmem:[#allocation3 + $0x1b0] sm:$0xff] %vm838, %v3960
        %3996 = vst.msk [vmem:[#allocation3 + $0x1b8] sm:$0xff] %vm838, %v3962
        %3997 = vst.msk [vmem:[#allocation3 + $0x1f0] sm:$0xff] %vm838, %v3964
        %3998 = vst.msk [vmem:[#allocation3 + $0x1f8] sm:$0xff] %vm838, %v3966
        %3999 = vrot.lane.b32.xlu0 %v1353, 32
        %v4000 = vpop.permute.xlu0 %3999
        %4001 = vrot.lane.b32.xlu0 %v1354, 32
        %v4002 = vpop.permute.xlu0 %4001
        %4003 = vrot.lane.b32.xlu0 %v1355, 32
        %v4004 = vpop.permute.xlu0 %4003
        %4005 = vrot.lane.b32.xlu0 %v1356, 32
        %v4006 = vpop.permute.xlu0 %4005
        %4007 = vrot.lane.b32.xlu0 %v1357, 32
        %v4008 = vpop.permute.xlu0 %4007
        %4009 = vrot.lane.b32.xlu0 %v1358, 32
        %v4010 = vpop.permute.xlu0 %4009
        %4011 = vrot.lane.b32.xlu0 %v1359, 32
        %v4012 = vpop.permute.xlu0 %4011
        %4013 = vrot.lane.b32.xlu0 %v1360, 32
        %v4014 = vpop.permute.xlu0 %4013
        %4015 = vrot.lane.b32.xlu0 %v1361, 32
        %v4016 = vpop.permute.xlu0 %4015
        %4017 = vrot.lane.b32.xlu0 %v1362, 32
        %v4018 = vpop.permute.xlu0 %4017
        %4019 = vrot.lane.b32.xlu0 %v1363, 32
        %v4020 = vpop.permute.xlu0 %4019
        %4021 = vrot.lane.b32.xlu0 %v1364, 32
        %v4022 = vpop.permute.xlu0 %4021
        %4023 = vrot.lane.b32.xlu0 %v1365, 32
        %v4024 = vpop.permute.xlu0 %4023
        %4025 = vrot.lane.b32.xlu0 %v1366, 32
        %v4026 = vpop.permute.xlu0 %4025
        %4027 = vrot.lane.b32.xlu0 %v1367, 32
        %v4028 = vpop.permute.xlu0 %4027
        %4029 = vrot.lane.b32.xlu0 %v1368, 32
        %v4030 = vpop.permute.xlu0 %4029
        %4047 = vst.msk [vmem:[#allocation4 + $0x30] sm:$0xff] %vm838, %v4000
        %4048 = vst.msk [vmem:[#allocation4 + $0x38] sm:$0xff] %vm838, %v4002
        %4049 = vst.msk [vmem:[#allocation4 + $0x70] sm:$0xff] %vm838, %v4004
        %4050 = vst.msk [vmem:[#allocation4 + $0x78] sm:$0xff] %vm838, %v4006
        %4051 = vst.msk [vmem:[#allocation4 + $0xb0] sm:$0xff] %vm838, %v4008
        %4052 = vst.msk [vmem:[#allocation4 + $0xb8] sm:$0xff] %vm838, %v4010
        %4053 = vst.msk [vmem:[#allocation4 + $0xf0] sm:$0xff] %vm838, %v4012
        %4054 = vst.msk [vmem:[#allocation4 + $0xf8] sm:$0xff] %vm838, %v4014
        %4055 = vst.msk [vmem:[#allocation4 + $0x130] sm:$0xff] %vm838, %v4016
        %4056 = vst.msk [vmem:[#allocation4 + $0x138] sm:$0xff] %vm838, %v4018
        %4057 = vst.msk [vmem:[#allocation4 + $0x170] sm:$0xff] %vm838, %v4020
        %4058 = vst.msk [vmem:[#allocation4 + $0x178] sm:$0xff] %vm838, %v4022
        %4059 = vst.msk [vmem:[#allocation4 + $0x1b0] sm:$0xff] %vm838, %v4024
        %4060 = vst.msk [vmem:[#allocation4 + $0x1b8] sm:$0xff] %vm838, %v4026
        %4061 = vst.msk [vmem:[#allocation4 + $0x1f0] sm:$0xff] %vm838, %v4028
        %4062 = vst.msk [vmem:[#allocation4 + $0x1f8] sm:$0xff] %vm838, %v4030
        %v4063 = vld [vmem:[#allocation2] sm:$0xff]
        %v4064 = vld [vmem:[#allocation2 + $0x8] sm:$0xff]
        %v4065 = vld [vmem:[#allocation2 + $0x10] sm:$0xff]
        %v4066 = vld [vmem:[#allocation2 + $0x18] sm:$0xff]
        %v4067 = vld [vmem:[#allocation2 + $0x20] sm:$0xff]
        %v4068 = vld [vmem:[#allocation2 + $0x28] sm:$0xff]
        %v4069 = vld [vmem:[#allocation2 + $0x30] sm:$0xff]
        %v4070 = vld [vmem:[#allocation2 + $0x38] sm:$0xff]
        %v4071 = vld [vmem:[#allocation2 + $0x40] sm:$0xff]
        %v4072 = vld [vmem:[#allocation2 + $0x48] sm:$0xff]
        %v4073 = vld [vmem:[#allocation2 + $0x50] sm:$0xff]
        %v4074 = vld [vmem:[#allocation2 + $0x58] sm:$0xff]
        %v4075 = vld [vmem:[#allocation2 + $0x60] sm:$0xff]
        %v4076 = vld [vmem:[#allocation2 + $0x68] sm:$0xff]
        %v4077 = vld [vmem:[#allocation2 + $0x70] sm:$0xff]
        %v4078 = vld [vmem:[#allocation2 + $0x78] sm:$0xff]
        %v4079 = vld [vmem:[#allocation2 + $0x80] sm:$0xff]
        %v4080 = vld [vmem:[#allocation2 + $0x88] sm:$0xff]
        %v4081 = vld [vmem:[#allocation2 + $0x90] sm:$0xff]
        %v4082 = vld [vmem:[#allocation2 + $0x98] sm:$0xff]
        %v4083 = vld [vmem:[#allocation2 + $0xa0] sm:$0xff]
        %v4084 = vld [vmem:[#allocation2 + $0xa8] sm:$0xff]
        %v4085 = vld [vmem:[#allocation2 + $0xb0] sm:$0xff]
        %v4086 = vld [vmem:[#allocation2 + $0xb8] sm:$0xff]
        %v4087 = vld [vmem:[#allocation2 + $0xc0] sm:$0xff]
        %v4088 = vld [vmem:[#allocation2 + $0xc8] sm:$0xff]
        %v4089 = vld [vmem:[#allocation2 + $0xd0] sm:$0xff]
        %v4090 = vld [vmem:[#allocation2 + $0xd8] sm:$0xff]
        %v4091 = vld [vmem:[#allocation2 + $0xe0] sm:$0xff]
        %v4092 = vld [vmem:[#allocation2 + $0xe8] sm:$0xff]
        %v4093 = vld [vmem:[#allocation2 + $0xf0] sm:$0xff]
        %v4094 = vld [vmem:[#allocation2 + $0xf8] sm:$0xff]
        %v4095 = vld [vmem:[#allocation2 + $0x100] sm:$0xff]
        %v4096 = vld [vmem:[#allocation2 + $0x108] sm:$0xff]
        %v4097 = vld [vmem:[#allocation2 + $0x110] sm:$0xff]
        %v4098 = vld [vmem:[#allocation2 + $0x118] sm:$0xff]
        %v4099 = vld [vmem:[#allocation2 + $0x120] sm:$0xff]
        %v4100 = vld [vmem:[#allocation2 + $0x128] sm:$0xff]
        %v4101 = vld [vmem:[#allocation2 + $0x130] sm:$0xff]
        %v4102 = vld [vmem:[#allocation2 + $0x138] sm:$0xff]
        %v4103 = vld [vmem:[#allocation2 + $0x140] sm:$0xff]
        %v4104 = vld [vmem:[#allocation2 + $0x148] sm:$0xff]
        %v4105 = vld [vmem:[#allocation2 + $0x150] sm:$0xff]
        %v4106 = vld [vmem:[#allocation2 + $0x158] sm:$0xff]
        %v4107 = vld [vmem:[#allocation2 + $0x160] sm:$0xff]
        %v4108 = vld [vmem:[#allocation2 + $0x168] sm:$0xff]
        %v4109 = vld [vmem:[#allocation2 + $0x170] sm:$0xff]
        %v4110 = vld [vmem:[#allocation2 + $0x178] sm:$0xff]
        %v4111 = vld [vmem:[#allocation2 + $0x180] sm:$0xff]
        %v4112 = vld [vmem:[#allocation2 + $0x188] sm:$0xff]
        %v4113 = vld [vmem:[#allocation2 + $0x190] sm:$0xff]
        %v4114 = vld [vmem:[#allocation2 + $0x198] sm:$0xff]
        %v4115 = vld [vmem:[#allocation2 + $0x1a0] sm:$0xff]
        %v4116 = vld [vmem:[#allocation2 + $0x1a8] sm:$0xff]
        %v4117 = vld [vmem:[#allocation2 + $0x1b0] sm:$0xff]
        %v4118 = vld [vmem:[#allocation2 + $0x1b8] sm:$0xff]
        %v4119 = vld [vmem:[#allocation2 + $0x1c0] sm:$0xff]
        %v4120 = vld [vmem:[#allocation2 + $0x1c8] sm:$0xff]
        %v4121 = vld [vmem:[#allocation2 + $0x1d0] sm:$0xff]
        %v4122 = vld [vmem:[#allocation2 + $0x1d8] sm:$0xff]
        %v4123 = vld [vmem:[#allocation2 + $0x1e0] sm:$0xff]
        %v4124 = vld [vmem:[#allocation2 + $0x1e8] sm:$0xff]
        %v4125 = vld [vmem:[#allocation2 + $0x1f0] sm:$0xff]
        %v4126 = vld [vmem:[#allocation2 + $0x1f8] sm:$0xff]
        %v4127 = vld [vmem:[#allocation3] sm:$0xff]
        %v4128 = vld [vmem:[#allocation3 + $0x8] sm:$0xff]
        %v4129 = vld [vmem:[#allocation3 + $0x10] sm:$0xff]
        %v4130 = vld [vmem:[#allocation3 + $0x18] sm:$0xff]
        %v4131 = vld [vmem:[#allocation3 + $0x20] sm:$0xff]
        %v4132 = vld [vmem:[#allocation3 + $0x28] sm:$0xff]
        %v4133 = vld [vmem:[#allocation3 + $0x30] sm:$0xff]
        %v4134 = vld [vmem:[#allocation3 + $0x38] sm:$0xff]
        %v4135 = vld [vmem:[#allocation3 + $0x40] sm:$0xff]
        %v4136 = vld [vmem:[#allocation3 + $0x48] sm:$0xff]
        %v4137 = vld [vmem:[#allocation3 + $0x50] sm:$0xff]
        %v4138 = vld [vmem:[#allocation3 + $0x58] sm:$0xff]
        %v4139 = vld [vmem:[#allocation3 + $0x60] sm:$0xff]
        %v4140 = vld [vmem:[#allocation3 + $0x68] sm:$0xff]
        %v4141 = vld [vmem:[#allocation3 + $0x70] sm:$0xff]
        %v4142 = vld [vmem:[#allocation3 + $0x78] sm:$0xff]
        %v4143 = vld [vmem:[#allocation3 + $0x80] sm:$0xff]
        %v4144 = vld [vmem:[#allocation3 + $0x88] sm:$0xff]
        %v4145 = vld [vmem:[#allocation3 + $0x90] sm:$0xff]
        %v4146 = vld [vmem:[#allocation3 + $0x98] sm:$0xff]
        %v4147 = vld [vmem:[#allocation3 + $0xa0] sm:$0xff]
        %v4148 = vld [vmem:[#allocation3 + $0xa8] sm:$0xff]
        %v4149 = vld [vmem:[#allocation3 + $0xb0] sm:$0xff]
        %v4150 = vld [vmem:[#allocation3 + $0xb8] sm:$0xff]
        %v4151 = vld [vmem:[#allocation3 + $0xc0] sm:$0xff]
        %v4152 = vld [vmem:[#allocation3 + $0xc8] sm:$0xff]
        %v4153 = vld [vmem:[#allocation3 + $0xd0] sm:$0xff]
        %v4154 = vld [vmem:[#allocation3 + $0xd8] sm:$0xff]
        %v4155 = vld [vmem:[#allocation3 + $0xe0] sm:$0xff]
        %v4156 = vld [vmem:[#allocation3 + $0xe8] sm:$0xff]
        %v4157 = vld [vmem:[#allocation3 + $0xf0] sm:$0xff]
        %v4158 = vld [vmem:[#allocation3 + $0xf8] sm:$0xff]
        %v4159 = vld [vmem:[#allocation3 + $0x100] sm:$0xff]
        %v4160 = vld [vmem:[#allocation3 + $0x108] sm:$0xff]
        %v4161 = vld [vmem:[#allocation3 + $0x110] sm:$0xff]
        %v4162 = vld [vmem:[#allocation3 + $0x118] sm:$0xff]
        %v4163 = vld [vmem:[#allocation3 + $0x120] sm:$0xff]
        %v4164 = vld [vmem:[#allocation3 + $0x128] sm:$0xff]
        %v4165 = vld [vmem:[#allocation3 + $0x130] sm:$0xff]
        %v4166 = vld [vmem:[#allocation3 + $0x138] sm:$0xff]
        %v4167 = vld [vmem:[#allocation3 + $0x140] sm:$0xff]
        %v4168 = vld [vmem:[#allocation3 + $0x148] sm:$0xff]
        %v4169 = vld [vmem:[#allocation3 + $0x150] sm:$0xff]
        %v4170 = vld [vmem:[#allocation3 + $0x158] sm:$0xff]
        %v4171 = vld [vmem:[#allocation3 + $0x160] sm:$0xff]
        %v4172 = vld [vmem:[#allocation3 + $0x168] sm:$0xff]
        %v4173 = vld [vmem:[#allocation3 + $0x170] sm:$0xff]
        %v4174 = vld [vmem:[#allocation3 + $0x178] sm:$0xff]
        %v4175 = vld [vmem:[#allocation3 + $0x180] sm:$0xff]
        %v4176 = vld [vmem:[#allocation3 + $0x188] sm:$0xff]
        %v4177 = vld [vmem:[#allocation3 + $0x190] sm:$0xff]
        %v4178 = vld [vmem:[#allocation3 + $0x198] sm:$0xff]
        %v4179 = vld [vmem:[#allocation3 + $0x1a0] sm:$0xff]
        %v4180 = vld [vmem:[#allocation3 + $0x1a8] sm:$0xff]
        %v4181 = vld [vmem:[#allocation3 + $0x1b0] sm:$0xff]
        %v4182 = vld [vmem:[#allocation3 + $0x1b8] sm:$0xff]
        %v4183 = vld [vmem:[#allocation3 + $0x1c0] sm:$0xff]
        %v4184 = vld [vmem:[#allocation3 + $0x1c8] sm:$0xff]
        %v4185 = vld [vmem:[#allocation3 + $0x1d0] sm:$0xff]
        %v4186 = vld [vmem:[#allocation3 + $0x1d8] sm:$0xff]
        %v4187 = vld [vmem:[#allocation3 + $0x1e0] sm:$0xff]
        %v4188 = vld [vmem:[#allocation3 + $0x1e8] sm:$0xff]
        %v4189 = vld [vmem:[#allocation3 + $0x1f0] sm:$0xff]
        %v4190 = vld [vmem:[#allocation3 + $0x1f8] sm:$0xff]
        %v4191 = vld [vmem:[#allocation14] sm:$0xff]
        %v4192 = vld [vmem:[#allocation14 + $0x8] sm:$0xff]
        %v4193 = vld [vmem:[#allocation14 + $0x10] sm:$0xff]
        %v4194 = vld [vmem:[#allocation14 + $0x18] sm:$0xff]
        %v4195 = vld [vmem:[#allocation14 + $0x20] sm:$0xff]
        %v4196 = vld [vmem:[#allocation14 + $0x28] sm:$0xff]
        %v4197 = vld [vmem:[#allocation14 + $0x30] sm:$0xff]
        %v4198 = vld [vmem:[#allocation14 + $0x38] sm:$0xff]
        %v4199 = vld [vmem:[#allocation14 + $0x40] sm:$0xff]
        %v4200 = vld [vmem:[#allocation14 + $0x48] sm:$0xff]
        %v4201 = vld [vmem:[#allocation14 + $0x50] sm:$0xff]
        %v4202 = vld [vmem:[#allocation14 + $0x58] sm:$0xff]
        %v4203 = vld [vmem:[#allocation14 + $0x60] sm:$0xff]
        %v4204 = vld [vmem:[#allocation14 + $0x68] sm:$0xff]
        %v4205 = vld [vmem:[#allocation14 + $0x70] sm:$0xff]
        %v4206 = vld [vmem:[#allocation14 + $0x78] sm:$0xff]
        %v4208 = vsel %vm838, %v4063, 0
        %v4211 = vsel %vm838, %v4064, 0
        %v4214 = vsel %vm838, %v4065, 0
        %v4217 = vsel %vm838, %v4066, 0
        %v4220 = vsel %vm838, %v4067, 0
        %v4223 = vsel %vm838, %v4068, 0
        %v4226 = vsel %vm838, %v4069, 0
        %v4229 = vsel %vm838, %v4070, 0
        %v4232 = vsel %vm838, %v4127, 0
        %v4235 = vsel %vm838, %v4128, 0
        %v4238 = vsel %vm838, %v4129, 0
        %v4241 = vsel %vm838, %v4130, 0
        %v4244 = vsel %vm838, %v4131, 0
        %v4247 = vsel %vm838, %v4132, 0
        %v4250 = vsel %vm838, %v4133, 0
        %v4253 = vsel %vm838, %v4134, 0
        %4255 = vmatprep.subr.bf16.mxu0 0
        %4256 = vmatpush1.bf16.xpose.msra.mxu0 %v4232
        %4257 = vmatprep.subr.bf16.mxu0 0
        %4258 = vmatpush1.bf16.xpose.msra.mxu0 %v4235
        %4259 = vmatprep.subr.bf16.mxu0 0
        %4260 = vmatpush1.bf16.xpose.msra.mxu0 %v4238
        %4261 = vmatprep.subr.bf16.mxu0 0
        %4262 = vmatpush1.bf16.xpose.msra.mxu0 %v4241
        %4263 = vmatprep.subr.bf16.mxu0 0
        %4264 = vmatpush1.bf16.xpose.msra.mxu0 %v4244
        %4265 = vmatprep.subr.bf16.mxu0 0
        %4266 = vmatpush1.bf16.xpose.msra.mxu0 %v4247
        %4267 = vmatprep.subr.bf16.mxu0 0
        %4268 = vmatpush1.bf16.xpose.msra.mxu0 %v4250
        %4269 = vmatprep.subr.bf16.mxu0 0
        %4270 = vmatpush1.bf16.xpose.msra.mxu0 %v4253
        %4271 = vmatprep.subr.bf16.mxu0 0
        %4272 = vmatpush1.bf16.xpose.msra.mxu0 0
        %4273 = vmatprep.subr.bf16.mxu0 0
        %4274 = vmatpush1.bf16.xpose.msra.mxu0 0
        %4275 = vmatprep.subr.bf16.mxu0 0
        %4276 = vmatpush1.bf16.xpose.msra.mxu0 0
        %4277 = vmatprep.subr.bf16.mxu0 0
        %4278 = vmatpush1.bf16.xpose.msra.mxu0 0
        %4279 = vmatprep.subr.bf16.mxu0 0
        %4280 = vmatpush1.bf16.xpose.msra.mxu0 0
        %4281 = vmatprep.subr.bf16.mxu0 0
        %4282 = vmatpush1.bf16.xpose.msra.mxu0 0
        %4283 = vmatprep.subr.bf16.mxu0 0
        %4284 = vmatpush1.bf16.xpose.msra.mxu0 0
        %4285 = vmatprep.subr.bf16.mxu0 0
        %4286 = vmatpush1.bf16.xpose.msra.mxu0 0
        %4287 = vmatprep.mubr.bf16.mxu0 0
        %4288 = vmatmul.mubr.bf16.gmra.mrb[0].mxu0 %v4208
        %v4289 = vpop.f32.mrb[0].mxu0
        %v4290 = vadd.f32 %v4191, %v4289
        %v4291 = vpop.f32.mrb[0].mxu0
        %v4292 = vpop.f32.mrb[0].mxu0
        %v4293 = vadd.f32 %v4192, %v4292
        %v4294 = vpop.f32.mrb[0].mxu0
        %4295 = vmatprep.mubr.bf16.mxu0 0
        %4296 = vmatmul.mubr.bf16.gmra.mrb[0].mxu0 %v4211
        %v4297 = vpop.f32.mrb[0].mxu0
        %v4298 = vadd.f32 %v4193, %v4297
        %v4299 = vpop.f32.mrb[0].mxu0
        %v4300 = vpop.f32.mrb[0].mxu0
        %v4301 = vadd.f32 %v4194, %v4300
        %v4302 = vpop.f32.mrb[0].mxu0
        %4303 = vmatprep.mubr.bf16.mxu0 0
        %4304 = vmatmul.mubr.bf16.gmra.mrb[0].mxu0 %v4214
        %v4305 = vpop.f32.mrb[0].mxu0
        %v4306 = vadd.f32 %v4195, %v4305
        %v4307 = vpop.f32.mrb[0].mxu0
        %v4308 = vpop.f32.mrb[0].mxu0
        %v4309 = vadd.f32 %v4196, %v4308
        %v4310 = vpop.f32.mrb[0].mxu0
        %4311 = vmatprep.mubr.bf16.mxu0 0
        %4312 = vmatmul.mubr.bf16.gmra.mrb[0].mxu0 %v4217
        %v4313 = vpop.f32.mrb[0].mxu0
        %v4314 = vadd.f32 %v4197, %v4313
        %v4315 = vpop.f32.mrb[0].mxu0
        %v4316 = vpop.f32.mrb[0].mxu0
        %v4317 = vadd.f32 %v4198, %v4316
        %v4318 = vpop.f32.mrb[0].mxu0
        %4319 = vmatprep.mubr.bf16.mxu0 0
        %4320 = vmatmul.mubr.bf16.gmra.mrb[0].mxu0 %v4220
        %v4321 = vpop.f32.mrb[0].mxu0
        %v4322 = vadd.f32 %v4199, %v4321
        %v4323 = vpop.f32.mrb[0].mxu0
        %v4324 = vpop.f32.mrb[0].mxu0
        %v4325 = vadd.f32 %v4200, %v4324
        %v4326 = vpop.f32.mrb[0].mxu0
        %4327 = vmatprep.mubr.bf16.mxu0 0
        %4328 = vmatmul.mubr.bf16.gmra.mrb[0].mxu0 %v4223
        %v4329 = vpop.f32.mrb[0].mxu0
        %v4330 = vadd.f32 %v4201, %v4329
        %v4331 = vpop.f32.mrb[0].mxu0
        %v4332 = vpop.f32.mrb[0].mxu0
        %v4333 = vadd.f32 %v4202, %v4332
        %v4334 = vpop.f32.mrb[0].mxu0
        %4335 = vmatprep.mubr.bf16.mxu0 0
        %4336 = vmatmul.mubr.bf16.gmra.mrb[0].mxu0 %v4226
        %v4337 = vpop.f32.mrb[0].mxu0
        %v4338 = vadd.f32 %v4203, %v4337
        %v4339 = vpop.f32.mrb[0].mxu0
        %v4340 = vpop.f32.mrb[0].mxu0
        %v4341 = vadd.f32 %v4204, %v4340
        %v4342 = vpop.f32.mrb[0].mxu0
        %4343 = vmatprep.mubr.bf16.mxu0 0
        %4344 = vmatmul.mubr.bf16.gmra.mrb[0].mxu0 %v4229
        %v4345 = vpop.f32.mrb[0].mxu0
        %v4346 = vadd.f32 %v4205, %v4345
        %v4347 = vpop.f32.mrb[0].mxu0
        %v4348 = vpop.f32.mrb[0].mxu0
        %v4349 = vadd.f32 %v4206, %v4348
        %v4350 = vpop.f32.mrb[0].mxu0
        %4351 = vdwg.mxu0
        %v4353 = vsel %vm838, %v4071, 0
        %v4356 = vsel %vm838, %v4072, 0
        %v4359 = vsel %vm838, %v4073, 0
        %v4362 = vsel %vm838, %v4074, 0
        %v4365 = vsel %vm838, %v4075, 0
        %v4368 = vsel %vm838, %v4076, 0
        %v4371 = vsel %vm838, %v4077, 0
        %v4374 = vsel %vm838, %v4078, 0
        %v4377 = vsel %vm838, %v4135, 0
        %v4380 = vsel %vm838, %v4136, 0
        %v4383 = vsel %vm838, %v4137, 0
        %v4386 = vsel %vm838, %v4138, 0
        %v4389 = vsel %vm838, %v4139, 0
        %v4392 = vsel %vm838, %v4140, 0
        %v4395 = vsel %vm838, %v4141, 0
        %v4398 = vsel %vm838, %v4142, 0
        %4400 = vmatprep.subr.bf16.mxu0 0
        %4401 = vmatpush1.bf16.xpose.msra.mxu0 %v4377
        %4402 = vmatprep.subr.bf16.mxu0 0
        %4403 = vmatpush1.bf16.xpose.msra.mxu0 %v4380
        %4404 = vmatprep.subr.bf16.mxu0 0
        %4405 = vmatpush1.bf16.xpose.msra.mxu0 %v4383
        %4406 = vmatprep.subr.bf16.mxu0 0
        %4407 = vmatpush1.bf16.xpose.msra.mxu0 %v4386
        %4408 = vmatprep.subr.bf16.mxu0 0
        %4409 = vmatpush1.bf16.xpose.msra.mxu0 %v4389
        %4410 = vmatprep.subr.bf16.mxu0 0
        %4411 = vmatpush1.bf16.xpose.msra.mxu0 %v4392
        %4412 = vmatprep.subr.bf16.mxu0 0
        %4413 = vmatpush1.bf16.xpose.msra.mxu0 %v4395
        %4414 = vmatprep.subr.bf16.mxu0 0
        %4415 = vmatpush1.bf16.xpose.msra.mxu0 %v4398
        %4416 = vmatprep.subr.bf16.mxu0 0
        %4417 = vmatpush1.bf16.xpose.msra.mxu0 0
        %4418 = vmatprep.subr.bf16.mxu0 0
        %4419 = vmatpush1.bf16.xpose.msra.mxu0 0
        %4420 = vmatprep.subr.bf16.mxu0 0
        %4421 = vmatpush1.bf16.xpose.msra.mxu0 0
        %4422 = vmatprep.subr.bf16.mxu0 0
        %4423 = vmatpush1.bf16.xpose.msra.mxu0 0
        %4424 = vmatprep.subr.bf16.mxu0 0
        %4425 = vmatpush1.bf16.xpose.msra.mxu0 0
        %4426 = vmatprep.subr.bf16.mxu0 0
        %4427 = vmatpush1.bf16.xpose.msra.mxu0 0
        %4428 = vmatprep.subr.bf16.mxu0 0
        %4429 = vmatpush1.bf16.xpose.msra.mxu0 0
        %4430 = vmatprep.subr.bf16.mxu0 0
        %4431 = vmatpush1.bf16.xpose.msra.mxu0 0
        %4432 = vmatprep.mubr.bf16.mxu0 0
        %4433 = vmatmul.mubr.bf16.gmra.mrb[0].mxu0 %v4353
        %v4434 = vpop.f32.mrb[0].mxu0
        %v4435 = vadd.f32 %v4191, %v4434
        %v4436 = vpop.f32.mrb[0].mxu0
        %v4437 = vpop.f32.mrb[0].mxu0
        %v4438 = vadd.f32 %v4192, %v4437
        %v4439 = vpop.f32.mrb[0].mxu0
        %4440 = vmatprep.mubr.bf16.mxu0 0
        %4441 = vmatmul.mubr.bf16.gmra.mrb[0].mxu0 %v4356
        %v4442 = vpop.f32.mrb[0].mxu0
        %v4443 = vadd.f32 %v4193, %v4442
        %v4444 = vpop.f32.mrb[0].mxu0
        %v4445 = vpop.f32.mrb[0].mxu0
        %v4446 = vadd.f32 %v4194, %v4445
        %v4447 = vpop.f32.mrb[0].mxu0
        %4448 = vmatprep.mubr.bf16.mxu0 0
        %4449 = vmatmul.mubr.bf16.gmra.mrb[0].mxu0 %v4359
        %v4450 = vpop.f32.mrb[0].mxu0
        %v4451 = vadd.f32 %v4195, %v4450
        %v4452 = vpop.f32.mrb[0].mxu0
        %v4453 = vpop.f32.mrb[0].mxu0
        %v4454 = vadd.f32 %v4196, %v4453
        %v4455 = vpop.f32.mrb[0].mxu0
        %4456 = vmatprep.mubr.bf16.mxu0 0
        %4457 = vmatmul.mubr.bf16.gmra.mrb[0].mxu0 %v4362
        %v4458 = vpop.f32.mrb[0].mxu0
        %v4459 = vadd.f32 %v4197, %v4458
        %v4460 = vpop.f32.mrb[0].mxu0
        %v4461 = vpop.f32.mrb[0].mxu0
        %v4462 = vadd.f32 %v4198, %v4461
        %v4463 = vpop.f32.mrb[0].mxu0
        %4464 = vmatprep.mubr.bf16.mxu0 0
        %4465 = vmatmul.mubr.bf16.gmra.mrb[0].mxu0 %v4365
        %v4466 = vpop.f32.mrb[0].mxu0
        %v4467 = vadd.f32 %v4199, %v4466
        %v4468 = vpop.f32.mrb[0].mxu0
        %v4469 = vpop.f32.mrb[0].mxu0
        %v4470 = vadd.f32 %v4200, %v4469
        %v4471 = vpop.f32.mrb[0].mxu0
        %4472 = vmatprep.mubr.bf16.mxu0 0
        %4473 = vmatmul.mubr.bf16.gmra.mrb[0].mxu0 %v4368
        %v4474 = vpop.f32.mrb[0].mxu0
        %v4475 = vadd.f32 %v4201, %v4474
        %v4476 = vpop.f32.mrb[0].mxu0
        %v4477 = vpop.f32.mrb[0].mxu0
        %v4478 = vadd.f32 %v4202, %v4477
        %v4479 = vpop.f32.mrb[0].mxu0
        %4480 = vmatprep.mubr.bf16.mxu0 0
        %4481 = vmatmul.mubr.bf16.gmra.mrb[0].mxu0 %v4371
        %v4482 = vpop.f32.mrb[0].mxu0
        %v4483 = vadd.f32 %v4203, %v4482
        %v4484 = vpop.f32.mrb[0].mxu0
        %v4485 = vpop.f32.mrb[0].mxu0
        %v4486 = vadd.f32 %v4204, %v4485
        %v4487 = vpop.f32.mrb[0].mxu0
        %4488 = vmatprep.mubr.bf16.mxu0 0
        %4489 = vmatmul.mubr.bf16.gmra.mrb[0].mxu0 %v4374
        %v4490 = vpop.f32.mrb[0].mxu0
        %v4491 = vadd.f32 %v4205, %v4490
        %v4492 = vpop.f32.mrb[0].mxu0
        %v4493 = vpop.f32.mrb[0].mxu0
        %v4494 = vadd.f32 %v4206, %v4493
        %v4495 = vpop.f32.mrb[0].mxu0
        %4496 = vdwg.mxu0
        %v4498 = vsel %vm838, %v4079, 0
        %v4501 = vsel %vm838, %v4080, 0
        %v4504 = vsel %vm838, %v4081, 0
        %v4507 = vsel %vm838, %v4082, 0
        %v4510 = vsel %vm838, %v4083, 0
        %v4513 = vsel %vm838, %v4084, 0
        %v4516 = vsel %vm838, %v4085, 0
        %v4519 = vsel %vm838, %v4086, 0
        %v4522 = vsel %vm838, %v4143, 0
        %v4525 = vsel %vm838, %v4144, 0
        %v4528 = vsel %vm838, %v4145, 0
        %v4531 = vsel %vm838, %v4146, 0
        %v4534 = vsel %vm838, %v4147, 0
        %v4537 = vsel %vm838, %v4148, 0
        %v4540 = vsel %vm838, %v4149, 0
        %v4543 = vsel %vm838, %v4150, 0
        %4545 = vmatprep.subr.bf16.mxu0 0
        %4546 = vmatpush1.bf16.xpose.msra.mxu0 %v4522
        %4547 = vmatprep.subr.bf16.mxu0 0
        %4548 = vmatpush1.bf16.xpose.msra.mxu0 %v4525
        %4549 = vmatprep.subr.bf16.mxu0 0
        %4550 = vmatpush1.bf16.xpose.msra.mxu0 %v4528
        %4551 = vmatprep.subr.bf16.mxu0 0
        %4552 = vmatpush1.bf16.xpose.msra.mxu0 %v4531
        %4553 = vmatprep.subr.bf16.mxu0 0
        %4554 = vmatpush1.bf16.xpose.msra.mxu0 %v4534
        %4555 = vmatprep.subr.bf16.mxu0 0
        %4556 = vmatpush1.bf16.xpose.msra.mxu0 %v4537
        %4557 = vmatprep.subr.bf16.mxu0 0
        %4558 = vmatpush1.bf16.xpose.msra.mxu0 %v4540
        %4559 = vmatprep.subr.bf16.mxu0 0
        %4560 = vmatpush1.bf16.xpose.msra.mxu0 %v4543
        %4561 = vmatprep.subr.bf16.mxu0 0
        %4562 = vmatpush1.bf16.xpose.msra.mxu0 0
        %4563 = vmatprep.subr.bf16.mxu0 0
        %4564 = vmatpush1.bf16.xpose.msra.mxu0 0
        %4565 = vmatprep.subr.bf16.mxu0 0
        %4566 = vmatpush1.bf16.xpose.msra.mxu0 0
        %4567 = vmatprep.subr.bf16.mxu0 0
        %4568 = vmatpush1.bf16.xpose.msra.mxu0 0
        %4569 = vmatprep.subr.bf16.mxu0 0
        %4570 = vmatpush1.bf16.xpose.msra.mxu0 0
        %4571 = vmatprep.subr.bf16.mxu0 0
        %4572 = vmatpush1.bf16.xpose.msra.mxu0 0
        %4573 = vmatprep.subr.bf16.mxu0 0
        %4574 = vmatpush1.bf16.xpose.msra.mxu0 0
        %4575 = vmatprep.subr.bf16.mxu0 0
        %4576 = vmatpush1.bf16.xpose.msra.mxu0 0
        %4577 = vmatprep.mubr.bf16.mxu0 0
        %4578 = vmatmul.mubr.bf16.gmra.mrb[0].mxu0 %v4498
        %v4579 = vpop.f32.mrb[0].mxu0
        %v4580 = vadd.f32 %v4191, %v4579
        %v4581 = vpop.f32.mrb[0].mxu0
        %v4582 = vpop.f32.mrb[0].mxu0
        %v4583 = vadd.f32 %v4192, %v4582
        %v4584 = vpop.f32.mrb[0].mxu0
        %4585 = vmatprep.mubr.bf16.mxu0 0
        %4586 = vmatmul.mubr.bf16.gmra.mrb[0].mxu0 %v4501
        %v4587 = vpop.f32.mrb[0].mxu0
        %v4588 = vadd.f32 %v4193, %v4587
        %v4589 = vpop.f32.mrb[0].mxu0
        %v4590 = vpop.f32.mrb[0].mxu0
        %v4591 = vadd.f32 %v4194, %v4590
        %v4592 = vpop.f32.mrb[0].mxu0
        %4593 = vmatprep.mubr.bf16.mxu0 0
        %4594 = vmatmul.mubr.bf16.gmra.mrb[0].mxu0 %v4504
        %v4595 = vpop.f32.mrb[0].mxu0
        %v4596 = vadd.f32 %v4195, %v4595
        %v4597 = vpop.f32.mrb[0].mxu0
        %v4598 = vpop.f32.mrb[0].mxu0
        %v4599 = vadd.f32 %v4196, %v4598
        %v4600 = vpop.f32.mrb[0].mxu0
        %4601 = vmatprep.mubr.bf16.mxu0 0
        %4602 = vmatmul.mubr.bf16.gmra.mrb[0].mxu0 %v4507
        %v4603 = vpop.f32.mrb[0].mxu0
        %v4604 = vadd.f32 %v4197, %v4603
        %v4605 = vpop.f32.mrb[0].mxu0
        %v4606 = vpop.f32.mrb[0].mxu0
        %v4607 = vadd.f32 %v4198, %v4606
        %v4608 = vpop.f32.mrb[0].mxu0
        %4609 = vmatprep.mubr.bf16.mxu0 0
        %4610 = vmatmul.mubr.bf16.gmra.mrb[0].mxu0 %v4510
        %v4611 = vpop.f32.mrb[0].mxu0
        %v4612 = vadd.f32 %v4199, %v4611
        %v4613 = vpop.f32.mrb[0].mxu0
        %v4614 = vpop.f32.mrb[0].mxu0
        %v4615 = vadd.f32 %v4200, %v4614
        %v4616 = vpop.f32.mrb[0].mxu0
        %4617 = vmatprep.mubr.bf16.mxu0 0
        %4618 = vmatmul.mubr.bf16.gmra.mrb[0].mxu0 %v4513
        %v4619 = vpop.f32.mrb[0].mxu0
        %v4620 = vadd.f32 %v4201, %v4619
        %v4621 = vpop.f32.mrb[0].mxu0
        %v4622 = vpop.f32.mrb[0].mxu0
        %v4623 = vadd.f32 %v4202, %v4622
        %v4624 = vpop.f32.mrb[0].mxu0
        %4625 = vmatprep.mubr.bf16.mxu0 0
        %4626 = vmatmul.mubr.bf16.gmra.mrb[0].mxu0 %v4516
        %v4627 = vpop.f32.mrb[0].mxu0
        %v4628 = vadd.f32 %v4203, %v4627
        %v4629 = vpop.f32.mrb[0].mxu0
        %v4630 = vpop.f32.mrb[0].mxu0
        %v4631 = vadd.f32 %v4204, %v4630
        %v4632 = vpop.f32.mrb[0].mxu0
        %4633 = vmatprep.mubr.bf16.mxu0 0
        %4634 = vmatmul.mubr.bf16.gmra.mrb[0].mxu0 %v4519
        %v4635 = vpop.f32.mrb[0].mxu0
        %v4636 = vadd.f32 %v4205, %v4635
        %v4637 = vpop.f32.mrb[0].mxu0
        %v4638 = vpop.f32.mrb[0].mxu0
        %v4639 = vadd.f32 %v4206, %v4638
        %v4640 = vpop.f32.mrb[0].mxu0
        %4641 = vdwg.mxu0
        %v4643 = vsel %vm838, %v4087, 0
        %v4646 = vsel %vm838, %v4088, 0
        %v4649 = vsel %vm838, %v4089, 0
        %v4652 = vsel %vm838, %v4090, 0
        %v4655 = vsel %vm838, %v4091, 0
        %v4658 = vsel %vm838, %v4092, 0
        %v4661 = vsel %vm838, %v4093, 0
        %v4664 = vsel %vm838, %v4094, 0
        %v4667 = vsel %vm838, %v4151, 0
        %v4670 = vsel %vm838, %v4152, 0
        %v4673 = vsel %vm838, %v4153, 0
        %v4676 = vsel %vm838, %v4154, 0
        %v4679 = vsel %vm838, %v4155, 0
        %v4682 = vsel %vm838, %v4156, 0
        %v4685 = vsel %vm838, %v4157, 0
        %v4688 = vsel %vm838, %v4158, 0
        %4690 = vmatprep.subr.bf16.mxu0 0
        %4691 = vmatpush1.bf16.xpose.msra.mxu0 %v4667
        %4692 = vmatprep.subr.bf16.mxu0 0
        %4693 = vmatpush1.bf16.xpose.msra.mxu0 %v4670
        %4694 = vmatprep.subr.bf16.mxu0 0
        %4695 = vmatpush1.bf16.xpose.msra.mxu0 %v4673
        %4696 = vmatprep.subr.bf16.mxu0 0
        %4697 = vmatpush1.bf16.xpose.msra.mxu0 %v4676
        %4698 = vmatprep.subr.bf16.mxu0 0
        %4699 = vmatpush1.bf16.xpose.msra.mxu0 %v4679
        %4700 = vmatprep.subr.bf16.mxu0 0
        %4701 = vmatpush1.bf16.xpose.msra.mxu0 %v4682
        %4702 = vmatprep.subr.bf16.mxu0 0
        %4703 = vmatpush1.bf16.xpose.msra.mxu0 %v4685
        %4704 = vmatprep.subr.bf16.mxu0 0
        %4705 = vmatpush1.bf16.xpose.msra.mxu0 %v4688
        %4706 = vmatprep.subr.bf16.mxu0 0
        %4707 = vmatpush1.bf16.xpose.msra.mxu0 0
        %4708 = vmatprep.subr.bf16.mxu0 0
        %4709 = vmatpush1.bf16.xpose.msra.mxu0 0
        %4710 = vmatprep.subr.bf16.mxu0 0
        %4711 = vmatpush1.bf16.xpose.msra.mxu0 0
        %4712 = vmatprep.subr.bf16.mxu0 0
        %4713 = vmatpush1.bf16.xpose.msra.mxu0 0
        %4714 = vmatprep.subr.bf16.mxu0 0
        %4715 = vmatpush1.bf16.xpose.msra.mxu0 0
        %4716 = vmatprep.subr.bf16.mxu0 0
        %4717 = vmatpush1.bf16.xpose.msra.mxu0 0
        %4718 = vmatprep.subr.bf16.mxu0 0
        %4719 = vmatpush1.bf16.xpose.msra.mxu0 0
        %4720 = vmatprep.subr.bf16.mxu0 0
        %4721 = vmatpush1.bf16.xpose.msra.mxu0 0
        %4722 = vmatprep.mubr.bf16.mxu0 0
        %4723 = vmatmul.mubr.bf16.gmra.mrb[0].mxu0 %v4643
        %v4724 = vpop.f32.mrb[0].mxu0
        %v4725 = vadd.f32 %v4191, %v4724
        %v4726 = vpop.f32.mrb[0].mxu0
        %v4727 = vpop.f32.mrb[0].mxu0
        %v4728 = vadd.f32 %v4192, %v4727
        %v4729 = vpop.f32.mrb[0].mxu0
        %4730 = vmatprep.mubr.bf16.mxu0 0
        %4731 = vmatmul.mubr.bf16.gmra.mrb[0].mxu0 %v4646
        %v4732 = vpop.f32.mrb[0].mxu0
        %v4733 = vadd.f32 %v4193, %v4732
        %v4734 = vpop.f32.mrb[0].mxu0
        %v4735 = vpop.f32.mrb[0].mxu0
        %v4736 = vadd.f32 %v4194, %v4735
        %v4737 = vpop.f32.mrb[0].mxu0
        %4738 = vmatprep.mubr.bf16.mxu0 0
        %4739 = vmatmul.mubr.bf16.gmra.mrb[0].mxu0 %v4649
        %v4740 = vpop.f32.mrb[0].mxu0
        %v4741 = vadd.f32 %v4195, %v4740
        %v4742 = vpop.f32.mrb[0].mxu0
        %v4743 = vpop.f32.mrb[0].mxu0
        %v4744 = vadd.f32 %v4196, %v4743
        %v4745 = vpop.f32.mrb[0].mxu0
        %4746 = vmatprep.mubr.bf16.mxu0 0
        %4747 = vmatmul.mubr.bf16.gmra.mrb[0].mxu0 %v4652
        %v4748 = vpop.f32.mrb[0].mxu0
        %v4749 = vadd.f32 %v4197, %v4748
        %v4750 = vpop.f32.mrb[0].mxu0
        %v4751 = vpop.f32.mrb[0].mxu0
        %v4752 = vadd.f32 %v4198, %v4751
        %v4753 = vpop.f32.mrb[0].mxu0
        %4754 = vmatprep.mubr.bf16.mxu0 0
        %4755 = vmatmul.mubr.bf16.gmra.mrb[0].mxu0 %v4655
        %v4756 = vpop.f32.mrb[0].mxu0
        %v4757 = vadd.f32 %v4199, %v4756
        %v4758 = vpop.f32.mrb[0].mxu0
        %v4759 = vpop.f32.mrb[0].mxu0
        %v4760 = vadd.f32 %v4200, %v4759
        %v4761 = vpop.f32.mrb[0].mxu0
        %4762 = vmatprep.mubr.bf16.mxu0 0
        %4763 = vmatmul.mubr.bf16.gmra.mrb[0].mxu0 %v4658
        %v4764 = vpop.f32.mrb[0].mxu0
        %v4765 = vadd.f32 %v4201, %v4764
        %v4766 = vpop.f32.mrb[0].mxu0
        %v4767 = vpop.f32.mrb[0].mxu0
        %v4768 = vadd.f32 %v4202, %v4767
        %v4769 = vpop.f32.mrb[0].mxu0
        %4770 = vmatprep.mubr.bf16.mxu0 0
        %4771 = vmatmul.mubr.bf16.gmra.mrb[0].mxu0 %v4661
        %v4772 = vpop.f32.mrb[0].mxu0
        %v4773 = vadd.f32 %v4203, %v4772
        %v4774 = vpop.f32.mrb[0].mxu0
        %v4775 = vpop.f32.mrb[0].mxu0
        %v4776 = vadd.f32 %v4204, %v4775
        %v4777 = vpop.f32.mrb[0].mxu0
        %4778 = vmatprep.mubr.bf16.mxu0 0
        %4779 = vmatmul.mubr.bf16.gmra.mrb[0].mxu0 %v4664
        %v4780 = vpop.f32.mrb[0].mxu0
        %v4781 = vadd.f32 %v4205, %v4780
        %v4782 = vpop.f32.mrb[0].mxu0
        %v4783 = vpop.f32.mrb[0].mxu0
        %v4784 = vadd.f32 %v4206, %v4783
        %v4785 = vpop.f32.mrb[0].mxu0
        %4786 = vdwg.mxu0
        %v4788 = vsel %vm838, %v4095, 0
        %v4791 = vsel %vm838, %v4096, 0
        %v4794 = vsel %vm838, %v4097, 0
        %v4797 = vsel %vm838, %v4098, 0
        %v4800 = vsel %vm838, %v4099, 0
        %v4803 = vsel %vm838, %v4100, 0
        %v4806 = vsel %vm838, %v4101, 0
        %v4809 = vsel %vm838, %v4102, 0
        %v4812 = vsel %vm838, %v4159, 0
        %v4815 = vsel %vm838, %v4160, 0
        %v4818 = vsel %vm838, %v4161, 0
        %v4821 = vsel %vm838, %v4162, 0
        %v4824 = vsel %vm838, %v4163, 0
        %v4827 = vsel %vm838, %v4164, 0
        %v4830 = vsel %vm838, %v4165, 0
        %v4833 = vsel %vm838, %v4166, 0
        %4835 = vmatprep.subr.bf16.mxu0 0
        %4836 = vmatpush1.bf16.xpose.msra.mxu0 %v4812
        %4837 = vmatprep.subr.bf16.mxu0 0
        %4838 = vmatpush1.bf16.xpose.msra.mxu0 %v4815
        %4839 = vmatprep.subr.bf16.mxu0 0
        %4840 = vmatpush1.bf16.xpose.msra.mxu0 %v4818
        %4841 = vmatprep.subr.bf16.mxu0 0
        %4842 = vmatpush1.bf16.xpose.msra.mxu0 %v4821
        %4843 = vmatprep.subr.bf16.mxu0 0
        %4844 = vmatpush1.bf16.xpose.msra.mxu0 %v4824
        %4845 = vmatprep.subr.bf16.mxu0 0
        %4846 = vmatpush1.bf16.xpose.msra.mxu0 %v4827
        %4847 = vmatprep.subr.bf16.mxu0 0
        %4848 = vmatpush1.bf16.xpose.msra.mxu0 %v4830
        %4849 = vmatprep.subr.bf16.mxu0 0
        %4850 = vmatpush1.bf16.xpose.msra.mxu0 %v4833
        %4851 = vmatprep.subr.bf16.mxu0 0
        %4852 = vmatpush1.bf16.xpose.msra.mxu0 0
        %4853 = vmatprep.subr.bf16.mxu0 0
        %4854 = vmatpush1.bf16.xpose.msra.mxu0 0
        %4855 = vmatprep.subr.bf16.mxu0 0
        %4856 = vmatpush1.bf16.xpose.msra.mxu0 0
        %4857 = vmatprep.subr.bf16.mxu0 0
        %4858 = vmatpush1.bf16.xpose.msra.mxu0 0
        %4859 = vmatprep.subr.bf16.mxu0 0
        %4860 = vmatpush1.bf16.xpose.msra.mxu0 0
        %4861 = vmatprep.subr.bf16.mxu0 0
        %4862 = vmatpush1.bf16.xpose.msra.mxu0 0
        %4863 = vmatprep.subr.bf16.mxu0 0
        %4864 = vmatpush1.bf16.xpose.msra.mxu0 0
        %4865 = vmatprep.subr.bf16.mxu0 0
        %4866 = vmatpush1.bf16.xpose.msra.mxu0 0
        %4867 = vmatprep.mubr.bf16.mxu0 0
        %4868 = vmatmul.mubr.bf16.gmra.mrb[0].mxu0 %v4788
        %v4869 = vpop.f32.mrb[0].mxu0
        %v4870 = vadd.f32 %v4191, %v4869
        %v4871 = vpop.f32.mrb[0].mxu0
        %v4872 = vpop.f32.mrb[0].mxu0
        %v4873 = vadd.f32 %v4192, %v4872
        %v4874 = vpop.f32.mrb[0].mxu0
        %4875 = vmatprep.mubr.bf16.mxu0 0
        %4876 = vmatmul.mubr.bf16.gmra.mrb[0].mxu0 %v4791
        %v4877 = vpop.f32.mrb[0].mxu0
        %v4878 = vadd.f32 %v4193, %v4877
        %v4879 = vpop.f32.mrb[0].mxu0
        %v4880 = vpop.f32.mrb[0].mxu0
        %v4881 = vadd.f32 %v4194, %v4880
        %v4882 = vpop.f32.mrb[0].mxu0
        %4883 = vmatprep.mubr.bf16.mxu0 0
        %4884 = vmatmul.mubr.bf16.gmra.mrb[0].mxu0 %v4794
        %v4885 = vpop.f32.mrb[0].mxu0
        %v4886 = vadd.f32 %v4195, %v4885
        %v4887 = vpop.f32.mrb[0].mxu0
        %v4888 = vpop.f32.mrb[0].mxu0
        %v4889 = vadd.f32 %v4196, %v4888
        %v4890 = vpop.f32.mrb[0].mxu0
        %4891 = vmatprep.mubr.bf16.mxu0 0
        %4892 = vmatmul.mubr.bf16.gmra.mrb[0].mxu0 %v4797
        %v4893 = vpop.f32.mrb[0].mxu0
        %v4894 = vadd.f32 %v4197, %v4893
        %v4895 = vpop.f32.mrb[0].mxu0
        %v4896 = vpop.f32.mrb[0].mxu0
        %v4897 = vadd.f32 %v4198, %v4896
        %v4898 = vpop.f32.mrb[0].mxu0
        %4899 = vmatprep.mubr.bf16.mxu0 0
        %4900 = vmatmul.mubr.bf16.gmra.mrb[0].mxu0 %v4800
        %v4901 = vpop.f32.mrb[0].mxu0
        %v4902 = vadd.f32 %v4199, %v4901
        %v4903 = vpop.f32.mrb[0].mxu0
        %v4904 = vpop.f32.mrb[0].mxu0
        %v4905 = vadd.f32 %v4200, %v4904
        %v4906 = vpop.f32.mrb[0].mxu0
        %4907 = vmatprep.mubr.bf16.mxu0 0
        %4908 = vmatmul.mubr.bf16.gmra.mrb[0].mxu0 %v4803
        %v4909 = vpop.f32.mrb[0].mxu0
        %v4910 = vadd.f32 %v4201, %v4909
        %v4911 = vpop.f32.mrb[0].mxu0
        %v4912 = vpop.f32.mrb[0].mxu0
        %v4913 = vadd.f32 %v4202, %v4912
        %v4914 = vpop.f32.mrb[0].mxu0
        %4915 = vmatprep.mubr.bf16.mxu0 0
        %4916 = vmatmul.mubr.bf16.gmra.mrb[0].mxu0 %v4806
        %v4917 = vpop.f32.mrb[0].mxu0
        %v4918 = vadd.f32 %v4203, %v4917
        %v4919 = vpop.f32.mrb[0].mxu0
        %v4920 = vpop.f32.mrb[0].mxu0
        %v4921 = vadd.f32 %v4204, %v4920
        %v4922 = vpop.f32.mrb[0].mxu0
        %4923 = vmatprep.mubr.bf16.mxu0 0
        %4924 = vmatmul.mubr.bf16.gmra.mrb[0].mxu0 %v4809
        %v4925 = vpop.f32.mrb[0].mxu0
        %v4926 = vadd.f32 %v4205, %v4925
        %v4927 = vpop.f32.mrb[0].mxu0
        %v4928 = vpop.f32.mrb[0].mxu0
        %v4929 = vadd.f32 %v4206, %v4928
        %v4930 = vpop.f32.mrb[0].mxu0
        %4931 = vdwg.mxu0
        %v4933 = vsel %vm838, %v4103, 0
        %v4936 = vsel %vm838, %v4104, 0
        %v4939 = vsel %vm838, %v4105, 0
        %v4942 = vsel %vm838, %v4106, 0
        %v4945 = vsel %vm838, %v4107, 0
        %v4948 = vsel %vm838, %v4108, 0
        %v4951 = vsel %vm838, %v4109, 0
        %v4954 = vsel %vm838, %v4110, 0
        %v4957 = vsel %vm838, %v4167, 0
        %v4960 = vsel %vm838, %v4168, 0
        %v4963 = vsel %vm838, %v4169, 0
        %v4966 = vsel %vm838, %v4170, 0
        %v4969 = vsel %vm838, %v4171, 0
        %v4972 = vsel %vm838, %v4172, 0
        %v4975 = vsel %vm838, %v4173, 0
        %v4978 = vsel %vm838, %v4174, 0
        %4980 = vmatprep.subr.bf16.mxu0 0
        %4981 = vmatpush1.bf16.xpose.msra.mxu0 %v4957
        %4982 = vmatprep.subr.bf16.mxu0 0
        %4983 = vmatpush1.bf16.xpose.msra.mxu0 %v4960
        %4984 = vmatprep.subr.bf16.mxu0 0
        %4985 = vmatpush1.bf16.xpose.msra.mxu0 %v4963
        %4986 = vmatprep.subr.bf16.mxu0 0
        %4987 = vmatpush1.bf16.xpose.msra.mxu0 %v4966
        %4988 = vmatprep.subr.bf16.mxu0 0
        %4989 = vmatpush1.bf16.xpose.msra.mxu0 %v4969
        %4990 = vmatprep.subr.bf16.mxu0 0
        %4991 = vmatpush1.bf16.xpose.msra.mxu0 %v4972
        %4992 = vmatprep.subr.bf16.mxu0 0
        %4993 = vmatpush1.bf16.xpose.msra.mxu0 %v4975
        %4994 = vmatprep.subr.bf16.mxu0 0
        %4995 = vmatpush1.bf16.xpose.msra.mxu0 %v4978
        %4996 = vmatprep.subr.bf16.mxu0 0
        %4997 = vmatpush1.bf16.xpose.msra.mxu0 0
        %4998 = vmatprep.subr.bf16.mxu0 0
        %4999 = vmatpush1.bf16.xpose.msra.mxu0 0
        %5000 = vmatprep.subr.bf16.mxu0 0
        %5001 = vmatpush1.bf16.xpose.msra.mxu0 0
        %5002 = vmatprep.subr.bf16.mxu0 0
        %5003 = vmatpush1.bf16.xpose.msra.mxu0 0
        %5004 = vmatprep.subr.bf16.mxu0 0
        %5005 = vmatpush1.bf16.xpose.msra.mxu0 0
        %5006 = vmatprep.subr.bf16.mxu0 0
        %5007 = vmatpush1.bf16.xpose.msra.mxu0 0
        %5008 = vmatprep.subr.bf16.mxu0 0
        %5009 = vmatpush1.bf16.xpose.msra.mxu0 0
        %5010 = vmatprep.subr.bf16.mxu0 0
        %5011 = vmatpush1.bf16.xpose.msra.mxu0 0
        %5012 = vmatprep.mubr.bf16.mxu0 0
        %5013 = vmatmul.mubr.bf16.gmra.mrb[0].mxu0 %v4933
        %v5014 = vpop.f32.mrb[0].mxu0
        %v5015 = vadd.f32 %v4191, %v5014
        %v5016 = vpop.f32.mrb[0].mxu0
        %v5017 = vpop.f32.mrb[0].mxu0
        %v5018 = vadd.f32 %v4192, %v5017
        %v5019 = vpop.f32.mrb[0].mxu0
        %5020 = vmatprep.mubr.bf16.mxu0 0
        %5021 = vmatmul.mubr.bf16.gmra.mrb[0].mxu0 %v4936
        %v5022 = vpop.f32.mrb[0].mxu0
        %v5023 = vadd.f32 %v4193, %v5022
        %v5024 = vpop.f32.mrb[0].mxu0
        %v5025 = vpop.f32.mrb[0].mxu0
        %v5026 = vadd.f32 %v4194, %v5025
        %v5027 = vpop.f32.mrb[0].mxu0
        %5028 = vmatprep.mubr.bf16.mxu0 0
        %5029 = vmatmul.mubr.bf16.gmra.mrb[0].mxu0 %v4939
        %v5030 = vpop.f32.mrb[0].mxu0
        %v5031 = vadd.f32 %v4195, %v5030
        %v5032 = vpop.f32.mrb[0].mxu0
        %v5033 = vpop.f32.mrb[0].mxu0
        %v5034 = vadd.f32 %v4196, %v5033
        %v5035 = vpop.f32.mrb[0].mxu0
        %5036 = vmatprep.mubr.bf16.mxu0 0
        %5037 = vmatmul.mubr.bf16.gmra.mrb[0].mxu0 %v4942
        %v5038 = vpop.f32.mrb[0].mxu0
        %v5039 = vadd.f32 %v4197, %v5038
        %v5040 = vpop.f32.mrb[0].mxu0
        %v5041 = vpop.f32.mrb[0].mxu0
        %v5042 = vadd.f32 %v4198, %v5041
        %v5043 = vpop.f32.mrb[0].mxu0
        %5044 = vmatprep.mubr.bf16.mxu0 0
        %5045 = vmatmul.mubr.bf16.gmra.mrb[0].mxu0 %v4945
        %v5046 = vpop.f32.mrb[0].mxu0
        %v5047 = vadd.f32 %v4199, %v5046
        %v5048 = vpop.f32.mrb[0].mxu0
        %v5049 = vpop.f32.mrb[0].mxu0
        %v5050 = vadd.f32 %v4200, %v5049
        %v5051 = vpop.f32.mrb[0].mxu0
        %5052 = vmatprep.mubr.bf16.mxu0 0
        %5053 = vmatmul.mubr.bf16.gmra.mrb[0].mxu0 %v4948
        %v5054 = vpop.f32.mrb[0].mxu0
        %v5055 = vadd.f32 %v4201, %v5054
        %v5056 = vpop.f32.mrb[0].mxu0
        %v5057 = vpop.f32.mrb[0].mxu0
        %v5058 = vadd.f32 %v4202, %v5057
        %v5059 = vpop.f32.mrb[0].mxu0
        %5060 = vmatprep.mubr.bf16.mxu0 0
        %5061 = vmatmul.mubr.bf16.gmra.mrb[0].mxu0 %v4951
        %v5062 = vpop.f32.mrb[0].mxu0
        %v5063 = vadd.f32 %v4203, %v5062
        %v5064 = vpop.f32.mrb[0].mxu0
        %v5065 = vpop.f32.mrb[0].mxu0
        %v5066 = vadd.f32 %v4204, %v5065
        %v5067 = vpop.f32.mrb[0].mxu0
        %5068 = vmatprep.mubr.bf16.mxu0 0
        %5069 = vmatmul.mubr.bf16.gmra.mrb[0].mxu0 %v4954
        %v5070 = vpop.f32.mrb[0].mxu0
        %v5071 = vadd.f32 %v4205, %v5070
        %v5072 = vpop.f32.mrb[0].mxu0
        %v5073 = vpop.f32.mrb[0].mxu0
        %v5074 = vadd.f32 %v4206, %v5073
        %v5075 = vpop.f32.mrb[0].mxu0
        %5076 = vdwg.mxu0
        %v5078 = vsel %vm838, %v4111, 0
        %v5081 = vsel %vm838, %v4112, 0
        %v5084 = vsel %vm838, %v4113, 0
        %v5087 = vsel %vm838, %v4114, 0
        %v5090 = vsel %vm838, %v4115, 0
        %v5093 = vsel %vm838, %v4116, 0
        %v5096 = vsel %vm838, %v4117, 0
        %v5099 = vsel %vm838, %v4118, 0
        %v5102 = vsel %vm838, %v4175, 0
        %v5105 = vsel %vm838, %v4176, 0
        %v5108 = vsel %vm838, %v4177, 0
        %v5111 = vsel %vm838, %v4178, 0
        %v5114 = vsel %vm838, %v4179, 0
        %v5117 = vsel %vm838, %v4180, 0
        %v5120 = vsel %vm838, %v4181, 0
        %v5123 = vsel %vm838, %v4182, 0
        %5125 = vmatprep.subr.bf16.mxu0 0
        %5126 = vmatpush1.bf16.xpose.msra.mxu0 %v5102
        %5127 = vmatprep.subr.bf16.mxu0 0
        %5128 = vmatpush1.bf16.xpose.msra.mxu0 %v5105
        %5129 = vmatprep.subr.bf16.mxu0 0
        %5130 = vmatpush1.bf16.xpose.msra.mxu0 %v5108
        %5131 = vmatprep.subr.bf16.mxu0 0
        %5132 = vmatpush1.bf16.xpose.msra.mxu0 %v5111
        %5133 = vmatprep.subr.bf16.mxu0 0
        %5134 = vmatpush1.bf16.xpose.msra.mxu0 %v5114
        %5135 = vmatprep.subr.bf16.mxu0 0
        %5136 = vmatpush1.bf16.xpose.msra.mxu0 %v5117
        %5137 = vmatprep.subr.bf16.mxu0 0
        %5138 = vmatpush1.bf16.xpose.msra.mxu0 %v5120
        %5139 = vmatprep.subr.bf16.mxu0 0
        %5140 = vmatpush1.bf16.xpose.msra.mxu0 %v5123
        %5141 = vmatprep.subr.bf16.mxu0 0
        %5142 = vmatpush1.bf16.xpose.msra.mxu0 0
        %5143 = vmatprep.subr.bf16.mxu0 0
        %5144 = vmatpush1.bf16.xpose.msra.mxu0 0
        %5145 = vmatprep.subr.bf16.mxu0 0
        %5146 = vmatpush1.bf16.xpose.msra.mxu0 0
        %5147 = vmatprep.subr.bf16.mxu0 0
        %5148 = vmatpush1.bf16.xpose.msra.mxu0 0
        %5149 = vmatprep.subr.bf16.mxu0 0
        %5150 = vmatpush1.bf16.xpose.msra.mxu0 0
        %5151 = vmatprep.subr.bf16.mxu0 0
        %5152 = vmatpush1.bf16.xpose.msra.mxu0 0
        %5153 = vmatprep.subr.bf16.mxu0 0
        %5154 = vmatpush1.bf16.xpose.msra.mxu0 0
        %5155 = vmatprep.subr.bf16.mxu0 0
        %5156 = vmatpush1.bf16.xpose.msra.mxu0 0
        %5157 = vmatprep.mubr.bf16.mxu0 0
        %5158 = vmatmul.mubr.bf16.gmra.mrb[0].mxu0 %v5078
        %v5159 = vpop.f32.mrb[0].mxu0
        %v5160 = vadd.f32 %v4191, %v5159
        %v5161 = vpop.f32.mrb[0].mxu0
        %v5162 = vpop.f32.mrb[0].mxu0
        %v5163 = vadd.f32 %v4192, %v5162
        %v5164 = vpop.f32.mrb[0].mxu0
        %5165 = vmatprep.mubr.bf16.mxu0 0
        %5166 = vmatmul.mubr.bf16.gmra.mrb[0].mxu0 %v5081
        %v5167 = vpop.f32.mrb[0].mxu0
        %v5168 = vadd.f32 %v4193, %v5167
        %v5169 = vpop.f32.mrb[0].mxu0
        %v5170 = vpop.f32.mrb[0].mxu0
        %v5171 = vadd.f32 %v4194, %v5170
        %v5172 = vpop.f32.mrb[0].mxu0
        %5173 = vmatprep.mubr.bf16.mxu0 0
        %5174 = vmatmul.mubr.bf16.gmra.mrb[0].mxu0 %v5084
        %v5175 = vpop.f32.mrb[0].mxu0
        %v5176 = vadd.f32 %v4195, %v5175
        %v5177 = vpop.f32.mrb[0].mxu0
        %v5178 = vpop.f32.mrb[0].mxu0
        %v5179 = vadd.f32 %v4196, %v5178
        %v5180 = vpop.f32.mrb[0].mxu0
        %5181 = vmatprep.mubr.bf16.mxu0 0
        %5182 = vmatmul.mubr.bf16.gmra.mrb[0].mxu0 %v5087
        %v5183 = vpop.f32.mrb[0].mxu0
        %v5184 = vadd.f32 %v4197, %v5183
        %v5185 = vpop.f32.mrb[0].mxu0
        %v5186 = vpop.f32.mrb[0].mxu0
        %v5187 = vadd.f32 %v4198, %v5186
        %v5188 = vpop.f32.mrb[0].mxu0
        %5189 = vmatprep.mubr.bf16.mxu0 0
        %5190 = vmatmul.mubr.bf16.gmra.mrb[0].mxu0 %v5090
        %v5191 = vpop.f32.mrb[0].mxu0
        %v5192 = vadd.f32 %v4199, %v5191
        %v5193 = vpop.f32.mrb[0].mxu0
        %v5194 = vpop.f32.mrb[0].mxu0
        %v5195 = vadd.f32 %v4200, %v5194
        %v5196 = vpop.f32.mrb[0].mxu0
        %5197 = vmatprep.mubr.bf16.mxu0 0
        %5198 = vmatmul.mubr.bf16.gmra.mrb[0].mxu0 %v5093
        %v5199 = vpop.f32.mrb[0].mxu0
        %v5200 = vadd.f32 %v4201, %v5199
        %v5201 = vpop.f32.mrb[0].mxu0
        %v5202 = vpop.f32.mrb[0].mxu0
        %v5203 = vadd.f32 %v4202, %v5202
        %v5204 = vpop.f32.mrb[0].mxu0
        %5205 = vmatprep.mubr.bf16.mxu0 0
        %5206 = vmatmul.mubr.bf16.gmra.mrb[0].mxu0 %v5096
        %v5207 = vpop.f32.mrb[0].mxu0
        %v5208 = vadd.f32 %v4203, %v5207
        %v5209 = vpop.f32.mrb[0].mxu0
        %v5210 = vpop.f32.mrb[0].mxu0
        %v5211 = vadd.f32 %v4204, %v5210
        %v5212 = vpop.f32.mrb[0].mxu0
        %5213 = vmatprep.mubr.bf16.mxu0 0
        %5214 = vmatmul.mubr.bf16.gmra.mrb[0].mxu0 %v5099
        %v5215 = vpop.f32.mrb[0].mxu0
        %v5216 = vadd.f32 %v4205, %v5215
        %v5217 = vpop.f32.mrb[0].mxu0
        %v5218 = vpop.f32.mrb[0].mxu0
        %v5219 = vadd.f32 %v4206, %v5218
        %v5220 = vpop.f32.mrb[0].mxu0
        %5221 = vdwg.mxu0
        %v5223 = vsel %vm838, %v4119, 0
        %v5226 = vsel %vm838, %v4120, 0
        %v5229 = vsel %vm838, %v4121, 0
        %v5232 = vsel %vm838, %v4122, 0
        %v5235 = vsel %vm838, %v4123, 0
        %v5238 = vsel %vm838, %v4124, 0
        %v5241 = vsel %vm838, %v4125, 0
        %v5244 = vsel %vm838, %v4126, 0
        %v5247 = vsel %vm838, %v4183, 0
        %v5250 = vsel %vm838, %v4184, 0
        %v5253 = vsel %vm838, %v4185, 0
        %v5256 = vsel %vm838, %v4186, 0
        %v5259 = vsel %vm838, %v4187, 0
        %v5262 = vsel %vm838, %v4188, 0
        %v5265 = vsel %vm838, %v4189, 0
        %v5268 = vsel %vm838, %v4190, 0
        %5270 = vmatprep.subr.bf16.mxu0 0
        %5271 = vmatpush1.bf16.xpose.msra.mxu0 %v5247
        %5272 = vmatprep.subr.bf16.mxu0 0
        %5273 = vmatpush1.bf16.xpose.msra.mxu0 %v5250
        %5274 = vmatprep.subr.bf16.mxu0 0
        %5275 = vmatpush1.bf16.xpose.msra.mxu0 %v5253
        %5276 = vmatprep.subr.bf16.mxu0 0
        %5277 = vmatpush1.bf16.xpose.msra.mxu0 %v5256
        %5278 = vmatprep.subr.bf16.mxu0 0
        %5279 = vmatpush1.bf16.xpose.msra.mxu0 %v5259
        %5280 = vmatprep.subr.bf16.mxu0 0
        %5281 = vmatpush1.bf16.xpose.msra.mxu0 %v5262
        %5282 = vmatprep.subr.bf16.mxu0 0
        %5283 = vmatpush1.bf16.xpose.msra.mxu0 %v5265
        %5284 = vmatprep.subr.bf16.mxu0 0
        %5285 = vmatpush1.bf16.xpose.msra.mxu0 %v5268
        %5286 = vmatprep.subr.bf16.mxu0 0
        %5287 = vmatpush1.bf16.xpose.msra.mxu0 0
        %5288 = vmatprep.subr.bf16.mxu0 0
        %5289 = vmatpush1.bf16.xpose.msra.mxu0 0
        %5290 = vmatprep.subr.bf16.mxu0 0
        %5291 = vmatpush1.bf16.xpose.msra.mxu0 0
        %5292 = vmatprep.subr.bf16.mxu0 0
        %5293 = vmatpush1.bf16.xpose.msra.mxu0 0
        %5294 = vmatprep.subr.bf16.mxu0 0
        %5295 = vmatpush1.bf16.xpose.msra.mxu0 0
        %5296 = vmatprep.subr.bf16.mxu0 0
        %5297 = vmatpush1.bf16.xpose.msra.mxu0 0
        %5298 = vmatprep.subr.bf16.mxu0 0
        %5299 = vmatpush1.bf16.xpose.msra.mxu0 0
        %5300 = vmatprep.subr.bf16.mxu0 0
        %5301 = vmatpush1.bf16.xpose.msra.mxu0 0
        %5302 = vmatprep.mubr.bf16.mxu0 0
        %5303 = vmatmul.mubr.bf16.gmra.mrb[0].mxu0 %v5223
        %v5304 = vpop.f32.mrb[0].mxu0
        %v5305 = vadd.f32 %v4191, %v5304
        %v5306 = vpop.f32.mrb[0].mxu0
        %v5307 = vpop.f32.mrb[0].mxu0
        %v5308 = vadd.f32 %v4192, %v5307
        %v5309 = vpop.f32.mrb[0].mxu0
        %5310 = vmatprep.mubr.bf16.mxu0 0
        %5311 = vmatmul.mubr.bf16.gmra.mrb[0].mxu0 %v5226
        %v5312 = vpop.f32.mrb[0].mxu0
        %v5313 = vadd.f32 %v4193, %v5312
        %v5314 = vpop.f32.mrb[0].mxu0
        %v5315 = vpop.f32.mrb[0].mxu0
        %v5316 = vadd.f32 %v4194, %v5315
        %v5317 = vpop.f32.mrb[0].mxu0
        %5318 = vmatprep.mubr.bf16.mxu0 0
        %5319 = vmatmul.mubr.bf16.gmra.mrb[0].mxu0 %v5229
        %v5320 = vpop.f32.mrb[0].mxu0
        %v5321 = vadd.f32 %v4195, %v5320
        %v5322 = vpop.f32.mrb[0].mxu0
        %v5323 = vpop.f32.mrb[0].mxu0
        %v5324 = vadd.f32 %v4196, %v5323
        %v5325 = vpop.f32.mrb[0].mxu0
        %5326 = vmatprep.mubr.bf16.mxu0 0
        %5327 = vmatmul.mubr.bf16.gmra.mrb[0].mxu0 %v5232
        %v5328 = vpop.f32.mrb[0].mxu0
        %v5329 = vadd.f32 %v4197, %v5328
        %v5330 = vpop.f32.mrb[0].mxu0
        %v5331 = vpop.f32.mrb[0].mxu0
        %v5332 = vadd.f32 %v4198, %v5331
        %v5333 = vpop.f32.mrb[0].mxu0
        %5334 = vmatprep.mubr.bf16.mxu0 0
        %5335 = vmatmul.mubr.bf16.gmra.mrb[0].mxu0 %v5235
        %v5336 = vpop.f32.mrb[0].mxu0
        %v5337 = vadd.f32 %v4199, %v5336
        %v5338 = vpop.f32.mrb[0].mxu0
        %v5339 = vpop.f32.mrb[0].mxu0
        %v5340 = vadd.f32 %v4200, %v5339
        %v5341 = vpop.f32.mrb[0].mxu0
        %5342 = vmatprep.mubr.bf16.mxu0 0
        %5343 = vmatmul.mubr.bf16.gmra.mrb[0].mxu0 %v5238
        %v5344 = vpop.f32.mrb[0].mxu0
        %v5345 = vadd.f32 %v4201, %v5344
        %v5346 = vpop.f32.mrb[0].mxu0
        %v5347 = vpop.f32.mrb[0].mxu0
        %v5348 = vadd.f32 %v4202, %v5347
        %v5349 = vpop.f32.mrb[0].mxu0
        %5350 = vmatprep.mubr.bf16.mxu0 0
        %5351 = vmatmul.mubr.bf16.gmra.mrb[0].mxu0 %v5241
        %v5352 = vpop.f32.mrb[0].mxu0
        %v5353 = vadd.f32 %v4203, %v5352
        %v5354 = vpop.f32.mrb[0].mxu0
        %v5355 = vpop.f32.mrb[0].mxu0
        %v5356 = vadd.f32 %v4204, %v5355
        %v5357 = vpop.f32.mrb[0].mxu0
        %5358 = vmatprep.mubr.bf16.mxu0 0
        %5359 = vmatmul.mubr.bf16.gmra.mrb[0].mxu0 %v5244
        %v5360 = vpop.f32.mrb[0].mxu0
        %v5361 = vadd.f32 %v4205, %v5360
        %v5362 = vpop.f32.mrb[0].mxu0
        %v5363 = vpop.f32.mrb[0].mxu0
        %v5364 = vadd.f32 %v4206, %v5363
        %v5365 = vpop.f32.mrb[0].mxu0
        %5366 = vdwg.mxu0
        %5367 = vmax.xlane.f32.xlu0 %v4290
        %v5368 = vpop.xlane.xlu0 %5367
        %5369 = vmax.xlane.f32.xlu0 %v4293
        %v5370 = vpop.xlane.xlu0 %5369
        %5371 = vmax.xlane.f32.xlu0 %v4298
        %v5372 = vpop.xlane.xlu0 %5371
        %5373 = vmax.xlane.f32.xlu0 %v4301
        %v5374 = vpop.xlane.xlu0 %5373
        %5375 = vmax.xlane.f32.xlu0 %v4306
        %v5376 = vpop.xlane.xlu0 %5375
        %5377 = vmax.xlane.f32.xlu0 %v4309
        %v5378 = vpop.xlane.xlu0 %5377
        %5379 = vmax.xlane.f32.xlu0 %v4314
        %v5380 = vpop.xlane.xlu0 %5379
        %5381 = vmax.xlane.f32.xlu0 %v4317
        %v5382 = vpop.xlane.xlu0 %5381
        %5383 = vmax.xlane.f32.xlu0 %v4322
        %v5384 = vpop.xlane.xlu0 %5383
        %5385 = vmax.xlane.f32.xlu0 %v4325
        %v5386 = vpop.xlane.xlu0 %5385
        %5387 = vmax.xlane.f32.xlu0 %v4330
        %v5388 = vpop.xlane.xlu0 %5387
        %5389 = vmax.xlane.f32.xlu0 %v4333
        %v5390 = vpop.xlane.xlu0 %5389
        %5391 = vmax.xlane.f32.xlu0 %v4338
        %v5392 = vpop.xlane.xlu0 %5391
        %5393 = vmax.xlane.f32.xlu0 %v4341
        %v5394 = vpop.xlane.xlu0 %5393
        %5395 = vmax.xlane.f32.xlu0 %v4346
        %v5396 = vpop.xlane.xlu0 %5395
        %5397 = vmax.xlane.f32.xlu0 %v4349
        %v5398 = vpop.xlane.xlu0 %5397
        %5399 = vmax.xlane.f32.xlu0 %v4435
        %v5400 = vpop.xlane.xlu0 %5399
        %5401 = vmax.xlane.f32.xlu0 %v4438
        %v5402 = vpop.xlane.xlu0 %5401
        %5403 = vmax.xlane.f32.xlu0 %v4443
        %v5404 = vpop.xlane.xlu0 %5403
        %5405 = vmax.xlane.f32.xlu0 %v4446
        %v5406 = vpop.xlane.xlu0 %5405
        %5407 = vmax.xlane.f32.xlu0 %v4451
        %v5408 = vpop.xlane.xlu0 %5407
        %5409 = vmax.xlane.f32.xlu0 %v4454
        %v5410 = vpop.xlane.xlu0 %5409
        %5411 = vmax.xlane.f32.xlu0 %v4459
        %v5412 = vpop.xlane.xlu0 %5411
        %5413 = vmax.xlane.f32.xlu0 %v4462
        %v5414 = vpop.xlane.xlu0 %5413
        %5415 = vmax.xlane.f32.xlu0 %v4467
        %v5416 = vpop.xlane.xlu0 %5415
        %5417 = vmax.xlane.f32.xlu0 %v4470
        %v5418 = vpop.xlane.xlu0 %5417
        %5419 = vmax.xlane.f32.xlu0 %v4475
        %v5420 = vpop.xlane.xlu0 %5419
        %5421 = vmax.xlane.f32.xlu0 %v4478
        %v5422 = vpop.xlane.xlu0 %5421
        %5423 = vmax.xlane.f32.xlu0 %v4483
        %v5424 = vpop.xlane.xlu0 %5423
        %5425 = vmax.xlane.f32.xlu0 %v4486
        %v5426 = vpop.xlane.xlu0 %5425
        %5427 = vmax.xlane.f32.xlu0 %v4491
        %v5428 = vpop.xlane.xlu0 %5427
        %5429 = vmax.xlane.f32.xlu0 %v4494
        %v5430 = vpop.xlane.xlu0 %5429
        %5431 = vmax.xlane.f32.xlu0 %v4580
        %v5432 = vpop.xlane.xlu0 %5431
        %5433 = vmax.xlane.f32.xlu0 %v4583
        %v5434 = vpop.xlane.xlu0 %5433
        %5435 = vmax.xlane.f32.xlu0 %v4588
        %v5436 = vpop.xlane.xlu0 %5435
        %5437 = vmax.xlane.f32.xlu0 %v4591
        %v5438 = vpop.xlane.xlu0 %5437
        %5439 = vmax.xlane.f32.xlu0 %v4596
        %v5440 = vpop.xlane.xlu0 %5439
        %5441 = vmax.xlane.f32.xlu0 %v4599
        %v5442 = vpop.xlane.xlu0 %5441
        %5443 = vmax.xlane.f32.xlu0 %v4604
        %v5444 = vpop.xlane.xlu0 %5443
        %5445 = vmax.xlane.f32.xlu0 %v4607
        %v5446 = vpop.xlane.xlu0 %5445
        %5447 = vmax.xlane.f32.xlu0 %v4612
        %v5448 = vpop.xlane.xlu0 %5447
        %5449 = vmax.xlane.f32.xlu0 %v4615
        %v5450 = vpop.xlane.xlu0 %5449
        %5451 = vmax.xlane.f32.xlu0 %v4620
        %v5452 = vpop.xlane.xlu0 %5451
        %5453 = vmax.xlane.f32.xlu0 %v4623
        %v5454 = vpop.xlane.xlu0 %5453
        %5455 = vmax.xlane.f32.xlu0 %v4628
        %v5456 = vpop.xlane.xlu0 %5455
        %5457 = vmax.xlane.f32.xlu0 %v4631
        %v5458 = vpop.xlane.xlu0 %5457
        %5459 = vmax.xlane.f32.xlu0 %v4636
        %v5460 = vpop.xlane.xlu0 %5459
        %5461 = vmax.xlane.f32.xlu0 %v4639
        %v5462 = vpop.xlane.xlu0 %5461
        %5463 = vmax.xlane.f32.xlu0 %v4725
        %v5464 = vpop.xlane.xlu0 %5463
        %5465 = vmax.xlane.f32.xlu0 %v4728
        %v5466 = vpop.xlane.xlu0 %5465
        %5467 = vmax.xlane.f32.xlu0 %v4733
        %v5468 = vpop.xlane.xlu0 %5467
        %5469 = vmax.xlane.f32.xlu0 %v4736
        %v5470 = vpop.xlane.xlu0 %5469
        %5471 = vmax.xlane.f32.xlu0 %v4741
        %v5472 = vpop.xlane.xlu0 %5471
        %5473 = vmax.xlane.f32.xlu0 %v4744
        %v5474 = vpop.xlane.xlu0 %5473
        %5475 = vmax.xlane.f32.xlu0 %v4749
        %v5476 = vpop.xlane.xlu0 %5475
        %5477 = vmax.xlane.f32.xlu0 %v4752
        %v5478 = vpop.xlane.xlu0 %5477
        %5479 = vmax.xlane.f32.xlu0 %v4757
        %v5480 = vpop.xlane.xlu0 %5479
        %5481 = vmax.xlane.f32.xlu0 %v4760
        %v5482 = vpop.xlane.xlu0 %5481
        %5483 = vmax.xlane.f32.xlu0 %v4765
        %v5484 = vpop.xlane.xlu0 %5483
        %5485 = vmax.xlane.f32.xlu0 %v4768
        %v5486 = vpop.xlane.xlu0 %5485
        %5487 = vmax.xlane.f32.xlu0 %v4773
        %v5488 = vpop.xlane.xlu0 %5487
        %5489 = vmax.xlane.f32.xlu0 %v4776
        %v5490 = vpop.xlane.xlu0 %5489
        %5491 = vmax.xlane.f32.xlu0 %v4781
        %v5492 = vpop.xlane.xlu0 %5491
        %5493 = vmax.xlane.f32.xlu0 %v4784
        %v5494 = vpop.xlane.xlu0 %5493
        %5495 = vmax.xlane.f32.xlu0 %v4870
        %v5496 = vpop.xlane.xlu0 %5495
        %5497 = vmax.xlane.f32.xlu0 %v4873
        %v5498 = vpop.xlane.xlu0 %5497
        %5499 = vmax.xlane.f32.xlu0 %v4878
        %v5500 = vpop.xlane.xlu0 %5499
        %5501 = vmax.xlane.f32.xlu0 %v4881
        %v5502 = vpop.xlane.xlu0 %5501
        %5503 = vmax.xlane.f32.xlu0 %v4886
        %v5504 = vpop.xlane.xlu0 %5503
        %5505 = vmax.xlane.f32.xlu0 %v4889
        %v5506 = vpop.xlane.xlu0 %5505
        %5507 = vmax.xlane.f32.xlu0 %v4894
        %v5508 = vpop.xlane.xlu0 %5507
        %5509 = vmax.xlane.f32.xlu0 %v4897
        %v5510 = vpop.xlane.xlu0 %5509
        %5511 = vmax.xlane.f32.xlu0 %v4902
        %v5512 = vpop.xlane.xlu0 %5511
        %5513 = vmax.xlane.f32.xlu0 %v4905
        %v5514 = vpop.xlane.xlu0 %5513
        %5515 = vmax.xlane.f32.xlu0 %v4910
        %v5516 = vpop.xlane.xlu0 %5515
        %5517 = vmax.xlane.f32.xlu0 %v4913
        %v5518 = vpop.xlane.xlu0 %5517
        %5519 = vmax.xlane.f32.xlu0 %v4918
        %v5520 = vpop.xlane.xlu0 %5519
        %5521 = vmax.xlane.f32.xlu0 %v4921
        %v5522 = vpop.xlane.xlu0 %5521
        %5523 = vmax.xlane.f32.xlu0 %v4926
        %v5524 = vpop.xlane.xlu0 %5523
        %5525 = vmax.xlane.f32.xlu0 %v4929
        %v5526 = vpop.xlane.xlu0 %5525
        %5527 = vmax.xlane.f32.xlu0 %v5015
        %v5528 = vpop.xlane.xlu0 %5527
        %5529 = vmax.xlane.f32.xlu0 %v5018
        %v5530 = vpop.xlane.xlu0 %5529
        %5531 = vmax.xlane.f32.xlu0 %v5023
        %v5532 = vpop.xlane.xlu0 %5531
        %5533 = vmax.xlane.f32.xlu0 %v5026
        %v5534 = vpop.xlane.xlu0 %5533
        %5535 = vmax.xlane.f32.xlu0 %v5031
        %v5536 = vpop.xlane.xlu0 %5535
        %5537 = vmax.xlane.f32.xlu0 %v5034
        %v5538 = vpop.xlane.xlu0 %5537
        %5539 = vmax.xlane.f32.xlu0 %v5039
        %v5540 = vpop.xlane.xlu0 %5539
        %5541 = vmax.xlane.f32.xlu0 %v5042
        %v5542 = vpop.xlane.xlu0 %5541
        %5543 = vmax.xlane.f32.xlu0 %v5047
        %v5544 = vpop.xlane.xlu0 %5543
        %5545 = vmax.xlane.f32.xlu0 %v5050
        %v5546 = vpop.xlane.xlu0 %5545
        %5547 = vmax.xlane.f32.xlu0 %v5055
        %v5548 = vpop.xlane.xlu0 %5547
        %5549 = vmax.xlane.f32.xlu0 %v5058
        %v5550 = vpop.xlane.xlu0 %5549
        %5551 = vmax.xlane.f32.xlu0 %v5063
        %v5552 = vpop.xlane.xlu0 %5551
        %5553 = vmax.xlane.f32.xlu0 %v5066
        %v5554 = vpop.xlane.xlu0 %5553
        %5555 = vmax.xlane.f32.xlu0 %v5071
        %v5556 = vpop.xlane.xlu0 %5555
        %5557 = vmax.xlane.f32.xlu0 %v5074
        %v5558 = vpop.xlane.xlu0 %5557
        %5559 = vmax.xlane.f32.xlu0 %v5160
        %v5560 = vpop.xlane.xlu0 %5559
        %5561 = vmax.xlane.f32.xlu0 %v5163
        %v5562 = vpop.xlane.xlu0 %5561
        %5563 = vmax.xlane.f32.xlu0 %v5168
        %v5564 = vpop.xlane.xlu0 %5563
        %5565 = vmax.xlane.f32.xlu0 %v5171
        %v5566 = vpop.xlane.xlu0 %5565
        %5567 = vmax.xlane.f32.xlu0 %v5176
        %v5568 = vpop.xlane.xlu0 %5567
        %5569 = vmax.xlane.f32.xlu0 %v5179
        %v5570 = vpop.xlane.xlu0 %5569
        %5571 = vmax.xlane.f32.xlu0 %v5184
        %v5572 = vpop.xlane.xlu0 %5571
        %5573 = vmax.xlane.f32.xlu0 %v5187
        %v5574 = vpop.xlane.xlu0 %5573
        %5575 = vmax.xlane.f32.xlu0 %v5192
        %v5576 = vpop.xlane.xlu0 %5575
        %5577 = vmax.xlane.f32.xlu0 %v5195
        %v5578 = vpop.xlane.xlu0 %5577
        %5579 = vmax.xlane.f32.xlu0 %v5200
        %v5580 = vpop.xlane.xlu0 %5579
        %5581 = vmax.xlane.f32.xlu0 %v5203
        %v5582 = vpop.xlane.xlu0 %5581
        %5583 = vmax.xlane.f32.xlu0 %v5208
        %v5584 = vpop.xlane.xlu0 %5583
        %5585 = vmax.xlane.f32.xlu0 %v5211
        %v5586 = vpop.xlane.xlu0 %5585
        %5587 = vmax.xlane.f32.xlu0 %v5216
        %v5588 = vpop.xlane.xlu0 %5587
        %5589 = vmax.xlane.f32.xlu0 %v5219
        %v5590 = vpop.xlane.xlu0 %5589
        %5591 = vmax.xlane.f32.xlu0 %v5305
        %v5592 = vpop.xlane.xlu0 %5591
        %5593 = vmax.xlane.f32.xlu0 %v5308
        %v5594 = vpop.xlane.xlu0 %5593
        %5595 = vmax.xlane.f32.xlu0 %v5313
        %v5596 = vpop.xlane.xlu0 %5595
        %5597 = vmax.xlane.f32.xlu0 %v5316
        %v5598 = vpop.xlane.xlu0 %5597
        %5599 = vmax.xlane.f32.xlu0 %v5321
        %v5600 = vpop.xlane.xlu0 %5599
        %5601 = vmax.xlane.f32.xlu0 %v5324
        %v5602 = vpop.xlane.xlu0 %5601
        %5603 = vmax.xlane.f32.xlu0 %v5329
        %v5604 = vpop.xlane.xlu0 %5603
        %5605 = vmax.xlane.f32.xlu0 %v5332
        %v5606 = vpop.xlane.xlu0 %5605
        %5607 = vmax.xlane.f32.xlu0 %v5337
        %v5608 = vpop.xlane.xlu0 %5607
        %5609 = vmax.xlane.f32.xlu0 %v5340
        %v5610 = vpop.xlane.xlu0 %5609
        %5611 = vmax.xlane.f32.xlu0 %v5345
        %v5612 = vpop.xlane.xlu0 %5611
        %5613 = vmax.xlane.f32.xlu0 %v5348
        %v5614 = vpop.xlane.xlu0 %5613
        %5615 = vmax.xlane.f32.xlu0 %v5353
        %v5616 = vpop.xlane.xlu0 %5615
        %5617 = vmax.xlane.f32.xlu0 %v5356
        %v5618 = vpop.xlane.xlu0 %5617
        %5619 = vmax.xlane.f32.xlu0 %v5361
        %v5620 = vpop.xlane.xlu0 %5619
        %5621 = vmax.xlane.f32.xlu0 %v5364
        %v5622 = vpop.xlane.xlu0 %5621
        %v5623 = vsub.f32 %v4290, %v5368
        %v5624 = vsub.f32 %v4293, %v5370
        %v5625 = vsub.f32 %v4298, %v5372
        %v5626 = vsub.f32 %v4301, %v5374
        %v5627 = vsub.f32 %v4306, %v5376
        %v5628 = vsub.f32 %v4309, %v5378
        %v5629 = vsub.f32 %v4314, %v5380
        %v5630 = vsub.f32 %v4317, %v5382
        %v5631 = vsub.f32 %v4322, %v5384
        %v5632 = vsub.f32 %v4325, %v5386
        %v5633 = vsub.f32 %v4330, %v5388
        %v5634 = vsub.f32 %v4333, %v5390
        %v5635 = vsub.f32 %v4338, %v5392
        %v5636 = vsub.f32 %v4341, %v5394
        %v5637 = vsub.f32 %v4346, %v5396
        %v5638 = vsub.f32 %v4349, %v5398
        %v5639 = vsub.f32 %v4435, %v5400
        %v5640 = vsub.f32 %v4438, %v5402
        %v5641 = vsub.f32 %v4443, %v5404
        %v5642 = vsub.f32 %v4446, %v5406
        %v5643 = vsub.f32 %v4451, %v5408
        %v5644 = vsub.f32 %v4454, %v5410
        %v5645 = vsub.f32 %v4459, %v5412
        %v5646 = vsub.f32 %v4462, %v5414
        %v5647 = vsub.f32 %v4467, %v5416
        %v5648 = vsub.f32 %v4470, %v5418
        %v5649 = vsub.f32 %v4475, %v5420
        %v5650 = vsub.f32 %v4478, %v5422
        %v5651 = vsub.f32 %v4483, %v5424
        %v5652 = vsub.f32 %v4486, %v5426
        %v5653 = vsub.f32 %v4491, %v5428
        %v5654 = vsub.f32 %v4494, %v5430
        %v5655 = vsub.f32 %v4580, %v5432
        %v5656 = vsub.f32 %v4583, %v5434
        %v5657 = vsub.f32 %v4588, %v5436
        %v5658 = vsub.f32 %v4591, %v5438
        %v5659 = vsub.f32 %v4596, %v5440
        %v5660 = vsub.f32 %v4599, %v5442
        %v5661 = vsub.f32 %v4604, %v5444
        %v5662 = vsub.f32 %v4607, %v5446
        %v5663 = vsub.f32 %v4612, %v5448
        %v5664 = vsub.f32 %v4615, %v5450
        %v5665 = vsub.f32 %v4620, %v5452
        %v5666 = vsub.f32 %v4623, %v5454
        %v5667 = vsub.f32 %v4628, %v5456
        %v5668 = vsub.f32 %v4631, %v5458
        %v5669 = vsub.f32 %v4636, %v5460
        %v5670 = vsub.f32 %v4639, %v5462
        %v5671 = vsub.f32 %v4725, %v5464
        %v5672 = vsub.f32 %v4728, %v5466
        %v5673 = vsub.f32 %v4733, %v5468
        %v5674 = vsub.f32 %v4736, %v5470
        %v5675 = vsub.f32 %v4741, %v5472
        %v5676 = vsub.f32 %v4744, %v5474
        %v5677 = vsub.f32 %v4749, %v5476
        %v5678 = vsub.f32 %v4752, %v5478
        %v5679 = vsub.f32 %v4757, %v5480
        %v5680 = vsub.f32 %v4760, %v5482
        %v5681 = vsub.f32 %v4765, %v5484
        %v5682 = vsub.f32 %v4768, %v5486
        %v5683 = vsub.f32 %v4773, %v5488
        %v5684 = vsub.f32 %v4776, %v5490
        %v5685 = vsub.f32 %v4781, %v5492
        %v5686 = vsub.f32 %v4784, %v5494
        %v5687 = vsub.f32 %v4870, %v5496
        %v5688 = vsub.f32 %v4873, %v5498
        %v5689 = vsub.f32 %v4878, %v5500
        %v5690 = vsub.f32 %v4881, %v5502
        %v5691 = vsub.f32 %v4886, %v5504
        %v5692 = vsub.f32 %v4889, %v5506
        %v5693 = vsub.f32 %v4894, %v5508
        %v5694 = vsub.f32 %v4897, %v5510
        %v5695 = vsub.f32 %v4902, %v5512
        %v5696 = vsub.f32 %v4905, %v5514
        %v5697 = vsub.f32 %v4910, %v5516
        %v5698 = vsub.f32 %v4913, %v5518
        %v5699 = vsub.f32 %v4918, %v5520
        %v5700 = vsub.f32 %v4921, %v5522
        %v5701 = vsub.f32 %v4926, %v5524
        %v5702 = vsub.f32 %v4929, %v5526
        %v5703 = vsub.f32 %v5015, %v5528
        %v5704 = vsub.f32 %v5018, %v5530
        %v5705 = vsub.f32 %v5023, %v5532
        %v5706 = vsub.f32 %v5026, %v5534
        %v5707 = vsub.f32 %v5031, %v5536
        %v5708 = vsub.f32 %v5034, %v5538
        %v5709 = vsub.f32 %v5039, %v5540
        %v5710 = vsub.f32 %v5042, %v5542
        %v5711 = vsub.f32 %v5047, %v5544
        %v5712 = vsub.f32 %v5050, %v5546
        %v5713 = vsub.f32 %v5055, %v5548
        %v5714 = vsub.f32 %v5058, %v5550
        %v5715 = vsub.f32 %v5063, %v5552
        %v5716 = vsub.f32 %v5066, %v5554
        %v5717 = vsub.f32 %v5071, %v5556
        %v5718 = vsub.f32 %v5074, %v5558
        %v5719 = vsub.f32 %v5160, %v5560
        %v5720 = vsub.f32 %v5163, %v5562
        %v5721 = vsub.f32 %v5168, %v5564
        %v5722 = vsub.f32 %v5171, %v5566
        %v5723 = vsub.f32 %v5176, %v5568
        %v5724 = vsub.f32 %v5179, %v5570
        %v5725 = vsub.f32 %v5184, %v5572
        %v5726 = vsub.f32 %v5187, %v5574
        %v5727 = vsub.f32 %v5192, %v5576
        %v5728 = vsub.f32 %v5195, %v5578
        %v5729 = vsub.f32 %v5200, %v5580
        %v5730 = vsub.f32 %v5203, %v5582
        %v5731 = vsub.f32 %v5208, %v5584
        %v5732 = vsub.f32 %v5211, %v5586
        %v5733 = vsub.f32 %v5216, %v5588
        %v5734 = vsub.f32 %v5219, %v5590
        %v5735 = vsub.f32 %v5305, %v5592
        %v5736 = vsub.f32 %v5308, %v5594
        %v5737 = vsub.f32 %v5313, %v5596
        %v5738 = vsub.f32 %v5316, %v5598
        %v5739 = vsub.f32 %v5321, %v5600
        %v5740 = vsub.f32 %v5324, %v5602
        %v5741 = vsub.f32 %v5329, %v5604
        %v5742 = vsub.f32 %v5332, %v5606
        %v5743 = vsub.f32 %v5337, %v5608
        %v5744 = vsub.f32 %v5340, %v5610
        %v5745 = vsub.f32 %v5345, %v5612
        %v5746 = vsub.f32 %v5348, %v5614
        %v5747 = vsub.f32 %v5353, %v5616
        %v5748 = vsub.f32 %v5356, %v5618
        %v5749 = vsub.f32 %v5361, %v5620
        %v5750 = vsub.f32 %v5364, %v5622
        %v5751 = vmul.f32 %v5623, 1.442695
        %v5752 = vpow.pop %v5751
        %v5753 = vmul.f32 %v5624, 1.442695
        %v5754 = vpow.pop %v5753
        %v5755 = vmul.f32 %v5625, 1.442695
        %v5756 = vpow.pop %v5755
        %v5757 = vmul.f32 %v5626, 1.442695
        %v5758 = vpow.pop %v5757
        %v5759 = vmul.f32 %v5627, 1.442695
        %v5760 = vpow.pop %v5759
        %v5761 = vmul.f32 %v5628, 1.442695
        %v5762 = vpow.pop %v5761
        %v5763 = vmul.f32 %v5629, 1.442695
        %v5764 = vpow.pop %v5763
        %v5765 = vmul.f32 %v5630, 1.442695
        %v5766 = vpow.pop %v5765
        %v5767 = vmul.f32 %v5631, 1.442695
        %v5768 = vpow.pop %v5767
        %v5769 = vmul.f32 %v5632, 1.442695
        %v5770 = vpow.pop %v5769
        %v5771 = vmul.f32 %v5633, 1.442695
        %v5772 = vpow.pop %v5771
        %v5773 = vmul.f32 %v5634, 1.442695
        %v5774 = vpow.pop %v5773
        %v5775 = vmul.f32 %v5635, 1.442695
        %v5776 = vpow.pop %v5775
        %v5777 = vmul.f32 %v5636, 1.442695
        %v5778 = vpow.pop %v5777
        %v5779 = vmul.f32 %v5637, 1.442695
        %v5780 = vpow.pop %v5779
        %v5781 = vmul.f32 %v5638, 1.442695
        %v5782 = vpow.pop %v5781
        %v5783 = vmul.f32 %v5639, 1.442695
        %v5784 = vpow.pop %v5783
        %v5785 = vmul.f32 %v5640, 1.442695
        %v5786 = vpow.pop %v5785
        %v5787 = vmul.f32 %v5641, 1.442695
        %v5788 = vpow.pop %v5787
        %v5789 = vmul.f32 %v5642, 1.442695
        %v5790 = vpow.pop %v5789
        %v5791 = vmul.f32 %v5643, 1.442695
        %v5792 = vpow.pop %v5791
        %v5793 = vmul.f32 %v5644, 1.442695
        %v5794 = vpow.pop %v5793
        %v5795 = vmul.f32 %v5645, 1.442695
        %v5796 = vpow.pop %v5795
        %v5797 = vmul.f32 %v5646, 1.442695
        %v5798 = vpow.pop %v5797
        %v5799 = vmul.f32 %v5647, 1.442695
        %v5800 = vpow.pop %v5799
        %v5801 = vmul.f32 %v5648, 1.442695
        %v5802 = vpow.pop %v5801
        %v5803 = vmul.f32 %v5649, 1.442695
        %v5804 = vpow.pop %v5803
        %v5805 = vmul.f32 %v5650, 1.442695
        %v5806 = vpow.pop %v5805
        %v5807 = vmul.f32 %v5651, 1.442695
        %v5808 = vpow.pop %v5807
        %v5809 = vmul.f32 %v5652, 1.442695
        %v5810 = vpow.pop %v5809
        %v5811 = vmul.f32 %v5653, 1.442695
        %v5812 = vpow.pop %v5811
        %v5813 = vmul.f32 %v5654, 1.442695
        %v5814 = vpow.pop %v5813
        %v5815 = vmul.f32 %v5655, 1.442695
        %v5816 = vpow.pop %v5815
        %v5817 = vmul.f32 %v5656, 1.442695
        %v5818 = vpow.pop %v5817
        %v5819 = vmul.f32 %v5657, 1.442695
        %v5820 = vpow.pop %v5819
        %v5821 = vmul.f32 %v5658, 1.442695
        %v5822 = vpow.pop %v5821
        %v5823 = vmul.f32 %v5659, 1.442695
        %v5824 = vpow.pop %v5823
        %v5825 = vmul.f32 %v5660, 1.442695
        %v5826 = vpow.pop %v5825
        %v5827 = vmul.f32 %v5661, 1.442695
        %v5828 = vpow.pop %v5827
        %v5829 = vmul.f32 %v5662, 1.442695
        %v5830 = vpow.pop %v5829
        %v5831 = vmul.f32 %v5663, 1.442695
        %v5832 = vpow.pop %v5831
        %v5833 = vmul.f32 %v5664, 1.442695
        %v5834 = vpow.pop %v5833
        %v5835 = vmul.f32 %v5665, 1.442695
        %v5836 = vpow.pop %v5835
        %v5837 = vmul.f32 %v5666, 1.442695
        %v5838 = vpow.pop %v5837
        %v5839 = vmul.f32 %v5667, 1.442695
        %v5840 = vpow.pop %v5839
        %v5841 = vmul.f32 %v5668, 1.442695
        %v5842 = vpow.pop %v5841
        %v5843 = vmul.f32 %v5669, 1.442695
        %v5844 = vpow.pop %v5843
        %v5845 = vmul.f32 %v5670, 1.442695
        %v5846 = vpow.pop %v5845
        %v5847 = vmul.f32 %v5671, 1.442695
        %v5848 = vpow.pop %v5847
        %v5849 = vmul.f32 %v5672, 1.442695
        %v5850 = vpow.pop %v5849
        %v5851 = vmul.f32 %v5673, 1.442695
        %v5852 = vpow.pop %v5851
        %v5853 = vmul.f32 %v5674, 1.442695
        %v5854 = vpow.pop %v5853
        %v5855 = vmul.f32 %v5675, 1.442695
        %v5856 = vpow.pop %v5855
        %v5857 = vmul.f32 %v5676, 1.442695
        %v5858 = vpow.pop %v5857
        %v5859 = vmul.f32 %v5677, 1.442695
        %v5860 = vpow.pop %v5859
        %v5861 = vmul.f32 %v5678, 1.442695
        %v5862 = vpow.pop %v5861
        %v5863 = vmul.f32 %v5679, 1.442695
        %v5864 = vpow.pop %v5863
        %v5865 = vmul.f32 %v5680, 1.442695
        %v5866 = vpow.pop %v5865
        %v5867 = vmul.f32 %v5681, 1.442695
        %v5868 = vpow.pop %v5867
        %v5869 = vmul.f32 %v5682, 1.442695
        %v5870 = vpow.pop %v5869
        %v5871 = vmul.f32 %v5683, 1.442695
        %v5872 = vpow.pop %v5871
        %v5873 = vmul.f32 %v5684, 1.442695
        %v5874 = vpow.pop %v5873
        %v5875 = vmul.f32 %v5685, 1.442695
        %v5876 = vpow.pop %v5875
        %v5877 = vmul.f32 %v5686, 1.442695
        %v5878 = vpow.pop %v5877
        %v5879 = vmul.f32 %v5687, 1.442695
        %v5880 = vpow.pop %v5879
        %v5881 = vmul.f32 %v5688, 1.442695
        %v5882 = vpow.pop %v5881
        %v5883 = vmul.f32 %v5689, 1.442695
        %v5884 = vpow.pop %v5883
        %v5885 = vmul.f32 %v5690, 1.442695
        %v5886 = vpow.pop %v5885
        %v5887 = vmul.f32 %v5691, 1.442695
        %v5888 = vpow.pop %v5887
        %v5889 = vmul.f32 %v5692, 1.442695
        %v5890 = vpow.pop %v5889
        %v5891 = vmul.f32 %v5693, 1.442695
        %v5892 = vpow.pop %v5891
        %v5893 = vmul.f32 %v5694, 1.442695
        %v5894 = vpow.pop %v5893
        %v5895 = vmul.f32 %v5695, 1.442695
        %v5896 = vpow.pop %v5895
        %v5897 = vmul.f32 %v5696, 1.442695
        %v5898 = vpow.pop %v5897
        %v5899 = vmul.f32 %v5697, 1.442695
        %v5900 = vpow.pop %v5899
        %v5901 = vmul.f32 %v5698, 1.442695
        %v5902 = vpow.pop %v5901
        %v5903 = vmul.f32 %v5699, 1.442695
        %v5904 = vpow.pop %v5903
        %v5905 = vmul.f32 %v5700, 1.442695
        %v5906 = vpow.pop %v5905
        %v5907 = vmul.f32 %v5701, 1.442695
        %v5908 = vpow.pop %v5907
        %v5909 = vmul.f32 %v5702, 1.442695
        %v5910 = vpow.pop %v5909
        %v5911 = vmul.f32 %v5703, 1.442695
        %v5912 = vpow.pop %v5911
        %v5913 = vmul.f32 %v5704, 1.442695
        %v5914 = vpow.pop %v5913
        %v5915 = vmul.f32 %v5705, 1.442695
        %v5916 = vpow.pop %v5915
        %v5917 = vmul.f32 %v5706, 1.442695
        %v5918 = vpow.pop %v5917
        %v5919 = vmul.f32 %v5707, 1.442695
        %v5920 = vpow.pop %v5919
        %v5921 = vmul.f32 %v5708, 1.442695
        %v5922 = vpow.pop %v5921
        %v5923 = vmul.f32 %v5709, 1.442695
        %v5924 = vpow.pop %v5923
        %v5925 = vmul.f32 %v5710, 1.442695
        %v5926 = vpow.pop %v5925
        %v5927 = vmul.f32 %v5711, 1.442695
        %v5928 = vpow.pop %v5927
        %v5929 = vmul.f32 %v5712, 1.442695
        %v5930 = vpow.pop %v5929
        %v5931 = vmul.f32 %v5713, 1.442695
        %v5932 = vpow.pop %v5931
        %v5933 = vmul.f32 %v5714, 1.442695
        %v5934 = vpow.pop %v5933
        %v5935 = vmul.f32 %v5715, 1.442695
        %v5936 = vpow.pop %v5935
        %v5937 = vmul.f32 %v5716, 1.442695
        %v5938 = vpow.pop %v5937
        %v5939 = vmul.f32 %v5717, 1.442695
        %v5940 = vpow.pop %v5939
        %v5941 = vmul.f32 %v5718, 1.442695
        %v5942 = vpow.pop %v5941
        %v5943 = vmul.f32 %v5719, 1.442695
        %v5944 = vpow.pop %v5943
        %v5945 = vmul.f32 %v5720, 1.442695
        %v5946 = vpow.pop %v5945
        %v5947 = vmul.f32 %v5721, 1.442695
        %v5948 = vpow.pop %v5947
        %v5949 = vmul.f32 %v5722, 1.442695
        %v5950 = vpow.pop %v5949
        %v5951 = vmul.f32 %v5723, 1.442695
        %v5952 = vpow.pop %v5951
        %v5953 = vmul.f32 %v5724, 1.442695
        %v5954 = vpow.pop %v5953
        %v5955 = vmul.f32 %v5725, 1.442695
        %v5956 = vpow.pop %v5955
        %v5957 = vmul.f32 %v5726, 1.442695
        %v5958 = vpow.pop %v5957
        %v5959 = vmul.f32 %v5727, 1.442695
        %v5960 = vpow.pop %v5959
        %v5961 = vmul.f32 %v5728, 1.442695
        %v5962 = vpow.pop %v5961
        %v5963 = vmul.f32 %v5729, 1.442695
        %v5964 = vpow.pop %v5963
        %v5965 = vmul.f32 %v5730, 1.442695
        %v5966 = vpow.pop %v5965
        %v5967 = vmul.f32 %v5731, 1.442695
        %v5968 = vpow.pop %v5967
        %v5969 = vmul.f32 %v5732, 1.442695
        %v5970 = vpow.pop %v5969
        %v5971 = vmul.f32 %v5733, 1.442695
        %v5972 = vpow.pop %v5971
        %v5973 = vmul.f32 %v5734, 1.442695
        %v5974 = vpow.pop %v5973
        %v5975 = vmul.f32 %v5735, 1.442695
        %v5976 = vpow.pop %v5975
        %v5977 = vmul.f32 %v5736, 1.442695
        %v5978 = vpow.pop %v5977
        %v5979 = vmul.f32 %v5737, 1.442695
        %v5980 = vpow.pop %v5979
        %v5981 = vmul.f32 %v5738, 1.442695
        %v5982 = vpow.pop %v5981
        %v5983 = vmul.f32 %v5739, 1.442695
        %v5984 = vpow.pop %v5983
        %v5985 = vmul.f32 %v5740, 1.442695
        %v5986 = vpow.pop %v5985
        %v5987 = vmul.f32 %v5741, 1.442695
        %v5988 = vpow.pop %v5987
        %v5989 = vmul.f32 %v5742, 1.442695
        %v5990 = vpow.pop %v5989
        %v5991 = vmul.f32 %v5743, 1.442695
        %v5992 = vpow.pop %v5991
        %v5993 = vmul.f32 %v5744, 1.442695
        %v5994 = vpow.pop %v5993
        %v5995 = vmul.f32 %v5745, 1.442695
        %v5996 = vpow.pop %v5995
        %v5997 = vmul.f32 %v5746, 1.442695
        %v5998 = vpow.pop %v5997
        %v5999 = vmul.f32 %v5747, 1.442695
        %v6000 = vpow.pop %v5999
        %v6001 = vmul.f32 %v5748, 1.442695
        %v6002 = vpow.pop %v6001
        %v6003 = vmul.f32 %v5749, 1.442695
        %v6004 = vpow.pop %v6003
        %v6005 = vmul.f32 %v5750, 1.442695
        %v6006 = vpow.pop %v6005
        %6007 = vadd.xlane.f32.xlu0 %v5752
        %v6008 = vpop.xlane.xlu0 %6007
        %6009 = vadd.xlane.f32.xlu0 %v5754
        %v6010 = vpop.xlane.xlu0 %6009
        %6011 = vadd.xlane.f32.xlu0 %v5756
        %v6012 = vpop.xlane.xlu0 %6011
        %6013 = vadd.xlane.f32.xlu0 %v5758
        %v6014 = vpop.xlane.xlu0 %6013
        %6015 = vadd.xlane.f32.xlu0 %v5760
        %v6016 = vpop.xlane.xlu0 %6015
        %6017 = vadd.xlane.f32.xlu0 %v5762
        %v6018 = vpop.xlane.xlu0 %6017
        %6019 = vadd.xlane.f32.xlu0 %v5764
        %v6020 = vpop.xlane.xlu0 %6019
        %6021 = vadd.xlane.f32.xlu0 %v5766
        %v6022 = vpop.xlane.xlu0 %6021
        %6023 = vadd.xlane.f32.xlu0 %v5768
        %v6024 = vpop.xlane.xlu0 %6023
        %6025 = vadd.xlane.f32.xlu0 %v5770
        %v6026 = vpop.xlane.xlu0 %6025
        %6027 = vadd.xlane.f32.xlu0 %v5772
        %v6028 = vpop.xlane.xlu0 %6027
        %6029 = vadd.xlane.f32.xlu0 %v5774
        %v6030 = vpop.xlane.xlu0 %6029
        %6031 = vadd.xlane.f32.xlu0 %v5776
        %v6032 = vpop.xlane.xlu0 %6031
        %6033 = vadd.xlane.f32.xlu0 %v5778
        %v6034 = vpop.xlane.xlu0 %6033
        %6035 = vadd.xlane.f32.xlu0 %v5780
        %v6036 = vpop.xlane.xlu0 %6035
        %6037 = vadd.xlane.f32.xlu0 %v5782
        %v6038 = vpop.xlane.xlu0 %6037
        %6039 = vadd.xlane.f32.xlu0 %v5784
        %v6040 = vpop.xlane.xlu0 %6039
        %6041 = vadd.xlane.f32.xlu0 %v5786
        %v6042 = vpop.xlane.xlu0 %6041
        %6043 = vadd.xlane.f32.xlu0 %v5788
        %v6044 = vpop.xlane.xlu0 %6043
        %6045 = vadd.xlane.f32.xlu0 %v5790
        %v6046 = vpop.xlane.xlu0 %6045
        %6047 = vadd.xlane.f32.xlu0 %v5792
        %v6048 = vpop.xlane.xlu0 %6047
        %6049 = vadd.xlane.f32.xlu0 %v5794
        %v6050 = vpop.xlane.xlu0 %6049
        %6051 = vadd.xlane.f32.xlu0 %v5796
        %v6052 = vpop.xlane.xlu0 %6051
        %6053 = vadd.xlane.f32.xlu0 %v5798
        %v6054 = vpop.xlane.xlu0 %6053
        %6055 = vadd.xlane.f32.xlu0 %v5800
        %v6056 = vpop.xlane.xlu0 %6055
        %6057 = vadd.xlane.f32.xlu0 %v5802
        %v6058 = vpop.xlane.xlu0 %6057
        %6059 = vadd.xlane.f32.xlu0 %v5804
        %v6060 = vpop.xlane.xlu0 %6059
        %6061 = vadd.xlane.f32.xlu0 %v5806
        %v6062 = vpop.xlane.xlu0 %6061
        %6063 = vadd.xlane.f32.xlu0 %v5808
        %v6064 = vpop.xlane.xlu0 %6063
        %6065 = vadd.xlane.f32.xlu0 %v5810
        %v6066 = vpop.xlane.xlu0 %6065
        %6067 = vadd.xlane.f32.xlu0 %v5812
        %v6068 = vpop.xlane.xlu0 %6067
        %6069 = vadd.xlane.f32.xlu0 %v5814
        %v6070 = vpop.xlane.xlu0 %6069
        %6071 = vadd.xlane.f32.xlu0 %v5816
        %v6072 = vpop.xlane.xlu0 %6071
        %6073 = vadd.xlane.f32.xlu0 %v5818
        %v6074 = vpop.xlane.xlu0 %6073
        %6075 = vadd.xlane.f32.xlu0 %v5820
        %v6076 = vpop.xlane.xlu0 %6075
        %6077 = vadd.xlane.f32.xlu0 %v5822
        %v6078 = vpop.xlane.xlu0 %6077
        %6079 = vadd.xlane.f32.xlu0 %v5824
        %v6080 = vpop.xlane.xlu0 %6079
        %6081 = vadd.xlane.f32.xlu0 %v5826
        %v6082 = vpop.xlane.xlu0 %6081
        %6083 = vadd.xlane.f32.xlu0 %v5828
        %v6084 = vpop.xlane.xlu0 %6083
        %6085 = vadd.xlane.f32.xlu0 %v5830
        %v6086 = vpop.xlane.xlu0 %6085
        %6087 = vadd.xlane.f32.xlu0 %v5832
        %v6088 = vpop.xlane.xlu0 %6087
        %6089 = vadd.xlane.f32.xlu0 %v5834
        %v6090 = vpop.xlane.xlu0 %6089
        %6091 = vadd.xlane.f32.xlu0 %v5836
        %v6092 = vpop.xlane.xlu0 %6091
        %6093 = vadd.xlane.f32.xlu0 %v5838
        %v6094 = vpop.xlane.xlu0 %6093
        %6095 = vadd.xlane.f32.xlu0 %v5840
        %v6096 = vpop.xlane.xlu0 %6095
        %6097 = vadd.xlane.f32.xlu0 %v5842
        %v6098 = vpop.xlane.xlu0 %6097
        %6099 = vadd.xlane.f32.xlu0 %v5844
        %v6100 = vpop.xlane.xlu0 %6099
        %6101 = vadd.xlane.f32.xlu0 %v5846
        %v6102 = vpop.xlane.xlu0 %6101
        %6103 = vadd.xlane.f32.xlu0 %v5848
        %v6104 = vpop.xlane.xlu0 %6103
        %6105 = vadd.xlane.f32.xlu0 %v5850
        %v6106 = vpop.xlane.xlu0 %6105
        %6107 = vadd.xlane.f32.xlu0 %v5852
        %v6108 = vpop.xlane.xlu0 %6107
        %6109 = vadd.xlane.f32.xlu0 %v5854
        %v6110 = vpop.xlane.xlu0 %6109
        %6111 = vadd.xlane.f32.xlu0 %v5856
        %v6112 = vpop.xlane.xlu0 %6111
        %6113 = vadd.xlane.f32.xlu0 %v5858
        %v6114 = vpop.xlane.xlu0 %6113
        %6115 = vadd.xlane.f32.xlu0 %v5860
        %v6116 = vpop.xlane.xlu0 %6115
        %6117 = vadd.xlane.f32.xlu0 %v5862
        %v6118 = vpop.xlane.xlu0 %6117
        %6119 = vadd.xlane.f32.xlu0 %v5864
        %v6120 = vpop.xlane.xlu0 %6119
        %6121 = vadd.xlane.f32.xlu0 %v5866
        %v6122 = vpop.xlane.xlu0 %6121
        %6123 = vadd.xlane.f32.xlu0 %v5868
        %v6124 = vpop.xlane.xlu0 %6123
        %6125 = vadd.xlane.f32.xlu0 %v5870
        %v6126 = vpop.xlane.xlu0 %6125
        %6127 = vadd.xlane.f32.xlu0 %v5872
        %v6128 = vpop.xlane.xlu0 %6127
        %6129 = vadd.xlane.f32.xlu0 %v5874
        %v6130 = vpop.xlane.xlu0 %6129
        %6131 = vadd.xlane.f32.xlu0 %v5876
        %v6132 = vpop.xlane.xlu0 %6131
        %6133 = vadd.xlane.f32.xlu0 %v5878
        %v6134 = vpop.xlane.xlu0 %6133
        %6135 = vadd.xlane.f32.xlu0 %v5880
        %v6136 = vpop.xlane.xlu0 %6135
        %6137 = vadd.xlane.f32.xlu0 %v5882
        %v6138 = vpop.xlane.xlu0 %6137
        %6139 = vadd.xlane.f32.xlu0 %v5884
        %v6140 = vpop.xlane.xlu0 %6139
        %6141 = vadd.xlane.f32.xlu0 %v5886
        %v6142 = vpop.xlane.xlu0 %6141
        %6143 = vadd.xlane.f32.xlu0 %v5888
        %v6144 = vpop.xlane.xlu0 %6143
        %6145 = vadd.xlane.f32.xlu0 %v5890
        %v6146 = vpop.xlane.xlu0 %6145
        %6147 = vadd.xlane.f32.xlu0 %v5892
        %v6148 = vpop.xlane.xlu0 %6147
        %6149 = vadd.xlane.f32.xlu0 %v5894
        %v6150 = vpop.xlane.xlu0 %6149
        %6151 = vadd.xlane.f32.xlu0 %v5896
        %v6152 = vpop.xlane.xlu0 %6151
        %6153 = vadd.xlane.f32.xlu0 %v5898
        %v6154 = vpop.xlane.xlu0 %6153
        %6155 = vadd.xlane.f32.xlu0 %v5900
        %v6156 = vpop.xlane.xlu0 %6155
        %6157 = vadd.xlane.f32.xlu0 %v5902
        %v6158 = vpop.xlane.xlu0 %6157
        %6159 = vadd.xlane.f32.xlu0 %v5904
        %v6160 = vpop.xlane.xlu0 %6159
        %6161 = vadd.xlane.f32.xlu0 %v5906
        %v6162 = vpop.xlane.xlu0 %6161
        %6163 = vadd.xlane.f32.xlu0 %v5908
        %v6164 = vpop.xlane.xlu0 %6163
        %6165 = vadd.xlane.f32.xlu0 %v5910
        %v6166 = vpop.xlane.xlu0 %6165
        %6167 = vadd.xlane.f32.xlu0 %v5912
        %v6168 = vpop.xlane.xlu0 %6167
        %6169 = vadd.xlane.f32.xlu0 %v5914
        %v6170 = vpop.xlane.xlu0 %6169
        %6171 = vadd.xlane.f32.xlu0 %v5916
        %v6172 = vpop.xlane.xlu0 %6171
        %6173 = vadd.xlane.f32.xlu0 %v5918
        %v6174 = vpop.xlane.xlu0 %6173
        %6175 = vadd.xlane.f32.xlu0 %v5920
        %v6176 = vpop.xlane.xlu0 %6175
        %6177 = vadd.xlane.f32.xlu0 %v5922
        %v6178 = vpop.xlane.xlu0 %6177
        %6179 = vadd.xlane.f32.xlu0 %v5924
        %v6180 = vpop.xlane.xlu0 %6179
        %6181 = vadd.xlane.f32.xlu0 %v5926
        %v6182 = vpop.xlane.xlu0 %6181
        %6183 = vadd.xlane.f32.xlu0 %v5928
        %v6184 = vpop.xlane.xlu0 %6183
        %6185 = vadd.xlane.f32.xlu0 %v5930
        %v6186 = vpop.xlane.xlu0 %6185
        %6187 = vadd.xlane.f32.xlu0 %v5932
        %v6188 = vpop.xlane.xlu0 %6187
        %6189 = vadd.xlane.f32.xlu0 %v5934
        %v6190 = vpop.xlane.xlu0 %6189
        %6191 = vadd.xlane.f32.xlu0 %v5936
        %v6192 = vpop.xlane.xlu0 %6191
        %6193 = vadd.xlane.f32.xlu0 %v5938
        %v6194 = vpop.xlane.xlu0 %6193
        %6195 = vadd.xlane.f32.xlu0 %v5940
        %v6196 = vpop.xlane.xlu0 %6195
        %6197 = vadd.xlane.f32.xlu0 %v5942
        %v6198 = vpop.xlane.xlu0 %6197
        %6199 = vadd.xlane.f32.xlu0 %v5944
        %v6200 = vpop.xlane.xlu0 %6199
        %6201 = vadd.xlane.f32.xlu0 %v5946
        %v6202 = vpop.xlane.xlu0 %6201
        %6203 = vadd.xlane.f32.xlu0 %v5948
        %v6204 = vpop.xlane.xlu0 %6203
        %6205 = vadd.xlane.f32.xlu0 %v5950
        %v6206 = vpop.xlane.xlu0 %6205
        %6207 = vadd.xlane.f32.xlu0 %v5952
        %v6208 = vpop.xlane.xlu0 %6207
        %6209 = vadd.xlane.f32.xlu0 %v5954
        %v6210 = vpop.xlane.xlu0 %6209
        %6211 = vadd.xlane.f32.xlu0 %v5956
        %v6212 = vpop.xlane.xlu0 %6211
        %6213 = vadd.xlane.f32.xlu0 %v5958
        %v6214 = vpop.xlane.xlu0 %6213
        %6215 = vadd.xlane.f32.xlu0 %v5960
        %v6216 = vpop.xlane.xlu0 %6215
        %6217 = vadd.xlane.f32.xlu0 %v5962
        %v6218 = vpop.xlane.xlu0 %6217
        %6219 = vadd.xlane.f32.xlu0 %v5964
        %v6220 = vpop.xlane.xlu0 %6219
        %6221 = vadd.xlane.f32.xlu0 %v5966
        %v6222 = vpop.xlane.xlu0 %6221
        %6223 = vadd.xlane.f32.xlu0 %v5968
        %v6224 = vpop.xlane.xlu0 %6223
        %6225 = vadd.xlane.f32.xlu0 %v5970
        %v6226 = vpop.xlane.xlu0 %6225
        %6227 = vadd.xlane.f32.xlu0 %v5972
        %v6228 = vpop.xlane.xlu0 %6227
        %6229 = vadd.xlane.f32.xlu0 %v5974
        %v6230 = vpop.xlane.xlu0 %6229
        %6231 = vadd.xlane.f32.xlu0 %v5976
        %v6232 = vpop.xlane.xlu0 %6231
        %6233 = vadd.xlane.f32.xlu0 %v5978
        %v6234 = vpop.xlane.xlu0 %6233
        %6235 = vadd.xlane.f32.xlu0 %v5980
        %v6236 = vpop.xlane.xlu0 %6235
        %6237 = vadd.xlane.f32.xlu0 %v5982
        %v6238 = vpop.xlane.xlu0 %6237
        %6239 = vadd.xlane.f32.xlu0 %v5984
        %v6240 = vpop.xlane.xlu0 %6239
        %6241 = vadd.xlane.f32.xlu0 %v5986
        %v6242 = vpop.xlane.xlu0 %6241
        %6243 = vadd.xlane.f32.xlu0 %v5988
        %v6244 = vpop.xlane.xlu0 %6243
        %6245 = vadd.xlane.f32.xlu0 %v5990
        %v6246 = vpop.xlane.xlu0 %6245
        %6247 = vadd.xlane.f32.xlu0 %v5992
        %v6248 = vpop.xlane.xlu0 %6247
        %6249 = vadd.xlane.f32.xlu0 %v5994
        %v6250 = vpop.xlane.xlu0 %6249
        %6251 = vadd.xlane.f32.xlu0 %v5996
        %v6252 = vpop.xlane.xlu0 %6251
        %6253 = vadd.xlane.f32.xlu0 %v5998
        %v6254 = vpop.xlane.xlu0 %6253
        %6255 = vadd.xlane.f32.xlu0 %v6000
        %v6256 = vpop.xlane.xlu0 %6255
        %6257 = vadd.xlane.f32.xlu0 %v6002
        %v6258 = vpop.xlane.xlu0 %6257
        %6259 = vadd.xlane.f32.xlu0 %v6004
        %v6260 = vpop.xlane.xlu0 %6259
        %6261 = vadd.xlane.f32.xlu0 %v6006
        %v6262 = vpop.xlane.xlu0 %6261
        %v6263 = vrcp.pop %v6008
        %v6264 = vrcp.pop %v6010
        %v6265 = vrcp.pop %v6012
        %v6266 = vrcp.pop %v6014
        %v6267 = vrcp.pop %v6016
        %v6268 = vrcp.pop %v6018
        %v6269 = vrcp.pop %v6020
        %v6270 = vrcp.pop %v6022
        %v6271 = vrcp.pop %v6024
        %v6272 = vrcp.pop %v6026
        %v6273 = vrcp.pop %v6028
        %v6274 = vrcp.pop %v6030
        %v6275 = vrcp.pop %v6032
        %v6276 = vrcp.pop %v6034
        %v6277 = vrcp.pop %v6036
        %v6278 = vrcp.pop %v6038
        %v6279 = vrcp.pop %v6040
        %v6280 = vrcp.pop %v6042
        %v6281 = vrcp.pop %v6044
        %v6282 = vrcp.pop %v6046
        %v6283 = vrcp.pop %v6048
        %v6284 = vrcp.pop %v6050
        %v6285 = vrcp.pop %v6052
        %v6286 = vrcp.pop %v6054
        %v6287 = vrcp.pop %v6056
        %v6288 = vrcp.pop %v6058
        %v6289 = vrcp.pop %v6060
        %v6290 = vrcp.pop %v6062
        %v6291 = vrcp.pop %v6064
        %v6292 = vrcp.pop %v6066
        %v6293 = vrcp.pop %v6068
        %v6294 = vrcp.pop %v6070
        %v6295 = vrcp.pop %v6072
        %v6296 = vrcp.pop %v6074
        %v6297 = vrcp.pop %v6076
        %v6298 = vrcp.pop %v6078
        %v6299 = vrcp.pop %v6080
        %v6300 = vrcp.pop %v6082
        %v6301 = vrcp.pop %v6084
        %v6302 = vrcp.pop %v6086
        %v6303 = vrcp.pop %v6088
        %v6304 = vrcp.pop %v6090
        %v6305 = vrcp.pop %v6092
        %v6306 = vrcp.pop %v6094
        %v6307 = vrcp.pop %v6096
        %v6308 = vrcp.pop %v6098
        %v6309 = vrcp.pop %v6100
        %v6310 = vrcp.pop %v6102
        %v6311 = vrcp.pop %v6104
        %v6312 = vrcp.pop %v6106
        %v6313 = vrcp.pop %v6108
        %v6314 = vrcp.pop %v6110
        %v6315 = vrcp.pop %v6112
        %v6316 = vrcp.pop %v6114
        %v6317 = vrcp.pop %v6116
        %v6318 = vrcp.pop %v6118
        %v6319 = vrcp.pop %v6120
        %v6320 = vrcp.pop %v6122
        %v6321 = vrcp.pop %v6124
        %v6322 = vrcp.pop %v6126
        %v6323 = vrcp.pop %v6128
        %v6324 = vrcp.pop %v6130
        %v6325 = vrcp.pop %v6132
        %v6326 = vrcp.pop %v6134
        %v6327 = vrcp.pop %v6136
        %v6328 = vrcp.pop %v6138
        %v6329 = vrcp.pop %v6140
        %v6330 = vrcp.pop %v6142
        %v6331 = vrcp.pop %v6144
        %v6332 = vrcp.pop %v6146
        %v6333 = vrcp.pop %v6148
        %v6334 = vrcp.pop %v6150
        %v6335 = vrcp.pop %v6152
        %v6336 = vrcp.pop %v6154
        %v6337 = vrcp.pop %v6156
        %v6338 = vrcp.pop %v6158
        %v6339 = vrcp.pop %v6160
        %v6340 = vrcp.pop %v6162
        %v6341 = vrcp.pop %v6164
        %v6342 = vrcp.pop %v6166
        %v6343 = vrcp.pop %v6168
        %v6344 = vrcp.pop %v6170
        %v6345 = vrcp.pop %v6172
        %v6346 = vrcp.pop %v6174
        %v6347 = vrcp.pop %v6176
        %v6348 = vrcp.pop %v6178
        %v6349 = vrcp.pop %v6180
        %v6350 = vrcp.pop %v6182
        %v6351 = vrcp.pop %v6184
        %v6352 = vrcp.pop %v6186
        %v6353 = vrcp.pop %v6188
        %v6354 = vrcp.pop %v6190
        %v6355 = vrcp.pop %v6192
        %v6356 = vrcp.pop %v6194
        %v6357 = vrcp.pop %v6196
        %v6358 = vrcp.pop %v6198
        %v6359 = vrcp.pop %v6200
        %v6360 = vrcp.pop %v6202
        %v6361 = vrcp.pop %v6204
        %v6362 = vrcp.pop %v6206
        %v6363 = vrcp.pop %v6208
        %v6364 = vrcp.pop %v6210
        %v6365 = vrcp.pop %v6212
        %v6366 = vrcp.pop %v6214
        %v6367 = vrcp.pop %v6216
        %v6368 = vrcp.pop %v6218
        %v6369 = vrcp.pop %v6220
        %v6370 = vrcp.pop %v6222
        %v6371 = vrcp.pop %v6224
        %v6372 = vrcp.pop %v6226
        %v6373 = vrcp.pop %v6228
        %v6374 = vrcp.pop %v6230
        %v6375 = vrcp.pop %v6232
        %v6376 = vrcp.pop %v6234
        %v6377 = vrcp.pop %v6236
        %v6378 = vrcp.pop %v6238
        %v6379 = vrcp.pop %v6240
        %v6380 = vrcp.pop %v6242
        %v6381 = vrcp.pop %v6244
        %v6382 = vrcp.pop %v6246
        %v6383 = vrcp.pop %v6248
        %v6384 = vrcp.pop %v6250
        %v6385 = vrcp.pop %v6252
        %v6386 = vrcp.pop %v6254
        %v6387 = vrcp.pop %v6256
        %v6388 = vrcp.pop %v6258
        %v6389 = vrcp.pop %v6260
        %v6390 = vrcp.pop %v6262
        %v6391 = vmul.f32 %v5752, %v6263
        %v6392 = vmul.f32 %v5754, %v6264
        %v6393 = vmul.f32 %v5756, %v6265
        %v6394 = vmul.f32 %v5758, %v6266
        %v6395 = vmul.f32 %v5760, %v6267
        %v6396 = vmul.f32 %v5762, %v6268
        %v6397 = vmul.f32 %v5764, %v6269
        %v6398 = vmul.f32 %v5766, %v6270
        %v6399 = vmul.f32 %v5768, %v6271
        %v6400 = vmul.f32 %v5770, %v6272
        %v6401 = vmul.f32 %v5772, %v6273
        %v6402 = vmul.f32 %v5774, %v6274
        %v6403 = vmul.f32 %v5776, %v6275
        %v6404 = vmul.f32 %v5778, %v6276
        %v6405 = vmul.f32 %v5780, %v6277
        %v6406 = vmul.f32 %v5782, %v6278
        %v6407 = vmul.f32 %v5784, %v6279
        %v6408 = vmul.f32 %v5786, %v6280
        %v6409 = vmul.f32 %v5788, %v6281
        %v6410 = vmul.f32 %v5790, %v6282
        %v6411 = vmul.f32 %v5792, %v6283
        %v6412 = vmul.f32 %v5794, %v6284
        %v6413 = vmul.f32 %v5796, %v6285
        %v6414 = vmul.f32 %v5798, %v6286
        %v6415 = vmul.f32 %v5800, %v6287
        %v6416 = vmul.f32 %v5802, %v6288
        %v6417 = vmul.f32 %v5804, %v6289
        %v6418 = vmul.f32 %v5806, %v6290
        %v6419 = vmul.f32 %v5808, %v6291
        %v6420 = vmul.f32 %v5810, %v6292
        %v6421 = vmul.f32 %v5812, %v6293
        %v6422 = vmul.f32 %v5814, %v6294
        %v6423 = vmul.f32 %v5816, %v6295
        %v6424 = vmul.f32 %v5818, %v6296
        %v6425 = vmul.f32 %v5820, %v6297
        %v6426 = vmul.f32 %v5822, %v6298
        %v6427 = vmul.f32 %v5824, %v6299
        %v6428 = vmul.f32 %v5826, %v6300
        %v6429 = vmul.f32 %v5828, %v6301
        %v6430 = vmul.f32 %v5830, %v6302
        %v6431 = vmul.f32 %v5832, %v6303
        %v6432 = vmul.f32 %v5834, %v6304
        %v6433 = vmul.f32 %v5836, %v6305
        %v6434 = vmul.f32 %v5838, %v6306
        %v6435 = vmul.f32 %v5840, %v6307
        %v6436 = vmul.f32 %v5842, %v6308
        %v6437 = vmul.f32 %v5844, %v6309
        %v6438 = vmul.f32 %v5846, %v6310
        %v6439 = vmul.f32 %v5848, %v6311
        %v6440 = vmul.f32 %v5850, %v6312
        %v6441 = vmul.f32 %v5852, %v6313
        %v6442 = vmul.f32 %v5854, %v6314
        %v6443 = vmul.f32 %v5856, %v6315
        %v6444 = vmul.f32 %v5858, %v6316
        %v6445 = vmul.f32 %v5860, %v6317
        %v6446 = vmul.f32 %v5862, %v6318
        %v6447 = vmul.f32 %v5864, %v6319
        %v6448 = vmul.f32 %v5866, %v6320
        %v6449 = vmul.f32 %v5868, %v6321
        %v6450 = vmul.f32 %v5870, %v6322
        %v6451 = vmul.f32 %v5872, %v6323
        %v6452 = vmul.f32 %v5874, %v6324
        %v6453 = vmul.f32 %v5876, %v6325
        %v6454 = vmul.f32 %v5878, %v6326
        %v6455 = vmul.f32 %v5880, %v6327
        %v6456 = vmul.f32 %v5882, %v6328
        %v6457 = vmul.f32 %v5884, %v6329
        %v6458 = vmul.f32 %v5886, %v6330
        %v6459 = vmul.f32 %v5888, %v6331
        %v6460 = vmul.f32 %v5890, %v6332
        %v6461 = vmul.f32 %v5892, %v6333
        %v6462 = vmul.f32 %v5894, %v6334
        %v6463 = vmul.f32 %v5896, %v6335
        %v6464 = vmul.f32 %v5898, %v6336
        %v6465 = vmul.f32 %v5900, %v6337
        %v6466 = vmul.f32 %v5902, %v6338
        %v6467 = vmul.f32 %v5904, %v6339
        %v6468 = vmul.f32 %v5906, %v6340
        %v6469 = vmul.f32 %v5908, %v6341
        %v6470 = vmul.f32 %v5910, %v6342
        %v6471 = vmul.f32 %v5912, %v6343
        %v6472 = vmul.f32 %v5914, %v6344
        %v6473 = vmul.f32 %v5916, %v6345
        %v6474 = vmul.f32 %v5918, %v6346
        %v6475 = vmul.f32 %v5920, %v6347
        %v6476 = vmul.f32 %v5922, %v6348
        %v6477 = vmul.f32 %v5924, %v6349
        %v6478 = vmul.f32 %v5926, %v6350
        %v6479 = vmul.f32 %v5928, %v6351
        %v6480 = vmul.f32 %v5930, %v6352
        %v6481 = vmul.f32 %v5932, %v6353
        %v6482 = vmul.f32 %v5934, %v6354
        %v6483 = vmul.f32 %v5936, %v6355
        %v6484 = vmul.f32 %v5938, %v6356
        %v6485 = vmul.f32 %v5940, %v6357
        %v6486 = vmul.f32 %v5942, %v6358
        %v6487 = vmul.f32 %v5944, %v6359
        %v6488 = vmul.f32 %v5946, %v6360
        %v6489 = vmul.f32 %v5948, %v6361
        %v6490 = vmul.f32 %v5950, %v6362
        %v6491 = vmul.f32 %v5952, %v6363
        %v6492 = vmul.f32 %v5954, %v6364
        %v6493 = vmul.f32 %v5956, %v6365
        %v6494 = vmul.f32 %v5958, %v6366
        %v6495 = vmul.f32 %v5960, %v6367
        %v6496 = vmul.f32 %v5962, %v6368
        %v6497 = vmul.f32 %v5964, %v6369
        %v6498 = vmul.f32 %v5966, %v6370
        %v6499 = vmul.f32 %v5968, %v6371
        %v6500 = vmul.f32 %v5970, %v6372
        %v6501 = vmul.f32 %v5972, %v6373
        %v6502 = vmul.f32 %v5974, %v6374
        %v6503 = vmul.f32 %v5976, %v6375
        %v6504 = vmul.f32 %v5978, %v6376
        %v6505 = vmul.f32 %v5980, %v6377
        %v6506 = vmul.f32 %v5982, %v6378
        %v6507 = vmul.f32 %v5984, %v6379
        %v6508 = vmul.f32 %v5986, %v6380
        %v6509 = vmul.f32 %v5988, %v6381
        %v6510 = vmul.f32 %v5990, %v6382
        %v6511 = vmul.f32 %v5992, %v6383
        %v6512 = vmul.f32 %v5994, %v6384
        %v6513 = vmul.f32 %v5996, %v6385
        %v6514 = vmul.f32 %v5998, %v6386
        %v6515 = vmul.f32 %v6000, %v6387
        %v6516 = vmul.f32 %v6002, %v6388
        %v6517 = vmul.f32 %v6004, %v6389
        %v6518 = vmul.f32 %v6006, %v6390
        %v6519 = vpack.c.bf16 %v6392, %v6391
        %v6520 = vpack.c.bf16 %v6394, %v6393
        %v6521 = vpack.c.bf16 %v6396, %v6395
        %v6522 = vpack.c.bf16 %v6398, %v6397
        %v6523 = vpack.c.bf16 %v6400, %v6399
        %v6524 = vpack.c.bf16 %v6402, %v6401
        %v6525 = vpack.c.bf16 %v6404, %v6403
        %v6526 = vpack.c.bf16 %v6406, %v6405
        %v6527 = vpack.c.bf16 %v6408, %v6407
        %v6528 = vpack.c.bf16 %v6410, %v6409
        %v6529 = vpack.c.bf16 %v6412, %v6411
        %v6530 = vpack.c.bf16 %v6414, %v6413
        %v6531 = vpack.c.bf16 %v6416, %v6415
        %v6532 = vpack.c.bf16 %v6418, %v6417
        %v6533 = vpack.c.bf16 %v6420, %v6419
        %v6534 = vpack.c.bf16 %v6422, %v6421
        %v6535 = vpack.c.bf16 %v6424, %v6423
        %v6536 = vpack.c.bf16 %v6426, %v6425
        %v6537 = vpack.c.bf16 %v6428, %v6427
        %v6538 = vpack.c.bf16 %v6430, %v6429
        %v6539 = vpack.c.bf16 %v6432, %v6431
        %v6540 = vpack.c.bf16 %v6434, %v6433
        %v6541 = vpack.c.bf16 %v6436, %v6435
        %v6542 = vpack.c.bf16 %v6438, %v6437
        %v6543 = vpack.c.bf16 %v6440, %v6439
        %v6544 = vpack.c.bf16 %v6442, %v6441
        %v6545 = vpack.c.bf16 %v6444, %v6443
        %v6546 = vpack.c.bf16 %v6446, %v6445
        %v6547 = vpack.c.bf16 %v6448, %v6447
        %v6548 = vpack.c.bf16 %v6450, %v6449
        %v6549 = vpack.c.bf16 %v6452, %v6451
        %v6550 = vpack.c.bf16 %v6454, %v6453
        %v6551 = vpack.c.bf16 %v6456, %v6455
        %v6552 = vpack.c.bf16 %v6458, %v6457
        %v6553 = vpack.c.bf16 %v6460, %v6459
        %v6554 = vpack.c.bf16 %v6462, %v6461
        %v6555 = vpack.c.bf16 %v6464, %v6463
        %v6556 = vpack.c.bf16 %v6466, %v6465
        %v6557 = vpack.c.bf16 %v6468, %v6467
        %v6558 = vpack.c.bf16 %v6470, %v6469
        %v6559 = vpack.c.bf16 %v6472, %v6471
        %v6560 = vpack.c.bf16 %v6474, %v6473
        %v6561 = vpack.c.bf16 %v6476, %v6475
        %v6562 = vpack.c.bf16 %v6478, %v6477
        %v6563 = vpack.c.bf16 %v6480, %v6479
        %v6564 = vpack.c.bf16 %v6482, %v6481
        %v6565 = vpack.c.bf16 %v6484, %v6483
        %v6566 = vpack.c.bf16 %v6486, %v6485
        %v6567 = vpack.c.bf16 %v6488, %v6487
        %v6568 = vpack.c.bf16 %v6490, %v6489
        %v6569 = vpack.c.bf16 %v6492, %v6491
        %v6570 = vpack.c.bf16 %v6494, %v6493
        %v6571 = vpack.c.bf16 %v6496, %v6495
        %v6572 = vpack.c.bf16 %v6498, %v6497
        %v6573 = vpack.c.bf16 %v6500, %v6499
        %v6574 = vpack.c.bf16 %v6502, %v6501
        %v6575 = vpack.c.bf16 %v6504, %v6503
        %v6576 = vpack.c.bf16 %v6506, %v6505
        %v6577 = vpack.c.bf16 %v6508, %v6507
        %v6578 = vpack.c.bf16 %v6510, %v6509
        %v6579 = vpack.c.bf16 %v6512, %v6511
        %v6580 = vpack.c.bf16 %v6514, %v6513
        %v6581 = vpack.c.bf16 %v6516, %v6515
        %v6582 = vpack.c.bf16 %v6518, %v6517
        %v6583 = vld [vmem:[#allocation4] sm:$0xff]
        %v6584 = vld [vmem:[#allocation4 + $0x8] sm:$0xff]
        %v6585 = vld [vmem:[#allocation4 + $0x10] sm:$0xff]
        %v6586 = vld [vmem:[#allocation4 + $0x18] sm:$0xff]
        %v6587 = vld [vmem:[#allocation4 + $0x20] sm:$0xff]
        %v6588 = vld [vmem:[#allocation4 + $0x28] sm:$0xff]
        %v6589 = vld [vmem:[#allocation4 + $0x30] sm:$0xff]
        %v6590 = vld [vmem:[#allocation4 + $0x38] sm:$0xff]
        %v6591 = vld [vmem:[#allocation4 + $0x40] sm:$0xff]
        %v6592 = vld [vmem:[#allocation4 + $0x48] sm:$0xff]
        %v6593 = vld [vmem:[#allocation4 + $0x50] sm:$0xff]
        %v6594 = vld [vmem:[#allocation4 + $0x58] sm:$0xff]
        %v6595 = vld [vmem:[#allocation4 + $0x60] sm:$0xff]
        %v6596 = vld [vmem:[#allocation4 + $0x68] sm:$0xff]
        %v6597 = vld [vmem:[#allocation4 + $0x70] sm:$0xff]
        %v6598 = vld [vmem:[#allocation4 + $0x78] sm:$0xff]
        %v6599 = vld [vmem:[#allocation4 + $0x80] sm:$0xff]
        %v6600 = vld [vmem:[#allocation4 + $0x88] sm:$0xff]
        %v6601 = vld [vmem:[#allocation4 + $0x90] sm:$0xff]
        %v6602 = vld [vmem:[#allocation4 + $0x98] sm:$0xff]
        %v6603 = vld [vmem:[#allocation4 + $0xa0] sm:$0xff]
        %v6604 = vld [vmem:[#allocation4 + $0xa8] sm:$0xff]
        %v6605 = vld [vmem:[#allocation4 + $0xb0] sm:$0xff]
        %v6606 = vld [vmem:[#allocation4 + $0xb8] sm:$0xff]
        %v6607 = vld [vmem:[#allocation4 + $0xc0] sm:$0xff]
        %v6608 = vld [vmem:[#allocation4 + $0xc8] sm:$0xff]
        %v6609 = vld [vmem:[#allocation4 + $0xd0] sm:$0xff]
        %v6610 = vld [vmem:[#allocation4 + $0xd8] sm:$0xff]
        %v6611 = vld [vmem:[#allocation4 + $0xe0] sm:$0xff]
        %v6612 = vld [vmem:[#allocation4 + $0xe8] sm:$0xff]
        %v6613 = vld [vmem:[#allocation4 + $0xf0] sm:$0xff]
        %v6614 = vld [vmem:[#allocation4 + $0xf8] sm:$0xff]
        %v6615 = vld [vmem:[#allocation4 + $0x100] sm:$0xff]
        %v6616 = vld [vmem:[#allocation4 + $0x108] sm:$0xff]
        %v6617 = vld [vmem:[#allocation4 + $0x110] sm:$0xff]
        %v6618 = vld [vmem:[#allocation4 + $0x118] sm:$0xff]
        %v6619 = vld [vmem:[#allocation4 + $0x120] sm:$0xff]
        %v6620 = vld [vmem:[#allocation4 + $0x128] sm:$0xff]
        %v6621 = vld [vmem:[#allocation4 + $0x130] sm:$0xff]
        %v6622 = vld [vmem:[#allocation4 + $0x138] sm:$0xff]
        %v6623 = vld [vmem:[#allocation4 + $0x140] sm:$0xff]
        %v6624 = vld [vmem:[#allocation4 + $0x148] sm:$0xff]
        %v6625 = vld [vmem:[#allocation4 + $0x150] sm:$0xff]
        %v6626 = vld [vmem:[#allocation4 + $0x158] sm:$0xff]
        %v6627 = vld [vmem:[#allocation4 + $0x160] sm:$0xff]
        %v6628 = vld [vmem:[#allocation4 + $0x168] sm:$0xff]
        %v6629 = vld [vmem:[#allocation4 + $0x170] sm:$0xff]
        %v6630 = vld [vmem:[#allocation4 + $0x178] sm:$0xff]
        %v6631 = vld [vmem:[#allocation4 + $0x180] sm:$0xff]
        %v6632 = vld [vmem:[#allocation4 + $0x188] sm:$0xff]
        %v6633 = vld [vmem:[#allocation4 + $0x190] sm:$0xff]
        %v6634 = vld [vmem:[#allocation4 + $0x198] sm:$0xff]
        %v6635 = vld [vmem:[#allocation4 + $0x1a0] sm:$0xff]
        %v6636 = vld [vmem:[#allocation4 + $0x1a8] sm:$0xff]
        %v6637 = vld [vmem:[#allocation4 + $0x1b0] sm:$0xff]
        %v6638 = vld [vmem:[#allocation4 + $0x1b8] sm:$0xff]
        %v6639 = vld [vmem:[#allocation4 + $0x1c0] sm:$0xff]
        %v6640 = vld [vmem:[#allocation4 + $0x1c8] sm:$0xff]
        %v6641 = vld [vmem:[#allocation4 + $0x1d0] sm:$0xff]
        %v6642 = vld [vmem:[#allocation4 + $0x1d8] sm:$0xff]
        %v6643 = vld [vmem:[#allocation4 + $0x1e0] sm:$0xff]
        %v6644 = vld [vmem:[#allocation4 + $0x1e8] sm:$0xff]
        %v6645 = vld [vmem:[#allocation4 + $0x1f0] sm:$0xff]
        %v6646 = vld [vmem:[#allocation4 + $0x1f8] sm:$0xff]
        %6647 = vmatprep.subr.bf16.mxu0 0
        %6648 = vmatpush1.bf16.msra.mxu0 %v6583
        %6649 = vmatprep.subr.bf16.mxu0 0
        %6650 = vmatpush1.bf16.msra.mxu0 %v6584
        %6651 = vmatprep.subr.bf16.mxu0 0
        %6652 = vmatpush1.bf16.msra.mxu0 %v6585
        %6653 = vmatprep.subr.bf16.mxu0 0
        %6654 = vmatpush1.bf16.msra.mxu0 %v6586
        %6655 = vmatprep.subr.bf16.mxu0 0
        %6656 = vmatpush1.bf16.msra.mxu0 %v6587
        %6657 = vmatprep.subr.bf16.mxu0 0
        %6658 = vmatpush1.bf16.msra.mxu0 %v6588
        %6659 = vmatprep.subr.bf16.mxu0 0
        %6660 = vmatpush1.bf16.msra.mxu0 %v6589
        %6661 = vmatprep.subr.bf16.mxu0 0
        %6662 = vmatpush1.bf16.msra.mxu0 %v6590
        %6663 = vmatprep.subr.bf16.mxu0 0
        %6664 = vmatpush1.bf16.msra.mxu0 0
        %6665 = vmatprep.subr.bf16.mxu0 0
        %6666 = vmatpush1.bf16.msra.mxu0 0
        %6667 = vmatprep.subr.bf16.mxu0 0
        %6668 = vmatpush1.bf16.msra.mxu0 0
        %6669 = vmatprep.subr.bf16.mxu0 0
        %6670 = vmatpush1.bf16.msra.mxu0 0
        %6671 = vmatprep.subr.bf16.mxu0 0
        %6672 = vmatpush1.bf16.msra.mxu0 0
        %6673 = vmatprep.subr.bf16.mxu0 0
        %6674 = vmatpush1.bf16.msra.mxu0 0
        %6675 = vmatprep.subr.bf16.mxu0 0
        %6676 = vmatpush1.bf16.msra.mxu0 0
        %6677 = vmatprep.subr.bf16.mxu0 0
        %6678 = vmatpush1.bf16.msra.mxu0 0
        %6679 = vmatprep.mubr.bf16.mxu0 0
        %6680 = vmatmul.mubr.bf16.gmra.mrb[0].mxu0 %v6519
        %v6681 = vpop.f32.mrb[0].mxu0
        %v6682 = vadd.f32 0.0, %v6681
        %v6683 = vpop.f32.mrb[0].mxu0
        %v6684 = vpop.f32.mrb[0].mxu0
        %v6685 = vadd.f32 0.0, %v6684
        %v6686 = vpop.f32.mrb[0].mxu0
        %6687 = vmatprep.mubr.bf16.mxu0 0
        %6688 = vmatmul.mubr.bf16.gmra.mrb[0].mxu0 %v6520
        %v6689 = vpop.f32.mrb[0].mxu0
        %v6690 = vadd.f32 0.0, %v6689
        %v6691 = vpop.f32.mrb[0].mxu0
        %v6692 = vpop.f32.mrb[0].mxu0
        %v6693 = vadd.f32 0.0, %v6692
        %v6694 = vpop.f32.mrb[0].mxu0
        %6695 = vmatprep.mubr.bf16.mxu0 0
        %6696 = vmatmul.mubr.bf16.gmra.mrb[0].mxu0 %v6521
        %v6697 = vpop.f32.mrb[0].mxu0
        %v6698 = vadd.f32 0.0, %v6697
        %v6699 = vpop.f32.mrb[0].mxu0
        %v6700 = vpop.f32.mrb[0].mxu0
        %v6701 = vadd.f32 0.0, %v6700
        %v6702 = vpop.f32.mrb[0].mxu0
        %6703 = vmatprep.mubr.bf16.mxu0 0
        %6704 = vmatmul.mubr.bf16.gmra.mrb[0].mxu0 %v6522
        %v6705 = vpop.f32.mrb[0].mxu0
        %v6706 = vadd.f32 0.0, %v6705
        %v6707 = vpop.f32.mrb[0].mxu0
        %v6708 = vpop.f32.mrb[0].mxu0
        %v6709 = vadd.f32 0.0, %v6708
        %v6710 = vpop.f32.mrb[0].mxu0
        %6711 = vmatprep.mubr.bf16.mxu0 0
        %6712 = vmatmul.mubr.bf16.gmra.mrb[0].mxu0 %v6523
        %v6713 = vpop.f32.mrb[0].mxu0
        %v6714 = vadd.f32 0.0, %v6713
        %v6715 = vpop.f32.mrb[0].mxu0
        %v6716 = vpop.f32.mrb[0].mxu0
        %v6717 = vadd.f32 0.0, %v6716
        %v6718 = vpop.f32.mrb[0].mxu0
        %6719 = vmatprep.mubr.bf16.mxu0 0
        %6720 = vmatmul.mubr.bf16.gmra.mrb[0].mxu0 %v6524
        %v6721 = vpop.f32.mrb[0].mxu0
        %v6722 = vadd.f32 0.0, %v6721
        %v6723 = vpop.f32.mrb[0].mxu0
        %v6724 = vpop.f32.mrb[0].mxu0
        %v6725 = vadd.f32 0.0, %v6724
        %v6726 = vpop.f32.mrb[0].mxu0
        %6727 = vmatprep.mubr.bf16.mxu0 0
        %6728 = vmatmul.mubr.bf16.gmra.mrb[0].mxu0 %v6525
        %v6729 = vpop.f32.mrb[0].mxu0
        %v6730 = vadd.f32 0.0, %v6729
        %v6731 = vpop.f32.mrb[0].mxu0
        %v6732 = vpop.f32.mrb[0].mxu0
        %v6733 = vadd.f32 0.0, %v6732
        %v6734 = vpop.f32.mrb[0].mxu0
        %6735 = vmatprep.mubr.bf16.mxu0 0
        %6736 = vmatmul.mubr.bf16.gmra.mrb[0].mxu0 %v6526
        %v6737 = vpop.f32.mrb[0].mxu0
        %v6738 = vadd.f32 0.0, %v6737
        %v6739 = vpop.f32.mrb[0].mxu0
        %v6740 = vpop.f32.mrb[0].mxu0
        %v6741 = vadd.f32 0.0, %v6740
        %v6742 = vpop.f32.mrb[0].mxu0
        %6743 = vdwg.mxu0
        %6744 = vmatprep.subr.bf16.mxu0 0
        %6745 = vmatpush1.bf16.msra.mxu0 %v6591
        %6746 = vmatprep.subr.bf16.mxu0 0
        %6747 = vmatpush1.bf16.msra.mxu0 %v6592
        %6748 = vmatprep.subr.bf16.mxu0 0
        %6749 = vmatpush1.bf16.msra.mxu0 %v6593
        %6750 = vmatprep.subr.bf16.mxu0 0
        %6751 = vmatpush1.bf16.msra.mxu0 %v6594
        %6752 = vmatprep.subr.bf16.mxu0 0
        %6753 = vmatpush1.bf16.msra.mxu0 %v6595
        %6754 = vmatprep.subr.bf16.mxu0 0
        %6755 = vmatpush1.bf16.msra.mxu0 %v6596
        %6756 = vmatprep.subr.bf16.mxu0 0
        %6757 = vmatpush1.bf16.msra.mxu0 %v6597
        %6758 = vmatprep.subr.bf16.mxu0 0
        %6759 = vmatpush1.bf16.msra.mxu0 %v6598
        %6760 = vmatprep.subr.bf16.mxu0 0
        %6761 = vmatpush1.bf16.msra.mxu0 0
        %6762 = vmatprep.subr.bf16.mxu0 0
        %6763 = vmatpush1.bf16.msra.mxu0 0
        %6764 = vmatprep.subr.bf16.mxu0 0
        %6765 = vmatpush1.bf16.msra.mxu0 0
        %6766 = vmatprep.subr.bf16.mxu0 0
        %6767 = vmatpush1.bf16.msra.mxu0 0
        %6768 = vmatprep.subr.bf16.mxu0 0
        %6769 = vmatpush1.bf16.msra.mxu0 0
        %6770 = vmatprep.subr.bf16.mxu0 0
        %6771 = vmatpush1.bf16.msra.mxu0 0
        %6772 = vmatprep.subr.bf16.mxu0 0
        %6773 = vmatpush1.bf16.msra.mxu0 0
        %6774 = vmatprep.subr.bf16.mxu0 0
        %6775 = vmatpush1.bf16.msra.mxu0 0
        %6776 = vmatprep.mubr.bf16.mxu0 0
        %6777 = vmatmul.mubr.bf16.gmra.mrb[0].mxu0 %v6527
        %v6778 = vpop.f32.mrb[0].mxu0
        %v6779 = vadd.f32 0.0, %v6778
        %v6780 = vpop.f32.mrb[0].mxu0
        %v6781 = vpop.f32.mrb[0].mxu0
        %v6782 = vadd.f32 0.0, %v6781
        %v6783 = vpop.f32.mrb[0].mxu0
        %6784 = vmatprep.mubr.bf16.mxu0 0
        %6785 = vmatmul.mubr.bf16.gmra.mrb[0].mxu0 %v6528
        %v6786 = vpop.f32.mrb[0].mxu0
        %v6787 = vadd.f32 0.0, %v6786
        %v6788 = vpop.f32.mrb[0].mxu0
        %v6789 = vpop.f32.mrb[0].mxu0
        %v6790 = vadd.f32 0.0, %v6789
        %v6791 = vpop.f32.mrb[0].mxu0
        %6792 = vmatprep.mubr.bf16.mxu0 0
        %6793 = vmatmul.mubr.bf16.gmra.mrb[0].mxu0 %v6529
        %v6794 = vpop.f32.mrb[0].mxu0
        %v6795 = vadd.f32 0.0, %v6794
        %v6796 = vpop.f32.mrb[0].mxu0
        %v6797 = vpop.f32.mrb[0].mxu0
        %v6798 = vadd.f32 0.0, %v6797
        %v6799 = vpop.f32.mrb[0].mxu0
        %6800 = vmatprep.mubr.bf16.mxu0 0
        %6801 = vmatmul.mubr.bf16.gmra.mrb[0].mxu0 %v6530
        %v6802 = vpop.f32.mrb[0].mxu0
        %v6803 = vadd.f32 0.0, %v6802
        %v6804 = vpop.f32.mrb[0].mxu0
        %v6805 = vpop.f32.mrb[0].mxu0
        %v6806 = vadd.f32 0.0, %v6805
        %v6807 = vpop.f32.mrb[0].mxu0
        %6808 = vmatprep.mubr.bf16.mxu0 0
        %6809 = vmatmul.mubr.bf16.gmra.mrb[0].mxu0 %v6531
        %v6810 = vpop.f32.mrb[0].mxu0
        %v6811 = vadd.f32 0.0, %v6810
        %v6812 = vpop.f32.mrb[0].mxu0
        %v6813 = vpop.f32.mrb[0].mxu0
        %v6814 = vadd.f32 0.0, %v6813
        %v6815 = vpop.f32.mrb[0].mxu0
        %6816 = vmatprep.mubr.bf16.mxu0 0
        %6817 = vmatmul.mubr.bf16.gmra.mrb[0].mxu0 %v6532
        %v6818 = vpop.f32.mrb[0].mxu0
        %v6819 = vadd.f32 0.0, %v6818
        %v6820 = vpop.f32.mrb[0].mxu0
        %v6821 = vpop.f32.mrb[0].mxu0
        %v6822 = vadd.f32 0.0, %v6821
        %v6823 = vpop.f32.mrb[0].mxu0
        %6824 = vmatprep.mubr.bf16.mxu0 0
        %6825 = vmatmul.mubr.bf16.gmra.mrb[0].mxu0 %v6533
        %v6826 = vpop.f32.mrb[0].mxu0
        %v6827 = vadd.f32 0.0, %v6826
        %v6828 = vpop.f32.mrb[0].mxu0
        %v6829 = vpop.f32.mrb[0].mxu0
        %v6830 = vadd.f32 0.0, %v6829
        %v6831 = vpop.f32.mrb[0].mxu0
        %6832 = vmatprep.mubr.bf16.mxu0 0
        %6833 = vmatmul.mubr.bf16.gmra.mrb[0].mxu0 %v6534
        %v6834 = vpop.f32.mrb[0].mxu0
        %v6835 = vadd.f32 0.0, %v6834
        %v6836 = vpop.f32.mrb[0].mxu0
        %v6837 = vpop.f32.mrb[0].mxu0
        %v6838 = vadd.f32 0.0, %v6837
        %v6839 = vpop.f32.mrb[0].mxu0
        %6840 = vdwg.mxu0
        %6841 = vmatprep.subr.bf16.mxu0 0
        %6842 = vmatpush1.bf16.msra.mxu0 %v6599
        %6843 = vmatprep.subr.bf16.mxu0 0
        %6844 = vmatpush1.bf16.msra.mxu0 %v6600
        %6845 = vmatprep.subr.bf16.mxu0 0
        %6846 = vmatpush1.bf16.msra.mxu0 %v6601
        %6847 = vmatprep.subr.bf16.mxu0 0
        %6848 = vmatpush1.bf16.msra.mxu0 %v6602
        %6849 = vmatprep.subr.bf16.mxu0 0
        %6850 = vmatpush1.bf16.msra.mxu0 %v6603
        %6851 = vmatprep.subr.bf16.mxu0 0
        %6852 = vmatpush1.bf16.msra.mxu0 %v6604
        %6853 = vmatprep.subr.bf16.mxu0 0
        %6854 = vmatpush1.bf16.msra.mxu0 %v6605
        %6855 = vmatprep.subr.bf16.mxu0 0
        %6856 = vmatpush1.bf16.msra.mxu0 %v6606
        %6857 = vmatprep.subr.bf16.mxu0 0
        %6858 = vmatpush1.bf16.msra.mxu0 0
        %6859 = vmatprep.subr.bf16.mxu0 0
        %6860 = vmatpush1.bf16.msra.mxu0 0
        %6861 = vmatprep.subr.bf16.mxu0 0
        %6862 = vmatpush1.bf16.msra.mxu0 0
        %6863 = vmatprep.subr.bf16.mxu0 0
        %6864 = vmatpush1.bf16.msra.mxu0 0
        %6865 = vmatprep.subr.bf16.mxu0 0
        %6866 = vmatpush1.bf16.msra.mxu0 0
        %6867 = vmatprep.subr.bf16.mxu0 0
        %6868 = vmatpush1.bf16.msra.mxu0 0
        %6869 = vmatprep.subr.bf16.mxu0 0
        %6870 = vmatpush1.bf16.msra.mxu0 0
        %6871 = vmatprep.subr.bf16.mxu0 0
        %6872 = vmatpush1.bf16.msra.mxu0 0
        %6873 = vmatprep.mubr.bf16.mxu0 0
        %6874 = vmatmul.mubr.bf16.gmra.mrb[0].mxu0 %v6535
        %v6875 = vpop.f32.mrb[0].mxu0
        %v6876 = vadd.f32 0.0, %v6875
        %v6877 = vpop.f32.mrb[0].mxu0
        %v6878 = vpop.f32.mrb[0].mxu0
        %v6879 = vadd.f32 0.0, %v6878
        %v6880 = vpop.f32.mrb[0].mxu0
        %6881 = vmatprep.mubr.bf16.mxu0 0
        %6882 = vmatmul.mubr.bf16.gmra.mrb[0].mxu0 %v6536
        %v6883 = vpop.f32.mrb[0].mxu0
        %v6884 = vadd.f32 0.0, %v6883
        %v6885 = vpop.f32.mrb[0].mxu0
        %v6886 = vpop.f32.mrb[0].mxu0
        %v6887 = vadd.f32 0.0, %v6886
        %v6888 = vpop.f32.mrb[0].mxu0
        %6889 = vmatprep.mubr.bf16.mxu0 0
        %6890 = vmatmul.mubr.bf16.gmra.mrb[0].mxu0 %v6537
        %v6891 = vpop.f32.mrb[0].mxu0
        %v6892 = vadd.f32 0.0, %v6891
        %v6893 = vpop.f32.mrb[0].mxu0
        %v6894 = vpop.f32.mrb[0].mxu0
        %v6895 = vadd.f32 0.0, %v6894
        %v6896 = vpop.f32.mrb[0].mxu0
        %6897 = vmatprep.mubr.bf16.mxu0 0
        %6898 = vmatmul.mubr.bf16.gmra.mrb[0].mxu0 %v6538
        %v6899 = vpop.f32.mrb[0].mxu0
        %v6900 = vadd.f32 0.0, %v6899
        %v6901 = vpop.f32.mrb[0].mxu0
        %v6902 = vpop.f32.mrb[0].mxu0
        %v6903 = vadd.f32 0.0, %v6902
        %v6904 = vpop.f32.mrb[0].mxu0
        %6905 = vmatprep.mubr.bf16.mxu0 0
        %6906 = vmatmul.mubr.bf16.gmra.mrb[0].mxu0 %v6539
        %v6907 = vpop.f32.mrb[0].mxu0
        %v6908 = vadd.f32 0.0, %v6907
        %v6909 = vpop.f32.mrb[0].mxu0
        %v6910 = vpop.f32.mrb[0].mxu0
        %v6911 = vadd.f32 0.0, %v6910
        %v6912 = vpop.f32.mrb[0].mxu0
        %6913 = vmatprep.mubr.bf16.mxu0 0
        %6914 = vmatmul.mubr.bf16.gmra.mrb[0].mxu0 %v6540
        %v6915 = vpop.f32.mrb[0].mxu0
        %v6916 = vadd.f32 0.0, %v6915
        %v6917 = vpop.f32.mrb[0].mxu0
        %v6918 = vpop.f32.mrb[0].mxu0
        %v6919 = vadd.f32 0.0, %v6918
        %v6920 = vpop.f32.mrb[0].mxu0
        %6921 = vmatprep.mubr.bf16.mxu0 0
        %6922 = vmatmul.mubr.bf16.gmra.mrb[0].mxu0 %v6541
        %v6923 = vpop.f32.mrb[0].mxu0
        %v6924 = vadd.f32 0.0, %v6923
        %v6925 = vpop.f32.mrb[0].mxu0
        %v6926 = vpop.f32.mrb[0].mxu0
        %v6927 = vadd.f32 0.0, %v6926
        %v6928 = vpop.f32.mrb[0].mxu0
        %6929 = vmatprep.mubr.bf16.mxu0 0
        %6930 = vmatmul.mubr.bf16.gmra.mrb[0].mxu0 %v6542
        %v6931 = vpop.f32.mrb[0].mxu0
        %v6932 = vadd.f32 0.0, %v6931
        %v6933 = vpop.f32.mrb[0].mxu0
        %v6934 = vpop.f32.mrb[0].mxu0
        %v6935 = vadd.f32 0.0, %v6934
        %v6936 = vpop.f32.mrb[0].mxu0
        %6937 = vdwg.mxu0
        %6938 = vmatprep.subr.bf16.mxu0 0
        %6939 = vmatpush1.bf16.msra.mxu0 %v6607
        %6940 = vmatprep.subr.bf16.mxu0 0
        %6941 = vmatpush1.bf16.msra.mxu0 %v6608
        %6942 = vmatprep.subr.bf16.mxu0 0
        %6943 = vmatpush1.bf16.msra.mxu0 %v6609
        %6944 = vmatprep.subr.bf16.mxu0 0
        %6945 = vmatpush1.bf16.msra.mxu0 %v6610
        %6946 = vmatprep.subr.bf16.mxu0 0
        %6947 = vmatpush1.bf16.msra.mxu0 %v6611
        %6948 = vmatprep.subr.bf16.mxu0 0
        %6949 = vmatpush1.bf16.msra.mxu0 %v6612
        %6950 = vmatprep.subr.bf16.mxu0 0
        %6951 = vmatpush1.bf16.msra.mxu0 %v6613
        %6952 = vmatprep.subr.bf16.mxu0 0
        %6953 = vmatpush1.bf16.msra.mxu0 %v6614
        %6954 = vmatprep.subr.bf16.mxu0 0
        %6955 = vmatpush1.bf16.msra.mxu0 0
        %6956 = vmatprep.subr.bf16.mxu0 0
        %6957 = vmatpush1.bf16.msra.mxu0 0
        %6958 = vmatprep.subr.bf16.mxu0 0
        %6959 = vmatpush1.bf16.msra.mxu0 0
        %6960 = vmatprep.subr.bf16.mxu0 0
        %6961 = vmatpush1.bf16.msra.mxu0 0
        %6962 = vmatprep.subr.bf16.mxu0 0
        %6963 = vmatpush1.bf16.msra.mxu0 0
        %6964 = vmatprep.subr.bf16.mxu0 0
        %6965 = vmatpush1.bf16.msra.mxu0 0
        %6966 = vmatprep.subr.bf16.mxu0 0
        %6967 = vmatpush1.bf16.msra.mxu0 0
        %6968 = vmatprep.subr.bf16.mxu0 0
        %6969 = vmatpush1.bf16.msra.mxu0 0
        %6970 = vmatprep.mubr.bf16.mxu0 0
        %6971 = vmatmul.mubr.bf16.gmra.mrb[0].mxu0 %v6543
        %v6972 = vpop.f32.mrb[0].mxu0
        %v6973 = vadd.f32 0.0, %v6972
        %v6974 = vpop.f32.mrb[0].mxu0
        %v6975 = vpop.f32.mrb[0].mxu0
        %v6976 = vadd.f32 0.0, %v6975
        %v6977 = vpop.f32.mrb[0].mxu0
        %6978 = vmatprep.mubr.bf16.mxu0 0
        %6979 = vmatmul.mubr.bf16.gmra.mrb[0].mxu0 %v6544
        %v6980 = vpop.f32.mrb[0].mxu0
        %v6981 = vadd.f32 0.0, %v6980
        %v6982 = vpop.f32.mrb[0].mxu0
        %v6983 = vpop.f32.mrb[0].mxu0
        %v6984 = vadd.f32 0.0, %v6983
        %v6985 = vpop.f32.mrb[0].mxu0
        %6986 = vmatprep.mubr.bf16.mxu0 0
        %6987 = vmatmul.mubr.bf16.gmra.mrb[0].mxu0 %v6545
        %v6988 = vpop.f32.mrb[0].mxu0
        %v6989 = vadd.f32 0.0, %v6988
        %v6990 = vpop.f32.mrb[0].mxu0
        %v6991 = vpop.f32.mrb[0].mxu0
        %v6992 = vadd.f32 0.0, %v6991
        %v6993 = vpop.f32.mrb[0].mxu0
        %6994 = vmatprep.mubr.bf16.mxu0 0
        %6995 = vmatmul.mubr.bf16.gmra.mrb[0].mxu0 %v6546
        %v6996 = vpop.f32.mrb[0].mxu0
        %v6997 = vadd.f32 0.0, %v6996
        %v6998 = vpop.f32.mrb[0].mxu0
        %v6999 = vpop.f32.mrb[0].mxu0
        %v7000 = vadd.f32 0.0, %v6999
        %v7001 = vpop.f32.mrb[0].mxu0
        %7002 = vmatprep.mubr.bf16.mxu0 0
        %7003 = vmatmul.mubr.bf16.gmra.mrb[0].mxu0 %v6547
        %v7004 = vpop.f32.mrb[0].mxu0
        %v7005 = vadd.f32 0.0, %v7004
        %v7006 = vpop.f32.mrb[0].mxu0
        %v7007 = vpop.f32.mrb[0].mxu0
        %v7008 = vadd.f32 0.0, %v7007
        %v7009 = vpop.f32.mrb[0].mxu0
        %7010 = vmatprep.mubr.bf16.mxu0 0
        %7011 = vmatmul.mubr.bf16.gmra.mrb[0].mxu0 %v6548
        %v7012 = vpop.f32.mrb[0].mxu0
        %v7013 = vadd.f32 0.0, %v7012
        %v7014 = vpop.f32.mrb[0].mxu0
        %v7015 = vpop.f32.mrb[0].mxu0
        %v7016 = vadd.f32 0.0, %v7015
        %v7017 = vpop.f32.mrb[0].mxu0
        %7018 = vmatprep.mubr.bf16.mxu0 0
        %7019 = vmatmul.mubr.bf16.gmra.mrb[0].mxu0 %v6549
        %v7020 = vpop.f32.mrb[0].mxu0
        %v7021 = vadd.f32 0.0, %v7020
        %v7022 = vpop.f32.mrb[0].mxu0
        %v7023 = vpop.f32.mrb[0].mxu0
        %v7024 = vadd.f32 0.0, %v7023
        %v7025 = vpop.f32.mrb[0].mxu0
        %7026 = vmatprep.mubr.bf16.mxu0 0
        %7027 = vmatmul.mubr.bf16.gmra.mrb[0].mxu0 %v6550
        %v7028 = vpop.f32.mrb[0].mxu0
        %v7029 = vadd.f32 0.0, %v7028
        %v7030 = vpop.f32.mrb[0].mxu0
        %v7031 = vpop.f32.mrb[0].mxu0
        %v7032 = vadd.f32 0.0, %v7031
        %v7033 = vpop.f32.mrb[0].mxu0
        %7034 = vdwg.mxu0
        %7035 = vmatprep.subr.bf16.mxu0 0
        %7036 = vmatpush1.bf16.msra.mxu0 %v6615
        %7037 = vmatprep.subr.bf16.mxu0 0
        %7038 = vmatpush1.bf16.msra.mxu0 %v6616
        %7039 = vmatprep.subr.bf16.mxu0 0
        %7040 = vmatpush1.bf16.msra.mxu0 %v6617
        %7041 = vmatprep.subr.bf16.mxu0 0
        %7042 = vmatpush1.bf16.msra.mxu0 %v6618
        %7043 = vmatprep.subr.bf16.mxu0 0
        %7044 = vmatpush1.bf16.msra.mxu0 %v6619
        %7045 = vmatprep.subr.bf16.mxu0 0
        %7046 = vmatpush1.bf16.msra.mxu0 %v6620
        %7047 = vmatprep.subr.bf16.mxu0 0
        %7048 = vmatpush1.bf16.msra.mxu0 %v6621
        %7049 = vmatprep.subr.bf16.mxu0 0
        %7050 = vmatpush1.bf16.msra.mxu0 %v6622
        %7051 = vmatprep.subr.bf16.mxu0 0
        %7052 = vmatpush1.bf16.msra.mxu0 0
        %7053 = vmatprep.subr.bf16.mxu0 0
        %7054 = vmatpush1.bf16.msra.mxu0 0
        %7055 = vmatprep.subr.bf16.mxu0 0
        %7056 = vmatpush1.bf16.msra.mxu0 0
        %7057 = vmatprep.subr.bf16.mxu0 0
        %7058 = vmatpush1.bf16.msra.mxu0 0
        %7059 = vmatprep.subr.bf16.mxu0 0
        %7060 = vmatpush1.bf16.msra.mxu0 0
        %7061 = vmatprep.subr.bf16.mxu0 0
        %7062 = vmatpush1.bf16.msra.mxu0 0
        %7063 = vmatprep.subr.bf16.mxu0 0
        %7064 = vmatpush1.bf16.msra.mxu0 0
        %7065 = vmatprep.subr.bf16.mxu0 0
        %7066 = vmatpush1.bf16.msra.mxu0 0
        %7067 = vmatprep.mubr.bf16.mxu0 0
        %7068 = vmatmul.mubr.bf16.gmra.mrb[0].mxu0 %v6551
        %v7069 = vpop.f32.mrb[0].mxu0
        %v7070 = vadd.f32 0.0, %v7069
        %v7071 = vpop.f32.mrb[0].mxu0
        %v7072 = vpop.f32.mrb[0].mxu0
        %v7073 = vadd.f32 0.0, %v7072
        %v7074 = vpop.f32.mrb[0].mxu0
        %7075 = vmatprep.mubr.bf16.mxu0 0
        %7076 = vmatmul.mubr.bf16.gmra.mrb[0].mxu0 %v6552
        %v7077 = vpop.f32.mrb[0].mxu0
        %v7078 = vadd.f32 0.0, %v7077
        %v7079 = vpop.f32.mrb[0].mxu0
        %v7080 = vpop.f32.mrb[0].mxu0
        %v7081 = vadd.f32 0.0, %v7080
        %v7082 = vpop.f32.mrb[0].mxu0
        %7083 = vmatprep.mubr.bf16.mxu0 0
        %7084 = vmatmul.mubr.bf16.gmra.mrb[0].mxu0 %v6553
        %v7085 = vpop.f32.mrb[0].mxu0
        %v7086 = vadd.f32 0.0, %v7085
        %v7087 = vpop.f32.mrb[0].mxu0
        %v7088 = vpop.f32.mrb[0].mxu0
        %v7089 = vadd.f32 0.0, %v7088
        %v7090 = vpop.f32.mrb[0].mxu0
        %7091 = vmatprep.mubr.bf16.mxu0 0
        %7092 = vmatmul.mubr.bf16.gmra.mrb[0].mxu0 %v6554
        %v7093 = vpop.f32.mrb[0].mxu0
        %v7094 = vadd.f32 0.0, %v7093
        %v7095 = vpop.f32.mrb[0].mxu0
        %v7096 = vpop.f32.mrb[0].mxu0
        %v7097 = vadd.f32 0.0, %v7096
        %v7098 = vpop.f32.mrb[0].mxu0
        %7099 = vmatprep.mubr.bf16.mxu0 0
        %7100 = vmatmul.mubr.bf16.gmra.mrb[0].mxu0 %v6555
        %v7101 = vpop.f32.mrb[0].mxu0
        %v7102 = vadd.f32 0.0, %v7101
        %v7103 = vpop.f32.mrb[0].mxu0
        %v7104 = vpop.f32.mrb[0].mxu0
        %v7105 = vadd.f32 0.0, %v7104
        %v7106 = vpop.f32.mrb[0].mxu0
        %7107 = vmatprep.mubr.bf16.mxu0 0
        %7108 = vmatmul.mubr.bf16.gmra.mrb[0].mxu0 %v6556
        %v7109 = vpop.f32.mrb[0].mxu0
        %v7110 = vadd.f32 0.0, %v7109
        %v7111 = vpop.f32.mrb[0].mxu0
        %v7112 = vpop.f32.mrb[0].mxu0
        %v7113 = vadd.f32 0.0, %v7112
        %v7114 = vpop.f32.mrb[0].mxu0
        %7115 = vmatprep.mubr.bf16.mxu0 0
        %7116 = vmatmul.mubr.bf16.gmra.mrb[0].mxu0 %v6557
        %v7117 = vpop.f32.mrb[0].mxu0
        %v7118 = vadd.f32 0.0, %v7117
        %v7119 = vpop.f32.mrb[0].mxu0
        %v7120 = vpop.f32.mrb[0].mxu0
        %v7121 = vadd.f32 0.0, %v7120
        %v7122 = vpop.f32.mrb[0].mxu0
        %7123 = vmatprep.mubr.bf16.mxu0 0
        %7124 = vmatmul.mubr.bf16.gmra.mrb[0].mxu0 %v6558
        %v7125 = vpop.f32.mrb[0].mxu0
        %v7126 = vadd.f32 0.0, %v7125
        %v7127 = vpop.f32.mrb[0].mxu0
        %v7128 = vpop.f32.mrb[0].mxu0
        %v7129 = vadd.f32 0.0, %v7128
        %v7130 = vpop.f32.mrb[0].mxu0
        %7131 = vdwg.mxu0
        %7132 = vmatprep.subr.bf16.mxu0 0
        %7133 = vmatpush1.bf16.msra.mxu0 %v6623
        %7134 = vmatprep.subr.bf16.mxu0 0
        %7135 = vmatpush1.bf16.msra.mxu0 %v6624
        %7136 = vmatprep.subr.bf16.mxu0 0
        %7137 = vmatpush1.bf16.msra.mxu0 %v6625
        %7138 = vmatprep.subr.bf16.mxu0 0
        %7139 = vmatpush1.bf16.msra.mxu0 %v6626
        %7140 = vmatprep.subr.bf16.mxu0 0
        %7141 = vmatpush1.bf16.msra.mxu0 %v6627
        %7142 = vmatprep.subr.bf16.mxu0 0
        %7143 = vmatpush1.bf16.msra.mxu0 %v6628
        %7144 = vmatprep.subr.bf16.mxu0 0
        %7145 = vmatpush1.bf16.msra.mxu0 %v6629
        %7146 = vmatprep.subr.bf16.mxu0 0
        %7147 = vmatpush1.bf16.msra.mxu0 %v6630
        %7148 = vmatprep.subr.bf16.mxu0 0
        %7149 = vmatpush1.bf16.msra.mxu0 0
        %7150 = vmatprep.subr.bf16.mxu0 0
        %7151 = vmatpush1.bf16.msra.mxu0 0
        %7152 = vmatprep.subr.bf16.mxu0 0
        %7153 = vmatpush1.bf16.msra.mxu0 0
        %7154 = vmatprep.subr.bf16.mxu0 0
        %7155 = vmatpush1.bf16.msra.mxu0 0
        %7156 = vmatprep.subr.bf16.mxu0 0
        %7157 = vmatpush1.bf16.msra.mxu0 0
        %7158 = vmatprep.subr.bf16.mxu0 0
        %7159 = vmatpush1.bf16.msra.mxu0 0
        %7160 = vmatprep.subr.bf16.mxu0 0
        %7161 = vmatpush1.bf16.msra.mxu0 0
        %7162 = vmatprep.subr.bf16.mxu0 0
        %7163 = vmatpush1.bf16.msra.mxu0 0
        %7164 = vmatprep.mubr.bf16.mxu0 0
        %7165 = vmatmul.mubr.bf16.gmra.mrb[0].mxu0 %v6559
        %v7166 = vpop.f32.mrb[0].mxu0
        %v7167 = vadd.f32 0.0, %v7166
        %v7168 = vpop.f32.mrb[0].mxu0
        %v7169 = vpop.f32.mrb[0].mxu0
        %v7170 = vadd.f32 0.0, %v7169
        %v7171 = vpop.f32.mrb[0].mxu0
        %7172 = vmatprep.mubr.bf16.mxu0 0
        %7173 = vmatmul.mubr.bf16.gmra.mrb[0].mxu0 %v6560
        %v7174 = vpop.f32.mrb[0].mxu0
        %v7175 = vadd.f32 0.0, %v7174
        %v7176 = vpop.f32.mrb[0].mxu0
        %v7177 = vpop.f32.mrb[0].mxu0
        %v7178 = vadd.f32 0.0, %v7177
        %v7179 = vpop.f32.mrb[0].mxu0
        %7180 = vmatprep.mubr.bf16.mxu0 0
        %7181 = vmatmul.mubr.bf16.gmra.mrb[0].mxu0 %v6561
        %v7182 = vpop.f32.mrb[0].mxu0
        %v7183 = vadd.f32 0.0, %v7182
        %v7184 = vpop.f32.mrb[0].mxu0
        %v7185 = vpop.f32.mrb[0].mxu0
        %v7186 = vadd.f32 0.0, %v7185
        %v7187 = vpop.f32.mrb[0].mxu0
        %7188 = vmatprep.mubr.bf16.mxu0 0
        %7189 = vmatmul.mubr.bf16.gmra.mrb[0].mxu0 %v6562
        %v7190 = vpop.f32.mrb[0].mxu0
        %v7191 = vadd.f32 0.0, %v7190
        %v7192 = vpop.f32.mrb[0].mxu0
        %v7193 = vpop.f32.mrb[0].mxu0
        %v7194 = vadd.f32 0.0, %v7193
        %v7195 = vpop.f32.mrb[0].mxu0
        %7196 = vmatprep.mubr.bf16.mxu0 0
        %7197 = vmatmul.mubr.bf16.gmra.mrb[0].mxu0 %v6563
        %v7198 = vpop.f32.mrb[0].mxu0
        %v7199 = vadd.f32 0.0, %v7198
        %v7200 = vpop.f32.mrb[0].mxu0
        %v7201 = vpop.f32.mrb[0].mxu0
        %v7202 = vadd.f32 0.0, %v7201
        %v7203 = vpop.f32.mrb[0].mxu0
        %7204 = vmatprep.mubr.bf16.mxu0 0
        %7205 = vmatmul.mubr.bf16.gmra.mrb[0].mxu0 %v6564
        %v7206 = vpop.f32.mrb[0].mxu0
        %v7207 = vadd.f32 0.0, %v7206
        %v7208 = vpop.f32.mrb[0].mxu0
        %v7209 = vpop.f32.mrb[0].mxu0
        %v7210 = vadd.f32 0.0, %v7209
        %v7211 = vpop.f32.mrb[0].mxu0
        %7212 = vmatprep.mubr.bf16.mxu0 0
        %7213 = vmatmul.mubr.bf16.gmra.mrb[0].mxu0 %v6565
        %v7214 = vpop.f32.mrb[0].mxu0
        %v7215 = vadd.f32 0.0, %v7214
        %v7216 = vpop.f32.mrb[0].mxu0
        %v7217 = vpop.f32.mrb[0].mxu0
        %v7218 = vadd.f32 0.0, %v7217
        %v7219 = vpop.f32.mrb[0].mxu0
        %7220 = vmatprep.mubr.bf16.mxu0 0
        %7221 = vmatmul.mubr.bf16.gmra.mrb[0].mxu0 %v6566
        %v7222 = vpop.f32.mrb[0].mxu0
        %v7223 = vadd.f32 0.0, %v7222
        %v7224 = vpop.f32.mrb[0].mxu0
        %v7225 = vpop.f32.mrb[0].mxu0
        %v7226 = vadd.f32 0.0, %v7225
        %v7227 = vpop.f32.mrb[0].mxu0
        %7228 = vdwg.mxu0
        %7229 = vmatprep.subr.bf16.mxu0 0
        %7230 = vmatpush1.bf16.msra.mxu0 %v6631
        %7231 = vmatprep.subr.bf16.mxu0 0
        %7232 = vmatpush1.bf16.msra.mxu0 %v6632
        %7233 = vmatprep.subr.bf16.mxu0 0
        %7234 = vmatpush1.bf16.msra.mxu0 %v6633
        %7235 = vmatprep.subr.bf16.mxu0 0
        %7236 = vmatpush1.bf16.msra.mxu0 %v6634
        %7237 = vmatprep.subr.bf16.mxu0 0
        %7238 = vmatpush1.bf16.msra.mxu0 %v6635
        %7239 = vmatprep.subr.bf16.mxu0 0
        %7240 = vmatpush1.bf16.msra.mxu0 %v6636
        %7241 = vmatprep.subr.bf16.mxu0 0
        %7242 = vmatpush1.bf16.msra.mxu0 %v6637
        %7243 = vmatprep.subr.bf16.mxu0 0
        %7244 = vmatpush1.bf16.msra.mxu0 %v6638
        %7245 = vmatprep.subr.bf16.mxu0 0
        %7246 = vmatpush1.bf16.msra.mxu0 0
        %7247 = vmatprep.subr.bf16.mxu0 0
        %7248 = vmatpush1.bf16.msra.mxu0 0
        %7249 = vmatprep.subr.bf16.mxu0 0
        %7250 = vmatpush1.bf16.msra.mxu0 0
        %7251 = vmatprep.subr.bf16.mxu0 0
        %7252 = vmatpush1.bf16.msra.mxu0 0
        %7253 = vmatprep.subr.bf16.mxu0 0
        %7254 = vmatpush1.bf16.msra.mxu0 0
        %7255 = vmatprep.subr.bf16.mxu0 0
        %7256 = vmatpush1.bf16.msra.mxu0 0
        %7257 = vmatprep.subr.bf16.mxu0 0
        %7258 = vmatpush1.bf16.msra.mxu0 0
        %7259 = vmatprep.subr.bf16.mxu0 0
        %7260 = vmatpush1.bf16.msra.mxu0 0
        %7261 = vmatprep.mubr.bf16.mxu0 0
        %7262 = vmatmul.mubr.bf16.gmra.mrb[0].mxu0 %v6567
        %v7263 = vpop.f32.mrb[0].mxu0
        %v7264 = vadd.f32 0.0, %v7263
        %v7265 = vpop.f32.mrb[0].mxu0
        %v7266 = vpop.f32.mrb[0].mxu0
        %v7267 = vadd.f32 0.0, %v7266
        %v7268 = vpop.f32.mrb[0].mxu0
        %7269 = vmatprep.mubr.bf16.mxu0 0
        %7270 = vmatmul.mubr.bf16.gmra.mrb[0].mxu0 %v6568
        %v7271 = vpop.f32.mrb[0].mxu0
        %v7272 = vadd.f32 0.0, %v7271
        %v7273 = vpop.f32.mrb[0].mxu0
        %v7274 = vpop.f32.mrb[0].mxu0
        %v7275 = vadd.f32 0.0, %v7274
        %v7276 = vpop.f32.mrb[0].mxu0
        %7277 = vmatprep.mubr.bf16.mxu0 0
        %7278 = vmatmul.mubr.bf16.gmra.mrb[0].mxu0 %v6569
        %v7279 = vpop.f32.mrb[0].mxu0
        %v7280 = vadd.f32 0.0, %v7279
        %v7281 = vpop.f32.mrb[0].mxu0
        %v7282 = vpop.f32.mrb[0].mxu0
        %v7283 = vadd.f32 0.0, %v7282
        %v7284 = vpop.f32.mrb[0].mxu0
        %7285 = vmatprep.mubr.bf16.mxu0 0
        %7286 = vmatmul.mubr.bf16.gmra.mrb[0].mxu0 %v6570
        %v7287 = vpop.f32.mrb[0].mxu0
        %v7288 = vadd.f32 0.0, %v7287
        %v7289 = vpop.f32.mrb[0].mxu0
        %v7290 = vpop.f32.mrb[0].mxu0
        %v7291 = vadd.f32 0.0, %v7290
        %v7292 = vpop.f32.mrb[0].mxu0
        %7293 = vmatprep.mubr.bf16.mxu0 0
        %7294 = vmatmul.mubr.bf16.gmra.mrb[0].mxu0 %v6571
        %v7295 = vpop.f32.mrb[0].mxu0
        %v7296 = vadd.f32 0.0, %v7295
        %v7297 = vpop.f32.mrb[0].mxu0
        %v7298 = vpop.f32.mrb[0].mxu0
        %v7299 = vadd.f32 0.0, %v7298
        %v7300 = vpop.f32.mrb[0].mxu0
        %7301 = vmatprep.mubr.bf16.mxu0 0
        %7302 = vmatmul.mubr.bf16.gmra.mrb[0].mxu0 %v6572
        %v7303 = vpop.f32.mrb[0].mxu0
        %v7304 = vadd.f32 0.0, %v7303
        %v7305 = vpop.f32.mrb[0].mxu0
        %v7306 = vpop.f32.mrb[0].mxu0
        %v7307 = vadd.f32 0.0, %v7306
        %v7308 = vpop.f32.mrb[0].mxu0
        %7309 = vmatprep.mubr.bf16.mxu0 0
        %7310 = vmatmul.mubr.bf16.gmra.mrb[0].mxu0 %v6573
        %v7311 = vpop.f32.mrb[0].mxu0
        %v7312 = vadd.f32 0.0, %v7311
        %v7313 = vpop.f32.mrb[0].mxu0
        %v7314 = vpop.f32.mrb[0].mxu0
        %v7315 = vadd.f32 0.0, %v7314
        %v7316 = vpop.f32.mrb[0].mxu0
        %7317 = vmatprep.mubr.bf16.mxu0 0
        %7318 = vmatmul.mubr.bf16.gmra.mrb[0].mxu0 %v6574
        %v7319 = vpop.f32.mrb[0].mxu0
        %v7320 = vadd.f32 0.0, %v7319
        %v7321 = vpop.f32.mrb[0].mxu0
        %v7322 = vpop.f32.mrb[0].mxu0
        %v7323 = vadd.f32 0.0, %v7322
        %v7324 = vpop.f32.mrb[0].mxu0
        %7325 = vdwg.mxu0
        %7326 = vmatprep.subr.bf16.mxu0 0
        %7327 = vmatpush1.bf16.msra.mxu0 %v6639
        %7328 = vmatprep.subr.bf16.mxu0 0
        %7329 = vmatpush1.bf16.msra.mxu0 %v6640
        %7330 = vmatprep.subr.bf16.mxu0 0
        %7331 = vmatpush1.bf16.msra.mxu0 %v6641
        %7332 = vmatprep.subr.bf16.mxu0 0
        %7333 = vmatpush1.bf16.msra.mxu0 %v6642
        %7334 = vmatprep.subr.bf16.mxu0 0
        %7335 = vmatpush1.bf16.msra.mxu0 %v6643
        %7336 = vmatprep.subr.bf16.mxu0 0
        %7337 = vmatpush1.bf16.msra.mxu0 %v6644
        %7338 = vmatprep.subr.bf16.mxu0 0
        %7339 = vmatpush1.bf16.msra.mxu0 %v6645
        %7340 = vmatprep.subr.bf16.mxu0 0
        %7341 = vmatpush1.bf16.msra.mxu0 %v6646
        %7342 = vmatprep.subr.bf16.mxu0 0
        %7343 = vmatpush1.bf16.msra.mxu0 0
        %7344 = vmatprep.subr.bf16.mxu0 0
        %7345 = vmatpush1.bf16.msra.mxu0 0
        %7346 = vmatprep.subr.bf16.mxu0 0
        %7347 = vmatpush1.bf16.msra.mxu0 0
        %7348 = vmatprep.subr.bf16.mxu0 0
        %7349 = vmatpush1.bf16.msra.mxu0 0
        %7350 = vmatprep.subr.bf16.mxu0 0
        %7351 = vmatpush1.bf16.msra.mxu0 0
        %7352 = vmatprep.subr.bf16.mxu0 0
        %7353 = vmatpush1.bf16.msra.mxu0 0
        %7354 = vmatprep.subr.bf16.mxu0 0
        %7355 = vmatpush1.bf16.msra.mxu0 0
        %7356 = vmatprep.subr.bf16.mxu0 0
        %7357 = vmatpush1.bf16.msra.mxu0 0
        %7358 = vmatprep.mubr.bf16.mxu0 0
        %7359 = vmatmul.mubr.bf16.gmra.mrb[0].mxu0 %v6575
        %v7360 = vpop.f32.mrb[0].mxu0
        %v7361 = vadd.f32 0.0, %v7360
        %v7362 = vpop.f32.mrb[0].mxu0
        %v7363 = vpop.f32.mrb[0].mxu0
        %v7364 = vadd.f32 0.0, %v7363
        %v7365 = vpop.f32.mrb[0].mxu0
        %7366 = vmatprep.mubr.bf16.mxu0 0
        %7367 = vmatmul.mubr.bf16.gmra.mrb[0].mxu0 %v6576
        %v7368 = vpop.f32.mrb[0].mxu0
        %v7369 = vadd.f32 0.0, %v7368
        %v7370 = vpop.f32.mrb[0].mxu0
        %v7371 = vpop.f32.mrb[0].mxu0
        %v7372 = vadd.f32 0.0, %v7371
        %v7373 = vpop.f32.mrb[0].mxu0
        %7374 = vmatprep.mubr.bf16.mxu0 0
        %7375 = vmatmul.mubr.bf16.gmra.mrb[0].mxu0 %v6577
        %v7376 = vpop.f32.mrb[0].mxu0
        %v7377 = vadd.f32 0.0, %v7376
        %v7378 = vpop.f32.mrb[0].mxu0
        %v7379 = vpop.f32.mrb[0].mxu0
        %v7380 = vadd.f32 0.0, %v7379
        %v7381 = vpop.f32.mrb[0].mxu0
        %7382 = vmatprep.mubr.bf16.mxu0 0
        %7383 = vmatmul.mubr.bf16.gmra.mrb[0].mxu0 %v6578
        %v7384 = vpop.f32.mrb[0].mxu0
        %v7385 = vadd.f32 0.0, %v7384
        %v7386 = vpop.f32.mrb[0].mxu0
        %v7387 = vpop.f32.mrb[0].mxu0
        %v7388 = vadd.f32 0.0, %v7387
        %v7389 = vpop.f32.mrb[0].mxu0
        %7390 = vmatprep.mubr.bf16.mxu0 0
        %7391 = vmatmul.mubr.bf16.gmra.mrb[0].mxu0 %v6579
        %v7392 = vpop.f32.mrb[0].mxu0
        %v7393 = vadd.f32 0.0, %v7392
        %v7394 = vpop.f32.mrb[0].mxu0
        %v7395 = vpop.f32.mrb[0].mxu0
        %v7396 = vadd.f32 0.0, %v7395
        %v7397 = vpop.f32.mrb[0].mxu0
        %7398 = vmatprep.mubr.bf16.mxu0 0
        %7399 = vmatmul.mubr.bf16.gmra.mrb[0].mxu0 %v6580
        %v7400 = vpop.f32.mrb[0].mxu0
        %v7401 = vadd.f32 0.0, %v7400
        %v7402 = vpop.f32.mrb[0].mxu0
        %v7403 = vpop.f32.mrb[0].mxu0
        %v7404 = vadd.f32 0.0, %v7403
        %v7405 = vpop.f32.mrb[0].mxu0
        %7406 = vmatprep.mubr.bf16.mxu0 0
        %7407 = vmatmul.mubr.bf16.gmra.mrb[0].mxu0 %v6581
        %v7408 = vpop.f32.mrb[0].mxu0
        %v7409 = vadd.f32 0.0, %v7408
        %v7410 = vpop.f32.mrb[0].mxu0
        %v7411 = vpop.f32.mrb[0].mxu0
        %v7412 = vadd.f32 0.0, %v7411
        %v7413 = vpop.f32.mrb[0].mxu0
        %7414 = vmatprep.mubr.bf16.mxu0 0
        %7415 = vmatmul.mubr.bf16.gmra.mrb[0].mxu0 %v6582
        %v7416 = vpop.f32.mrb[0].mxu0
        %v7417 = vadd.f32 0.0, %v7416
        %v7418 = vpop.f32.mrb[0].mxu0
        %v7419 = vpop.f32.mrb[0].mxu0
        %v7420 = vadd.f32 0.0, %v7419
        %v7421 = vpop.f32.mrb[0].mxu0
        %7422 = vdwg.mxu0
        %v7423 = vpack.c.bf16 %v6685, %v6682
        %v7424 = vpack.c.bf16 %v6693, %v6690
        %v7425 = vpack.c.bf16 %v6782, %v6779
        %v7426 = vpack.c.bf16 %v6790, %v6787
        %v7427 = vpack.c.bf16 %v6879, %v6876
        %v7428 = vpack.c.bf16 %v6887, %v6884
        %v7429 = vpack.c.bf16 %v6976, %v6973
        %v7430 = vpack.c.bf16 %v6984, %v6981
        %v7431 = vpack.c.bf16 %v7073, %v7070
        %v7432 = vpack.c.bf16 %v7081, %v7078
        %v7433 = vpack.c.bf16 %v7170, %v7167
        %v7434 = vpack.c.bf16 %v7178, %v7175
        %v7435 = vpack.c.bf16 %v7267, %v7264
        %v7436 = vpack.c.bf16 %v7275, %v7272
        %v7437 = vpack.c.bf16 %v7364, %v7361
        %v7438 = vpack.c.bf16 %v7372, %v7369
        %7439 = vst.msk [vmem:[#allocation5] sm:$0xff] %vm838, %v7423
        %7440 = vst.msk [vmem:[#allocation5 + $0x8] sm:$0xff] %vm838, %v7424
        %7441 = vst.msk [vmem:[#allocation5 + $0x10] sm:$0xff] %vm838, %v7425
        %7442 = vst.msk [vmem:[#allocation5 + $0x18] sm:$0xff] %vm838, %v7426
        %7443 = vst.msk [vmem:[#allocation5 + $0x20] sm:$0xff] %vm838, %v7427
        %7444 = vst.msk [vmem:[#allocation5 + $0x28] sm:$0xff] %vm838, %v7428
        %7445 = vst.msk [vmem:[#allocation5 + $0x30] sm:$0xff] %vm838, %v7429
        %7446 = vst.msk [vmem:[#allocation5 + $0x38] sm:$0xff] %vm838, %v7430
        %7447 = vst.msk [vmem:[#allocation5 + $0x40] sm:$0xff] %vm838, %v7431
        %7448 = vst.msk [vmem:[#allocation5 + $0x48] sm:$0xff] %vm838, %v7432
        %7449 = vst.msk [vmem:[#allocation5 + $0x50] sm:$0xff] %vm838, %v7433
        %7450 = vst.msk [vmem:[#allocation5 + $0x58] sm:$0xff] %vm838, %v7434
        %7451 = vst.msk [vmem:[#allocation5 + $0x60] sm:$0xff] %vm838, %v7435
        %7452 = vst.msk [vmem:[#allocation5 + $0x68] sm:$0xff] %vm838, %v7436
        %7453 = vst.msk [vmem:[#allocation5 + $0x70] sm:$0xff] %vm838, %v7437
        %7454 = vst.msk [vmem:[#allocation5 + $0x78] sm:$0xff] %vm838, %v7438
        %v7455 = vpack.c.bf16 %v6701, %v6698
        %v7456 = vpack.c.bf16 %v6709, %v6706
        %v7457 = vpack.c.bf16 %v6798, %v6795
        %v7458 = vpack.c.bf16 %v6806, %v6803
        %v7459 = vpack.c.bf16 %v6895, %v6892
        %v7460 = vpack.c.bf16 %v6903, %v6900
        %v7461 = vpack.c.bf16 %v6992, %v6989
        %v7462 = vpack.c.bf16 %v7000, %v6997
        %v7463 = vpack.c.bf16 %v7089, %v7086
        %v7464 = vpack.c.bf16 %v7097, %v7094
        %v7465 = vpack.c.bf16 %v7186, %v7183
        %v7466 = vpack.c.bf16 %v7194, %v7191
        %v7467 = vpack.c.bf16 %v7283, %v7280
        %v7468 = vpack.c.bf16 %v7291, %v7288
        %v7469 = vpack.c.bf16 %v7380, %v7377
        %v7470 = vpack.c.bf16 %v7388, %v7385
        %7487 = vrot.lane.b32.xlu0 %v7455, 32
        %v7488 = vpop.permute.xlu0 %7487
        %7489 = vrot.lane.b32.xlu0 %v7456, 32
        %v7490 = vpop.permute.xlu0 %7489
        %7491 = vrot.lane.b32.xlu0 %v7457, 32
        %v7492 = vpop.permute.xlu0 %7491
        %7493 = vrot.lane.b32.xlu0 %v7458, 32
        %v7494 = vpop.permute.xlu0 %7493
        %7495 = vrot.lane.b32.xlu0 %v7459, 32
        %v7496 = vpop.permute.xlu0 %7495
        %7497 = vrot.lane.b32.xlu0 %v7460, 32
        %v7498 = vpop.permute.xlu0 %7497
        %7499 = vrot.lane.b32.xlu0 %v7461, 32
        %v7500 = vpop.permute.xlu0 %7499
        %7501 = vrot.lane.b32.xlu0 %v7462, 32
        %v7502 = vpop.permute.xlu0 %7501
        %7503 = vrot.lane.b32.xlu0 %v7463, 32
        %v7504 = vpop.permute.xlu0 %7503
        %7505 = vrot.lane.b32.xlu0 %v7464, 32
        %v7506 = vpop.permute.xlu0 %7505
        %7507 = vrot.lane.b32.xlu0 %v7465, 32
        %v7508 = vpop.permute.xlu0 %7507
        %7509 = vrot.lane.b32.xlu0 %v7466, 32
        %v7510 = vpop.permute.xlu0 %7509
        %7511 = vrot.lane.b32.xlu0 %v7467, 32
        %v7512 = vpop.permute.xlu0 %7511
        %7513 = vrot.lane.b32.xlu0 %v7468, 32
        %v7514 = vpop.permute.xlu0 %7513
        %7515 = vrot.lane.b32.xlu0 %v7469, 32
        %v7516 = vpop.permute.xlu0 %7515
        %7517 = vrot.lane.b32.xlu0 %v7470, 32
        %v7518 = vpop.permute.xlu0 %7517
        %vm7535 = vcmask 523520
        %7536 = vst.msk [vmem:[#allocation5] sm:$0xff] %vm7535, %v7488
        %7537 = vst.msk [vmem:[#allocation5 + $0x8] sm:$0xff] %vm7535, %v7490
        %7538 = vst.msk [vmem:[#allocation5 + $0x10] sm:$0xff] %vm7535, %v7492
        %7539 = vst.msk [vmem:[#allocation5 + $0x18] sm:$0xff] %vm7535, %v7494
        %7540 = vst.msk [vmem:[#allocation5 + $0x20] sm:$0xff] %vm7535, %v7496
        %7541 = vst.msk [vmem:[#allocation5 + $0x28] sm:$0xff] %vm7535, %v7498
        %7542 = vst.msk [vmem:[#allocation5 + $0x30] sm:$0xff] %vm7535, %v7500
        %7543 = vst.msk [vmem:[#allocation5 + $0x38] sm:$0xff] %vm7535, %v7502
        %7544 = vst.msk [vmem:[#allocation5 + $0x40] sm:$0xff] %vm7535, %v7504
        %7545 = vst.msk [vmem:[#allocation5 + $0x48] sm:$0xff] %vm7535, %v7506
        %7546 = vst.msk [vmem:[#allocation5 + $0x50] sm:$0xff] %vm7535, %v7508
        %7547 = vst.msk [vmem:[#allocation5 + $0x58] sm:$0xff] %vm7535, %v7510
        %7548 = vst.msk [vmem:[#allocation5 + $0x60] sm:$0xff] %vm7535, %v7512
        %7549 = vst.msk [vmem:[#allocation5 + $0x68] sm:$0xff] %vm7535, %v7514
        %7550 = vst.msk [vmem:[#allocation5 + $0x70] sm:$0xff] %vm7535, %v7516
        %7551 = vst.msk [vmem:[#allocation5 + $0x78] sm:$0xff] %vm7535, %v7518
        %v7552 = vpack.c.bf16 %v6717, %v6714
        %v7553 = vpack.c.bf16 %v6725, %v6722
        %v7554 = vpack.c.bf16 %v6814, %v6811
        %v7555 = vpack.c.bf16 %v6822, %v6819
        %v7556 = vpack.c.bf16 %v6911, %v6908
        %v7557 = vpack.c.bf16 %v6919, %v6916
        %v7558 = vpack.c.bf16 %v7008, %v7005
        %v7559 = vpack.c.bf16 %v7016, %v7013
        %v7560 = vpack.c.bf16 %v7105, %v7102
        %v7561 = vpack.c.bf16 %v7113, %v7110
        %v7562 = vpack.c.bf16 %v7202, %v7199
        %v7563 = vpack.c.bf16 %v7210, %v7207
        %v7564 = vpack.c.bf16 %v7299, %v7296
        %v7565 = vpack.c.bf16 %v7307, %v7304
        %v7566 = vpack.c.bf16 %v7396, %v7393
        %v7567 = vpack.c.bf16 %v7404, %v7401
        %7584 = vrot.lane.b32.xlu0 %v7552, 64
        %v7585 = vpop.permute.xlu0 %7584
        %7586 = vrot.lane.b32.xlu0 %v7553, 64
        %v7587 = vpop.permute.xlu0 %7586
        %7588 = vrot.lane.b32.xlu0 %v7554, 64
        %v7589 = vpop.permute.xlu0 %7588
        %7590 = vrot.lane.b32.xlu0 %v7555, 64
        %v7591 = vpop.permute.xlu0 %7590
        %7592 = vrot.lane.b32.xlu0 %v7556, 64
        %v7593 = vpop.permute.xlu0 %7592
        %7594 = vrot.lane.b32.xlu0 %v7557, 64
        %v7595 = vpop.permute.xlu0 %7594
        %7596 = vrot.lane.b32.xlu0 %v7558, 64
        %v7597 = vpop.permute.xlu0 %7596
        %7598 = vrot.lane.b32.xlu0 %v7559, 64
        %v7599 = vpop.permute.xlu0 %7598
        %7600 = vrot.lane.b32.xlu0 %v7560, 64
        %v7601 = vpop.permute.xlu0 %7600
        %7602 = vrot.lane.b32.xlu0 %v7561, 64
        %v7603 = vpop.permute.xlu0 %7602
        %7604 = vrot.lane.b32.xlu0 %v7562, 64
        %v7605 = vpop.permute.xlu0 %7604
        %7606 = vrot.lane.b32.xlu0 %v7563, 64
        %v7607 = vpop.permute.xlu0 %7606
        %7608 = vrot.lane.b32.xlu0 %v7564, 64
        %v7609 = vpop.permute.xlu0 %7608
        %7610 = vrot.lane.b32.xlu0 %v7565, 64
        %v7611 = vpop.permute.xlu0 %7610
        %7612 = vrot.lane.b32.xlu0 %v7566, 64
        %v7613 = vpop.permute.xlu0 %7612
        %7614 = vrot.lane.b32.xlu0 %v7567, 64
        %v7615 = vpop.permute.xlu0 %7614
        %vm7632 = vcmask 785920
        %7633 = vst.msk [vmem:[#allocation5] sm:$0xff] %vm7632, %v7585
        %7634 = vst.msk [vmem:[#allocation5 + $0x8] sm:$0xff] %vm7632, %v7587
        %7635 = vst.msk [vmem:[#allocation5 + $0x10] sm:$0xff] %vm7632, %v7589
        %7636 = vst.msk [vmem:[#allocation5 + $0x18] sm:$0xff] %vm7632, %v7591
        %7637 = vst.msk [vmem:[#allocation5 + $0x20] sm:$0xff] %vm7632, %v7593
        %7638 = vst.msk [vmem:[#allocation5 + $0x28] sm:$0xff] %vm7632, %v7595
        %7639 = vst.msk [vmem:[#allocation5 + $0x30] sm:$0xff] %vm7632, %v7597
        %7640 = vst.msk [vmem:[#allocation5 + $0x38] sm:$0xff] %vm7632, %v7599
        %7641 = vst.msk [vmem:[#allocation5 + $0x40] sm:$0xff] %vm7632, %v7601
        %7642 = vst.msk [vmem:[#allocation5 + $0x48] sm:$0xff] %vm7632, %v7603
        %7643 = vst.msk [vmem:[#allocation5 + $0x50] sm:$0xff] %vm7632, %v7605
        %7644 = vst.msk [vmem:[#allocation5 + $0x58] sm:$0xff] %vm7632, %v7607
        %7645 = vst.msk [vmem:[#allocation5 + $0x60] sm:$0xff] %vm7632, %v7609
        %7646 = vst.msk [vmem:[#allocation5 + $0x68] sm:$0xff] %vm7632, %v7611
        %7647 = vst.msk [vmem:[#allocation5 + $0x70] sm:$0xff] %vm7632, %v7613
        %7648 = vst.msk [vmem:[#allocation5 + $0x78] sm:$0xff] %vm7632, %v7615
        %v7649 = vpack.c.bf16 %v6733, %v6730
        %v7650 = vpack.c.bf16 %v6741, %v6738
        %v7651 = vpack.c.bf16 %v6830, %v6827
        %v7652 = vpack.c.bf16 %v6838, %v6835
        %v7653 = vpack.c.bf16 %v6927, %v6924
        %v7654 = vpack.c.bf16 %v6935, %v6932
        %v7655 = vpack.c.bf16 %v7024, %v7021
        %v7656 = vpack.c.bf16 %v7032, %v7029
        %v7657 = vpack.c.bf16 %v7121, %v7118
        %v7658 = vpack.c.bf16 %v7129, %v7126
        %v7659 = vpack.c.bf16 %v7218, %v7215
        %v7660 = vpack.c.bf16 %v7226, %v7223
        %v7661 = vpack.c.bf16 %v7315, %v7312
        %v7662 = vpack.c.bf16 %v7323, %v7320
        %v7663 = vpack.c.bf16 %v7412, %v7409
        %v7664 = vpack.c.bf16 %v7420, %v7417
        %7681 = vrot.lane.b32.xlu0 %v7649, 96
        %v7682 = vpop.permute.xlu0 %7681
        %7683 = vrot.lane.b32.xlu0 %v7650, 96
        %v7684 = vpop.permute.xlu0 %7683
        %7685 = vrot.lane.b32.xlu0 %v7651, 96
        %v7686 = vpop.permute.xlu0 %7685
        %7687 = vrot.lane.b32.xlu0 %v7652, 96
        %v7688 = vpop.permute.xlu0 %7687
        %7689 = vrot.lane.b32.xlu0 %v7653, 96
        %v7690 = vpop.permute.xlu0 %7689
        %7691 = vrot.lane.b32.xlu0 %v7654, 96
        %v7692 = vpop.permute.xlu0 %7691
        %7693 = vrot.lane.b32.xlu0 %v7655, 96
        %v7694 = vpop.permute.xlu0 %7693
        %7695 = vrot.lane.b32.xlu0 %v7656, 96
        %v7696 = vpop.permute.xlu0 %7695
        %7697 = vrot.lane.b32.xlu0 %v7657, 96
        %v7698 = vpop.permute.xlu0 %7697
        %7699 = vrot.lane.b32.xlu0 %v7658, 96
        %v7700 = vpop.permute.xlu0 %7699
        %7701 = vrot.lane.b32.xlu0 %v7659, 96
        %v7702 = vpop.permute.xlu0 %7701
        %7703 = vrot.lane.b32.xlu0 %v7660, 96
        %v7704 = vpop.permute.xlu0 %7703
        %7705 = vrot.lane.b32.xlu0 %v7661, 96
        %v7706 = vpop.permute.xlu0 %7705
        %7707 = vrot.lane.b32.xlu0 %v7662, 96
        %v7708 = vpop.permute.xlu0 %7707
        %7709 = vrot.lane.b32.xlu0 %v7663, 96
        %v7710 = vpop.permute.xlu0 %7709
        %7711 = vrot.lane.b32.xlu0 %v7664, 96
        %v7712 = vpop.permute.xlu0 %7711
        %vm7729 = vcmask 1048320
        %7730 = vst.msk [vmem:[#allocation5] sm:$0xff] %vm7729, %v7682
        %7731 = vst.msk [vmem:[#allocation5 + $0x8] sm:$0xff] %vm7729, %v7684
        %7732 = vst.msk [vmem:[#allocation5 + $0x10] sm:$0xff] %vm7729, %v7686
        %7733 = vst.msk [vmem:[#allocation5 + $0x18] sm:$0xff] %vm7729, %v7688
        %7734 = vst.msk [vmem:[#allocation5 + $0x20] sm:$0xff] %vm7729, %v7690
        %7735 = vst.msk [vmem:[#allocation5 + $0x28] sm:$0xff] %vm7729, %v7692
        %7736 = vst.msk [vmem:[#allocation5 + $0x30] sm:$0xff] %vm7729, %v7694
        %7737 = vst.msk [vmem:[#allocation5 + $0x38] sm:$0xff] %vm7729, %v7696
        %7738 = vst.msk [vmem:[#allocation5 + $0x40] sm:$0xff] %vm7729, %v7698
        %7739 = vst.msk [vmem:[#allocation5 + $0x48] sm:$0xff] %vm7729, %v7700
        %7740 = vst.msk [vmem:[#allocation5 + $0x50] sm:$0xff] %vm7729, %v7702
        %7741 = vst.msk [vmem:[#allocation5 + $0x58] sm:$0xff] %vm7729, %v7704
        %7742 = vst.msk [vmem:[#allocation5 + $0x60] sm:$0xff] %vm7729, %v7706
        %7743 = vst.msk [vmem:[#allocation5 + $0x68] sm:$0xff] %vm7729, %v7708
        %7744 = vst.msk [vmem:[#allocation5 + $0x70] sm:$0xff] %vm7729, %v7710
        %7745 = vst.msk [vmem:[#allocation5 + $0x78] sm:$0xff] %vm7729, %v7712
        %v7746 = vld [vmem:[#allocation5] sm:$0xff]
        %v7747 = vld [vmem:[#allocation5 + $0x8] sm:$0xff]
        %v7748 = vld [vmem:[#allocation5 + $0x10] sm:$0xff]
        %v7749 = vld [vmem:[#allocation5 + $0x18] sm:$0xff]
        %v7750 = vld [vmem:[#allocation5 + $0x20] sm:$0xff]
        %v7751 = vld [vmem:[#allocation5 + $0x28] sm:$0xff]
        %v7752 = vld [vmem:[#allocation5 + $0x30] sm:$0xff]
        %v7753 = vld [vmem:[#allocation5 + $0x38] sm:$0xff]
        %v7754 = vld [vmem:[#allocation5 + $0x40] sm:$0xff]
        %v7755 = vld [vmem:[#allocation5 + $0x48] sm:$0xff]
        %v7756 = vld [vmem:[#allocation5 + $0x50] sm:$0xff]
        %v7757 = vld [vmem:[#allocation5 + $0x58] sm:$0xff]
        %v7758 = vld [vmem:[#allocation5 + $0x60] sm:$0xff]
        %v7759 = vld [vmem:[#allocation5 + $0x68] sm:$0xff]
        %v7760 = vld [vmem:[#allocation5 + $0x70] sm:$0xff]
        %v7761 = vld [vmem:[#allocation5 + $0x78] sm:$0xff]
        %v7762 = vld [vmem:[#allocation12] sm:$0xff]
        %v7763 = vld [vmem:[#allocation12 + $0x8] sm:$0xff]
        %v7764 = vld [vmem:[#allocation12 + $0x10] sm:$0xff]
        %v7765 = vld [vmem:[#allocation12 + $0x18] sm:$0xff]
        %v7766 = vld [vmem:[#allocation12 + $0x20] sm:$0xff]
        %v7767 = vld [vmem:[#allocation12 + $0x28] sm:$0xff]
        %v7768 = vld [vmem:[#allocation12 + $0x30] sm:$0xff]
        %v7769 = vld [vmem:[#allocation12 + $0x38] sm:$0xff]
        %v7770 = vld [vmem:[#allocation12 + $0x40] sm:$0xff]
        %v7771 = vld [vmem:[#allocation12 + $0x48] sm:$0xff]
        %v7772 = vld [vmem:[#allocation12 + $0x50] sm:$0xff]
        %v7773 = vld [vmem:[#allocation12 + $0x58] sm:$0xff]
        %v7774 = vld [vmem:[#allocation12 + $0x60] sm:$0xff]
        %v7775 = vld [vmem:[#allocation12 + $0x68] sm:$0xff]
        %v7776 = vld [vmem:[#allocation12 + $0x70] sm:$0xff]
        %v7777 = vld [vmem:[#allocation12 + $0x78] sm:$0xff]
        %v7778 = vpack.c.bf16 %v7763, %v7762
        %v7779 = vpack.c.bf16 %v7765, %v7764
        %v7780 = vpack.c.bf16 %v7767, %v7766
        %v7781 = vpack.c.bf16 %v7769, %v7768
        %v7782 = vpack.c.bf16 %v7771, %v7770
        %v7783 = vpack.c.bf16 %v7773, %v7772
        %v7784 = vpack.c.bf16 %v7775, %v7774
        %v7785 = vpack.c.bf16 %v7777, %v7776
        %v7786 = vld [vmem:[%s3] sm:$0x1]
        %v7788 = vlaneseq
        %v7789 = vshrl.u32 %v7788, 7
        %v7790 = vsub.s32 0, %v7789
        %v7791 = vrot.slane %v7786, %v7790
        %7793 = vmatprep.subr.bf16.mxu0 0
        %7794 = vmatpush1.bf16.msra.mxu0 %v7778
        %7795 = vmatprep.subr.bf16.mxu0 0
        %7796 = vmatpush1.bf16.msra.mxu0 %v7779
        %7797 = vmatprep.subr.bf16.mxu0 0
        %7798 = vmatpush1.bf16.msra.mxu0 %v7780
        %7799 = vmatprep.subr.bf16.mxu0 0
        %7800 = vmatpush1.bf16.msra.mxu0 %v7781
        %7801 = vmatprep.subr.bf16.mxu0 0
        %7802 = vmatpush1.bf16.msra.mxu0 %v7782
        %7803 = vmatprep.subr.bf16.mxu0 0
        %7804 = vmatpush1.bf16.msra.mxu0 %v7783
        %7805 = vmatprep.subr.bf16.mxu0 0
        %7806 = vmatpush1.bf16.msra.mxu0 %v7784
        %7807 = vmatprep.subr.bf16.mxu0 0
        %7808 = vmatpush1.bf16.msra.mxu0 %v7785
        %7809 = vmatprep.subr.bf16.mxu0 0
        %7810 = vmatpush1.bf16.msra.mxu0 0
        %7811 = vmatprep.subr.bf16.mxu0 0
        %7812 = vmatpush1.bf16.msra.mxu0 0
        %7813 = vmatprep.subr.bf16.mxu0 0
        %7814 = vmatpush1.bf16.msra.mxu0 0
        %7815 = vmatprep.subr.bf16.mxu0 0
        %7816 = vmatpush1.bf16.msra.mxu0 0
        %7817 = vmatprep.subr.bf16.mxu0 0
        %7818 = vmatpush1.bf16.msra.mxu0 0
        %7819 = vmatprep.subr.bf16.mxu0 0
        %7820 = vmatpush1.bf16.msra.mxu0 0
        %7821 = vmatprep.subr.bf16.mxu0 0
        %7822 = vmatpush1.bf16.msra.mxu0 0
        %7823 = vmatprep.subr.bf16.mxu0 0
        %7824 = vmatpush1.bf16.msra.mxu0 0
        %7825 = vmatprep.mubr.bf16.mxu0 0
        %7826 = vmatmul.mubr.bf16.gmra.mrb[0].mxu0 %v7746
        %v7827 = vpop.f32.mrb[0].mxu0
        %v7828 = vadd.f32 %v7791, %v7827
        %v7829 = vpop.f32.mrb[0].mxu0
        %v7830 = vpop.f32.mrb[0].mxu0
        %v7831 = vadd.f32 %v7791, %v7830
        %v7832 = vpop.f32.mrb[0].mxu0
        %7833 = vmatprep.mubr.bf16.mxu0 0
        %7834 = vmatmul.mubr.bf16.gmra.mrb[0].mxu0 %v7747
        %v7835 = vpop.f32.mrb[0].mxu0
        %v7836 = vadd.f32 %v7791, %v7835
        %v7837 = vpop.f32.mrb[0].mxu0
        %v7838 = vpop.f32.mrb[0].mxu0
        %v7839 = vadd.f32 %v7791, %v7838
        %v7840 = vpop.f32.mrb[0].mxu0
        %7841 = vmatprep.mubr.bf16.mxu0 0
        %7842 = vmatmul.mubr.bf16.gmra.mrb[0].mxu0 %v7748
        %v7843 = vpop.f32.mrb[0].mxu0
        %v7844 = vadd.f32 %v7791, %v7843
        %v7845 = vpop.f32.mrb[0].mxu0
        %v7846 = vpop.f32.mrb[0].mxu0
        %v7847 = vadd.f32 %v7791, %v7846
        %v7848 = vpop.f32.mrb[0].mxu0
        %7849 = vmatprep.mubr.bf16.mxu0 0
        %7850 = vmatmul.mubr.bf16.gmra.mrb[0].mxu0 %v7749
        %v7851 = vpop.f32.mrb[0].mxu0
        %v7852 = vadd.f32 %v7791, %v7851
        %v7853 = vpop.f32.mrb[0].mxu0
        %v7854 = vpop.f32.mrb[0].mxu0
        %v7855 = vadd.f32 %v7791, %v7854
        %v7856 = vpop.f32.mrb[0].mxu0
        %7857 = vmatprep.mubr.bf16.mxu0 0
        %7858 = vmatmul.mubr.bf16.gmra.mrb[0].mxu0 %v7750
        %v7859 = vpop.f32.mrb[0].mxu0
        %v7860 = vadd.f32 %v7791, %v7859
        %v7861 = vpop.f32.mrb[0].mxu0
        %v7862 = vpop.f32.mrb[0].mxu0
        %v7863 = vadd.f32 %v7791, %v7862
        %v7864 = vpop.f32.mrb[0].mxu0
        %7865 = vmatprep.mubr.bf16.mxu0 0
        %7866 = vmatmul.mubr.bf16.gmra.mrb[0].mxu0 %v7751
        %v7867 = vpop.f32.mrb[0].mxu0
        %v7868 = vadd.f32 %v7791, %v7867
        %v7869 = vpop.f32.mrb[0].mxu0
        %v7870 = vpop.f32.mrb[0].mxu0
        %v7871 = vadd.f32 %v7791, %v7870
        %v7872 = vpop.f32.mrb[0].mxu0
        %7873 = vmatprep.mubr.bf16.mxu0 0
        %7874 = vmatmul.mubr.bf16.gmra.mrb[0].mxu0 %v7752
        %v7875 = vpop.f32.mrb[0].mxu0
        %v7876 = vadd.f32 %v7791, %v7875
        %v7877 = vpop.f32.mrb[0].mxu0
        %v7878 = vpop.f32.mrb[0].mxu0
        %v7879 = vadd.f32 %v7791, %v7878
        %v7880 = vpop.f32.mrb[0].mxu0
        %7881 = vmatprep.mubr.bf16.mxu0 0
        %7882 = vmatmul.mubr.bf16.gmra.mrb[0].mxu0 %v7753
        %v7883 = vpop.f32.mrb[0].mxu0
        %v7884 = vadd.f32 %v7791, %v7883
        %v7885 = vpop.f32.mrb[0].mxu0
        %v7886 = vpop.f32.mrb[0].mxu0
        %v7887 = vadd.f32 %v7791, %v7886
        %v7888 = vpop.f32.mrb[0].mxu0
        %7889 = vmatprep.mubr.bf16.mxu0 0
        %7890 = vmatmul.mubr.bf16.gmra.mrb[0].mxu0 %v7754
        %v7891 = vpop.f32.mrb[0].mxu0
        %v7892 = vadd.f32 %v7791, %v7891
        %v7893 = vpop.f32.mrb[0].mxu0
        %v7894 = vpop.f32.mrb[0].mxu0
        %v7895 = vadd.f32 %v7791, %v7894
        %v7896 = vpop.f32.mrb[0].mxu0
        %7897 = vmatprep.mubr.bf16.mxu0 0
        %7898 = vmatmul.mubr.bf16.gmra.mrb[0].mxu0 %v7755
        %v7899 = vpop.f32.mrb[0].mxu0
        %v7900 = vadd.f32 %v7791, %v7899
        %v7901 = vpop.f32.mrb[0].mxu0
        %v7902 = vpop.f32.mrb[0].mxu0
        %v7903 = vadd.f32 %v7791, %v7902
        %v7904 = vpop.f32.mrb[0].mxu0
        %7905 = vmatprep.mubr.bf16.mxu0 0
        %7906 = vmatmul.mubr.bf16.gmra.mrb[0].mxu0 %v7756
        %v7907 = vpop.f32.mrb[0].mxu0
        %v7908 = vadd.f32 %v7791, %v7907
        %v7909 = vpop.f32.mrb[0].mxu0
        %v7910 = vpop.f32.mrb[0].mxu0
        %v7911 = vadd.f32 %v7791, %v7910
        %v7912 = vpop.f32.mrb[0].mxu0
        %7913 = vmatprep.mubr.bf16.mxu0 0
        %7914 = vmatmul.mubr.bf16.gmra.mrb[0].mxu0 %v7757
        %v7915 = vpop.f32.mrb[0].mxu0
        %v7916 = vadd.f32 %v7791, %v7915
        %v7917 = vpop.f32.mrb[0].mxu0
        %v7918 = vpop.f32.mrb[0].mxu0
        %v7919 = vadd.f32 %v7791, %v7918
        %v7920 = vpop.f32.mrb[0].mxu0
        %7921 = vmatprep.mubr.bf16.mxu0 0
        %7922 = vmatmul.mubr.bf16.gmra.mrb[0].mxu0 %v7758
        %v7923 = vpop.f32.mrb[0].mxu0
        %v7924 = vadd.f32 %v7791, %v7923
        %v7925 = vpop.f32.mrb[0].mxu0
        %v7926 = vpop.f32.mrb[0].mxu0
        %v7927 = vadd.f32 %v7791, %v7926
        %v7928 = vpop.f32.mrb[0].mxu0
        %7929 = vmatprep.mubr.bf16.mxu0 0
        %7930 = vmatmul.mubr.bf16.gmra.mrb[0].mxu0 %v7759
        %v7931 = vpop.f32.mrb[0].mxu0
        %v7932 = vadd.f32 %v7791, %v7931
        %v7933 = vpop.f32.mrb[0].mxu0
        %v7934 = vpop.f32.mrb[0].mxu0
        %v7935 = vadd.f32 %v7791, %v7934
        %v7936 = vpop.f32.mrb[0].mxu0
        %7937 = vmatprep.mubr.bf16.mxu0 0
        %7938 = vmatmul.mubr.bf16.gmra.mrb[0].mxu0 %v7760
        %v7939 = vpop.f32.mrb[0].mxu0
        %v7940 = vadd.f32 %v7791, %v7939
        %v7941 = vpop.f32.mrb[0].mxu0
        %v7942 = vpop.f32.mrb[0].mxu0
        %v7943 = vadd.f32 %v7791, %v7942
        %v7944 = vpop.f32.mrb[0].mxu0
        %7945 = vmatprep.mubr.bf16.mxu0 0
        %7946 = vmatmul.mubr.bf16.gmra.mrb[0].mxu0 %v7761
        %v7947 = vpop.f32.mrb[0].mxu0
        %v7948 = vadd.f32 %v7791, %v7947
        %v7949 = vpop.f32.mrb[0].mxu0
        %v7950 = vpop.f32.mrb[0].mxu0
        %v7951 = vadd.f32 %v7791, %v7950
        %v7952 = vpop.f32.mrb[0].mxu0
        %7953 = vdwg.mxu0
        %7954 = vst [vmem:[%s328] sm:$0xff] %v7828
        %7955 = vst [vmem:[%s328 + $0x8] sm:$0xff] %v7831
        %7956 = vst [vmem:[%s328 + $0x10] sm:$0xff] %v7836
        %7957 = vst [vmem:[%s328 + $0x18] sm:$0xff] %v7839
        %7958 = vst [vmem:[%s328 + $0x20] sm:$0xff] %v7844
        %7959 = vst [vmem:[%s328 + $0x28] sm:$0xff] %v7847
        %7960 = vst [vmem:[%s328 + $0x30] sm:$0xff] %v7852
        %7961 = vst [vmem:[%s328 + $0x38] sm:$0xff] %v7855
        %7962 = vst [vmem:[%s328 + $0x40] sm:$0xff] %v7860
        %7963 = vst [vmem:[%s328 + $0x48] sm:$0xff] %v7863
        %7964 = vst [vmem:[%s328 + $0x50] sm:$0xff] %v7868
        %7965 = vst [vmem:[%s328 + $0x58] sm:$0xff] %v7871
        %7966 = vst [vmem:[%s328 + $0x60] sm:$0xff] %v7876
        %7967 = vst [vmem:[%s328 + $0x68] sm:$0xff] %v7879
        %7968 = vst [vmem:[%s328 + $0x70] sm:$0xff] %v7884
        %7969 = vst [vmem:[%s328 + $0x78] sm:$0xff] %v7887
        %7970 = vst [vmem:[%s328 + $0x80] sm:$0xff] %v7892
        %7971 = vst [vmem:[%s328 + $0x88] sm:$0xff] %v7895
        %7972 = vst [vmem:[%s328 + $0x90] sm:$0xff] %v7900
        %7973 = vst [vmem:[%s328 + $0x98] sm:$0xff] %v7903
        %7974 = vst [vmem:[%s328 + $0xa0] sm:$0xff] %v7908
        %7975 = vst [vmem:[%s328 + $0xa8] sm:$0xff] %v7911
        %7976 = vst [vmem:[%s328 + $0xb0] sm:$0xff] %v7916
        %7977 = vst [vmem:[%s328 + $0xb8] sm:$0xff] %v7919
        %7978 = vst [vmem:[%s328 + $0xc0] sm:$0xff] %v7924
        %7979 = vst [vmem:[%s328 + $0xc8] sm:$0xff] %v7927
        %7980 = vst [vmem:[%s328 + $0xd0] sm:$0xff] %v7932
        %7981 = vst [vmem:[%s328 + $0xd8] sm:$0xff] %v7935
        %7982 = vst [vmem:[%s328 + $0xe0] sm:$0xff] %v7940
        %7983 = vst [vmem:[%s328 + $0xe8] sm:$0xff] %v7943
        %7984 = vst [vmem:[%s328 + $0xf0] sm:$0xff] %v7948
        %7985 = vst [vmem:[%s328 + $0xf8] sm:$0xff] %v7951
        %s7986 = sand.u32 %s165, 1
        %s7987 = scalar_lea.sflag [#allocation8], %s7986
        %s7988 = sand.u32 %s165, 1
        %s7989 = smul.addr %s7988, 256
        %s7990 = scalar_lea.vmem [#allocation16], %s7989
        // Predicated region
        $region65: #{tpu_custom_call.1} parent=43 // pred_check
          %p7991 = pneg %p175
        $region66: #{tpu_custom_call.1} parent=43 // pred_check_branch
          %7993 = sbr.rel (%p7991) target = $region68
        $region67: #{tpu_custom_call.1} parent=43 // pred_region
          %s7994 = smul.u32 8, %s26
          %s7996 = ssub.s32 4096, 4096
          %7997 = vsyncadd %s7987, %s7996
          %s7998 = smul.addr %s7994, 4
          %s7999 = smul.addr %s7998, 128
          %s8000 = scalar_lea.hbm %s6, %s7999
          %s8001 = sshll.u32 %s7990, 4
          %s8002 = int_to_ptr.vmem [resolvable:$true] %s8001
          %8007 = dma.vmem_to_hbm [thread:$0]  %s8002, 4096, %s8000, %s7987, 128, 128, 8
        $region68: #{tpu_custom_call.1} parent=43 // pred_fallthru
          _
      $region44: #{tpu_custom_call.1} parent=5 // pred_fallthru
        _
      %p8008 = scmp.le.s32.totalorder 2, %s21
      // Predicated region
      $region69: #{tpu_custom_call.1} parent=5 // pred_check
        %p8009 = pneg %p8008
      $region70: #{tpu_custom_call.1} parent=5 // pred_check_branch
        %8011 = sbr.rel (%p8009) target = $region72
      $region71: #{tpu_custom_call.1} parent=5 // pred_region
        %s8012 = ssub.s32 %s21, 2
        // Predicated region
        $region73: #{tpu_custom_call.1} parent=71 // pred_check
          %p8013 = pneg %p181
        $region74: #{tpu_custom_call.1} parent=71 // pred_check_branch
          %8015 = sbr.rel (%p8013) target = $region76
        $region75: #{tpu_custom_call.1} parent=71 // pred_region
          %s8016 = sand.u32 %s166, 1
          %s8017 = scalar_lea.sflag [#allocation8], %s8016
          %s8018 = sand.u32 %s166, 1
          %s8019 = smul.addr %s8018, 256
          %s8020 = scalar_lea.vmem [#allocation16], %s8019
          %8021 = dma.done %s8017, 4096
        $region76: #{tpu_custom_call.1} parent=71 // pred_fallthru
          _
      $region72: #{tpu_custom_call.1} parent=5 // pred_fallthru
        _
    $region6: #{tpu_custom_call.1} parent=1 // loop_footer
      %s25 = sadd.s32 1, %s21
    $region7: #{tpu_custom_call.1} parent=1 // loop_footer_branch
      %20 = sbr.rel target = $region3
    $region8: #{tpu_custom_call.1} parent=1 // loop_exit
      _
    %8022 = vsyncpa [#allocation7], 1
    %s8023 = scalar_lea.sflag [#allocation7], 1
    %8024 = vsyncpa %s8023, 1
    %8025 = vsyncpa [#allocation11], 1
    %8026 = vsyncpa [#allocation15], 1
    %8027 = vsyncpa [#allocation8], 1
    %s8028 = scalar_lea.sflag [#allocation8], 1
    %8029 = vsyncpa %s8028, 1
    %8030 = vsyncpa [#allocation9], 1
    %s8031 = scalar_lea.sflag [#allocation9], 1
    %8032 = vsyncpa %s8031, 1

</llo_original>
